<compile_context>
chip_gen: v7x
topology: tpu7x:2x2x1
jax: 0.10.0
libtpu: 0.0.40
codegen_flags: <defaults>
</compile_context>

<pallas_src>
import functools
import math

import jax
import jax.numpy as jnp
from jax.experimental import pallas as pl
from jax.experimental.pallas import tpu as pltpu

# ----------------------------- config (small synthetic GPT-2) ----------------
VOCAB = 128
HIDDEN = 32
N_HEAD = 4
N_LAYER = 2
HEAD_DIM = HIDDEN // N_HEAD
MLP_DIM = 4 * HIDDEN
IMG_DIM = 512
NUM_PREFIX = 4
MAX_POS = 32          # padded sequence length T (prefix + text + pad) -> H*B*T lane dense
LN_EPS = 1e-5
NEG_INF = -1e9

# row layout of the packed (N_VEC, 1, HIDDEN) vector-parameter slab
VEC_PER_LAYER = 9
(V_LN1G, V_LN1B, V_BQ, V_BK, V_BV, V_BO, V_LN2G, V_LN2B, V_BPROJ) = range(VEC_PER_LAYER)
V_LNFG = VEC_PER_LAYER * N_LAYER
V_LNFB = V_LNFG + 1
N_VEC = V_LNFB + 1


# ----------------------------- in-kernel helper -------------------------------
def _layer_norm(v, g, b):
    mu = jnp.mean(v, axis=-1, keepdims=True)
    var = jnp.mean((v - mu) ** 2, axis=-1, keepdims=True)
    return (v - mu) * jax.lax.rsqrt(var + LN_EPS) * g + b


# ----------------------------- fused forward kernel ---------------------------
def _fused_caption_kernel(ids_ref, imgbd_ref, bias_ref, pos_ref, scat_ref,
                          bdm_ref, grp_ref, mapw_ref, wte_ref, wtet_ref,
                          wattn_ref, wfc_ref, wproj_ref, vec_ref, bfc_ref,
                          logits_ref, loss_ref):
    f32 = jnp.float32
    BT = pos_ref.shape[0]                      # B * T (64)
    V, D = wte_ref.shape                       # (128, 32)
    scale = 1.0 / math.sqrt(HEAD_DIM)

    tok_col = ids_ref[0]                       # (BT, 1) token id, -1 = no token (prefix/pad)
    lab_col = ids_ref[1]                       # (BT, 1) shifted label, -100 = ignore

    # ---------------- embeddings ----------------------------------------------
    vid = jax.lax.broadcasted_iota(jnp.int32, (BT, V), 1)
    oh_tok = (vid == tok_col).astype(f32)                                      # (BT, V)
    tok_emb = jnp.dot(oh_tok, wte_ref[...], preferred_element_type=f32)        # (BT, D)

    # image prefix: block-diag image slab @ restructured mapper weight, scattered to rows
    pre_rows = jnp.dot(imgbd_ref[...], mapw_ref[...], preferred_element_type=f32)   # (B*P, D)
    pre_flat = jnp.dot(scat_ref[...], pre_rows, preferred_element_type=f32)         # (BT, D)

    # pos_ref already holds wpe[t] + mapper_b chunk on prefix rows
    h = tok_emb + pre_flat + pos_ref[...]                                      # (BT, D)

    bias = bias_ref[...]                       # (BT, H*BT) causal+pad+cross-batch, (h,b,t) cols
    bdm = bdm_ref[...]                         # (H*BT, D)  head feature mask
    grp = grp_ref[...]                         # (H*BT, H*B) (head,batch)-group membership

    # ---------------- GPT-2 transformer blocks --------------------------------
    for l in range(N_LAYER):
        base = l * VEC_PER_LAYER
        hn = _layer_norm(h, vec_ref[base + V_LN1G], vec_ref[base + V_LN1B])
        q = jnp.dot(hn, wattn_ref[4 * l + 0], preferred_element_type=f32) + vec_ref[base + V_BQ]
        k = jnp.dot(hn, wattn_ref[4 * l + 1], preferred_element_type=f32) + vec_ref[base + V_BK]
        v = jnp.dot(hn, wattn_ref[4 * l + 2], preferred_element_type=f32) + vec_ref[base + V_BV]

        # block-diagonal packed K / V over rows ordered (head, batch, time)
        k_bd = jnp.concatenate([k] * N_HEAD, axis=0) * bdm                     # (H*BT, D)
        v_bd = jnp.concatenate([v] * N_HEAD, axis=0) * bdm                     # (H*BT, D)

        s = jax.lax.dot_general(q, k_bd, (((1,), (1,)), ((), ())),
                                preferred_element_type=f32) * scale + bias     # (BT, H*BT)
        # subtracting the global row max is a per-row constant -> valid for the
        # per-(head,batch)-block softmax; own-batch prefix keys are always attendable.
        s = s - jnp.max(s, axis=-1, keepdims=True)
        p = jnp.exp(s)                                                         # masked cols -> 0
        psum = jnp.dot(p, grp, preferred_element_type=f32)                     # (BT, H*B)
        denom = jax.lax.dot_general(psum, grp, (((1,), (1,)), ((), ())),
                                    preferred_element_type=f32)                # (BT, H*BT)
        # cross-batch groups have denom == 0 and p == 0; clamp so 0 * (1/eps) stays 0.
        p = p * pl.reciprocal(jnp.maximum(denom, 1e-20), approx=True)
        ctx = jnp.dot(p, v_bd, preferred_element_type=f32)                     # (BT, D) heads concat'd
        h = h + jnp.dot(ctx, wattn_ref[4 * l + 3],
                        preferred_element_type=f32) + vec_ref[base + V_BO]

        hm = _layer_norm(h, vec_ref[base + V_LN2G], vec_ref[base + V_LN2B])
        f = jnp.dot(hm, wfc_ref[l], preferred_element_type=f32) + bfc_ref[l]   # (BT, MLP)
        f = 0.5 * f * (1.0 + jnp.tanh(math.sqrt(2.0 / math.pi)
                                      * (f + 0.044715 * f ** 3)))              # gelu_new
        h = h + jnp.dot(f, wproj_ref[l], preferred_element_type=f32) + vec_ref[base + V_BPROJ]

    # ---------------- tied lm_head (lane-dense 128-wide output) ---------------
    hf = _layer_norm(h, vec_ref[V_LNFG], vec_ref[V_LNFB])
    logits = jnp.dot(hf, wtet_ref[...], preferred_element_type=f32)            # (BT, V)
    logits_ref[...] = logits

    # ---------------- shifted cross-entropy, full rows, validity-masked -------
    oh_lab = (vid == lab_col).astype(f32)                                      # 0-rows where -100
    m = jnp.max(logits, axis=-1, keepdims=True)
    lse = m + jnp.log(jnp.sum(jnp.exp(logits - m), axis=-1, keepdims=True))
    tgt = jnp.sum(oh_lab * logits, axis=-1, keepdims=True)
    valid = jnp.sum(oh_lab, axis=-1, keepdims=True)                            # 1 if label valid
    nll = (lse - tgt) * valid
    tot = jnp.sum(nll, axis=0, keepdims=True)                                  # (1, 1)
    cnt = jnp.sum(valid, axis=0, keepdims=True)                                # (1, 1)
    loss_ref[...] = tot / jnp.maximum(cnt, 1.0)


# ----------------------------- pallas_call wrapper ----------------------------
def _full_spec(a):
    nd = a.ndim
    return pl.BlockSpec(a.shape, lambda i, _nd=nd: (0,) * _nd)


@functools.partial(jax.jit, static_argnames=("return_loss",))
def caption_model_forward(params, input_ids, image_feature, attention_mask=None,
                          return_loss=True):
    B, T_text = input_ids.shape
    T_real = NUM_PREFIX + T_text
    T = MAX_POS                         # pad so B*T = 64, H*B*T = 256 (lane/sublane dense)
    assert T_real <= T
    input_ids = input_ids.astype(jnp.int32)

    # ---- token ids (-1 = no token) and shifted labels (-100 = ignore) -------
    tok = jnp.concatenate([jnp.full((B, NUM_PREFIX), -1, jnp.int32), input_ids,
                           jnp.full((B, T - T_real), -1, jnp.int32)], axis=1)          # (B, T)
    labels = jnp.concatenate([jnp.full((B, NUM_PREFIX), -100, jnp.int32),
                              input_ids], axis=1)                                      # (B, T_real)
    shifted = jnp.concatenate([labels[:, 1:],
                               jnp.full((B, 1 + T - T_real), -100, jnp.int32)],
                              axis=1)                                                  # (B, T)
    ids = jnp.stack([tok.reshape(B * T, 1), shifted.reshape(B * T, 1)], axis=0)        # (2, B*T, 1)

    # ---- key mask (prefix always attendable, artificial pad rows never) -----
    if attention_mask is None:
        text_mask = jnp.ones((B, T_text), jnp.float32)
    else:
        text_mask = attention_mask.astype(jnp.float32)
    key_ok = jnp.concatenate([jnp.ones((B, NUM_PREFIX), jnp.float32), text_mask,
                              jnp.zeros((B, T - T_real), jnp.float32)], axis=1) > 0.5  # (B, T)

    # ---- additive attention bias; key columns ordered (head, batch, key_pos) -
    bidx = jnp.arange(B)
    causal = jnp.arange(T)[:, None] >= jnp.arange(T)[None, :]                          # (T, T)
    allowed = ((bidx[:, None, None, None] == bidx[None, None, :, None])
               & causal[None, :, None, :]
               & key_ok[None, None, :, :])                                             # (B,T,B,T)
    allowed = jnp.broadcast_to(allowed[:, :, None, :, :], (B, T, N_HEAD, B, T))
    attn_bias = jnp.where(allowed, 0.0, NEG_INF).reshape(
        B * T, N_HEAD * B * T).astype(jnp.float32)                                     # (B*T, H*B*T)

    # ---- static block-diagonal helpers (compile-time constants of shapes) ----
    r = jnp.arange(N_HEAD * B * T)
    bd_mask = ((r[:, None] // (B * T)) ==
               (jnp.arange(HIDDEN)[None, :] // HEAD_DIM)).astype(jnp.float32)          # (H*B*T, D)
    grp = ((r[:, None] // T) ==
           jnp.arange(N_HEAD * B)[None, :]).astype(jnp.float32)                        # (H*B*T, H*B)
    rr = jnp.arange(B * T)
    cc = jnp.arange(B * NUM_PREFIX)
    scat = (((rr[:, None] // T) == (cc[None, :] // NUM_PREFIX))
            & ((rr[:, None] % T) == (cc[None, :] % NUM_PREFIX))).astype(jnp.float32)   # (B*T, B*P)

    # ---- image features as a (B*P, P*IMG) block-diagonal slab ----------------
    eye_p = jnp.eye(NUM_PREFIX, dtype=jnp.float32)
    img_bd = (eye_p[None, :, :, None] *
              image_feature.astype(jnp.float32)[:, None, None, :]).reshape(
        B * NUM_PREFIX, NUM_PREFIX * IMG_DIM)

    # ---- positional slab = wpe (+ mapper bias on prefix rows), tiled over batch
    mb = params['mapper_b'].reshape(NUM_PREFIX, HIDDEN)
    pos_one = params['wpe'][:T, :] + jnp.pad(mb, ((0, T - NUM_PREFIX), (0, 0)))
    pos = jnp.tile(pos_one, (B, 1))                                                    # (B*T, D)

    args = [ids, img_bd, attn_bias, pos, scat, bd_mask, grp,
            params['mapper_w_r'], params['wte'], params['wte_t'],
            params['w_attn'], params['w_fc'], params['w_proj'],
            params['vec_d'], params['b_fc']]

    logits_flat, loss = pl.pallas_call(
        _fused_caption_kernel,
        out_shape=(jax.ShapeDtypeStruct((B * T, VOCAB), jnp.float32),
                   jax.ShapeDtypeStruct((1, 1), jnp.float32)),
        grid=(1,),
        in_specs=[_full_spec(a) for a in args],
        out_specs=(pl.BlockSpec((B * T, VOCAB), lambda i: (0, 0)),
                   pl.BlockSpec((1, 1), lambda i: (0, 0))),
        compiler_params=pltpu.CompilerParams(dimension_semantics=("arbitrary",)),
    )(*args)

    logits = logits_flat.reshape(B, T, VOCAB)[:, :T_real, :]
    loss_out = loss[0, 0] if return_loss else None
    return loss_out, logits


# ----------------------------- parameters ------------------------------------
def init_params(key):
    ks = jax.random.split(key, 4 + N_LAYER)

    def nrm(k, shape, scale=0.02):
        return scale * jax.random.normal(k, shape, dtype=jnp.float32)

    wte = nrm(ks[0], (VOCAB, HIDDEN))
    mapper_w = nrm(ks[2], (IMG_DIM, NUM_PREFIX * HIDDEN))
    params = {
        'wte': wte,
        'wte_t': jnp.transpose(wte),               # tied lm_head weight, transposed once at init
        'wpe': nrm(ks[1], (MAX_POS, HIDDEN)),
        # LinearMapper(512, num_prefix, prefix_hidden_size=HIDDEN) modeled as a single
        # Linear(512 -> num_prefix * HIDDEN).
        'mapper_w': mapper_w,
        'mapper_b': jnp.zeros((1, NUM_PREFIX * HIDDEN), jnp.float32),
        # restructured once so the prefix rows fall out of one matmul:
        # mapper_w_r[(p, i), d] = mapper_w[i, p*D + d]
        'mapper_w_r': mapper_w.reshape(IMG_DIM, NUM_PREFIX, HIDDEN)
                              .transpose(1, 0, 2).reshape(NUM_PREFIX * IMG_DIM, HIDDEN),
    }

    w_attn, w_fc, w_proj, b_fc, vec_rows = [], [], [], [], []
    ones = jnp.ones((1, HIDDEN), jnp.float32)
    zeros = jnp.zeros((1, HIDDEN), jnp.float32)
    for l in range(N_LAYER):
        kk = jax.random.split(ks[3 + l], 6)
        w_attn += [nrm(kk[0], (HIDDEN, HIDDEN)),   # w_q
                   nrm(kk[1], (HIDDEN, HIDDEN)),   # w_k
                   nrm(kk[2], (HIDDEN, HIDDEN)),   # w_v
                   nrm(kk[3], (HIDDEN, HIDDEN))]   # w_o
        w_fc.append(nrm(kk[4], (HIDDEN, MLP_DIM)))
        w_proj.append(nrm(kk[5], (MLP_DIM, HIDDEN)))
        b_fc.append(jnp.zeros((1, MLP_DIM), jnp.float32))
        # [ln1_g, ln1_b, b_q, b_k, b_v, b_o, ln2_g, ln2_b, b_proj]
        vec_rows += [ones, zeros, zeros, zeros, zeros, zeros, ones, zeros, zeros]
    vec_rows += [ones, zeros]                      # ln_f gain / bias

    params['w_attn'] = jnp.stack(w_attn, axis=0)   # (4*L, D, D)  role = 4*l + {q,k,v,o}
    params['w_fc'] = jnp.stack(w_fc, axis=0)       # (L, D, 4D)
    params['w_proj'] = jnp.stack(w_proj, axis=0)   # (L, 4D, D)
    params['b_fc'] = jnp.stack(b_fc, axis=0)       # (L, 1, 4D)
    params['vec_d'] = jnp.stack(vec_rows, axis=0)  # (N_VEC, 1, D)
    return params


# ----------------------------- main -------------------------------------------
if __name__ == "__main__":
    key = jax.random.PRNGKey(0)
    k_param, k_ids, k_img = jax.random.split(key, 3)

    params = init_params(k_param)

    B, T_TEXT = 2, 8
    input_ids = jax.random.randint(k_ids, (B, T_TEXT), 0, VOCAB, dtype=jnp.int32)
    image_feature = jax.random.normal(k_img, (B, IMG_DIM), dtype=jnp.float32)
    attention_mask = jnp.ones((B, T_TEXT), jnp.float32)

    loss, logits = caption_model_forward(params, input_ids, image_feature,
                                         attention_mask, return_loss=True)
    jax.block_until_ready((loss, logits))

    assert logits.shape == (B, NUM_PREFIX + T_TEXT, VOCAB)
    assert loss.shape == ()
    assert bool(jnp.isfinite(loss))
    print("KERNEL_OK")
</pallas_src>

<mosaic_0001>
module attributes {stable_mosaic.version = 11 : i64} {
  func.func @_fused_caption_kernel(%arg0: i32, %arg1: memref<2x64x1xi32, #tpu.memory_space<vmem>>, %arg2: memref<8x2048xf32, #tpu.memory_space<vmem>>, %arg3: memref<64x256xf32, #tpu.memory_space<vmem>>, %arg4: memref<64x32xf32, #tpu.memory_space<vmem>>, %arg5: memref<64x8xf32, #tpu.memory_space<vmem>>, %arg6: memref<256x32xf32, #tpu.memory_space<vmem>>, %arg7: memref<256x8xf32, #tpu.memory_space<vmem>>, %arg8: memref<2048x32xf32, #tpu.memory_space<vmem>>, %arg9: memref<128x32xf32, #tpu.memory_space<vmem>>, %arg10: memref<32x128xf32, #tpu.memory_space<vmem>>, %arg11: memref<8x32x32xf32, #tpu.memory_space<vmem>>, %arg12: memref<2x32x128xf32, #tpu.memory_space<vmem>>, %arg13: memref<2x128x32xf32, #tpu.memory_space<vmem>>, %arg14: memref<20x1x32xf32, #tpu.memory_space<vmem>>, %arg15: memref<2x1x128xf32, #tpu.memory_space<vmem>>, %arg16: memref<64x128xf32, #tpu.memory_space<vmem>>, %arg17: memref<1x1xf32, #tpu.memory_space<vmem>>) attributes {dimension_semantics = [#tpu.dimension_semantics<arbitrary>], iteration_bounds = array<i64: 1>, scalar_prefetch = 0 : i64, scratch_operands = 0 : i64, tpu.core_type = #tpu.core_type<tc>, window_params = [{pipeline_mode = #tpu.pipeline_mode<synchronous>, transform_indices = @transform_0, window_bounds = array<i64: 2, 64, 1>}, {pipeline_mode = #tpu.pipeline_mode<synchronous>, transform_indices = @transform_1, window_bounds = array<i64: 8, 2048>}, {pipeline_mode = #tpu.pipeline_mode<synchronous>, transform_indices = @transform_2, window_bounds = array<i64: 64, 256>}, {pipeline_mode = #tpu.pipeline_mode<synchronous>, transform_indices = @transform_3, window_bounds = array<i64: 64, 32>}, {pipeline_mode = #tpu.pipeline_mode<synchronous>, transform_indices = @transform_4, window_bounds = array<i64: 64, 8>}, {pipeline_mode = #tpu.pipeline_mode<synchronous>, transform_indices = @transform_5, window_bounds = array<i64: 256, 32>}, {pipeline_mode = #tpu.pipeline_mode<synchronous>, transform_indices = @transform_6, window_bounds = array<i64: 256, 8>}, {pipeline_mode = #tpu.pipeline_mode<synchronous>, transform_indices = @transform_7, window_bounds = array<i64: 2048, 32>}, {pipeline_mode = #tpu.pipeline_mode<synchronous>, transform_indices = @transform_8, window_bounds = array<i64: 128, 32>}, {pipeline_mode = #tpu.pipeline_mode<synchronous>, transform_indices = @transform_9, window_bounds = array<i64: 32, 128>}, {pipeline_mode = #tpu.pipeline_mode<synchronous>, transform_indices = @transform_10, window_bounds = array<i64: 8, 32, 32>}, {pipeline_mode = #tpu.pipeline_mode<synchronous>, transform_indices = @transform_11, window_bounds = array<i64: 2, 32, 128>}, {pipeline_mode = #tpu.pipeline_mode<synchronous>, transform_indices = @transform_12, window_bounds = array<i64: 2, 128, 32>}, {pipeline_mode = #tpu.pipeline_mode<synchronous>, transform_indices = @transform_13, window_bounds = array<i64: 20, 1, 32>}, {pipeline_mode = #tpu.pipeline_mode<synchronous>, transform_indices = @transform_14, window_bounds = array<i64: 2, 1, 128>}, {pipeline_mode = #tpu.pipeline_mode<synchronous>, transform_indices = @transform_15, window_bounds = array<i64: 64, 128>}, {pipeline_mode = #tpu.pipeline_mode<synchronous>, transform_indices = @transform_16, window_bounds = array<i64: 1, 1>}]} {
    %c0 = arith.constant 0 : index
    %c0_0 = arith.constant 0 : index
    %c0_1 = arith.constant 0 : index
    %0 = vector.load %arg1[%c0, %c0_0, %c0_1] : memref<2x64x1xi32, #tpu.memory_space<vmem>>, vector<1x64x1xi32>
    %1 = vector.shape_cast %0 : vector<1x64x1xi32> to vector<64x1xi32>
    %c1 = arith.constant 1 : index
    %c0_2 = arith.constant 0 : index
    %c0_3 = arith.constant 0 : index
    %2 = vector.load %arg1[%c1, %c0_2, %c0_3] : memref<2x64x1xi32, #tpu.memory_space<vmem>>, vector<1x64x1xi32>
    %3 = vector.shape_cast %2 : vector<1x64x1xi32> to vector<64x1xi32>
    %4 = tpu.iota {dimensions = array<i32: 1>} : vector<64x128xi32>
    %5 = vector.broadcast %1 : vector<64x1xi32> to vector<64x128xi32>
    %6 = arith.cmpi eq, %4, %5 : vector<64x128xi32>
    %7 = arith.extui %6 : vector<64x128xi1> to vector<64x128xi32>
    %8 = arith.sitofp %7 : vector<64x128xi32> to vector<64x128xf32>
    %c0_4 = arith.constant 0 : index
    %c0_5 = arith.constant 0 : index
    %9 = vector.load %arg9[%c0_4, %c0_5] : memref<128x32xf32, #tpu.memory_space<vmem>>, vector<128x32xf32>
    %cst = arith.constant dense<0.000000e+00> : vector<64x32xf32>
    %10 = tpu.matmul %8, %9, %cst {dimension_numbers = #tpu.dot_dimension_numbers<[1], [0], [0], [1], [0, 0, 1, 1], [], []>} : vector<64x128xf32>, vector<128x32xf32>, vector<64x32xf32> -> vector<64x32xf32>
    %c0_6 = arith.constant 0 : index
    %c0_7 = arith.constant 0 : index
    %11 = vector.load %arg2[%c0_6, %c0_7] : memref<8x2048xf32, #tpu.memory_space<vmem>>, vector<8x2048xf32>
    %c0_8 = arith.constant 0 : index
    %c0_9 = arith.constant 0 : index
    %12 = vector.load %arg8[%c0_8, %c0_9] : memref<2048x32xf32, #tpu.memory_space<vmem>>, vector<2048x32xf32>
    %cst_10 = arith.constant dense<0.000000e+00> : vector<8x32xf32>
    %13 = tpu.matmul %11, %12, %cst_10 {dimension_numbers = #tpu.dot_dimension_numbers<[1], [0], [0], [1], [0, 0, 1, 1], [], []>} : vector<8x2048xf32>, vector<2048x32xf32>, vector<8x32xf32> -> vector<8x32xf32>
    %c0_11 = arith.constant 0 : index
    %c0_12 = arith.constant 0 : index
    %14 = vector.load %arg5[%c0_11, %c0_12] : memref<64x8xf32, #tpu.memory_space<vmem>>, vector<64x8xf32>
    %cst_13 = arith.constant dense<0.000000e+00> : vector<64x32xf32>
    %15 = tpu.matmul %14, %13, %cst_13 {dimension_numbers = #tpu.dot_dimension_numbers<[1], [0], [0], [1], [0, 0, 1, 1], [], []>} : vector<64x8xf32>, vector<8x32xf32>, vector<64x32xf32> -> vector<64x32xf32>
    %16 = arith.addf %10, %15 : vector<64x32xf32>
    %c0_14 = arith.constant 0 : index
    %c0_15 = arith.constant 0 : index
    %17 = vector.load %arg4[%c0_14, %c0_15] : memref<64x32xf32, #tpu.memory_space<vmem>>, vector<64x32xf32>
    %18 = arith.addf %16, %17 : vector<64x32xf32>
    %c0_16 = arith.constant 0 : index
    %c0_17 = arith.constant 0 : index
    %19 = vector.load %arg3[%c0_16, %c0_17] : memref<64x256xf32, #tpu.memory_space<vmem>>, vector<64x256xf32>
    %c0_18 = arith.constant 0 : index
    %c0_19 = arith.constant 0 : index
    %20 = vector.load %arg6[%c0_18, %c0_19] : memref<256x32xf32, #tpu.memory_space<vmem>>, vector<256x32xf32>
    %c0_20 = arith.constant 0 : index
    %c0_21 = arith.constant 0 : index
    %21 = vector.load %arg7[%c0_20, %c0_21] : memref<256x8xf32, #tpu.memory_space<vmem>>, vector<256x8xf32>
    %c0_22 = arith.constant 0 : index
    %c0_23 = arith.constant 0 : index
    %c0_24 = arith.constant 0 : index
    %22 = vector.load %arg14[%c0_22, %c0_23, %c0_24] : memref<20x1x32xf32, #tpu.memory_space<vmem>>, vector<1x1x32xf32>
    %23 = vector.shape_cast %22 : vector<1x1x32xf32> to vector<1x32xf32>
    %c1_25 = arith.constant 1 : index
    %c0_26 = arith.constant 0 : index
    %c0_27 = arith.constant 0 : index
    %24 = vector.load %arg14[%c1_25, %c0_26, %c0_27] : memref<20x1x32xf32, #tpu.memory_space<vmem>>, vector<1x1x32xf32>
    %25 = vector.shape_cast %24 : vector<1x1x32xf32> to vector<1x32xf32>
    %cst_28 = arith.constant dense<0.000000e+00> : vector<64xf32>
    %26 = vector.multi_reduction <add>, %18, %cst_28 [1] : vector<64x32xf32> to vector<64xf32>
    %27 = vector.shape_cast %26 : vector<64xf32> to vector<64x1xf32>
    %cst_29 = arith.constant 3.200000e+01 : f32
    %28 = vector.broadcast %cst_29 : f32 to vector<64x1xf32>
    %29 = arith.divf %27, %28 : vector<64x1xf32>
    %30 = vector.broadcast %29 : vector<64x1xf32> to vector<64x32xf32>
    %31 = arith.subf %18, %30 : vector<64x32xf32>
    %32 = arith.mulf %31, %31 : vector<64x32xf32>
    %cst_30 = arith.constant dense<0.000000e+00> : vector<64xf32>
    %33 = vector.multi_reduction <add>, %32, %cst_30 [1] : vector<64x32xf32> to vector<64xf32>
    %34 = vector.shape_cast %33 : vector<64xf32> to vector<64x1xf32>
    %cst_31 = arith.constant 3.200000e+01 : f32
    %35 = vector.broadcast %cst_31 : f32 to vector<64x1xf32>
    %36 = arith.divf %34, %35 : vector<64x1xf32>
    %37 = vector.broadcast %29 : vector<64x1xf32> to vector<64x32xf32>
    %38 = arith.subf %18, %37 : vector<64x32xf32>
    %cst_32 = arith.constant 9.99999974E-6 : f32
    %39 = vector.broadcast %cst_32 : f32 to vector<64x1xf32>
    %40 = arith.addf %36, %39 : vector<64x1xf32>
    %41 = math.rsqrt %40 : vector<64x1xf32>
    %42 = vector.broadcast %41 : vector<64x1xf32> to vector<64x32xf32>
    %43 = arith.mulf %38, %42 : vector<64x32xf32>
    %44 = vector.broadcast %23 : vector<1x32xf32> to vector<64x32xf32>
    %45 = arith.mulf %43, %44 : vector<64x32xf32>
    %46 = vector.broadcast %25 : vector<1x32xf32> to vector<64x32xf32>
    %47 = arith.addf %45, %46 : vector<64x32xf32>
    %c0_33 = arith.constant 0 : index
    %c0_34 = arith.constant 0 : index
    %c0_35 = arith.constant 0 : index
    %48 = vector.load %arg11[%c0_33, %c0_34, %c0_35] : memref<8x32x32xf32, #tpu.memory_space<vmem>>, vector<1x32x32xf32>
    %49 = vector.shape_cast %48 : vector<1x32x32xf32> to vector<32x32xf32>
    %cst_36 = arith.constant dense<0.000000e+00> : vector<64x32xf32>
    %50 = tpu.matmul %47, %49, %cst_36 {dimension_numbers = #tpu.dot_dimension_numbers<[1], [0], [0], [1], [0, 0, 1, 1], [], []>} : vector<64x32xf32>, vector<32x32xf32>, vector<64x32xf32> -> vector<64x32xf32>
    %c2 = arith.constant 2 : index
    %c0_37 = arith.constant 0 : index
    %c0_38 = arith.constant 0 : index
    %51 = vector.load %arg14[%c2, %c0_37, %c0_38] : memref<20x1x32xf32, #tpu.memory_space<vmem>>, vector<1x1x32xf32>
    %52 = vector.shape_cast %51 : vector<1x1x32xf32> to vector<1x32xf32>
    %53 = vector.broadcast %52 : vector<1x32xf32> to vector<64x32xf32>
    %54 = arith.addf %50, %53 : vector<64x32xf32>
    %c1_39 = arith.constant 1 : index
    %c0_40 = arith.constant 0 : index
    %c0_41 = arith.constant 0 : index
    %55 = vector.load %arg11[%c1_39, %c0_40, %c0_41] : memref<8x32x32xf32, #tpu.memory_space<vmem>>, vector<1x32x32xf32>
    %56 = vector.shape_cast %55 : vector<1x32x32xf32> to vector<32x32xf32>
    %cst_42 = arith.constant dense<0.000000e+00> : vector<64x32xf32>
    %57 = tpu.matmul %47, %56, %cst_42 {dimension_numbers = #tpu.dot_dimension_numbers<[1], [0], [0], [1], [0, 0, 1, 1], [], []>} : vector<64x32xf32>, vector<32x32xf32>, vector<64x32xf32> -> vector<64x32xf32>
    %c3 = arith.constant 3 : index
    %c0_43 = arith.constant 0 : index
    %c0_44 = arith.constant 0 : index
    %58 = vector.load %arg14[%c3, %c0_43, %c0_44] : memref<20x1x32xf32, #tpu.memory_space<vmem>>, vector<1x1x32xf32>
    %59 = vector.shape_cast %58 : vector<1x1x32xf32> to vector<1x32xf32>
    %60 = vector.broadcast %59 : vector<1x32xf32> to vector<64x32xf32>
    %61 = arith.addf %57, %60 : vector<64x32xf32>
    %c2_45 = arith.constant 2 : index
    %c0_46 = arith.constant 0 : index
    %c0_47 = arith.constant 0 : index
    %62 = vector.load %arg11[%c2_45, %c0_46, %c0_47] : memref<8x32x32xf32, #tpu.memory_space<vmem>>, vector<1x32x32xf32>
    %63 = vector.shape_cast %62 : vector<1x32x32xf32> to vector<32x32xf32>
    %cst_48 = arith.constant dense<0.000000e+00> : vector<64x32xf32>
    %64 = tpu.matmul %47, %63, %cst_48 {dimension_numbers = #tpu.dot_dimension_numbers<[1], [0], [0], [1], [0, 0, 1, 1], [], []>} : vector<64x32xf32>, vector<32x32xf32>, vector<64x32xf32> -> vector<64x32xf32>
    %c4 = arith.constant 4 : index
    %c0_49 = arith.constant 0 : index
    %c0_50 = arith.constant 0 : index
    %65 = vector.load %arg14[%c4, %c0_49, %c0_50] : memref<20x1x32xf32, #tpu.memory_space<vmem>>, vector<1x1x32xf32>
    %66 = vector.shape_cast %65 : vector<1x1x32xf32> to vector<1x32xf32>
    %67 = vector.broadcast %66 : vector<1x32xf32> to vector<64x32xf32>
    %68 = arith.addf %64, %67 : vector<64x32xf32>
    %69 = tpu.concatenate %61, %61, %61, %61 in 0 : vector<64x32xf32>, vector<64x32xf32>, vector<64x32xf32>, vector<64x32xf32> -> vector<256x32xf32>
    %70 = arith.mulf %69, %20 : vector<256x32xf32>
    %71 = tpu.concatenate %68, %68, %68, %68 in 0 : vector<64x32xf32>, vector<64x32xf32>, vector<64x32xf32>, vector<64x32xf32> -> vector<256x32xf32>
    %72 = arith.mulf %71, %20 : vector<256x32xf32>
    %cst_51 = arith.constant dense<0.000000e+00> : vector<64x256xf32>
    %73 = tpu.matmul %54, %70, %cst_51 {dimension_numbers = #tpu.dot_dimension_numbers<[1], [1], [0], [0], [0, 0, 1, 0], [], []>} : vector<64x32xf32>, vector<256x32xf32>, vector<64x256xf32> -> vector<64x256xf32>
    %cst_52 = arith.constant 0.353553385 : f32
    %74 = vector.broadcast %cst_52 : f32 to vector<64x256xf32>
    %75 = arith.mulf %73, %74 : vector<64x256xf32>
    %76 = arith.addf %75, %19 : vector<64x256xf32>
    %cst_53 = arith.constant dense<0xFF800000> : vector<64xf32>
    %77 = vector.multi_reduction <maximumf>, %76, %cst_53 [1] : vector<64x256xf32> to vector<64xf32>
    %78 = vector.shape_cast %77 : vector<64xf32> to vector<64x1xf32>
    %79 = vector.broadcast %78 : vector<64x1xf32> to vector<64x256xf32>
    %80 = arith.subf %76, %79 : vector<64x256xf32>
    %81 = math.exp %80 : vector<64x256xf32>
    %cst_54 = arith.constant dense<0.000000e+00> : vector<64x8xf32>
    %82 = tpu.matmul %81, %21, %cst_54 {dimension_numbers = #tpu.dot_dimension_numbers<[1], [0], [0], [1], [0, 0, 1, 1], [], []>} : vector<64x256xf32>, vector<256x8xf32>, vector<64x8xf32> -> vector<64x8xf32>
    %cst_55 = arith.constant dense<0.000000e+00> : vector<64x256xf32>
    %83 = tpu.matmul %82, %21, %cst_55 {dimension_numbers = #tpu.dot_dimension_numbers<[1], [1], [0], [0], [0, 0, 1, 0], [], []>} : vector<64x8xf32>, vector<256x8xf32>, vector<64x256xf32> -> vector<64x256xf32>
    %cst_56 = arith.constant 9.99999968E-21 : f32
    %84 = vector.broadcast %cst_56 : f32 to vector<64x256xf32>
    %85 = arith.maximumf %83, %84 : vector<64x256xf32>
    %86 = tpu.reciprocal %85 {approx = true} : vector<64x256xf32> -> vector<64x256xf32>
    %87 = arith.mulf %81, %86 : vector<64x256xf32>
    %cst_57 = arith.constant dense<0.000000e+00> : vector<64x32xf32>
    %88 = tpu.matmul %87, %72, %cst_57 {dimension_numbers = #tpu.dot_dimension_numbers<[1], [0], [0], [1], [0, 0, 1, 1], [], []>} : vector<64x256xf32>, vector<256x32xf32>, vector<64x32xf32> -> vector<64x32xf32>
    %c3_58 = arith.constant 3 : index
    %c0_59 = arith.constant 0 : index
    %c0_60 = arith.constant 0 : index
    %89 = vector.load %arg11[%c3_58, %c0_59, %c0_60] : memref<8x32x32xf32, #tpu.memory_space<vmem>>, vector<1x32x32xf32>
    %90 = vector.shape_cast %89 : vector<1x32x32xf32> to vector<32x32xf32>
    %cst_61 = arith.constant dense<0.000000e+00> : vector<64x32xf32>
    %91 = tpu.matmul %88, %90, %cst_61 {dimension_numbers = #tpu.dot_dimension_numbers<[1], [0], [0], [1], [0, 0, 1, 1], [], []>} : vector<64x32xf32>, vector<32x32xf32>, vector<64x32xf32> -> vector<64x32xf32>
    %92 = arith.addf %18, %91 : vector<64x32xf32>
    %c5 = arith.constant 5 : index
    %c0_62 = arith.constant 0 : index
    %c0_63 = arith.constant 0 : index
    %93 = vector.load %arg14[%c5, %c0_62, %c0_63] : memref<20x1x32xf32, #tpu.memory_space<vmem>>, vector<1x1x32xf32>
    %94 = vector.shape_cast %93 : vector<1x1x32xf32> to vector<1x32xf32>
    %95 = vector.broadcast %94 : vector<1x32xf32> to vector<64x32xf32>
    %96 = arith.addf %92, %95 : vector<64x32xf32>
    %c6 = arith.constant 6 : index
    %c0_64 = arith.constant 0 : index
    %c0_65 = arith.constant 0 : index
    %97 = vector.load %arg14[%c6, %c0_64, %c0_65] : memref<20x1x32xf32, #tpu.memory_space<vmem>>, vector<1x1x32xf32>
    %98 = vector.shape_cast %97 : vector<1x1x32xf32> to vector<1x32xf32>
    %c7 = arith.constant 7 : index
    %c0_66 = arith.constant 0 : index
    %c0_67 = arith.constant 0 : index
    %99 = vector.load %arg14[%c7, %c0_66, %c0_67] : memref<20x1x32xf32, #tpu.memory_space<vmem>>, vector<1x1x32xf32>
    %100 = vector.shape_cast %99 : vector<1x1x32xf32> to vector<1x32xf32>
    %cst_68 = arith.constant dense<0.000000e+00> : vector<64xf32>
    %101 = vector.multi_reduction <add>, %96, %cst_68 [1] : vector<64x32xf32> to vector<64xf32>
    %102 = vector.shape_cast %101 : vector<64xf32> to vector<64x1xf32>
    %cst_69 = arith.constant 3.200000e+01 : f32
    %103 = vector.broadcast %cst_69 : f32 to vector<64x1xf32>
    %104 = arith.divf %102, %103 : vector<64x1xf32>
    %105 = vector.broadcast %104 : vector<64x1xf32> to vector<64x32xf32>
    %106 = arith.subf %96, %105 : vector<64x32xf32>
    %107 = arith.mulf %106, %106 : vector<64x32xf32>
    %cst_70 = arith.constant dense<0.000000e+00> : vector<64xf32>
    %108 = vector.multi_reduction <add>, %107, %cst_70 [1] : vector<64x32xf32> to vector<64xf32>
    %109 = vector.shape_cast %108 : vector<64xf32> to vector<64x1xf32>
    %cst_71 = arith.constant 3.200000e+01 : f32
    %110 = vector.broadcast %cst_71 : f32 to vector<64x1xf32>
    %111 = arith.divf %109, %110 : vector<64x1xf32>
    %112 = vector.broadcast %104 : vector<64x1xf32> to vector<64x32xf32>
    %113 = arith.subf %96, %112 : vector<64x32xf32>
    %cst_72 = arith.constant 9.99999974E-6 : f32
    %114 = vector.broadcast %cst_72 : f32 to vector<64x1xf32>
    %115 = arith.addf %111, %114 : vector<64x1xf32>
    %116 = math.rsqrt %115 : vector<64x1xf32>
    %117 = vector.broadcast %116 : vector<64x1xf32> to vector<64x32xf32>
    %118 = arith.mulf %113, %117 : vector<64x32xf32>
    %119 = vector.broadcast %98 : vector<1x32xf32> to vector<64x32xf32>
    %120 = arith.mulf %118, %119 : vector<64x32xf32>
    %121 = vector.broadcast %100 : vector<1x32xf32> to vector<64x32xf32>
    %122 = arith.addf %120, %121 : vector<64x32xf32>
    %c0_73 = arith.constant 0 : index
    %c0_74 = arith.constant 0 : index
    %c0_75 = arith.constant 0 : index
    %123 = vector.load %arg12[%c0_73, %c0_74, %c0_75] : memref<2x32x128xf32, #tpu.memory_space<vmem>>, vector<1x32x128xf32>
    %124 = vector.shape_cast %123 : vector<1x32x128xf32> to vector<32x128xf32>
    %cst_76 = arith.constant dense<0.000000e+00> : vector<64x128xf32>
    %125 = tpu.matmul %122, %124, %cst_76 {dimension_numbers = #tpu.dot_dimension_numbers<[1], [0], [0], [1], [0, 0, 1, 1], [], []>} : vector<64x32xf32>, vector<32x128xf32>, vector<64x128xf32> -> vector<64x128xf32>
    %c0_77 = arith.constant 0 : index
    %c0_78 = arith.constant 0 : index
    %c0_79 = arith.constant 0 : index
    %126 = vector.load %arg15[%c0_77, %c0_78, %c0_79] : memref<2x1x128xf32, #tpu.memory_space<vmem>>, vector<1x1x128xf32>
    %127 = vector.shape_cast %126 : vector<1x1x128xf32> to vector<1x128xf32>
    %128 = vector.broadcast %127 : vector<1x128xf32> to vector<64x128xf32>
    %129 = arith.addf %125, %128 : vector<64x128xf32>
    %cst_80 = arith.constant 5.000000e-01 : f32
    %130 = vector.broadcast %cst_80 : f32 to vector<64x128xf32>
    %131 = arith.mulf %130, %129 : vector<64x128xf32>
    %132 = arith.mulf %129, %129 : vector<64x128xf32>
    %133 = arith.mulf %129, %132 : vector<64x128xf32>
    %cst_81 = arith.constant 4.471500e-02 : f32
    %134 = vector.broadcast %cst_81 : f32 to vector<64x128xf32>
    %135 = arith.mulf %134, %133 : vector<64x128xf32>
    %136 = arith.addf %129, %135 : vector<64x128xf32>
    %cst_82 = arith.constant 0.797884583 : f32
    %137 = vector.broadcast %cst_82 : f32 to vector<64x128xf32>
    %138 = arith.mulf %137, %136 : vector<64x128xf32>
    %139 = math.tanh %138 : vector<64x128xf32>
    %cst_83 = arith.constant 1.000000e+00 : f32
    %140 = vector.broadcast %cst_83 : f32 to vector<64x128xf32>
    %141 = arith.addf %140, %139 : vector<64x128xf32>
    %142 = arith.mulf %131, %141 : vector<64x128xf32>
    %c0_84 = arith.constant 0 : index
    %c0_85 = arith.constant 0 : index
    %c0_86 = arith.constant 0 : index
    %143 = vector.load %arg13[%c0_84, %c0_85, %c0_86] : memref<2x128x32xf32, #tpu.memory_space<vmem>>, vector<1x128x32xf32>
    %144 = vector.shape_cast %143 : vector<1x128x32xf32> to vector<128x32xf32>
    %cst_87 = arith.constant dense<0.000000e+00> : vector<64x32xf32>
    %145 = tpu.matmul %142, %144, %cst_87 {dimension_numbers = #tpu.dot_dimension_numbers<[1], [0], [0], [1], [0, 0, 1, 1], [], []>} : vector<64x128xf32>, vector<128x32xf32>, vector<64x32xf32> -> vector<64x32xf32>
    %146 = arith.addf %96, %145 : vector<64x32xf32>
    %c8 = arith.constant 8 : index
    %c0_88 = arith.constant 0 : index
    %c0_89 = arith.constant 0 : index
    %147 = vector.load %arg14[%c8, %c0_88, %c0_89] : memref<20x1x32xf32, #tpu.memory_space<vmem>>, vector<1x1x32xf32>
    %148 = vector.shape_cast %147 : vector<1x1x32xf32> to vector<1x32xf32>
    %149 = vector.broadcast %148 : vector<1x32xf32> to vector<64x32xf32>
    %150 = arith.addf %146, %149 : vector<64x32xf32>
    %c9 = arith.constant 9 : index
    %c0_90 = arith.constant 0 : index
    %c0_91 = arith.constant 0 : index
    %151 = vector.load %arg14[%c9, %c0_90, %c0_91] : memref<20x1x32xf32, #tpu.memory_space<vmem>>, vector<1x1x32xf32>
    %152 = vector.shape_cast %151 : vector<1x1x32xf32> to vector<1x32xf32>
    %c10 = arith.constant 10 : index
    %c0_92 = arith.constant 0 : index
    %c0_93 = arith.constant 0 : index
    %153 = vector.load %arg14[%c10, %c0_92, %c0_93] : memref<20x1x32xf32, #tpu.memory_space<vmem>>, vector<1x1x32xf32>
    %154 = vector.shape_cast %153 : vector<1x1x32xf32> to vector<1x32xf32>
    %cst_94 = arith.constant dense<0.000000e+00> : vector<64xf32>
    %155 = vector.multi_reduction <add>, %150, %cst_94 [1] : vector<64x32xf32> to vector<64xf32>
    %156 = vector.shape_cast %155 : vector<64xf32> to vector<64x1xf32>
    %cst_95 = arith.constant 3.200000e+01 : f32
    %157 = vector.broadcast %cst_95 : f32 to vector<64x1xf32>
    %158 = arith.divf %156, %157 : vector<64x1xf32>
    %159 = vector.broadcast %158 : vector<64x1xf32> to vector<64x32xf32>
    %160 = arith.subf %150, %159 : vector<64x32xf32>
    %161 = arith.mulf %160, %160 : vector<64x32xf32>
    %cst_96 = arith.constant dense<0.000000e+00> : vector<64xf32>
    %162 = vector.multi_reduction <add>, %161, %cst_96 [1] : vector<64x32xf32> to vector<64xf32>
    %163 = vector.shape_cast %162 : vector<64xf32> to vector<64x1xf32>
    %cst_97 = arith.constant 3.200000e+01 : f32
    %164 = vector.broadcast %cst_97 : f32 to vector<64x1xf32>
    %165 = arith.divf %163, %164 : vector<64x1xf32>
    %166 = vector.broadcast %158 : vector<64x1xf32> to vector<64x32xf32>
    %167 = arith.subf %150, %166 : vector<64x32xf32>
    %cst_98 = arith.constant 9.99999974E-6 : f32
    %168 = vector.broadcast %cst_98 : f32 to vector<64x1xf32>
    %169 = arith.addf %165, %168 : vector<64x1xf32>
    %170 = math.rsqrt %169 : vector<64x1xf32>
    %171 = vector.broadcast %170 : vector<64x1xf32> to vector<64x32xf32>
    %172 = arith.mulf %167, %171 : vector<64x32xf32>
    %173 = vector.broadcast %152 : vector<1x32xf32> to vector<64x32xf32>
    %174 = arith.mulf %172, %173 : vector<64x32xf32>
    %175 = vector.broadcast %154 : vector<1x32xf32> to vector<64x32xf32>
    %176 = arith.addf %174, %175 : vector<64x32xf32>
    %c4_99 = arith.constant 4 : index
    %c0_100 = arith.constant 0 : index
    %c0_101 = arith.constant 0 : index
    %177 = vector.load %arg11[%c4_99, %c0_100, %c0_101] : memref<8x32x32xf32, #tpu.memory_space<vmem>>, vector<1x32x32xf32>
    %178 = vector.shape_cast %177 : vector<1x32x32xf32> to vector<32x32xf32>
    %cst_102 = arith.constant dense<0.000000e+00> : vector<64x32xf32>
    %179 = tpu.matmul %176, %178, %cst_102 {dimension_numbers = #tpu.dot_dimension_numbers<[1], [0], [0], [1], [0, 0, 1, 1], [], []>} : vector<64x32xf32>, vector<32x32xf32>, vector<64x32xf32> -> vector<64x32xf32>
    %c11 = arith.constant 11 : index
    %c0_103 = arith.constant 0 : index
    %c0_104 = arith.constant 0 : index
    %180 = vector.load %arg14[%c11, %c0_103, %c0_104] : memref<20x1x32xf32, #tpu.memory_space<vmem>>, vector<1x1x32xf32>
    %181 = vector.shape_cast %180 : vector<1x1x32xf32> to vector<1x32xf32>
    %182 = vector.broadcast %181 : vector<1x32xf32> to vector<64x32xf32>
    %183 = arith.addf %179, %182 : vector<64x32xf32>
    %c5_105 = arith.constant 5 : index
    %c0_106 = arith.constant 0 : index
    %c0_107 = arith.constant 0 : index
    %184 = vector.load %arg11[%c5_105, %c0_106, %c0_107] : memref<8x32x32xf32, #tpu.memory_space<vmem>>, vector<1x32x32xf32>
    %185 = vector.shape_cast %184 : vector<1x32x32xf32> to vector<32x32xf32>
    %cst_108 = arith.constant dense<0.000000e+00> : vector<64x32xf32>
    %186 = tpu.matmul %176, %185, %cst_108 {dimension_numbers = #tpu.dot_dimension_numbers<[1], [0], [0], [1], [0, 0, 1, 1], [], []>} : vector<64x32xf32>, vector<32x32xf32>, vector<64x32xf32> -> vector<64x32xf32>
    %c12 = arith.constant 12 : index
    %c0_109 = arith.constant 0 : index
    %c0_110 = arith.constant 0 : index
    %187 = vector.load %arg14[%c12, %c0_109, %c0_110] : memref<20x1x32xf32, #tpu.memory_space<vmem>>, vector<1x1x32xf32>
    %188 = vector.shape_cast %187 : vector<1x1x32xf32> to vector<1x32xf32>
    %189 = vector.broadcast %188 : vector<1x32xf32> to vector<64x32xf32>
    %190 = arith.addf %186, %189 : vector<64x32xf32>
    %c6_111 = arith.constant 6 : index
    %c0_112 = arith.constant 0 : index
    %c0_113 = arith.constant 0 : index
    %191 = vector.load %arg11[%c6_111, %c0_112, %c0_113] : memref<8x32x32xf32, #tpu.memory_space<vmem>>, vector<1x32x32xf32>
    %192 = vector.shape_cast %191 : vector<1x32x32xf32> to vector<32x32xf32>
    %cst_114 = arith.constant dense<0.000000e+00> : vector<64x32xf32>
    %193 = tpu.matmul %176, %192, %cst_114 {dimension_numbers = #tpu.dot_dimension_numbers<[1], [0], [0], [1], [0, 0, 1, 1], [], []>} : vector<64x32xf32>, vector<32x32xf32>, vector<64x32xf32> -> vector<64x32xf32>
    %c13 = arith.constant 13 : index
    %c0_115 = arith.constant 0 : index
    %c0_116 = arith.constant 0 : index
    %194 = vector.load %arg14[%c13, %c0_115, %c0_116] : memref<20x1x32xf32, #tpu.memory_space<vmem>>, vector<1x1x32xf32>
    %195 = vector.shape_cast %194 : vector<1x1x32xf32> to vector<1x32xf32>
    %196 = vector.broadcast %195 : vector<1x32xf32> to vector<64x32xf32>
    %197 = arith.addf %193, %196 : vector<64x32xf32>
    %198 = tpu.concatenate %190, %190, %190, %190 in 0 : vector<64x32xf32>, vector<64x32xf32>, vector<64x32xf32>, vector<64x32xf32> -> vector<256x32xf32>
    %199 = arith.mulf %198, %20 : vector<256x32xf32>
    %200 = tpu.concatenate %197, %197, %197, %197 in 0 : vector<64x32xf32>, vector<64x32xf32>, vector<64x32xf32>, vector<64x32xf32> -> vector<256x32xf32>
    %201 = arith.mulf %200, %20 : vector<256x32xf32>
    %cst_117 = arith.constant dense<0.000000e+00> : vector<64x256xf32>
    %202 = tpu.matmul %183, %199, %cst_117 {dimension_numbers = #tpu.dot_dimension_numbers<[1], [1], [0], [0], [0, 0, 1, 0], [], []>} : vector<64x32xf32>, vector<256x32xf32>, vector<64x256xf32> -> vector<64x256xf32>
    %cst_118 = arith.constant 0.353553385 : f32
    %203 = vector.broadcast %cst_118 : f32 to vector<64x256xf32>
    %204 = arith.mulf %202, %203 : vector<64x256xf32>
    %205 = arith.addf %204, %19 : vector<64x256xf32>
    %cst_119 = arith.constant dense<0xFF800000> : vector<64xf32>
    %206 = vector.multi_reduction <maximumf>, %205, %cst_119 [1] : vector<64x256xf32> to vector<64xf32>
    %207 = vector.shape_cast %206 : vector<64xf32> to vector<64x1xf32>
    %208 = vector.broadcast %207 : vector<64x1xf32> to vector<64x256xf32>
    %209 = arith.subf %205, %208 : vector<64x256xf32>
    %210 = math.exp %209 : vector<64x256xf32>
    %cst_120 = arith.constant dense<0.000000e+00> : vector<64x8xf32>
    %211 = tpu.matmul %210, %21, %cst_120 {dimension_numbers = #tpu.dot_dimension_numbers<[1], [0], [0], [1], [0, 0, 1, 1], [], []>} : vector<64x256xf32>, vector<256x8xf32>, vector<64x8xf32> -> vector<64x8xf32>
    %cst_121 = arith.constant dense<0.000000e+00> : vector<64x256xf32>
    %212 = tpu.matmul %211, %21, %cst_121 {dimension_numbers = #tpu.dot_dimension_numbers<[1], [1], [0], [0], [0, 0, 1, 0], [], []>} : vector<64x8xf32>, vector<256x8xf32>, vector<64x256xf32> -> vector<64x256xf32>
    %cst_122 = arith.constant 9.99999968E-21 : f32
    %213 = vector.broadcast %cst_122 : f32 to vector<64x256xf32>
    %214 = arith.maximumf %212, %213 : vector<64x256xf32>
    %215 = tpu.reciprocal %214 {approx = true} : vector<64x256xf32> -> vector<64x256xf32>
    %216 = arith.mulf %210, %215 : vector<64x256xf32>
    %cst_123 = arith.constant dense<0.000000e+00> : vector<64x32xf32>
    %217 = tpu.matmul %216, %201, %cst_123 {dimension_numbers = #tpu.dot_dimension_numbers<[1], [0], [0], [1], [0, 0, 1, 1], [], []>} : vector<64x256xf32>, vector<256x32xf32>, vector<64x32xf32> -> vector<64x32xf32>
    %c7_124 = arith.constant 7 : index
    %c0_125 = arith.constant 0 : index
    %c0_126 = arith.constant 0 : index
    %218 = vector.load %arg11[%c7_124, %c0_125, %c0_126] : memref<8x32x32xf32, #tpu.memory_space<vmem>>, vector<1x32x32xf32>
    %219 = vector.shape_cast %218 : vector<1x32x32xf32> to vector<32x32xf32>
    %cst_127 = arith.constant dense<0.000000e+00> : vector<64x32xf32>
    %220 = tpu.matmul %217, %219, %cst_127 {dimension_numbers = #tpu.dot_dimension_numbers<[1], [0], [0], [1], [0, 0, 1, 1], [], []>} : vector<64x32xf32>, vector<32x32xf32>, vector<64x32xf32> -> vector<64x32xf32>
    %221 = arith.addf %150, %220 : vector<64x32xf32>
    %c14 = arith.constant 14 : index
    %c0_128 = arith.constant 0 : index
    %c0_129 = arith.constant 0 : index
    %222 = vector.load %arg14[%c14, %c0_128, %c0_129] : memref<20x1x32xf32, #tpu.memory_space<vmem>>, vector<1x1x32xf32>
    %223 = vector.shape_cast %222 : vector<1x1x32xf32> to vector<1x32xf32>
    %224 = vector.broadcast %223 : vector<1x32xf32> to vector<64x32xf32>
    %225 = arith.addf %221, %224 : vector<64x32xf32>
    %c15 = arith.constant 15 : index
    %c0_130 = arith.constant 0 : index
    %c0_131 = arith.constant 0 : index
    %226 = vector.load %arg14[%c15, %c0_130, %c0_131] : memref<20x1x32xf32, #tpu.memory_space<vmem>>, vector<1x1x32xf32>
    %227 = vector.shape_cast %226 : vector<1x1x32xf32> to vector<1x32xf32>
    %c16 = arith.constant 16 : index
    %c0_132 = arith.constant 0 : index
    %c0_133 = arith.constant 0 : index
    %228 = vector.load %arg14[%c16, %c0_132, %c0_133] : memref<20x1x32xf32, #tpu.memory_space<vmem>>, vector<1x1x32xf32>
    %229 = vector.shape_cast %228 : vector<1x1x32xf32> to vector<1x32xf32>
    %cst_134 = arith.constant dense<0.000000e+00> : vector<64xf32>
    %230 = vector.multi_reduction <add>, %225, %cst_134 [1] : vector<64x32xf32> to vector<64xf32>
    %231 = vector.shape_cast %230 : vector<64xf32> to vector<64x1xf32>
    %cst_135 = arith.constant 3.200000e+01 : f32
    %232 = vector.broadcast %cst_135 : f32 to vector<64x1xf32>
    %233 = arith.divf %231, %232 : vector<64x1xf32>
    %234 = vector.broadcast %233 : vector<64x1xf32> to vector<64x32xf32>
    %235 = arith.subf %225, %234 : vector<64x32xf32>
    %236 = arith.mulf %235, %235 : vector<64x32xf32>
    %cst_136 = arith.constant dense<0.000000e+00> : vector<64xf32>
    %237 = vector.multi_reduction <add>, %236, %cst_136 [1] : vector<64x32xf32> to vector<64xf32>
    %238 = vector.shape_cast %237 : vector<64xf32> to vector<64x1xf32>
    %cst_137 = arith.constant 3.200000e+01 : f32
    %239 = vector.broadcast %cst_137 : f32 to vector<64x1xf32>
    %240 = arith.divf %238, %239 : vector<64x1xf32>
    %241 = vector.broadcast %233 : vector<64x1xf32> to vector<64x32xf32>
    %242 = arith.subf %225, %241 : vector<64x32xf32>
    %cst_138 = arith.constant 9.99999974E-6 : f32
    %243 = vector.broadcast %cst_138 : f32 to vector<64x1xf32>
    %244 = arith.addf %240, %243 : vector<64x1xf32>
    %245 = math.rsqrt %244 : vector<64x1xf32>
    %246 = vector.broadcast %245 : vector<64x1xf32> to vector<64x32xf32>
    %247 = arith.mulf %242, %246 : vector<64x32xf32>
    %248 = vector.broadcast %227 : vector<1x32xf32> to vector<64x32xf32>
    %249 = arith.mulf %247, %248 : vector<64x32xf32>
    %250 = vector.broadcast %229 : vector<1x32xf32> to vector<64x32xf32>
    %251 = arith.addf %249, %250 : vector<64x32xf32>
    %c1_139 = arith.constant 1 : index
    %c0_140 = arith.constant 0 : index
    %c0_141 = arith.constant 0 : index
    %252 = vector.load %arg12[%c1_139, %c0_140, %c0_141] : memref<2x32x128xf32, #tpu.memory_space<vmem>>, vector<1x32x128xf32>
    %253 = vector.shape_cast %252 : vector<1x32x128xf32> to vector<32x128xf32>
    %cst_142 = arith.constant dense<0.000000e+00> : vector<64x128xf32>
    %254 = tpu.matmul %251, %253, %cst_142 {dimension_numbers = #tpu.dot_dimension_numbers<[1], [0], [0], [1], [0, 0, 1, 1], [], []>} : vector<64x32xf32>, vector<32x128xf32>, vector<64x128xf32> -> vector<64x128xf32>
    %c1_143 = arith.constant 1 : index
    %c0_144 = arith.constant 0 : index
    %c0_145 = arith.constant 0 : index
    %255 = vector.load %arg15[%c1_143, %c0_144, %c0_145] : memref<2x1x128xf32, #tpu.memory_space<vmem>>, vector<1x1x128xf32>
    %256 = vector.shape_cast %255 : vector<1x1x128xf32> to vector<1x128xf32>
    %257 = vector.broadcast %256 : vector<1x128xf32> to vector<64x128xf32>
    %258 = arith.addf %254, %257 : vector<64x128xf32>
    %cst_146 = arith.constant 5.000000e-01 : f32
    %259 = vector.broadcast %cst_146 : f32 to vector<64x128xf32>
    %260 = arith.mulf %259, %258 : vector<64x128xf32>
    %261 = arith.mulf %258, %258 : vector<64x128xf32>
    %262 = arith.mulf %258, %261 : vector<64x128xf32>
    %cst_147 = arith.constant 4.471500e-02 : f32
    %263 = vector.broadcast %cst_147 : f32 to vector<64x128xf32>
    %264 = arith.mulf %263, %262 : vector<64x128xf32>
    %265 = arith.addf %258, %264 : vector<64x128xf32>
    %cst_148 = arith.constant 0.797884583 : f32
    %266 = vector.broadcast %cst_148 : f32 to vector<64x128xf32>
    %267 = arith.mulf %266, %265 : vector<64x128xf32>
    %268 = math.tanh %267 : vector<64x128xf32>
    %cst_149 = arith.constant 1.000000e+00 : f32
    %269 = vector.broadcast %cst_149 : f32 to vector<64x128xf32>
    %270 = arith.addf %269, %268 : vector<64x128xf32>
    %271 = arith.mulf %260, %270 : vector<64x128xf32>
    %c1_150 = arith.constant 1 : index
    %c0_151 = arith.constant 0 : index
    %c0_152 = arith.constant 0 : index
    %272 = vector.load %arg13[%c1_150, %c0_151, %c0_152] : memref<2x128x32xf32, #tpu.memory_space<vmem>>, vector<1x128x32xf32>
    %273 = vector.shape_cast %272 : vector<1x128x32xf32> to vector<128x32xf32>
    %cst_153 = arith.constant dense<0.000000e+00> : vector<64x32xf32>
    %274 = tpu.matmul %271, %273, %cst_153 {dimension_numbers = #tpu.dot_dimension_numbers<[1], [0], [0], [1], [0, 0, 1, 1], [], []>} : vector<64x128xf32>, vector<128x32xf32>, vector<64x32xf32> -> vector<64x32xf32>
    %275 = arith.addf %225, %274 : vector<64x32xf32>
    %c17 = arith.constant 17 : index
    %c0_154 = arith.constant 0 : index
    %c0_155 = arith.constant 0 : index
    %276 = vector.load %arg14[%c17, %c0_154, %c0_155] : memref<20x1x32xf32, #tpu.memory_space<vmem>>, vector<1x1x32xf32>
    %277 = vector.shape_cast %276 : vector<1x1x32xf32> to vector<1x32xf32>
    %278 = vector.broadcast %277 : vector<1x32xf32> to vector<64x32xf32>
    %279 = arith.addf %275, %278 : vector<64x32xf32>
    %c18 = arith.constant 18 : index
    %c0_156 = arith.constant 0 : index
    %c0_157 = arith.constant 0 : index
    %280 = vector.load %arg14[%c18, %c0_156, %c0_157] : memref<20x1x32xf32, #tpu.memory_space<vmem>>, vector<1x1x32xf32>
    %281 = vector.shape_cast %280 : vector<1x1x32xf32> to vector<1x32xf32>
    %c19 = arith.constant 19 : index
    %c0_158 = arith.constant 0 : index
    %c0_159 = arith.constant 0 : index
    %282 = vector.load %arg14[%c19, %c0_158, %c0_159] : memref<20x1x32xf32, #tpu.memory_space<vmem>>, vector<1x1x32xf32>
    %283 = vector.shape_cast %282 : vector<1x1x32xf32> to vector<1x32xf32>
    %cst_160 = arith.constant dense<0.000000e+00> : vector<64xf32>
    %284 = vector.multi_reduction <add>, %279, %cst_160 [1] : vector<64x32xf32> to vector<64xf32>
    %285 = vector.shape_cast %284 : vector<64xf32> to vector<64x1xf32>
    %cst_161 = arith.constant 3.200000e+01 : f32
    %286 = vector.broadcast %cst_161 : f32 to vector<64x1xf32>
    %287 = arith.divf %285, %286 : vector<64x1xf32>
    %288 = vector.broadcast %287 : vector<64x1xf32> to vector<64x32xf32>
    %289 = arith.subf %279, %288 : vector<64x32xf32>
    %290 = arith.mulf %289, %289 : vector<64x32xf32>
    %cst_162 = arith.constant dense<0.000000e+00> : vector<64xf32>
    %291 = vector.multi_reduction <add>, %290, %cst_162 [1] : vector<64x32xf32> to vector<64xf32>
    %292 = vector.shape_cast %291 : vector<64xf32> to vector<64x1xf32>
    %cst_163 = arith.constant 3.200000e+01 : f32
    %293 = vector.broadcast %cst_163 : f32 to vector<64x1xf32>
    %294 = arith.divf %292, %293 : vector<64x1xf32>
    %295 = vector.broadcast %287 : vector<64x1xf32> to vector<64x32xf32>
    %296 = arith.subf %279, %295 : vector<64x32xf32>
    %cst_164 = arith.constant 9.99999974E-6 : f32
    %297 = vector.broadcast %cst_164 : f32 to vector<64x1xf32>
    %298 = arith.addf %294, %297 : vector<64x1xf32>
    %299 = math.rsqrt %298 : vector<64x1xf32>
    %300 = vector.broadcast %299 : vector<64x1xf32> to vector<64x32xf32>
    %301 = arith.mulf %296, %300 : vector<64x32xf32>
    %302 = vector.broadcast %281 : vector<1x32xf32> to vector<64x32xf32>
    %303 = arith.mulf %301, %302 : vector<64x32xf32>
    %304 = vector.broadcast %283 : vector<1x32xf32> to vector<64x32xf32>
    %305 = arith.addf %303, %304 : vector<64x32xf32>
    %c0_165 = arith.constant 0 : index
    %c0_166 = arith.constant 0 : index
    %306 = vector.load %arg10[%c0_165, %c0_166] : memref<32x128xf32, #tpu.memory_space<vmem>>, vector<32x128xf32>
    %cst_167 = arith.constant dense<0.000000e+00> : vector<64x128xf32>
    %307 = tpu.matmul %305, %306, %cst_167 {dimension_numbers = #tpu.dot_dimension_numbers<[1], [0], [0], [1], [0, 0, 1, 1], [], []>} : vector<64x32xf32>, vector<32x128xf32>, vector<64x128xf32> -> vector<64x128xf32>
    %c0_168 = arith.constant 0 : index
    %c0_169 = arith.constant 0 : index
    %308 = vector.load %arg16[%c0_168, %c0_169] : memref<64x128xf32, #tpu.memory_space<vmem>>, vector<64x128xf32>
    tpu.vector_store %arg16[%c0_168, %c0_169], %307 {strides = array<i32>} : memref<64x128xf32, #tpu.memory_space<vmem>>, vector<64x128xf32>,
    %309 = vector.broadcast %3 : vector<64x1xi32> to vector<64x128xi32>
    %310 = arith.cmpi eq, %4, %309 : vector<64x128xi32>
    %311 = arith.extui %310 : vector<64x128xi1> to vector<64x128xi32>
    %312 = arith.sitofp %311 : vector<64x128xi32> to vector<64x128xf32>
    %cst_170 = arith.constant dense<0xFF800000> : vector<64xf32>
    %313 = vector.multi_reduction <maximumf>, %307, %cst_170 [1] : vector<64x128xf32> to vector<64xf32>
    %314 = vector.shape_cast %313 : vector<64xf32> to vector<64x1xf32>
    %315 = vector.broadcast %314 : vector<64x1xf32> to vector<64x128xf32>
    %316 = arith.subf %307, %315 : vector<64x128xf32>
    %317 = math.exp %316 : vector<64x128xf32>
    %cst_171 = arith.constant dense<0.000000e+00> : vector<64xf32>
    %318 = vector.multi_reduction <add>, %317, %cst_171 [1] : vector<64x128xf32> to vector<64xf32>
    %319 = vector.shape_cast %318 : vector<64xf32> to vector<64x1xf32>
    %320 = math.log %319 : vector<64x1xf32>
    %321 = arith.addf %314, %320 : vector<64x1xf32>
    %322 = arith.mulf %312, %307 : vector<64x128xf32>
    %cst_172 = arith.constant dense<0.000000e+00> : vector<64xf32>
    %323 = vector.multi_reduction <add>, %322, %cst_172 [1] : vector<64x128xf32> to vector<64xf32>
    %324 = vector.shape_cast %323 : vector<64xf32> to vector<64x1xf32>
    %cst_173 = arith.constant dense<0.000000e+00> : vector<64xf32>
    %325 = vector.multi_reduction <add>, %312, %cst_173 [1] : vector<64x128xf32> to vector<64xf32>
    %326 = vector.shape_cast %325 : vector<64xf32> to vector<64x1xf32>
    %327 = arith.subf %321, %324 : vector<64x1xf32>
    %328 = arith.mulf %327, %326 : vector<64x1xf32>
    %cst_174 = arith.constant dense<0.000000e+00> : vector<1xf32>
    %329 = vector.multi_reduction <add>, %328, %cst_174 [0] : vector<64x1xf32> to vector<1xf32>
    %330 = vector.shape_cast %329 : vector<1xf32> to vector<1x1xf32>
    %cst_175 = arith.constant dense<0.000000e+00> : vector<1xf32>
    %331 = vector.multi_reduction <add>, %326, %cst_175 [0] : vector<64x1xf32> to vector<1xf32>
    %332 = vector.shape_cast %331 : vector<1xf32> to vector<1x1xf32>
    %cst_176 = arith.constant 1.000000e+00 : f32
    %333 = vector.broadcast %cst_176 : f32 to vector<1x1xf32>
    %334 = arith.maximumf %332, %333 : vector<1x1xf32>
    %335 = arith.divf %330, %334 : vector<1x1xf32>
    %c0_177 = arith.constant 0 : index
    %c0_178 = arith.constant 0 : index
    %336 = vector.load %arg17[%c0_177, %c0_178] : memref<1x1xf32, #tpu.memory_space<vmem>>, vector<1x1xf32>
    tpu.vector_store %arg17[%c0_177, %c0_178], %335 {strides = array<i32>} : memref<1x1xf32, #tpu.memory_space<vmem>>, vector<1x1xf32>,
    return
  }
  func.func @transform_0(%arg0: i32) -> (i32, i32, i32) {
    %c0_i32 = arith.constant 0 : i32
    %c0_i32_0 = arith.constant 0 : i32
    %c0_i32_1 = arith.constant 0 : i32
    %c0_i32_2 = arith.constant 0 : i32
    return %c0_i32, %c0_i32_0, %c0_i32_1 : i32, i32, i32
  }
  func.func @transform_1(%arg0: i32) -> (i32, i32) {
    %c0_i32 = arith.constant 0 : i32
    %c0_i32_0 = arith.constant 0 : i32
    %c0_i32_1 = arith.constant 0 : i32
    return %c0_i32, %c0_i32_0 : i32, i32
  }
  func.func @transform_2(%arg0: i32) -> (i32, i32) {
    %c0_i32 = arith.constant 0 : i32
    %c0_i32_0 = arith.constant 0 : i32
    %c0_i32_1 = arith.constant 0 : i32
    return %c0_i32, %c0_i32_0 : i32, i32
  }
  func.func @transform_3(%arg0: i32) -> (i32, i32) {
    %c0_i32 = arith.constant 0 : i32
    %c0_i32_0 = arith.constant 0 : i32
    %c0_i32_1 = arith.constant 0 : i32
    return %c0_i32, %c0_i32_0 : i32, i32
  }
  func.func @transform_4(%arg0: i32) -> (i32, i32) {
    %c0_i32 = arith.constant 0 : i32
    %c0_i32_0 = arith.constant 0 : i32
    %c0_i32_1 = arith.constant 0 : i32
    return %c0_i32, %c0_i32_0 : i32, i32
  }
  func.func @transform_5(%arg0: i32) -> (i32, i32) {
    %c0_i32 = arith.constant 0 : i32
    %c0_i32_0 = arith.constant 0 : i32
    %c0_i32_1 = arith.constant 0 : i32
    return %c0_i32, %c0_i32_0 : i32, i32
  }
  func.func @transform_6(%arg0: i32) -> (i32, i32) {
    %c0_i32 = arith.constant 0 : i32
    %c0_i32_0 = arith.constant 0 : i32
    %c0_i32_1 = arith.constant 0 : i32
    return %c0_i32, %c0_i32_0 : i32, i32
  }
  func.func @transform_7(%arg0: i32) -> (i32, i32) {
    %c0_i32 = arith.constant 0 : i32
    %c0_i32_0 = arith.constant 0 : i32
    %c0_i32_1 = arith.constant 0 : i32
    return %c0_i32, %c0_i32_0 : i32, i32
  }
  func.func @transform_8(%arg0: i32) -> (i32, i32) {
    %c0_i32 = arith.constant 0 : i32
    %c0_i32_0 = arith.constant 0 : i32
    %c0_i32_1 = arith.constant 0 : i32
    return %c0_i32, %c0_i32_0 : i32, i32
  }
  func.func @transform_9(%arg0: i32) -> (i32, i32) {
    %c0_i32 = arith.constant 0 : i32
    %c0_i32_0 = arith.constant 0 : i32
    %c0_i32_1 = arith.constant 0 : i32
    return %c0_i32, %c0_i32_0 : i32, i32
  }
  func.func @transform_10(%arg0: i32) -> (i32, i32, i32) {
    %c0_i32 = arith.constant 0 : i32
    %c0_i32_0 = arith.constant 0 : i32
    %c0_i32_1 = arith.constant 0 : i32
    %c0_i32_2 = arith.constant 0 : i32
    return %c0_i32, %c0_i32_0, %c0_i32_1 : i32, i32, i32
  }
  func.func @transform_11(%arg0: i32) -> (i32, i32, i32) {
    %c0_i32 = arith.constant 0 : i32
    %c0_i32_0 = arith.constant 0 : i32
    %c0_i32_1 = arith.constant 0 : i32
    %c0_i32_2 = arith.constant 0 : i32
    return %c0_i32, %c0_i32_0, %c0_i32_1 : i32, i32, i32
  }
  func.func @transform_12(%arg0: i32) -> (i32, i32, i32) {
    %c0_i32 = arith.constant 0 : i32
    %c0_i32_0 = arith.constant 0 : i32
    %c0_i32_1 = arith.constant 0 : i32
    %c0_i32_2 = arith.constant 0 : i32
    return %c0_i32, %c0_i32_0, %c0_i32_1 : i32, i32, i32
  }
  func.func @transform_13(%arg0: i32) -> (i32, i32, i32) {
    %c0_i32 = arith.constant 0 : i32
    %c0_i32_0 = arith.constant 0 : i32
    %c0_i32_1 = arith.constant 0 : i32
    %c0_i32_2 = arith.constant 0 : i32
    return %c0_i32, %c0_i32_0, %c0_i32_1 : i32, i32, i32
  }
  func.func @transform_14(%arg0: i32) -> (i32, i32, i32) {
    %c0_i32 = arith.constant 0 : i32
    %c0_i32_0 = arith.constant 0 : i32
    %c0_i32_1 = arith.constant 0 : i32
    %c0_i32_2 = arith.constant 0 : i32
    return %c0_i32, %c0_i32_0, %c0_i32_1 : i32, i32, i32
  }
  func.func @transform_15(%arg0: i32) -> (i32, i32) {
    %c0_i32 = arith.constant 0 : i32
    %c0_i32_0 = arith.constant 0 : i32
    %c0_i32_1 = arith.constant 0 : i32
    return %c0_i32, %c0_i32_0 : i32, i32
  }
  func.func @transform_16(%arg0: i32) -> (i32, i32) {
    %c0_i32 = arith.constant 0 : i32
    %c0_i32_0 = arith.constant 0 : i32
    %c0_i32_1 = arith.constant 0 : i32
    return %c0_i32, %c0_i32_0 : i32, i32
  }
}

</mosaic_0001>

<llo_original>
// kernel: caption_model_forward.1
$region0: #{caption_model_forward.1}
  #allocation0 [shape = 'u32[]', space=smem, size = 0x4, offset = 0x4, fixed_abs, tag = 'smem constant byte address 0x4 - core index']
  #allocation1 [shape = 'u32[144,128]{1,0:T(1,128)}', space=vmem, size = 0x12000, scoped, tag = 'internal scratch']
  %s0 = inlined_call_operand.vmem [shape: s32[2,64,1], index: 0, kind: input, shape index: {}]
  %s1 = inlined_call_operand.vmem [shape: f32[8,2048], index: 1, kind: input, shape index: {}]
  %s2 = inlined_call_operand.vmem [shape: f32[64,256], index: 2, kind: input, shape index: {}]
  %s3 = inlined_call_operand.vmem [shape: f32[64,32], index: 3, kind: input, shape index: {}]
  %s4 = inlined_call_operand.vmem [shape: f32[64,8], index: 4, kind: input, shape index: {}]
  %s5 = inlined_call_operand.vmem [shape: f32[256,32], index: 5, kind: input, shape index: {}]
  %s6 = inlined_call_operand.vmem [shape: f32[256,8], index: 6, kind: input, shape index: {}]
  %s7 = inlined_call_operand.vmem [shape: f32[2048,32], index: 7, kind: input, shape index: {}]
  %s8 = inlined_call_operand.vmem [shape: f32[128,32], index: 8, kind: input, shape index: {}]
  %s9 = inlined_call_operand.vmem [shape: f32[32,128], index: 9, kind: input, shape index: {}]
  %s10 = inlined_call_operand.vmem [shape: f32[8,32,32], index: 10, kind: input, shape index: {}]
  %s11 = inlined_call_operand.vmem [shape: f32[2,32,128], index: 11, kind: input, shape index: {}]
  %s12 = inlined_call_operand.vmem [shape: f32[2,128,32], index: 12, kind: input, shape index: {}]
  %s13 = inlined_call_operand.vmem [shape: f32[20,1,32], index: 13, kind: input, shape index: {}]
  %s14 = inlined_call_operand.vmem [shape: f32[2,1,128], index: 14, kind: input, shape index: {}]
  %s15 = inlined_call_operand.vmem [shape: f32[64,128], index: 15, kind: output, shape index: {0}]
  %s16 = inlined_call_operand.hbm [shape: f32[1,1], index: 16, kind: output, shape index: {1}]
  %17 = xla_tuple %s15, %s16
  %s18 = sld [smem:[#allocation0]]
  $region78: #{caption_model_forward.1} parent=0
    _
  %s20 = ssub.s32 1, %s18
  %s21 = scalar_select 0, %s20, %s18
  $region1: #{caption_model_forward.1} parent=0
    #allocation2 [shape = 'u8[512]{0}', space=vmem, size = 0x400, scoped, tag = 'output window, operand 1, single buffered']
    #allocation3 [shape = 's32[1]{0}', space=sflag, size = 0x4, scoped, tag = 'scoped memory for caption_model_forward.1']
    %22 = vsyncpa [#allocation3], 0
    // Predicated region
    $region2: #{caption_model_forward.1} parent=1 // pred_check
      _
    $region3: #{caption_model_forward.1} parent=1 // pred_check_branch
      %24 = sbr.rel (0) target = $region5
    $region4: #{caption_model_forward.1} parent=1 // pred_region
      _
    $region5: #{caption_model_forward.1} parent=1 // pred_fallthru
      _
    // Predicated region
    $region6: #{caption_model_forward.1} parent=1 // pred_check
      _
    $region7: #{caption_model_forward.1} parent=1 // pred_check_branch
      %26 = sbr.rel (0) target = $region9
    $region8: #{caption_model_forward.1} parent=1 // pred_region
      _
    $region9: #{caption_model_forward.1} parent=1 // pred_fallthru
      _
    // Predicated region
    $region10: #{caption_model_forward.1} parent=1 // pred_check
      _
    $region11: #{caption_model_forward.1} parent=1 // pred_check_branch
      %28 = sbr.rel (0) target = $region13
    $region12: #{caption_model_forward.1} parent=1 // pred_region
      _
    $region13: #{caption_model_forward.1} parent=1 // pred_fallthru
      _
    // Predicated region
    $region14: #{caption_model_forward.1} parent=1 // pred_check
      _
    $region15: #{caption_model_forward.1} parent=1 // pred_check_branch
      %30 = sbr.rel (0) target = $region17
    $region16: #{caption_model_forward.1} parent=1 // pred_region
      _
    $region17: #{caption_model_forward.1} parent=1 // pred_fallthru
      _
    // Predicated region
    $region18: #{caption_model_forward.1} parent=1 // pred_check
      _
    $region19: #{caption_model_forward.1} parent=1 // pred_check_branch
      %32 = sbr.rel (0) target = $region21
    $region20: #{caption_model_forward.1} parent=1 // pred_region
      _
    $region21: #{caption_model_forward.1} parent=1 // pred_fallthru
      _
    // Predicated region
    $region22: #{caption_model_forward.1} parent=1 // pred_check
      _
    $region23: #{caption_model_forward.1} parent=1 // pred_check_branch
      %34 = sbr.rel (0) target = $region25
    $region24: #{caption_model_forward.1} parent=1 // pred_region
      _
    $region25: #{caption_model_forward.1} parent=1 // pred_fallthru
      _
    // Predicated region
    $region26: #{caption_model_forward.1} parent=1 // pred_check
      _
    $region27: #{caption_model_forward.1} parent=1 // pred_check_branch
      %36 = sbr.rel (0) target = $region29
    $region28: #{caption_model_forward.1} parent=1 // pred_region
      _
    $region29: #{caption_model_forward.1} parent=1 // pred_fallthru
      _
    // Predicated region
    $region30: #{caption_model_forward.1} parent=1 // pred_check
      _
    $region31: #{caption_model_forward.1} parent=1 // pred_check_branch
      %38 = sbr.rel (0) target = $region33
    $region32: #{caption_model_forward.1} parent=1 // pred_region
      _
    $region33: #{caption_model_forward.1} parent=1 // pred_fallthru
      _
    // Predicated region
    $region34: #{caption_model_forward.1} parent=1 // pred_check
      _
    $region35: #{caption_model_forward.1} parent=1 // pred_check_branch
      %40 = sbr.rel (0) target = $region37
    $region36: #{caption_model_forward.1} parent=1 // pred_region
      _
    $region37: #{caption_model_forward.1} parent=1 // pred_fallthru
      _
    // Predicated region
    $region38: #{caption_model_forward.1} parent=1 // pred_check
      _
    $region39: #{caption_model_forward.1} parent=1 // pred_check_branch
      %42 = sbr.rel (0) target = $region41
    $region40: #{caption_model_forward.1} parent=1 // pred_region
      _
    $region41: #{caption_model_forward.1} parent=1 // pred_fallthru
      _
    // Predicated region
    $region42: #{caption_model_forward.1} parent=1 // pred_check
      _
    $region43: #{caption_model_forward.1} parent=1 // pred_check_branch
      %44 = sbr.rel (0) target = $region45
    $region44: #{caption_model_forward.1} parent=1 // pred_region
      _
    $region45: #{caption_model_forward.1} parent=1 // pred_fallthru
      _
    // Predicated region
    $region46: #{caption_model_forward.1} parent=1 // pred_check
      _
    $region47: #{caption_model_forward.1} parent=1 // pred_check_branch
      %46 = sbr.rel (0) target = $region49
    $region48: #{caption_model_forward.1} parent=1 // pred_region
      _
    $region49: #{caption_model_forward.1} parent=1 // pred_fallthru
      _
    // Predicated region
    $region50: #{caption_model_forward.1} parent=1 // pred_check
      _
    $region51: #{caption_model_forward.1} parent=1 // pred_check_branch
      %48 = sbr.rel (0) target = $region53
    $region52: #{caption_model_forward.1} parent=1 // pred_region
      _
    $region53: #{caption_model_forward.1} parent=1 // pred_fallthru
      _
    // Predicated region
    $region54: #{caption_model_forward.1} parent=1 // pred_check
      _
    $region55: #{caption_model_forward.1} parent=1 // pred_check_branch
      %50 = sbr.rel (0) target = $region57
    $region56: #{caption_model_forward.1} parent=1 // pred_region
      _
    $region57: #{caption_model_forward.1} parent=1 // pred_fallthru
      _
    // Predicated region
    $region58: #{caption_model_forward.1} parent=1 // pred_check
      _
    $region59: #{caption_model_forward.1} parent=1 // pred_check_branch
      %52 = sbr.rel (0) target = $region61
    $region60: #{caption_model_forward.1} parent=1 // pred_region
      _
    $region61: #{caption_model_forward.1} parent=1 // pred_fallthru
      _
    %v53 = vld [vmem:[%s0] sm:$0xff]
    %v54 = vld [vmem:[%s0 + $0x8] sm:$0xff]
    %v55 = vld [vmem:[%s0 + $0x10] sm:$0xff]
    %v56 = vld [vmem:[%s0 + $0x18] sm:$0xff]
    %v57 = vld [vmem:[%s0 + $0x20] sm:$0xff]
    %v58 = vld [vmem:[%s0 + $0x28] sm:$0xff]
    %v59 = vld [vmem:[%s0 + $0x30] sm:$0xff]
    %v60 = vld [vmem:[%s0 + $0x38] sm:$0xff]
    %s61 = scalar_lea.vmem %s0, 64
    %v62 = vld [vmem:[%s61] sm:$0xff]
    %v63 = vld [vmem:[%s61 + $0x8] sm:$0xff]
    %v64 = vld [vmem:[%s61 + $0x10] sm:$0xff]
    %v65 = vld [vmem:[%s61 + $0x18] sm:$0xff]
    %v66 = vld [vmem:[%s61 + $0x20] sm:$0xff]
    %v67 = vld [vmem:[%s61 + $0x28] sm:$0xff]
    %v68 = vld [vmem:[%s61 + $0x30] sm:$0xff]
    %v69 = vld [vmem:[%s61 + $0x38] sm:$0xff]
    %v70 = vlaneseq
    %v71 = vand.u32 %v70, 127
    %72 = vset.pattern.permute.xlu0 0
    %73 = vperm.xlu0 %72, %v53
    %v74 = vpop.permute.xlu0 %73
    %75 = vset.pattern.permute.xlu0 0
    %76 = vperm.xlu0 %75, %v54
    %v77 = vpop.permute.xlu0 %76
    %78 = vset.pattern.permute.xlu0 0
    %79 = vperm.xlu0 %78, %v55
    %v80 = vpop.permute.xlu0 %79
    %81 = vset.pattern.permute.xlu0 0
    %82 = vperm.xlu0 %81, %v56
    %v83 = vpop.permute.xlu0 %82
    %84 = vset.pattern.permute.xlu0 0
    %85 = vperm.xlu0 %84, %v57
    %v86 = vpop.permute.xlu0 %85
    %87 = vset.pattern.permute.xlu0 0
    %88 = vperm.xlu0 %87, %v58
    %v89 = vpop.permute.xlu0 %88
    %90 = vset.pattern.permute.xlu0 0
    %91 = vperm.xlu0 %90, %v59
    %v92 = vpop.permute.xlu0 %91
    %93 = vset.pattern.permute.xlu0 0
    %94 = vperm.xlu0 %93, %v60
    %v95 = vpop.permute.xlu0 %94
    %vm96 = vcmp.eq.s32.totalorder %v71, %v74
    %vm97 = vcmp.eq.s32.totalorder %v71, %v77
    %vm98 = vcmp.eq.s32.totalorder %v71, %v80
    %vm99 = vcmp.eq.s32.totalorder %v71, %v83
    %vm100 = vcmp.eq.s32.totalorder %v71, %v86
    %vm101 = vcmp.eq.s32.totalorder %v71, %v89
    %vm102 = vcmp.eq.s32.totalorder %v71, %v92
    %vm103 = vcmp.eq.s32.totalorder %v71, %v95
    %v104 = vsel %vm96, 1, 0
    %v105 = vsel %vm97, 1, 0
    %v106 = vsel %vm98, 1, 0
    %v107 = vsel %vm99, 1, 0
    %v108 = vsel %vm100, 1, 0
    %v109 = vsel %vm101, 1, 0
    %v110 = vsel %vm102, 1, 0
    %v111 = vsel %vm103, 1, 0
    %v112 = vcvt.s32.f32 %v104
    %v113 = vcvt.s32.f32 %v105
    %v114 = vcvt.s32.f32 %v106
    %v115 = vcvt.s32.f32 %v107
    %v116 = vcvt.s32.f32 %v108
    %v117 = vcvt.s32.f32 %v109
    %v118 = vcvt.s32.f32 %v110
    %v119 = vcvt.s32.f32 %v111
    %v120 = vld [vmem:[%s8] sm:$0xff]
    %v121 = vld [vmem:[%s8 + $0x8] sm:$0xff]
    %v122 = vld [vmem:[%s8 + $0x10] sm:$0xff]
    %v123 = vld [vmem:[%s8 + $0x18] sm:$0xff]
    %v124 = vld [vmem:[%s8 + $0x20] sm:$0xff]
    %v125 = vld [vmem:[%s8 + $0x28] sm:$0xff]
    %v126 = vld [vmem:[%s8 + $0x30] sm:$0xff]
    %v127 = vld [vmem:[%s8 + $0x38] sm:$0xff]
    %v128 = vld [vmem:[%s8 + $0x40] sm:$0xff]
    %v129 = vld [vmem:[%s8 + $0x48] sm:$0xff]
    %v130 = vld [vmem:[%s8 + $0x50] sm:$0xff]
    %v131 = vld [vmem:[%s8 + $0x58] sm:$0xff]
    %v132 = vld [vmem:[%s8 + $0x60] sm:$0xff]
    %v133 = vld [vmem:[%s8 + $0x68] sm:$0xff]
    %v134 = vld [vmem:[%s8 + $0x70] sm:$0xff]
    %v135 = vld [vmem:[%s8 + $0x78] sm:$0xff]
    %v136 = vld [vmem:[%s1] sm:$0xff]
    %v137 = vld [vmem:[%s1 + $0x8] sm:$0xff]
    %v138 = vld [vmem:[%s1 + $0x10] sm:$0xff]
    %v139 = vld [vmem:[%s1 + $0x18] sm:$0xff]
    %v140 = vld [vmem:[%s1 + $0x20] sm:$0xff]
    %v141 = vld [vmem:[%s1 + $0x28] sm:$0xff]
    %v142 = vld [vmem:[%s1 + $0x30] sm:$0xff]
    %v143 = vld [vmem:[%s1 + $0x38] sm:$0xff]
    %v144 = vld [vmem:[%s1 + $0x40] sm:$0xff]
    %v145 = vld [vmem:[%s1 + $0x48] sm:$0xff]
    %v146 = vld [vmem:[%s1 + $0x50] sm:$0xff]
    %v147 = vld [vmem:[%s1 + $0x58] sm:$0xff]
    %v148 = vld [vmem:[%s1 + $0x60] sm:$0xff]
    %v149 = vld [vmem:[%s1 + $0x68] sm:$0xff]
    %v150 = vld [vmem:[%s1 + $0x70] sm:$0xff]
    %v151 = vld [vmem:[%s1 + $0x78] sm:$0xff]
    %v152 = vld [vmem:[%s7] sm:$0xff]
    %v153 = vld [vmem:[%s7 + $0x8] sm:$0xff]
    %v154 = vld [vmem:[%s7 + $0x10] sm:$0xff]
    %v155 = vld [vmem:[%s7 + $0x18] sm:$0xff]
    %v156 = vld [vmem:[%s7 + $0x20] sm:$0xff]
    %v157 = vld [vmem:[%s7 + $0x28] sm:$0xff]
    %v158 = vld [vmem:[%s7 + $0x30] sm:$0xff]
    %v159 = vld [vmem:[%s7 + $0x38] sm:$0xff]
    %v160 = vld [vmem:[%s7 + $0x40] sm:$0xff]
    %v161 = vld [vmem:[%s7 + $0x48] sm:$0xff]
    %v162 = vld [vmem:[%s7 + $0x50] sm:$0xff]
    %v163 = vld [vmem:[%s7 + $0x58] sm:$0xff]
    %v164 = vld [vmem:[%s7 + $0x60] sm:$0xff]
    %v165 = vld [vmem:[%s7 + $0x68] sm:$0xff]
    %v166 = vld [vmem:[%s7 + $0x70] sm:$0xff]
    %v167 = vld [vmem:[%s7 + $0x78] sm:$0xff]
    %v168 = vld [vmem:[%s7 + $0x80] sm:$0xff]
    %v169 = vld [vmem:[%s7 + $0x88] sm:$0xff]
    %v170 = vld [vmem:[%s7 + $0x90] sm:$0xff]
    %v171 = vld [vmem:[%s7 + $0x98] sm:$0xff]
    %v172 = vld [vmem:[%s7 + $0xa0] sm:$0xff]
    %v173 = vld [vmem:[%s7 + $0xa8] sm:$0xff]
    %v174 = vld [vmem:[%s7 + $0xb0] sm:$0xff]
    %v175 = vld [vmem:[%s7 + $0xb8] sm:$0xff]
    %v176 = vld [vmem:[%s7 + $0xc0] sm:$0xff]
    %v177 = vld [vmem:[%s7 + $0xc8] sm:$0xff]
    %v178 = vld [vmem:[%s7 + $0xd0] sm:$0xff]
    %v179 = vld [vmem:[%s7 + $0xd8] sm:$0xff]
    %v180 = vld [vmem:[%s7 + $0xe0] sm:$0xff]
    %v181 = vld [vmem:[%s7 + $0xe8] sm:$0xff]
    %v182 = vld [vmem:[%s7 + $0xf0] sm:$0xff]
    %v183 = vld [vmem:[%s7 + $0xf8] sm:$0xff]
    %v184 = vld [vmem:[%s7 + $0x100] sm:$0xff]
    %v185 = vld [vmem:[%s7 + $0x108] sm:$0xff]
    %v186 = vld [vmem:[%s7 + $0x110] sm:$0xff]
    %v187 = vld [vmem:[%s7 + $0x118] sm:$0xff]
    %v188 = vld [vmem:[%s7 + $0x120] sm:$0xff]
    %v189 = vld [vmem:[%s7 + $0x128] sm:$0xff]
    %v190 = vld [vmem:[%s7 + $0x130] sm:$0xff]
    %v191 = vld [vmem:[%s7 + $0x138] sm:$0xff]
    %v192 = vld [vmem:[%s7 + $0x140] sm:$0xff]
    %v193 = vld [vmem:[%s7 + $0x148] sm:$0xff]
    %v194 = vld [vmem:[%s7 + $0x150] sm:$0xff]
    %v195 = vld [vmem:[%s7 + $0x158] sm:$0xff]
    %v196 = vld [vmem:[%s7 + $0x160] sm:$0xff]
    %v197 = vld [vmem:[%s7 + $0x168] sm:$0xff]
    %v198 = vld [vmem:[%s7 + $0x170] sm:$0xff]
    %v199 = vld [vmem:[%s7 + $0x178] sm:$0xff]
    %v200 = vld [vmem:[%s7 + $0x180] sm:$0xff]
    %v201 = vld [vmem:[%s7 + $0x188] sm:$0xff]
    %v202 = vld [vmem:[%s7 + $0x190] sm:$0xff]
    %v203 = vld [vmem:[%s7 + $0x198] sm:$0xff]
    %v204 = vld [vmem:[%s7 + $0x1a0] sm:$0xff]
    %v205 = vld [vmem:[%s7 + $0x1a8] sm:$0xff]
    %v206 = vld [vmem:[%s7 + $0x1b0] sm:$0xff]
    %v207 = vld [vmem:[%s7 + $0x1b8] sm:$0xff]
    %v208 = vld [vmem:[%s7 + $0x1c0] sm:$0xff]
    %v209 = vld [vmem:[%s7 + $0x1c8] sm:$0xff]
    %v210 = vld [vmem:[%s7 + $0x1d0] sm:$0xff]
    %v211 = vld [vmem:[%s7 + $0x1d8] sm:$0xff]
    %v212 = vld [vmem:[%s7 + $0x1e0] sm:$0xff]
    %v213 = vld [vmem:[%s7 + $0x1e8] sm:$0xff]
    %v214 = vld [vmem:[%s7 + $0x1f0] sm:$0xff]
    %v215 = vld [vmem:[%s7 + $0x1f8] sm:$0xff]
    %v216 = vld [vmem:[%s7 + $0x200] sm:$0xff]
    %v217 = vld [vmem:[%s7 + $0x208] sm:$0xff]
    %v218 = vld [vmem:[%s7 + $0x210] sm:$0xff]
    %v219 = vld [vmem:[%s7 + $0x218] sm:$0xff]
    %v220 = vld [vmem:[%s7 + $0x220] sm:$0xff]
    %v221 = vld [vmem:[%s7 + $0x228] sm:$0xff]
    %v222 = vld [vmem:[%s7 + $0x230] sm:$0xff]
    %v223 = vld [vmem:[%s7 + $0x238] sm:$0xff]
    %v224 = vld [vmem:[%s7 + $0x240] sm:$0xff]
    %v225 = vld [vmem:[%s7 + $0x248] sm:$0xff]
    %v226 = vld [vmem:[%s7 + $0x250] sm:$0xff]
    %v227 = vld [vmem:[%s7 + $0x258] sm:$0xff]
    %v228 = vld [vmem:[%s7 + $0x260] sm:$0xff]
    %v229 = vld [vmem:[%s7 + $0x268] sm:$0xff]
    %v230 = vld [vmem:[%s7 + $0x270] sm:$0xff]
    %v231 = vld [vmem:[%s7 + $0x278] sm:$0xff]
    %v232 = vld [vmem:[%s7 + $0x280] sm:$0xff]
    %v233 = vld [vmem:[%s7 + $0x288] sm:$0xff]
    %v234 = vld [vmem:[%s7 + $0x290] sm:$0xff]
    %v235 = vld [vmem:[%s7 + $0x298] sm:$0xff]
    %v236 = vld [vmem:[%s7 + $0x2a0] sm:$0xff]
    %v237 = vld [vmem:[%s7 + $0x2a8] sm:$0xff]
    %v238 = vld [vmem:[%s7 + $0x2b0] sm:$0xff]
    %v239 = vld [vmem:[%s7 + $0x2b8] sm:$0xff]
    %v240 = vld [vmem:[%s7 + $0x2c0] sm:$0xff]
    %v241 = vld [vmem:[%s7 + $0x2c8] sm:$0xff]
    %v242 = vld [vmem:[%s7 + $0x2d0] sm:$0xff]
    %v243 = vld [vmem:[%s7 + $0x2d8] sm:$0xff]
    %v244 = vld [vmem:[%s7 + $0x2e0] sm:$0xff]
    %v245 = vld [vmem:[%s7 + $0x2e8] sm:$0xff]
    %v246 = vld [vmem:[%s7 + $0x2f0] sm:$0xff]
    %v247 = vld [vmem:[%s7 + $0x2f8] sm:$0xff]
    %v248 = vld [vmem:[%s7 + $0x300] sm:$0xff]
    %v249 = vld [vmem:[%s7 + $0x308] sm:$0xff]
    %v250 = vld [vmem:[%s7 + $0x310] sm:$0xff]
    %v251 = vld [vmem:[%s7 + $0x318] sm:$0xff]
    %v252 = vld [vmem:[%s7 + $0x320] sm:$0xff]
    %v253 = vld [vmem:[%s7 + $0x328] sm:$0xff]
    %v254 = vld [vmem:[%s7 + $0x330] sm:$0xff]
    %v255 = vld [vmem:[%s7 + $0x338] sm:$0xff]
    %v256 = vld [vmem:[%s7 + $0x340] sm:$0xff]
    %v257 = vld [vmem:[%s7 + $0x348] sm:$0xff]
    %v258 = vld [vmem:[%s7 + $0x350] sm:$0xff]
    %v259 = vld [vmem:[%s7 + $0x358] sm:$0xff]
    %v260 = vld [vmem:[%s7 + $0x360] sm:$0xff]
    %v261 = vld [vmem:[%s7 + $0x368] sm:$0xff]
    %v262 = vld [vmem:[%s7 + $0x370] sm:$0xff]
    %v263 = vld [vmem:[%s7 + $0x378] sm:$0xff]
    %v264 = vld [vmem:[%s7 + $0x380] sm:$0xff]
    %v265 = vld [vmem:[%s7 + $0x388] sm:$0xff]
    %v266 = vld [vmem:[%s7 + $0x390] sm:$0xff]
    %v267 = vld [vmem:[%s7 + $0x398] sm:$0xff]
    %v268 = vld [vmem:[%s7 + $0x3a0] sm:$0xff]
    %v269 = vld [vmem:[%s7 + $0x3a8] sm:$0xff]
    %v270 = vld [vmem:[%s7 + $0x3b0] sm:$0xff]
    %v271 = vld [vmem:[%s7 + $0x3b8] sm:$0xff]
    %v272 = vld [vmem:[%s7 + $0x3c0] sm:$0xff]
    %v273 = vld [vmem:[%s7 + $0x3c8] sm:$0xff]
    %v274 = vld [vmem:[%s7 + $0x3d0] sm:$0xff]
    %v275 = vld [vmem:[%s7 + $0x3d8] sm:$0xff]
    %v276 = vld [vmem:[%s7 + $0x3e0] sm:$0xff]
    %v277 = vld [vmem:[%s7 + $0x3e8] sm:$0xff]
    %v278 = vld [vmem:[%s7 + $0x3f0] sm:$0xff]
    %v279 = vld [vmem:[%s7 + $0x3f8] sm:$0xff]
    %v280 = vld [vmem:[%s7 + $0x400] sm:$0xff]
    %v281 = vld [vmem:[%s7 + $0x408] sm:$0xff]
    %v282 = vld [vmem:[%s7 + $0x410] sm:$0xff]
    %v283 = vld [vmem:[%s7 + $0x418] sm:$0xff]
    %v284 = vld [vmem:[%s7 + $0x420] sm:$0xff]
    %v285 = vld [vmem:[%s7 + $0x428] sm:$0xff]
    %v286 = vld [vmem:[%s7 + $0x430] sm:$0xff]
    %v287 = vld [vmem:[%s7 + $0x438] sm:$0xff]
    %v288 = vld [vmem:[%s7 + $0x440] sm:$0xff]
    %v289 = vld [vmem:[%s7 + $0x448] sm:$0xff]
    %v290 = vld [vmem:[%s7 + $0x450] sm:$0xff]
    %v291 = vld [vmem:[%s7 + $0x458] sm:$0xff]
    %v292 = vld [vmem:[%s7 + $0x460] sm:$0xff]
    %v293 = vld [vmem:[%s7 + $0x468] sm:$0xff]
    %v294 = vld [vmem:[%s7 + $0x470] sm:$0xff]
    %v295 = vld [vmem:[%s7 + $0x478] sm:$0xff]
    %v296 = vld [vmem:[%s7 + $0x480] sm:$0xff]
    %v297 = vld [vmem:[%s7 + $0x488] sm:$0xff]
    %v298 = vld [vmem:[%s7 + $0x490] sm:$0xff]
    %v299 = vld [vmem:[%s7 + $0x498] sm:$0xff]
    %v300 = vld [vmem:[%s7 + $0x4a0] sm:$0xff]
    %v301 = vld [vmem:[%s7 + $0x4a8] sm:$0xff]
    %v302 = vld [vmem:[%s7 + $0x4b0] sm:$0xff]
    %v303 = vld [vmem:[%s7 + $0x4b8] sm:$0xff]
    %v304 = vld [vmem:[%s7 + $0x4c0] sm:$0xff]
    %v305 = vld [vmem:[%s7 + $0x4c8] sm:$0xff]
    %v306 = vld [vmem:[%s7 + $0x4d0] sm:$0xff]
    %v307 = vld [vmem:[%s7 + $0x4d8] sm:$0xff]
    %v308 = vld [vmem:[%s7 + $0x4e0] sm:$0xff]
    %v309 = vld [vmem:[%s7 + $0x4e8] sm:$0xff]
    %v310 = vld [vmem:[%s7 + $0x4f0] sm:$0xff]
    %v311 = vld [vmem:[%s7 + $0x4f8] sm:$0xff]
    %v312 = vld [vmem:[%s7 + $0x500] sm:$0xff]
    %v313 = vld [vmem:[%s7 + $0x508] sm:$0xff]
    %v314 = vld [vmem:[%s7 + $0x510] sm:$0xff]
    %v315 = vld [vmem:[%s7 + $0x518] sm:$0xff]
    %v316 = vld [vmem:[%s7 + $0x520] sm:$0xff]
    %v317 = vld [vmem:[%s7 + $0x528] sm:$0xff]
    %v318 = vld [vmem:[%s7 + $0x530] sm:$0xff]
    %v319 = vld [vmem:[%s7 + $0x538] sm:$0xff]
    %v320 = vld [vmem:[%s7 + $0x540] sm:$0xff]
    %v321 = vld [vmem:[%s7 + $0x548] sm:$0xff]
    %v322 = vld [vmem:[%s7 + $0x550] sm:$0xff]
    %v323 = vld [vmem:[%s7 + $0x558] sm:$0xff]
    %v324 = vld [vmem:[%s7 + $0x560] sm:$0xff]
    %v325 = vld [vmem:[%s7 + $0x568] sm:$0xff]
    %v326 = vld [vmem:[%s7 + $0x570] sm:$0xff]
    %v327 = vld [vmem:[%s7 + $0x578] sm:$0xff]
    %v328 = vld [vmem:[%s7 + $0x580] sm:$0xff]
    %v329 = vld [vmem:[%s7 + $0x588] sm:$0xff]
    %v330 = vld [vmem:[%s7 + $0x590] sm:$0xff]
    %v331 = vld [vmem:[%s7 + $0x598] sm:$0xff]
    %v332 = vld [vmem:[%s7 + $0x5a0] sm:$0xff]
    %v333 = vld [vmem:[%s7 + $0x5a8] sm:$0xff]
    %v334 = vld [vmem:[%s7 + $0x5b0] sm:$0xff]
    %v335 = vld [vmem:[%s7 + $0x5b8] sm:$0xff]
    %v336 = vld [vmem:[%s7 + $0x5c0] sm:$0xff]
    %v337 = vld [vmem:[%s7 + $0x5c8] sm:$0xff]
    %v338 = vld [vmem:[%s7 + $0x5d0] sm:$0xff]
    %v339 = vld [vmem:[%s7 + $0x5d8] sm:$0xff]
    %v340 = vld [vmem:[%s7 + $0x5e0] sm:$0xff]
    %v341 = vld [vmem:[%s7 + $0x5e8] sm:$0xff]
    %v342 = vld [vmem:[%s7 + $0x5f0] sm:$0xff]
    %v343 = vld [vmem:[%s7 + $0x5f8] sm:$0xff]
    %v344 = vld [vmem:[%s7 + $0x600] sm:$0xff]
    %v345 = vld [vmem:[%s7 + $0x608] sm:$0xff]
    %v346 = vld [vmem:[%s7 + $0x610] sm:$0xff]
    %v347 = vld [vmem:[%s7 + $0x618] sm:$0xff]
    %v348 = vld [vmem:[%s7 + $0x620] sm:$0xff]
    %v349 = vld [vmem:[%s7 + $0x628] sm:$0xff]
    %v350 = vld [vmem:[%s7 + $0x630] sm:$0xff]
    %v351 = vld [vmem:[%s7 + $0x638] sm:$0xff]
    %v352 = vld [vmem:[%s7 + $0x640] sm:$0xff]
    %v353 = vld [vmem:[%s7 + $0x648] sm:$0xff]
    %v354 = vld [vmem:[%s7 + $0x650] sm:$0xff]
    %v355 = vld [vmem:[%s7 + $0x658] sm:$0xff]
    %v356 = vld [vmem:[%s7 + $0x660] sm:$0xff]
    %v357 = vld [vmem:[%s7 + $0x668] sm:$0xff]
    %v358 = vld [vmem:[%s7 + $0x670] sm:$0xff]
    %v359 = vld [vmem:[%s7 + $0x678] sm:$0xff]
    %v360 = vld [vmem:[%s7 + $0x680] sm:$0xff]
    %v361 = vld [vmem:[%s7 + $0x688] sm:$0xff]
    %v362 = vld [vmem:[%s7 + $0x690] sm:$0xff]
    %v363 = vld [vmem:[%s7 + $0x698] sm:$0xff]
    %v364 = vld [vmem:[%s7 + $0x6a0] sm:$0xff]
    %v365 = vld [vmem:[%s7 + $0x6a8] sm:$0xff]
    %v366 = vld [vmem:[%s7 + $0x6b0] sm:$0xff]
    %v367 = vld [vmem:[%s7 + $0x6b8] sm:$0xff]
    %v368 = vld [vmem:[%s7 + $0x6c0] sm:$0xff]
    %v369 = vld [vmem:[%s7 + $0x6c8] sm:$0xff]
    %v370 = vld [vmem:[%s7 + $0x6d0] sm:$0xff]
    %v371 = vld [vmem:[%s7 + $0x6d8] sm:$0xff]
    %v372 = vld [vmem:[%s7 + $0x6e0] sm:$0xff]
    %v373 = vld [vmem:[%s7 + $0x6e8] sm:$0xff]
    %v374 = vld [vmem:[%s7 + $0x6f0] sm:$0xff]
    %v375 = vld [vmem:[%s7 + $0x6f8] sm:$0xff]
    %v376 = vld [vmem:[%s7 + $0x700] sm:$0xff]
    %v377 = vld [vmem:[%s7 + $0x708] sm:$0xff]
    %v378 = vld [vmem:[%s7 + $0x710] sm:$0xff]
    %v379 = vld [vmem:[%s7 + $0x718] sm:$0xff]
    %v380 = vld [vmem:[%s7 + $0x720] sm:$0xff]
    %v381 = vld [vmem:[%s7 + $0x728] sm:$0xff]
    %v382 = vld [vmem:[%s7 + $0x730] sm:$0xff]
    %v383 = vld [vmem:[%s7 + $0x738] sm:$0xff]
    %v384 = vld [vmem:[%s7 + $0x740] sm:$0xff]
    %v385 = vld [vmem:[%s7 + $0x748] sm:$0xff]
    %v386 = vld [vmem:[%s7 + $0x750] sm:$0xff]
    %v387 = vld [vmem:[%s7 + $0x758] sm:$0xff]
    %v388 = vld [vmem:[%s7 + $0x760] sm:$0xff]
    %v389 = vld [vmem:[%s7 + $0x768] sm:$0xff]
    %v390 = vld [vmem:[%s7 + $0x770] sm:$0xff]
    %v391 = vld [vmem:[%s7 + $0x778] sm:$0xff]
    %v392 = vld [vmem:[%s7 + $0x780] sm:$0xff]
    %v393 = vld [vmem:[%s7 + $0x788] sm:$0xff]
    %v394 = vld [vmem:[%s7 + $0x790] sm:$0xff]
    %v395 = vld [vmem:[%s7 + $0x798] sm:$0xff]
    %v396 = vld [vmem:[%s7 + $0x7a0] sm:$0xff]
    %v397 = vld [vmem:[%s7 + $0x7a8] sm:$0xff]
    %v398 = vld [vmem:[%s7 + $0x7b0] sm:$0xff]
    %v399 = vld [vmem:[%s7 + $0x7b8] sm:$0xff]
    %v400 = vld [vmem:[%s7 + $0x7c0] sm:$0xff]
    %v401 = vld [vmem:[%s7 + $0x7c8] sm:$0xff]
    %v402 = vld [vmem:[%s7 + $0x7d0] sm:$0xff]
    %v403 = vld [vmem:[%s7 + $0x7d8] sm:$0xff]
    %v404 = vld [vmem:[%s7 + $0x7e0] sm:$0xff]
    %v405 = vld [vmem:[%s7 + $0x7e8] sm:$0xff]
    %v406 = vld [vmem:[%s7 + $0x7f0] sm:$0xff]
    %v407 = vld [vmem:[%s7 + $0x7f8] sm:$0xff]
    %408 = vmatprep.subr.mxu0 0.0
    %409 = vmatpush1.msra.mxu0 %v152
    %410 = vmatprep.subr.mxu0 0.0
    %411 = vmatpush1.msra.mxu0 %v153
    %412 = vmatprep.subr.mxu0 0.0
    %413 = vmatpush1.msra.mxu0 %v154
    %414 = vmatprep.subr.mxu0 0.0
    %415 = vmatpush1.msra.mxu0 %v155
    %416 = vmatprep.subr.mxu0 0.0
    %417 = vmatpush1.msra.mxu0 %v156
    %418 = vmatprep.subr.mxu0 0.0
    %419 = vmatpush1.msra.mxu0 %v157
    %420 = vmatprep.subr.mxu0 0.0
    %421 = vmatpush1.msra.mxu0 %v158
    %422 = vmatprep.subr.mxu0 0.0
    %423 = vmatpush1.msra.mxu0 %v159
    %424 = vmatprep.subr.mxu0 0.0
    %425 = vmatpush1.msra.mxu0 %v160
    %426 = vmatprep.subr.mxu0 0.0
    %427 = vmatpush1.msra.mxu0 %v161
    %428 = vmatprep.subr.mxu0 0.0
    %429 = vmatpush1.msra.mxu0 %v162
    %430 = vmatprep.subr.mxu0 0.0
    %431 = vmatpush1.msra.mxu0 %v163
    %432 = vmatprep.subr.mxu0 0.0
    %433 = vmatpush1.msra.mxu0 %v164
    %434 = vmatprep.subr.mxu0 0.0
    %435 = vmatpush1.msra.mxu0 %v165
    %436 = vmatprep.subr.mxu0 0.0
    %437 = vmatpush1.msra.mxu0 %v166
    %438 = vmatprep.subr.mxu0 0.0
    %439 = vmatpush1.msra.mxu0 %v167
    %440 = vmatprep.subr.mxu0 0.0
    %441 = vmatpush1.msra.mxu0 %v168
    %442 = vmatprep.subr.mxu0 0.0
    %443 = vmatpush1.msra.mxu0 %v169
    %444 = vmatprep.subr.mxu0 0.0
    %445 = vmatpush1.msra.mxu0 %v170
    %446 = vmatprep.subr.mxu0 0.0
    %447 = vmatpush1.msra.mxu0 %v171
    %448 = vmatprep.subr.mxu0 0.0
    %449 = vmatpush1.msra.mxu0 %v172
    %450 = vmatprep.subr.mxu0 0.0
    %451 = vmatpush1.msra.mxu0 %v173
    %452 = vmatprep.subr.mxu0 0.0
    %453 = vmatpush1.msra.mxu0 %v174
    %454 = vmatprep.subr.mxu0 0.0
    %455 = vmatpush1.msra.mxu0 %v175
    %456 = vmatprep.subr.mxu0 0.0
    %457 = vmatpush1.msra.mxu0 %v176
    %458 = vmatprep.subr.mxu0 0.0
    %459 = vmatpush1.msra.mxu0 %v177
    %460 = vmatprep.subr.mxu0 0.0
    %461 = vmatpush1.msra.mxu0 %v178
    %462 = vmatprep.subr.mxu0 0.0
    %463 = vmatpush1.msra.mxu0 %v179
    %464 = vmatprep.subr.mxu0 0.0
    %465 = vmatpush1.msra.mxu0 %v180
    %466 = vmatprep.subr.mxu0 0.0
    %467 = vmatpush1.msra.mxu0 %v181
    %468 = vmatprep.subr.mxu0 0.0
    %469 = vmatpush1.msra.mxu0 %v182
    %470 = vmatprep.subr.mxu0 0.0
    %471 = vmatpush1.msra.mxu0 %v183
    %472 = vmatprep.mubr.f32.mxu0 %v137
    %473 = vmatmul.mubr.f32.gmra.mrb[0].mxu0 %v136
    %v474 = vpop.f32.mrb[0].mxu0
    %v475 = vadd.f32 0.0, %v474
    %v476 = vpop.f32.mrb[0].mxu0
    %477 = vdwg.mxu0
    %478 = vmatprep.subr.mxu0 0.0
    %479 = vmatpush1.msra.mxu0 %v184
    %480 = vmatprep.subr.mxu0 0.0
    %481 = vmatpush1.msra.mxu0 %v185
    %482 = vmatprep.subr.mxu0 0.0
    %483 = vmatpush1.msra.mxu0 %v186
    %484 = vmatprep.subr.mxu0 0.0
    %485 = vmatpush1.msra.mxu0 %v187
    %486 = vmatprep.subr.mxu0 0.0
    %487 = vmatpush1.msra.mxu0 %v188
    %488 = vmatprep.subr.mxu0 0.0
    %489 = vmatpush1.msra.mxu0 %v189
    %490 = vmatprep.subr.mxu0 0.0
    %491 = vmatpush1.msra.mxu0 %v190
    %492 = vmatprep.subr.mxu0 0.0
    %493 = vmatpush1.msra.mxu0 %v191
    %494 = vmatprep.subr.mxu0 0.0
    %495 = vmatpush1.msra.mxu0 %v192
    %496 = vmatprep.subr.mxu0 0.0
    %497 = vmatpush1.msra.mxu0 %v193
    %498 = vmatprep.subr.mxu0 0.0
    %499 = vmatpush1.msra.mxu0 %v194
    %500 = vmatprep.subr.mxu0 0.0
    %501 = vmatpush1.msra.mxu0 %v195
    %502 = vmatprep.subr.mxu0 0.0
    %503 = vmatpush1.msra.mxu0 %v196
    %504 = vmatprep.subr.mxu0 0.0
    %505 = vmatpush1.msra.mxu0 %v197
    %506 = vmatprep.subr.mxu0 0.0
    %507 = vmatpush1.msra.mxu0 %v198
    %508 = vmatprep.subr.mxu0 0.0
    %509 = vmatpush1.msra.mxu0 %v199
    %510 = vmatprep.subr.mxu0 0.0
    %511 = vmatpush1.msra.mxu0 %v200
    %512 = vmatprep.subr.mxu0 0.0
    %513 = vmatpush1.msra.mxu0 %v201
    %514 = vmatprep.subr.mxu0 0.0
    %515 = vmatpush1.msra.mxu0 %v202
    %516 = vmatprep.subr.mxu0 0.0
    %517 = vmatpush1.msra.mxu0 %v203
    %518 = vmatprep.subr.mxu0 0.0
    %519 = vmatpush1.msra.mxu0 %v204
    %520 = vmatprep.subr.mxu0 0.0
    %521 = vmatpush1.msra.mxu0 %v205
    %522 = vmatprep.subr.mxu0 0.0
    %523 = vmatpush1.msra.mxu0 %v206
    %524 = vmatprep.subr.mxu0 0.0
    %525 = vmatpush1.msra.mxu0 %v207
    %526 = vmatprep.subr.mxu0 0.0
    %527 = vmatpush1.msra.mxu0 %v208
    %528 = vmatprep.subr.mxu0 0.0
    %529 = vmatpush1.msra.mxu0 %v209
    %530 = vmatprep.subr.mxu0 0.0
    %531 = vmatpush1.msra.mxu0 %v210
    %532 = vmatprep.subr.mxu0 0.0
    %533 = vmatpush1.msra.mxu0 %v211
    %534 = vmatprep.subr.mxu0 0.0
    %535 = vmatpush1.msra.mxu0 %v212
    %536 = vmatprep.subr.mxu0 0.0
    %537 = vmatpush1.msra.mxu0 %v213
    %538 = vmatprep.subr.mxu0 0.0
    %539 = vmatpush1.msra.mxu0 %v214
    %540 = vmatprep.subr.mxu0 0.0
    %541 = vmatpush1.msra.mxu0 %v215
    %542 = vmatprep.mubr.f32.mxu0 %v139
    %543 = vmatmul.mubr.f32.gmra.mrb[0].mxu0 %v138
    %v544 = vpop.f32.mrb[0].mxu0
    %v545 = vadd.f32 %v475, %v544
    %v546 = vpop.f32.mrb[0].mxu0
    %547 = vdwg.mxu0
    %548 = vmatprep.subr.mxu0 0.0
    %549 = vmatpush1.msra.mxu0 %v216
    %550 = vmatprep.subr.mxu0 0.0
    %551 = vmatpush1.msra.mxu0 %v217
    %552 = vmatprep.subr.mxu0 0.0
    %553 = vmatpush1.msra.mxu0 %v218
    %554 = vmatprep.subr.mxu0 0.0
    %555 = vmatpush1.msra.mxu0 %v219
    %556 = vmatprep.subr.mxu0 0.0
    %557 = vmatpush1.msra.mxu0 %v220
    %558 = vmatprep.subr.mxu0 0.0
    %559 = vmatpush1.msra.mxu0 %v221
    %560 = vmatprep.subr.mxu0 0.0
    %561 = vmatpush1.msra.mxu0 %v222
    %562 = vmatprep.subr.mxu0 0.0
    %563 = vmatpush1.msra.mxu0 %v223
    %564 = vmatprep.subr.mxu0 0.0
    %565 = vmatpush1.msra.mxu0 %v224
    %566 = vmatprep.subr.mxu0 0.0
    %567 = vmatpush1.msra.mxu0 %v225
    %568 = vmatprep.subr.mxu0 0.0
    %569 = vmatpush1.msra.mxu0 %v226
    %570 = vmatprep.subr.mxu0 0.0
    %571 = vmatpush1.msra.mxu0 %v227
    %572 = vmatprep.subr.mxu0 0.0
    %573 = vmatpush1.msra.mxu0 %v228
    %574 = vmatprep.subr.mxu0 0.0
    %575 = vmatpush1.msra.mxu0 %v229
    %576 = vmatprep.subr.mxu0 0.0
    %577 = vmatpush1.msra.mxu0 %v230
    %578 = vmatprep.subr.mxu0 0.0
    %579 = vmatpush1.msra.mxu0 %v231
    %580 = vmatprep.subr.mxu0 0.0
    %581 = vmatpush1.msra.mxu0 %v232
    %582 = vmatprep.subr.mxu0 0.0
    %583 = vmatpush1.msra.mxu0 %v233
    %584 = vmatprep.subr.mxu0 0.0
    %585 = vmatpush1.msra.mxu0 %v234
    %586 = vmatprep.subr.mxu0 0.0
    %587 = vmatpush1.msra.mxu0 %v235
    %588 = vmatprep.subr.mxu0 0.0
    %589 = vmatpush1.msra.mxu0 %v236
    %590 = vmatprep.subr.mxu0 0.0
    %591 = vmatpush1.msra.mxu0 %v237
    %592 = vmatprep.subr.mxu0 0.0
    %593 = vmatpush1.msra.mxu0 %v238
    %594 = vmatprep.subr.mxu0 0.0
    %595 = vmatpush1.msra.mxu0 %v239
    %596 = vmatprep.subr.mxu0 0.0
    %597 = vmatpush1.msra.mxu0 %v240
    %598 = vmatprep.subr.mxu0 0.0
    %599 = vmatpush1.msra.mxu0 %v241
    %600 = vmatprep.subr.mxu0 0.0
    %601 = vmatpush1.msra.mxu0 %v242
    %602 = vmatprep.subr.mxu0 0.0
    %603 = vmatpush1.msra.mxu0 %v243
    %604 = vmatprep.subr.mxu0 0.0
    %605 = vmatpush1.msra.mxu0 %v244
    %606 = vmatprep.subr.mxu0 0.0
    %607 = vmatpush1.msra.mxu0 %v245
    %608 = vmatprep.subr.mxu0 0.0
    %609 = vmatpush1.msra.mxu0 %v246
    %610 = vmatprep.subr.mxu0 0.0
    %611 = vmatpush1.msra.mxu0 %v247
    %612 = vmatprep.mubr.f32.mxu0 %v141
    %613 = vmatmul.mubr.f32.gmra.mrb[0].mxu0 %v140
    %v614 = vpop.f32.mrb[0].mxu0
    %v615 = vadd.f32 %v545, %v614
    %v616 = vpop.f32.mrb[0].mxu0
    %617 = vdwg.mxu0
    %618 = vmatprep.subr.mxu0 0.0
    %619 = vmatpush1.msra.mxu0 %v248
    %620 = vmatprep.subr.mxu0 0.0
    %621 = vmatpush1.msra.mxu0 %v249
    %622 = vmatprep.subr.mxu0 0.0
    %623 = vmatpush1.msra.mxu0 %v250
    %624 = vmatprep.subr.mxu0 0.0
    %625 = vmatpush1.msra.mxu0 %v251
    %626 = vmatprep.subr.mxu0 0.0
    %627 = vmatpush1.msra.mxu0 %v252
    %628 = vmatprep.subr.mxu0 0.0
    %629 = vmatpush1.msra.mxu0 %v253
    %630 = vmatprep.subr.mxu0 0.0
    %631 = vmatpush1.msra.mxu0 %v254
    %632 = vmatprep.subr.mxu0 0.0
    %633 = vmatpush1.msra.mxu0 %v255
    %634 = vmatprep.subr.mxu0 0.0
    %635 = vmatpush1.msra.mxu0 %v256
    %636 = vmatprep.subr.mxu0 0.0
    %637 = vmatpush1.msra.mxu0 %v257
    %638 = vmatprep.subr.mxu0 0.0
    %639 = vmatpush1.msra.mxu0 %v258
    %640 = vmatprep.subr.mxu0 0.0
    %641 = vmatpush1.msra.mxu0 %v259
    %642 = vmatprep.subr.mxu0 0.0
    %643 = vmatpush1.msra.mxu0 %v260
    %644 = vmatprep.subr.mxu0 0.0
    %645 = vmatpush1.msra.mxu0 %v261
    %646 = vmatprep.subr.mxu0 0.0
    %647 = vmatpush1.msra.mxu0 %v262
    %648 = vmatprep.subr.mxu0 0.0
    %649 = vmatpush1.msra.mxu0 %v263
    %650 = vmatprep.subr.mxu0 0.0
    %651 = vmatpush1.msra.mxu0 %v264
    %652 = vmatprep.subr.mxu0 0.0
    %653 = vmatpush1.msra.mxu0 %v265
    %654 = vmatprep.subr.mxu0 0.0
    %655 = vmatpush1.msra.mxu0 %v266
    %656 = vmatprep.subr.mxu0 0.0
    %657 = vmatpush1.msra.mxu0 %v267
    %658 = vmatprep.subr.mxu0 0.0
    %659 = vmatpush1.msra.mxu0 %v268
    %660 = vmatprep.subr.mxu0 0.0
    %661 = vmatpush1.msra.mxu0 %v269
    %662 = vmatprep.subr.mxu0 0.0
    %663 = vmatpush1.msra.mxu0 %v270
    %664 = vmatprep.subr.mxu0 0.0
    %665 = vmatpush1.msra.mxu0 %v271
    %666 = vmatprep.subr.mxu0 0.0
    %667 = vmatpush1.msra.mxu0 %v272
    %668 = vmatprep.subr.mxu0 0.0
    %669 = vmatpush1.msra.mxu0 %v273
    %670 = vmatprep.subr.mxu0 0.0
    %671 = vmatpush1.msra.mxu0 %v274
    %672 = vmatprep.subr.mxu0 0.0
    %673 = vmatpush1.msra.mxu0 %v275
    %674 = vmatprep.subr.mxu0 0.0
    %675 = vmatpush1.msra.mxu0 %v276
    %676 = vmatprep.subr.mxu0 0.0
    %677 = vmatpush1.msra.mxu0 %v277
    %678 = vmatprep.subr.mxu0 0.0
    %679 = vmatpush1.msra.mxu0 %v278
    %680 = vmatprep.subr.mxu0 0.0
    %681 = vmatpush1.msra.mxu0 %v279
    %682 = vmatprep.mubr.f32.mxu0 %v143
    %683 = vmatmul.mubr.f32.gmra.mrb[0].mxu0 %v142
    %v684 = vpop.f32.mrb[0].mxu0
    %v685 = vadd.f32 %v615, %v684
    %v686 = vpop.f32.mrb[0].mxu0
    %687 = vdwg.mxu0
    %688 = vmatprep.subr.mxu0 0.0
    %689 = vmatpush1.msra.mxu0 %v280
    %690 = vmatprep.subr.mxu0 0.0
    %691 = vmatpush1.msra.mxu0 %v281
    %692 = vmatprep.subr.mxu0 0.0
    %693 = vmatpush1.msra.mxu0 %v282
    %694 = vmatprep.subr.mxu0 0.0
    %695 = vmatpush1.msra.mxu0 %v283
    %696 = vmatprep.subr.mxu0 0.0
    %697 = vmatpush1.msra.mxu0 %v284
    %698 = vmatprep.subr.mxu0 0.0
    %699 = vmatpush1.msra.mxu0 %v285
    %700 = vmatprep.subr.mxu0 0.0
    %701 = vmatpush1.msra.mxu0 %v286
    %702 = vmatprep.subr.mxu0 0.0
    %703 = vmatpush1.msra.mxu0 %v287
    %704 = vmatprep.subr.mxu0 0.0
    %705 = vmatpush1.msra.mxu0 %v288
    %706 = vmatprep.subr.mxu0 0.0
    %707 = vmatpush1.msra.mxu0 %v289
    %708 = vmatprep.subr.mxu0 0.0
    %709 = vmatpush1.msra.mxu0 %v290
    %710 = vmatprep.subr.mxu0 0.0
    %711 = vmatpush1.msra.mxu0 %v291
    %712 = vmatprep.subr.mxu0 0.0
    %713 = vmatpush1.msra.mxu0 %v292
    %714 = vmatprep.subr.mxu0 0.0
    %715 = vmatpush1.msra.mxu0 %v293
    %716 = vmatprep.subr.mxu0 0.0
    %717 = vmatpush1.msra.mxu0 %v294
    %718 = vmatprep.subr.mxu0 0.0
    %719 = vmatpush1.msra.mxu0 %v295
    %720 = vmatprep.subr.mxu0 0.0
    %721 = vmatpush1.msra.mxu0 %v296
    %722 = vmatprep.subr.mxu0 0.0
    %723 = vmatpush1.msra.mxu0 %v297
    %724 = vmatprep.subr.mxu0 0.0
    %725 = vmatpush1.msra.mxu0 %v298
    %726 = vmatprep.subr.mxu0 0.0
    %727 = vmatpush1.msra.mxu0 %v299
    %728 = vmatprep.subr.mxu0 0.0
    %729 = vmatpush1.msra.mxu0 %v300
    %730 = vmatprep.subr.mxu0 0.0
    %731 = vmatpush1.msra.mxu0 %v301
    %732 = vmatprep.subr.mxu0 0.0
    %733 = vmatpush1.msra.mxu0 %v302
    %734 = vmatprep.subr.mxu0 0.0
    %735 = vmatpush1.msra.mxu0 %v303
    %736 = vmatprep.subr.mxu0 0.0
    %737 = vmatpush1.msra.mxu0 %v304
    %738 = vmatprep.subr.mxu0 0.0
    %739 = vmatpush1.msra.mxu0 %v305
    %740 = vmatprep.subr.mxu0 0.0
    %741 = vmatpush1.msra.mxu0 %v306
    %742 = vmatprep.subr.mxu0 0.0
    %743 = vmatpush1.msra.mxu0 %v307
    %744 = vmatprep.subr.mxu0 0.0
    %745 = vmatpush1.msra.mxu0 %v308
    %746 = vmatprep.subr.mxu0 0.0
    %747 = vmatpush1.msra.mxu0 %v309
    %748 = vmatprep.subr.mxu0 0.0
    %749 = vmatpush1.msra.mxu0 %v310
    %750 = vmatprep.subr.mxu0 0.0
    %751 = vmatpush1.msra.mxu0 %v311
    %752 = vmatprep.mubr.f32.mxu0 %v145
    %753 = vmatmul.mubr.f32.gmra.mrb[0].mxu0 %v144
    %v754 = vpop.f32.mrb[0].mxu0
    %v755 = vadd.f32 %v685, %v754
    %v756 = vpop.f32.mrb[0].mxu0
    %757 = vdwg.mxu0
    %758 = vmatprep.subr.mxu0 0.0
    %759 = vmatpush1.msra.mxu0 %v312
    %760 = vmatprep.subr.mxu0 0.0
    %761 = vmatpush1.msra.mxu0 %v313
    %762 = vmatprep.subr.mxu0 0.0
    %763 = vmatpush1.msra.mxu0 %v314
    %764 = vmatprep.subr.mxu0 0.0
    %765 = vmatpush1.msra.mxu0 %v315
    %766 = vmatprep.subr.mxu0 0.0
    %767 = vmatpush1.msra.mxu0 %v316
    %768 = vmatprep.subr.mxu0 0.0
    %769 = vmatpush1.msra.mxu0 %v317
    %770 = vmatprep.subr.mxu0 0.0
    %771 = vmatpush1.msra.mxu0 %v318
    %772 = vmatprep.subr.mxu0 0.0
    %773 = vmatpush1.msra.mxu0 %v319
    %774 = vmatprep.subr.mxu0 0.0
    %775 = vmatpush1.msra.mxu0 %v320
    %776 = vmatprep.subr.mxu0 0.0
    %777 = vmatpush1.msra.mxu0 %v321
    %778 = vmatprep.subr.mxu0 0.0
    %779 = vmatpush1.msra.mxu0 %v322
    %780 = vmatprep.subr.mxu0 0.0
    %781 = vmatpush1.msra.mxu0 %v323
    %782 = vmatprep.subr.mxu0 0.0
    %783 = vmatpush1.msra.mxu0 %v324
    %784 = vmatprep.subr.mxu0 0.0
    %785 = vmatpush1.msra.mxu0 %v325
    %786 = vmatprep.subr.mxu0 0.0
    %787 = vmatpush1.msra.mxu0 %v326
    %788 = vmatprep.subr.mxu0 0.0
    %789 = vmatpush1.msra.mxu0 %v327
    %790 = vmatprep.subr.mxu0 0.0
    %791 = vmatpush1.msra.mxu0 %v328
    %792 = vmatprep.subr.mxu0 0.0
    %793 = vmatpush1.msra.mxu0 %v329
    %794 = vmatprep.subr.mxu0 0.0
    %795 = vmatpush1.msra.mxu0 %v330
    %796 = vmatprep.subr.mxu0 0.0
    %797 = vmatpush1.msra.mxu0 %v331
    %798 = vmatprep.subr.mxu0 0.0
    %799 = vmatpush1.msra.mxu0 %v332
    %800 = vmatprep.subr.mxu0 0.0
    %801 = vmatpush1.msra.mxu0 %v333
    %802 = vmatprep.subr.mxu0 0.0
    %803 = vmatpush1.msra.mxu0 %v334
    %804 = vmatprep.subr.mxu0 0.0
    %805 = vmatpush1.msra.mxu0 %v335
    %806 = vmatprep.subr.mxu0 0.0
    %807 = vmatpush1.msra.mxu0 %v336
    %808 = vmatprep.subr.mxu0 0.0
    %809 = vmatpush1.msra.mxu0 %v337
    %810 = vmatprep.subr.mxu0 0.0
    %811 = vmatpush1.msra.mxu0 %v338
    %812 = vmatprep.subr.mxu0 0.0
    %813 = vmatpush1.msra.mxu0 %v339
    %814 = vmatprep.subr.mxu0 0.0
    %815 = vmatpush1.msra.mxu0 %v340
    %816 = vmatprep.subr.mxu0 0.0
    %817 = vmatpush1.msra.mxu0 %v341
    %818 = vmatprep.subr.mxu0 0.0
    %819 = vmatpush1.msra.mxu0 %v342
    %820 = vmatprep.subr.mxu0 0.0
    %821 = vmatpush1.msra.mxu0 %v343
    %822 = vmatprep.mubr.f32.mxu0 %v147
    %823 = vmatmul.mubr.f32.gmra.mrb[0].mxu0 %v146
    %v824 = vpop.f32.mrb[0].mxu0
    %v825 = vadd.f32 %v755, %v824
    %v826 = vpop.f32.mrb[0].mxu0
    %827 = vdwg.mxu0
    %828 = vmatprep.subr.mxu0 0.0
    %829 = vmatpush1.msra.mxu0 %v344
    %830 = vmatprep.subr.mxu0 0.0
    %831 = vmatpush1.msra.mxu0 %v345
    %832 = vmatprep.subr.mxu0 0.0
    %833 = vmatpush1.msra.mxu0 %v346
    %834 = vmatprep.subr.mxu0 0.0
    %835 = vmatpush1.msra.mxu0 %v347
    %836 = vmatprep.subr.mxu0 0.0
    %837 = vmatpush1.msra.mxu0 %v348
    %838 = vmatprep.subr.mxu0 0.0
    %839 = vmatpush1.msra.mxu0 %v349
    %840 = vmatprep.subr.mxu0 0.0
    %841 = vmatpush1.msra.mxu0 %v350
    %842 = vmatprep.subr.mxu0 0.0
    %843 = vmatpush1.msra.mxu0 %v351
    %844 = vmatprep.subr.mxu0 0.0
    %845 = vmatpush1.msra.mxu0 %v352
    %846 = vmatprep.subr.mxu0 0.0
    %847 = vmatpush1.msra.mxu0 %v353
    %848 = vmatprep.subr.mxu0 0.0
    %849 = vmatpush1.msra.mxu0 %v354
    %850 = vmatprep.subr.mxu0 0.0
    %851 = vmatpush1.msra.mxu0 %v355
    %852 = vmatprep.subr.mxu0 0.0
    %853 = vmatpush1.msra.mxu0 %v356
    %854 = vmatprep.subr.mxu0 0.0
    %855 = vmatpush1.msra.mxu0 %v357
    %856 = vmatprep.subr.mxu0 0.0
    %857 = vmatpush1.msra.mxu0 %v358
    %858 = vmatprep.subr.mxu0 0.0
    %859 = vmatpush1.msra.mxu0 %v359
    %860 = vmatprep.subr.mxu0 0.0
    %861 = vmatpush1.msra.mxu0 %v360
    %862 = vmatprep.subr.mxu0 0.0
    %863 = vmatpush1.msra.mxu0 %v361
    %864 = vmatprep.subr.mxu0 0.0
    %865 = vmatpush1.msra.mxu0 %v362
    %866 = vmatprep.subr.mxu0 0.0
    %867 = vmatpush1.msra.mxu0 %v363
    %868 = vmatprep.subr.mxu0 0.0
    %869 = vmatpush1.msra.mxu0 %v364
    %870 = vmatprep.subr.mxu0 0.0
    %871 = vmatpush1.msra.mxu0 %v365
    %872 = vmatprep.subr.mxu0 0.0
    %873 = vmatpush1.msra.mxu0 %v366
    %874 = vmatprep.subr.mxu0 0.0
    %875 = vmatpush1.msra.mxu0 %v367
    %876 = vmatprep.subr.mxu0 0.0
    %877 = vmatpush1.msra.mxu0 %v368
    %878 = vmatprep.subr.mxu0 0.0
    %879 = vmatpush1.msra.mxu0 %v369
    %880 = vmatprep.subr.mxu0 0.0
    %881 = vmatpush1.msra.mxu0 %v370
    %882 = vmatprep.subr.mxu0 0.0
    %883 = vmatpush1.msra.mxu0 %v371
    %884 = vmatprep.subr.mxu0 0.0
    %885 = vmatpush1.msra.mxu0 %v372
    %886 = vmatprep.subr.mxu0 0.0
    %887 = vmatpush1.msra.mxu0 %v373
    %888 = vmatprep.subr.mxu0 0.0
    %889 = vmatpush1.msra.mxu0 %v374
    %890 = vmatprep.subr.mxu0 0.0
    %891 = vmatpush1.msra.mxu0 %v375
    %892 = vmatprep.mubr.f32.mxu0 %v149
    %893 = vmatmul.mubr.f32.gmra.mrb[0].mxu0 %v148
    %v894 = vpop.f32.mrb[0].mxu0
    %v895 = vadd.f32 %v825, %v894
    %v896 = vpop.f32.mrb[0].mxu0
    %897 = vdwg.mxu0
    %898 = vmatprep.subr.mxu0 0.0
    %899 = vmatpush1.msra.mxu0 %v376
    %900 = vmatprep.subr.mxu0 0.0
    %901 = vmatpush1.msra.mxu0 %v377
    %902 = vmatprep.subr.mxu0 0.0
    %903 = vmatpush1.msra.mxu0 %v378
    %904 = vmatprep.subr.mxu0 0.0
    %905 = vmatpush1.msra.mxu0 %v379
    %906 = vmatprep.subr.mxu0 0.0
    %907 = vmatpush1.msra.mxu0 %v380
    %908 = vmatprep.subr.mxu0 0.0
    %909 = vmatpush1.msra.mxu0 %v381
    %910 = vmatprep.subr.mxu0 0.0
    %911 = vmatpush1.msra.mxu0 %v382
    %912 = vmatprep.subr.mxu0 0.0
    %913 = vmatpush1.msra.mxu0 %v383
    %914 = vmatprep.subr.mxu0 0.0
    %915 = vmatpush1.msra.mxu0 %v384
    %916 = vmatprep.subr.mxu0 0.0
    %917 = vmatpush1.msra.mxu0 %v385
    %918 = vmatprep.subr.mxu0 0.0
    %919 = vmatpush1.msra.mxu0 %v386
    %920 = vmatprep.subr.mxu0 0.0
    %921 = vmatpush1.msra.mxu0 %v387
    %922 = vmatprep.subr.mxu0 0.0
    %923 = vmatpush1.msra.mxu0 %v388
    %924 = vmatprep.subr.mxu0 0.0
    %925 = vmatpush1.msra.mxu0 %v389
    %926 = vmatprep.subr.mxu0 0.0
    %927 = vmatpush1.msra.mxu0 %v390
    %928 = vmatprep.subr.mxu0 0.0
    %929 = vmatpush1.msra.mxu0 %v391
    %930 = vmatprep.subr.mxu0 0.0
    %931 = vmatpush1.msra.mxu0 %v392
    %932 = vmatprep.subr.mxu0 0.0
    %933 = vmatpush1.msra.mxu0 %v393
    %934 = vmatprep.subr.mxu0 0.0
    %935 = vmatpush1.msra.mxu0 %v394
    %936 = vmatprep.subr.mxu0 0.0
    %937 = vmatpush1.msra.mxu0 %v395
    %938 = vmatprep.subr.mxu0 0.0
    %939 = vmatpush1.msra.mxu0 %v396
    %940 = vmatprep.subr.mxu0 0.0
    %941 = vmatpush1.msra.mxu0 %v397
    %942 = vmatprep.subr.mxu0 0.0
    %943 = vmatpush1.msra.mxu0 %v398
    %944 = vmatprep.subr.mxu0 0.0
    %945 = vmatpush1.msra.mxu0 %v399
    %946 = vmatprep.subr.mxu0 0.0
    %947 = vmatpush1.msra.mxu0 %v400
    %948 = vmatprep.subr.mxu0 0.0
    %949 = vmatpush1.msra.mxu0 %v401
    %950 = vmatprep.subr.mxu0 0.0
    %951 = vmatpush1.msra.mxu0 %v402
    %952 = vmatprep.subr.mxu0 0.0
    %953 = vmatpush1.msra.mxu0 %v403
    %954 = vmatprep.subr.mxu0 0.0
    %955 = vmatpush1.msra.mxu0 %v404
    %956 = vmatprep.subr.mxu0 0.0
    %957 = vmatpush1.msra.mxu0 %v405
    %958 = vmatprep.subr.mxu0 0.0
    %959 = vmatpush1.msra.mxu0 %v406
    %960 = vmatprep.subr.mxu0 0.0
    %961 = vmatpush1.msra.mxu0 %v407
    %962 = vmatprep.mubr.f32.mxu0 %v151
    %963 = vmatmul.mubr.f32.gmra.mrb[0].mxu0 %v150
    %v964 = vpop.f32.mrb[0].mxu0
    %v965 = vadd.f32 %v895, %v964
    %v966 = vpop.f32.mrb[0].mxu0
    %967 = vdwg.mxu0
    %v968 = vld [vmem:[%s4] sm:$0xff]
    %v969 = vld [vmem:[%s4 + $0x8] sm:$0xff]
    %v970 = vld [vmem:[%s4 + $0x10] sm:$0xff]
    %v971 = vld [vmem:[%s4 + $0x18] sm:$0xff]
    %v972 = vld [vmem:[%s4 + $0x20] sm:$0xff]
    %v973 = vld [vmem:[%s4 + $0x28] sm:$0xff]
    %v974 = vld [vmem:[%s4 + $0x30] sm:$0xff]
    %v975 = vld [vmem:[%s4 + $0x38] sm:$0xff]
    %vm976 = vcmask 64512
    %v978 = vsel %vm976, %v968, 0
    %v981 = vsel %vm976, %v969, 0
    %v984 = vsel %vm976, %v970, 0
    %v987 = vsel %vm976, %v971, 0
    %v990 = vsel %vm976, %v972, 0
    %v993 = vsel %vm976, %v973, 0
    %v996 = vsel %vm976, %v974, 0
    %v999 = vsel %vm976, %v975, 0
    %1001 = vmatprep.subr.mxu0 0.0
    %1002 = vmatpush1.msra.mxu0 %v965
    %1003 = vmatprep.subr.mxu0 0.0
    %1004 = vmatpush1.msra.mxu0 0.0
    %1005 = vmatprep.subr.mxu0 0.0
    %1006 = vmatpush1.msra.mxu0 0.0
    %1007 = vmatprep.subr.mxu0 0.0
    %1008 = vmatpush1.msra.mxu0 0.0
    %1009 = vmatprep.subr.mxu0 0.0
    %1010 = vmatpush1.msra.mxu0 0.0
    %1011 = vmatprep.subr.mxu0 0.0
    %1012 = vmatpush1.msra.mxu0 0.0
    %1013 = vmatprep.subr.mxu0 0.0
    %1014 = vmatpush1.msra.mxu0 0.0
    %1015 = vmatprep.subr.mxu0 0.0
    %1016 = vmatpush1.msra.mxu0 0.0
    %1017 = vmatprep.subr.mxu0 0.0
    %1018 = vmatpush1.msra.mxu0 0.0
    %1019 = vmatprep.subr.mxu0 0.0
    %1020 = vmatpush1.msra.mxu0 0.0
    %1021 = vmatprep.subr.mxu0 0.0
    %1022 = vmatpush1.msra.mxu0 0.0
    %1023 = vmatprep.subr.mxu0 0.0
    %1024 = vmatpush1.msra.mxu0 0.0
    %1025 = vmatprep.subr.mxu0 0.0
    %1026 = vmatpush1.msra.mxu0 0.0
    %1027 = vmatprep.subr.mxu0 0.0
    %1028 = vmatpush1.msra.mxu0 0.0
    %1029 = vmatprep.subr.mxu0 0.0
    %1030 = vmatpush1.msra.mxu0 0.0
    %1031 = vmatprep.subr.mxu0 0.0
    %1032 = vmatpush1.msra.mxu0 0.0
    %1033 = vmatprep.subr.mxu0 0.0
    %1034 = vmatpush1.msra.mxu0 0.0
    %1035 = vmatprep.subr.mxu0 0.0
    %1036 = vmatpush1.msra.mxu0 0.0
    %1037 = vmatprep.subr.mxu0 0.0
    %1038 = vmatpush1.msra.mxu0 0.0
    %1039 = vmatprep.subr.mxu0 0.0
    %1040 = vmatpush1.msra.mxu0 0.0
    %1041 = vmatprep.subr.mxu0 0.0
    %1042 = vmatpush1.msra.mxu0 0.0
    %1043 = vmatprep.subr.mxu0 0.0
    %1044 = vmatpush1.msra.mxu0 0.0
    %1045 = vmatprep.subr.mxu0 0.0
    %1046 = vmatpush1.msra.mxu0 0.0
    %1047 = vmatprep.subr.mxu0 0.0
    %1048 = vmatpush1.msra.mxu0 0.0
    %1049 = vmatprep.subr.mxu0 0.0
    %1050 = vmatpush1.msra.mxu0 0.0
    %1051 = vmatprep.subr.mxu0 0.0
    %1052 = vmatpush1.msra.mxu0 0.0
    %1053 = vmatprep.subr.mxu0 0.0
    %1054 = vmatpush1.msra.mxu0 0.0
    %1055 = vmatprep.subr.mxu0 0.0
    %1056 = vmatpush1.msra.mxu0 0.0
    %1057 = vmatprep.subr.mxu0 0.0
    %1058 = vmatpush1.msra.mxu0 0.0
    %1059 = vmatprep.subr.mxu0 0.0
    %1060 = vmatpush1.msra.mxu0 0.0
    %1061 = vmatprep.subr.mxu0 0.0
    %1062 = vmatpush1.msra.mxu0 0.0
    %1063 = vmatprep.subr.mxu0 0.0
    %1064 = vmatpush1.msra.mxu0 0.0
    %1065 = vmatprep.mubr.f32.mxu0 0.0
    %1066 = vmatmul.mubr.f32.gmra.mrb[0].mxu0 %v978
    %v1067 = vpop.f32.mrb[0].mxu0
    %v1068 = vadd.f32 0.0, %v1067
    %v1069 = vpop.f32.mrb[0].mxu0
    %1070 = vmatprep.mubr.f32.mxu0 0.0
    %1071 = vmatmul.mubr.f32.gmra.mrb[0].mxu0 %v981
    %v1072 = vpop.f32.mrb[0].mxu0
    %v1073 = vadd.f32 0.0, %v1072
    %v1074 = vpop.f32.mrb[0].mxu0
    %1075 = vmatprep.mubr.f32.mxu0 0.0
    %1076 = vmatmul.mubr.f32.gmra.mrb[0].mxu0 %v984
    %v1077 = vpop.f32.mrb[0].mxu0
    %v1078 = vadd.f32 0.0, %v1077
    %v1079 = vpop.f32.mrb[0].mxu0
    %1080 = vmatprep.mubr.f32.mxu0 0.0
    %1081 = vmatmul.mubr.f32.gmra.mrb[0].mxu0 %v987
    %v1082 = vpop.f32.mrb[0].mxu0
    %v1083 = vadd.f32 0.0, %v1082
    %v1084 = vpop.f32.mrb[0].mxu0
    %1085 = vmatprep.mubr.f32.mxu0 0.0
    %1086 = vmatmul.mubr.f32.gmra.mrb[0].mxu0 %v990
    %v1087 = vpop.f32.mrb[0].mxu0
    %v1088 = vadd.f32 0.0, %v1087
    %v1089 = vpop.f32.mrb[0].mxu0
    %1090 = vmatprep.mubr.f32.mxu0 0.0
    %1091 = vmatmul.mubr.f32.gmra.mrb[0].mxu0 %v993
    %v1092 = vpop.f32.mrb[0].mxu0
    %v1093 = vadd.f32 0.0, %v1092
    %v1094 = vpop.f32.mrb[0].mxu0
    %1095 = vmatprep.mubr.f32.mxu0 0.0
    %1096 = vmatmul.mubr.f32.gmra.mrb[0].mxu0 %v996
    %v1097 = vpop.f32.mrb[0].mxu0
    %v1098 = vadd.f32 0.0, %v1097
    %v1099 = vpop.f32.mrb[0].mxu0
    %1100 = vmatprep.mubr.f32.mxu0 0.0
    %1101 = vmatmul.mubr.f32.gmra.mrb[0].mxu0 %v999
    %v1102 = vpop.f32.mrb[0].mxu0
    %v1103 = vadd.f32 0.0, %v1102
    %v1104 = vpop.f32.mrb[0].mxu0
    %1105 = vdwg.mxu0
    %1106 = vmatprep.subr.mxu0 0.0
    %1107 = vmatpush1.msra.mxu0 %v120
    %1108 = vmatprep.subr.mxu0 0.0
    %1109 = vmatpush1.msra.mxu0 %v121
    %1110 = vmatprep.subr.mxu0 0.0
    %1111 = vmatpush1.msra.mxu0 %v122
    %1112 = vmatprep.subr.mxu0 0.0
    %1113 = vmatpush1.msra.mxu0 %v123
    %1114 = vmatprep.subr.mxu0 0.0
    %1115 = vmatpush1.msra.mxu0 %v124
    %1116 = vmatprep.subr.mxu0 0.0
    %1117 = vmatpush1.msra.mxu0 %v125
    %1118 = vmatprep.subr.mxu0 0.0
    %1119 = vmatpush1.msra.mxu0 %v126
    %1120 = vmatprep.subr.mxu0 0.0
    %1121 = vmatpush1.msra.mxu0 %v127
    %1122 = vmatprep.subr.mxu0 0.0
    %1123 = vmatpush1.msra.mxu0 %v128
    %1124 = vmatprep.subr.mxu0 0.0
    %1125 = vmatpush1.msra.mxu0 %v129
    %1126 = vmatprep.subr.mxu0 0.0
    %1127 = vmatpush1.msra.mxu0 %v130
    %1128 = vmatprep.subr.mxu0 0.0
    %1129 = vmatpush1.msra.mxu0 %v131
    %1130 = vmatprep.subr.mxu0 0.0
    %1131 = vmatpush1.msra.mxu0 %v132
    %1132 = vmatprep.subr.mxu0 0.0
    %1133 = vmatpush1.msra.mxu0 %v133
    %1134 = vmatprep.subr.mxu0 0.0
    %1135 = vmatpush1.msra.mxu0 %v134
    %1136 = vmatprep.subr.mxu0 0.0
    %1137 = vmatpush1.msra.mxu0 %v135
    %1138 = vmatprep.subr.mxu0 0.0
    %1139 = vmatpush1.msra.mxu0 0.0
    %1140 = vmatprep.subr.mxu0 0.0
    %1141 = vmatpush1.msra.mxu0 0.0
    %1142 = vmatprep.subr.mxu0 0.0
    %1143 = vmatpush1.msra.mxu0 0.0
    %1144 = vmatprep.subr.mxu0 0.0
    %1145 = vmatpush1.msra.mxu0 0.0
    %1146 = vmatprep.subr.mxu0 0.0
    %1147 = vmatpush1.msra.mxu0 0.0
    %1148 = vmatprep.subr.mxu0 0.0
    %1149 = vmatpush1.msra.mxu0 0.0
    %1150 = vmatprep.subr.mxu0 0.0
    %1151 = vmatpush1.msra.mxu0 0.0
    %1152 = vmatprep.subr.mxu0 0.0
    %1153 = vmatpush1.msra.mxu0 0.0
    %1154 = vmatprep.subr.mxu0 0.0
    %1155 = vmatpush1.msra.mxu0 0.0
    %1156 = vmatprep.subr.mxu0 0.0
    %1157 = vmatpush1.msra.mxu0 0.0
    %1158 = vmatprep.subr.mxu0 0.0
    %1159 = vmatpush1.msra.mxu0 0.0
    %1160 = vmatprep.subr.mxu0 0.0
    %1161 = vmatpush1.msra.mxu0 0.0
    %1162 = vmatprep.subr.mxu0 0.0
    %1163 = vmatpush1.msra.mxu0 0.0
    %1164 = vmatprep.subr.mxu0 0.0
    %1165 = vmatpush1.msra.mxu0 0.0
    %1166 = vmatprep.subr.mxu0 0.0
    %1167 = vmatpush1.msra.mxu0 0.0
    %1168 = vmatprep.subr.mxu0 0.0
    %1169 = vmatpush1.msra.mxu0 0.0
    %1170 = vmatprep.mubr.f32.mxu0 0.0
    %1171 = vmatmul.mubr.f32.gmra.mrb[0].mxu0 %v112
    %v1172 = vpop.f32.mrb[0].mxu0
    %v1173 = vadd.f32 %v1068, %v1172
    %v1174 = vpop.f32.mrb[0].mxu0
    %1175 = vmatprep.mubr.f32.mxu0 0.0
    %1176 = vmatmul.mubr.f32.gmra.mrb[0].mxu0 %v113
    %v1177 = vpop.f32.mrb[0].mxu0
    %v1178 = vadd.f32 %v1073, %v1177
    %v1179 = vpop.f32.mrb[0].mxu0
    %1180 = vmatprep.mubr.f32.mxu0 0.0
    %1181 = vmatmul.mubr.f32.gmra.mrb[0].mxu0 %v114
    %v1182 = vpop.f32.mrb[0].mxu0
    %v1183 = vadd.f32 %v1078, %v1182
    %v1184 = vpop.f32.mrb[0].mxu0
    %1185 = vmatprep.mubr.f32.mxu0 0.0
    %1186 = vmatmul.mubr.f32.gmra.mrb[0].mxu0 %v115
    %v1187 = vpop.f32.mrb[0].mxu0
    %v1188 = vadd.f32 %v1083, %v1187
    %v1189 = vpop.f32.mrb[0].mxu0
    %1190 = vmatprep.mubr.f32.mxu0 0.0
    %1191 = vmatmul.mubr.f32.gmra.mrb[0].mxu0 %v116
    %v1192 = vpop.f32.mrb[0].mxu0
    %v1193 = vadd.f32 %v1088, %v1192
    %v1194 = vpop.f32.mrb[0].mxu0
    %1195 = vmatprep.mubr.f32.mxu0 0.0
    %1196 = vmatmul.mubr.f32.gmra.mrb[0].mxu0 %v117
    %v1197 = vpop.f32.mrb[0].mxu0
    %v1198 = vadd.f32 %v1093, %v1197
    %v1199 = vpop.f32.mrb[0].mxu0
    %1200 = vmatprep.mubr.f32.mxu0 0.0
    %1201 = vmatmul.mubr.f32.gmra.mrb[0].mxu0 %v118
    %v1202 = vpop.f32.mrb[0].mxu0
    %v1203 = vadd.f32 %v1098, %v1202
    %v1204 = vpop.f32.mrb[0].mxu0
    %1205 = vmatprep.mubr.f32.mxu0 0.0
    %1206 = vmatmul.mubr.f32.gmra.mrb[0].mxu0 %v119
    %v1207 = vpop.f32.mrb[0].mxu0
    %v1208 = vadd.f32 %v1103, %v1207
    %v1209 = vpop.f32.mrb[0].mxu0
    %1210 = vdwg.mxu0
    %v1211 = vld [vmem:[%s3] sm:$0xff]
    %v1212 = vld [vmem:[%s3 + $0x8] sm:$0xff]
    %v1213 = vld [vmem:[%s3 + $0x10] sm:$0xff]
    %v1214 = vld [vmem:[%s3 + $0x18] sm:$0xff]
    %v1215 = vld [vmem:[%s3 + $0x20] sm:$0xff]
    %v1216 = vld [vmem:[%s3 + $0x28] sm:$0xff]
    %v1217 = vld [vmem:[%s3 + $0x30] sm:$0xff]
    %v1218 = vld [vmem:[%s3 + $0x38] sm:$0xff]
    %v1219 = vadd.f32 %v1173, %v1211
    %v1220 = vadd.f32 %v1178, %v1212
    %v1221 = vadd.f32 %v1183, %v1213
    %v1222 = vadd.f32 %v1188, %v1214
    %v1223 = vadd.f32 %v1193, %v1215
    %v1224 = vadd.f32 %v1198, %v1216
    %v1225 = vadd.f32 %v1203, %v1217
    %v1226 = vadd.f32 %v1208, %v1218
    %v1227 = vld [vmem:[%s2] sm:$0xff]
    %v1228 = vld [vmem:[%s2 + $0x8] sm:$0xff]
    %v1229 = vld [vmem:[%s2 + $0x10] sm:$0xff]
    %v1230 = vld [vmem:[%s2 + $0x18] sm:$0xff]
    %v1231 = vld [vmem:[%s2 + $0x20] sm:$0xff]
    %v1232 = vld [vmem:[%s2 + $0x28] sm:$0xff]
    %v1233 = vld [vmem:[%s2 + $0x30] sm:$0xff]
    %v1234 = vld [vmem:[%s2 + $0x38] sm:$0xff]
    %v1235 = vld [vmem:[%s2 + $0x40] sm:$0xff]
    %v1236 = vld [vmem:[%s2 + $0x48] sm:$0xff]
    %v1237 = vld [vmem:[%s2 + $0x50] sm:$0xff]
    %v1238 = vld [vmem:[%s2 + $0x58] sm:$0xff]
    %v1239 = vld [vmem:[%s2 + $0x60] sm:$0xff]
    %v1240 = vld [vmem:[%s2 + $0x68] sm:$0xff]
    %v1241 = vld [vmem:[%s2 + $0x70] sm:$0xff]
    %v1242 = vld [vmem:[%s2 + $0x78] sm:$0xff]
    %v1243 = vld [vmem:[%s5] sm:$0xff]
    %v1244 = vld [vmem:[%s5 + $0x8] sm:$0xff]
    %v1245 = vld [vmem:[%s5 + $0x10] sm:$0xff]
    %v1246 = vld [vmem:[%s5 + $0x18] sm:$0xff]
    %v1247 = vld [vmem:[%s5 + $0x20] sm:$0xff]
    %v1248 = vld [vmem:[%s5 + $0x28] sm:$0xff]
    %v1249 = vld [vmem:[%s5 + $0x30] sm:$0xff]
    %v1250 = vld [vmem:[%s5 + $0x38] sm:$0xff]
    %v1251 = vld [vmem:[%s5 + $0x40] sm:$0xff]
    %v1252 = vld [vmem:[%s5 + $0x48] sm:$0xff]
    %v1253 = vld [vmem:[%s5 + $0x50] sm:$0xff]
    %v1254 = vld [vmem:[%s5 + $0x58] sm:$0xff]
    %v1255 = vld [vmem:[%s5 + $0x60] sm:$0xff]
    %v1256 = vld [vmem:[%s5 + $0x68] sm:$0xff]
    %v1257 = vld [vmem:[%s5 + $0x70] sm:$0xff]
    %v1258 = vld [vmem:[%s5 + $0x78] sm:$0xff]
    %v1259 = vld [vmem:[%s5 + $0x80] sm:$0xff]
    %v1260 = vld [vmem:[%s5 + $0x88] sm:$0xff]
    %v1261 = vld [vmem:[%s5 + $0x90] sm:$0xff]
    %v1262 = vld [vmem:[%s5 + $0x98] sm:$0xff]
    %v1263 = vld [vmem:[%s5 + $0xa0] sm:$0xff]
    %v1264 = vld [vmem:[%s5 + $0xa8] sm:$0xff]
    %v1265 = vld [vmem:[%s5 + $0xb0] sm:$0xff]
    %v1266 = vld [vmem:[%s5 + $0xb8] sm:$0xff]
    %v1267 = vld [vmem:[%s5 + $0xc0] sm:$0xff]
    %v1268 = vld [vmem:[%s5 + $0xc8] sm:$0xff]
    %v1269 = vld [vmem:[%s5 + $0xd0] sm:$0xff]
    %v1270 = vld [vmem:[%s5 + $0xd8] sm:$0xff]
    %v1271 = vld [vmem:[%s5 + $0xe0] sm:$0xff]
    %v1272 = vld [vmem:[%s5 + $0xe8] sm:$0xff]
    %v1273 = vld [vmem:[%s5 + $0xf0] sm:$0xff]
    %v1274 = vld [vmem:[%s5 + $0xf8] sm:$0xff]
    %v1275 = vld [vmem:[%s6] sm:$0xff]
    %v1276 = vld [vmem:[%s6 + $0x8] sm:$0xff]
    %v1277 = vld [vmem:[%s6 + $0x10] sm:$0xff]
    %v1278 = vld [vmem:[%s6 + $0x18] sm:$0xff]
    %v1279 = vld [vmem:[%s6 + $0x20] sm:$0xff]
    %v1280 = vld [vmem:[%s6 + $0x28] sm:$0xff]
    %v1281 = vld [vmem:[%s6 + $0x30] sm:$0xff]
    %v1282 = vld [vmem:[%s6 + $0x38] sm:$0xff]
    %v1283 = vld [vmem:[%s6 + $0x40] sm:$0xff]
    %v1284 = vld [vmem:[%s6 + $0x48] sm:$0xff]
    %v1285 = vld [vmem:[%s6 + $0x50] sm:$0xff]
    %v1286 = vld [vmem:[%s6 + $0x58] sm:$0xff]
    %v1287 = vld [vmem:[%s6 + $0x60] sm:$0xff]
    %v1288 = vld [vmem:[%s6 + $0x68] sm:$0xff]
    %v1289 = vld [vmem:[%s6 + $0x70] sm:$0xff]
    %v1290 = vld [vmem:[%s6 + $0x78] sm:$0xff]
    %v1291 = vld [vmem:[%s6 + $0x80] sm:$0xff]
    %v1292 = vld [vmem:[%s6 + $0x88] sm:$0xff]
    %v1293 = vld [vmem:[%s6 + $0x90] sm:$0xff]
    %v1294 = vld [vmem:[%s6 + $0x98] sm:$0xff]
    %v1295 = vld [vmem:[%s6 + $0xa0] sm:$0xff]
    %v1296 = vld [vmem:[%s6 + $0xa8] sm:$0xff]
    %v1297 = vld [vmem:[%s6 + $0xb0] sm:$0xff]
    %v1298 = vld [vmem:[%s6 + $0xb8] sm:$0xff]
    %v1299 = vld [vmem:[%s6 + $0xc0] sm:$0xff]
    %v1300 = vld [vmem:[%s6 + $0xc8] sm:$0xff]
    %v1301 = vld [vmem:[%s6 + $0xd0] sm:$0xff]
    %v1302 = vld [vmem:[%s6 + $0xd8] sm:$0xff]
    %v1303 = vld [vmem:[%s6 + $0xe0] sm:$0xff]
    %v1304 = vld [vmem:[%s6 + $0xe8] sm:$0xff]
    %v1305 = vld [vmem:[%s6 + $0xf0] sm:$0xff]
    %v1306 = vld [vmem:[%s6 + $0xf8] sm:$0xff]
    %v1307 = vld [vmem:[%s13] sm:$0x1]
    %s1308 = scalar_lea.vmem %s13, 1
    %v1309 = vld [vmem:[%s1308] sm:$0x1]
    %vm1310 = vcmask 261120
    %v1311 = vsel %vm1310, %v1219, 0.0
    %1312 = vadd.xlane.f32.xlu0 %v1311
    %v1313 = vpop.xlane.xlu0 %1312
    %v1314 = vsel %vm1310, %v1220, 0.0
    %1315 = vadd.xlane.f32.xlu0 %v1314
    %v1316 = vpop.xlane.xlu0 %1315
    %v1317 = vsel %vm1310, %v1221, 0.0
    %1318 = vadd.xlane.f32.xlu0 %v1317
    %v1319 = vpop.xlane.xlu0 %1318
    %v1320 = vsel %vm1310, %v1222, 0.0
    %1321 = vadd.xlane.f32.xlu0 %v1320
    %v1322 = vpop.xlane.xlu0 %1321
    %v1323 = vsel %vm1310, %v1223, 0.0
    %1324 = vadd.xlane.f32.xlu0 %v1323
    %v1325 = vpop.xlane.xlu0 %1324
    %v1326 = vsel %vm1310, %v1224, 0.0
    %1327 = vadd.xlane.f32.xlu0 %v1326
    %v1328 = vpop.xlane.xlu0 %1327
    %v1329 = vsel %vm1310, %v1225, 0.0
    %1330 = vadd.xlane.f32.xlu0 %v1329
    %v1331 = vpop.xlane.xlu0 %1330
    %v1332 = vsel %vm1310, %v1226, 0.0
    %1333 = vadd.xlane.f32.xlu0 %v1332
    %v1334 = vpop.xlane.xlu0 %1333
    %v1335 = vrcp.pop 32.0
    %v1336 = vmul.f32 %v1313, %v1335
    %v1337 = vmul.f32 %v1316, %v1335
    %v1338 = vmul.f32 %v1319, %v1335
    %v1339 = vmul.f32 %v1322, %v1335
    %v1340 = vmul.f32 %v1325, %v1335
    %v1341 = vmul.f32 %v1328, %v1335
    %v1342 = vmul.f32 %v1331, %v1335
    %v1343 = vmul.f32 %v1334, %v1335
    %v1344 = vsub.f32 %v1219, %v1336
    %v1345 = vsub.f32 %v1220, %v1337
    %v1346 = vsub.f32 %v1221, %v1338
    %v1347 = vsub.f32 %v1222, %v1339
    %v1348 = vsub.f32 %v1223, %v1340
    %v1349 = vsub.f32 %v1224, %v1341
    %v1350 = vsub.f32 %v1225, %v1342
    %v1351 = vsub.f32 %v1226, %v1343
    %v1352 = vmul.f32 %v1344, %v1344
    %v1353 = vmul.f32 %v1345, %v1345
    %v1354 = vmul.f32 %v1346, %v1346
    %v1355 = vmul.f32 %v1347, %v1347
    %v1356 = vmul.f32 %v1348, %v1348
    %v1357 = vmul.f32 %v1349, %v1349
    %v1358 = vmul.f32 %v1350, %v1350
    %v1359 = vmul.f32 %v1351, %v1351
    %v1360 = vsel %vm1310, %v1352, 0.0
    %1361 = vadd.xlane.f32.xlu0 %v1360
    %v1362 = vpop.xlane.xlu0 %1361
    %v1363 = vsel %vm1310, %v1353, 0.0
    %1364 = vadd.xlane.f32.xlu0 %v1363
    %v1365 = vpop.xlane.xlu0 %1364
    %v1366 = vsel %vm1310, %v1354, 0.0
    %1367 = vadd.xlane.f32.xlu0 %v1366
    %v1368 = vpop.xlane.xlu0 %1367
    %v1369 = vsel %vm1310, %v1355, 0.0
    %1370 = vadd.xlane.f32.xlu0 %v1369
    %v1371 = vpop.xlane.xlu0 %1370
    %v1372 = vsel %vm1310, %v1356, 0.0
    %1373 = vadd.xlane.f32.xlu0 %v1372
    %v1374 = vpop.xlane.xlu0 %1373
    %v1375 = vsel %vm1310, %v1357, 0.0
    %1376 = vadd.xlane.f32.xlu0 %v1375
    %v1377 = vpop.xlane.xlu0 %1376
    %v1378 = vsel %vm1310, %v1358, 0.0
    %1379 = vadd.xlane.f32.xlu0 %v1378
    %v1380 = vpop.xlane.xlu0 %1379
    %v1381 = vsel %vm1310, %v1359, 0.0
    %1382 = vadd.xlane.f32.xlu0 %v1381
    %v1383 = vpop.xlane.xlu0 %1382
    %v1384 = vmul.f32 %v1362, %v1335
    %v1385 = vmul.f32 %v1365, %v1335
    %v1386 = vmul.f32 %v1368, %v1335
    %v1387 = vmul.f32 %v1371, %v1335
    %v1388 = vmul.f32 %v1374, %v1335
    %v1389 = vmul.f32 %v1377, %v1335
    %v1390 = vmul.f32 %v1380, %v1335
    %v1391 = vmul.f32 %v1383, %v1335
    %v1392 = vadd.f32 %v1384, 1e-05
    %v1393 = vadd.f32 %v1385, 1e-05
    %v1394 = vadd.f32 %v1386, 1e-05
    %v1395 = vadd.f32 %v1387, 1e-05
    %v1396 = vadd.f32 %v1388, 1e-05
    %v1397 = vadd.f32 %v1389, 1e-05
    %v1398 = vadd.f32 %v1390, 1e-05
    %v1399 = vadd.f32 %v1391, 1e-05
    %v1400 = vrsqrt.pop %v1392
    %v1401 = vrsqrt.pop %v1393
    %v1402 = vrsqrt.pop %v1394
    %v1403 = vrsqrt.pop %v1395
    %v1404 = vrsqrt.pop %v1396
    %v1405 = vrsqrt.pop %v1397
    %v1406 = vrsqrt.pop %v1398
    %v1407 = vrsqrt.pop %v1399
    %v1408 = vmul.f32 %v1344, %v1400
    %v1409 = vmul.f32 %v1345, %v1401
    %v1410 = vmul.f32 %v1346, %v1402
    %v1411 = vmul.f32 %v1347, %v1403
    %v1412 = vmul.f32 %v1348, %v1404
    %v1413 = vmul.f32 %v1349, %v1405
    %v1414 = vmul.f32 %v1350, %v1406
    %v1415 = vmul.f32 %v1351, %v1407
    %v1417 = vlaneseq
    %v1418 = vshrl.u32 %v1417, 7
    %v1419 = vsub.s32 0, %v1418
    %v1420 = vrot.slane %v1307, %v1419
    %v1422 = vmul.f32 %v1408, %v1420
    %v1423 = vmul.f32 %v1409, %v1420
    %v1424 = vmul.f32 %v1410, %v1420
    %v1425 = vmul.f32 %v1411, %v1420
    %v1426 = vmul.f32 %v1412, %v1420
    %v1427 = vmul.f32 %v1413, %v1420
    %v1428 = vmul.f32 %v1414, %v1420
    %v1429 = vmul.f32 %v1415, %v1420
    %v1431 = vlaneseq
    %v1432 = vshrl.u32 %v1431, 7
    %v1433 = vsub.s32 0, %v1432
    %v1434 = vrot.slane %v1309, %v1433
    %v1436 = vadd.f32 %v1422, %v1434
    %v1437 = vadd.f32 %v1423, %v1434
    %v1438 = vadd.f32 %v1424, %v1434
    %v1439 = vadd.f32 %v1425, %v1434
    %v1440 = vadd.f32 %v1426, %v1434
    %v1441 = vadd.f32 %v1427, %v1434
    %v1442 = vadd.f32 %v1428, %v1434
    %v1443 = vadd.f32 %v1429, %v1434
    %v1444 = vld [vmem:[%s10] sm:$0xff]
    %v1445 = vld [vmem:[%s10 + $0x8] sm:$0xff]
    %v1446 = vld [vmem:[%s10 + $0x10] sm:$0xff]
    %v1447 = vld [vmem:[%s10 + $0x18] sm:$0xff]
    %s1448 = scalar_lea.vmem %s13, 2
    %v1449 = vld [vmem:[%s1448] sm:$0x1]
    %v1451 = vlaneseq
    %v1452 = vshrl.u32 %v1451, 7
    %v1453 = vsub.s32 0, %v1452
    %v1454 = vrot.slane %v1449, %v1453
    %v1457 = vsel %vm1310, %v1436, 0
    %v1460 = vsel %vm1310, %v1437, 0
    %v1463 = vsel %vm1310, %v1438, 0
    %v1466 = vsel %vm1310, %v1439, 0
    %v1469 = vsel %vm1310, %v1440, 0
    %v1472 = vsel %vm1310, %v1441, 0
    %v1475 = vsel %vm1310, %v1442, 0
    %v1478 = vsel %vm1310, %v1443, 0
    %1480 = vmatprep.subr.mxu0 0.0
    %1481 = vmatpush1.msra.mxu0 %v1444
    %1482 = vmatprep.subr.mxu0 0.0
    %1483 = vmatpush1.msra.mxu0 %v1445
    %1484 = vmatprep.subr.mxu0 0.0
    %1485 = vmatpush1.msra.mxu0 %v1446
    %1486 = vmatprep.subr.mxu0 0.0
    %1487 = vmatpush1.msra.mxu0 %v1447
    %1488 = vmatprep.subr.mxu0 0.0
    %1489 = vmatpush1.msra.mxu0 0.0
    %1490 = vmatprep.subr.mxu0 0.0
    %1491 = vmatpush1.msra.mxu0 0.0
    %1492 = vmatprep.subr.mxu0 0.0
    %1493 = vmatpush1.msra.mxu0 0.0
    %1494 = vmatprep.subr.mxu0 0.0
    %1495 = vmatpush1.msra.mxu0 0.0
    %1496 = vmatprep.subr.mxu0 0.0
    %1497 = vmatpush1.msra.mxu0 0.0
    %1498 = vmatprep.subr.mxu0 0.0
    %1499 = vmatpush1.msra.mxu0 0.0
    %1500 = vmatprep.subr.mxu0 0.0
    %1501 = vmatpush1.msra.mxu0 0.0
    %1502 = vmatprep.subr.mxu0 0.0
    %1503 = vmatpush1.msra.mxu0 0.0
    %1504 = vmatprep.subr.mxu0 0.0
    %1505 = vmatpush1.msra.mxu0 0.0
    %1506 = vmatprep.subr.mxu0 0.0
    %1507 = vmatpush1.msra.mxu0 0.0
    %1508 = vmatprep.subr.mxu0 0.0
    %1509 = vmatpush1.msra.mxu0 0.0
    %1510 = vmatprep.subr.mxu0 0.0
    %1511 = vmatpush1.msra.mxu0 0.0
    %1512 = vmatprep.subr.mxu0 0.0
    %1513 = vmatpush1.msra.mxu0 0.0
    %1514 = vmatprep.subr.mxu0 0.0
    %1515 = vmatpush1.msra.mxu0 0.0
    %1516 = vmatprep.subr.mxu0 0.0
    %1517 = vmatpush1.msra.mxu0 0.0
    %1518 = vmatprep.subr.mxu0 0.0
    %1519 = vmatpush1.msra.mxu0 0.0
    %1520 = vmatprep.subr.mxu0 0.0
    %1521 = vmatpush1.msra.mxu0 0.0
    %1522 = vmatprep.subr.mxu0 0.0
    %1523 = vmatpush1.msra.mxu0 0.0
    %1524 = vmatprep.subr.mxu0 0.0
    %1525 = vmatpush1.msra.mxu0 0.0
    %1526 = vmatprep.subr.mxu0 0.0
    %1527 = vmatpush1.msra.mxu0 0.0
    %1528 = vmatprep.subr.mxu0 0.0
    %1529 = vmatpush1.msra.mxu0 0.0
    %1530 = vmatprep.subr.mxu0 0.0
    %1531 = vmatpush1.msra.mxu0 0.0
    %1532 = vmatprep.subr.mxu0 0.0
    %1533 = vmatpush1.msra.mxu0 0.0
    %1534 = vmatprep.subr.mxu0 0.0
    %1535 = vmatpush1.msra.mxu0 0.0
    %1536 = vmatprep.subr.mxu0 0.0
    %1537 = vmatpush1.msra.mxu0 0.0
    %1538 = vmatprep.subr.mxu0 0.0
    %1539 = vmatpush1.msra.mxu0 0.0
    %1540 = vmatprep.subr.mxu0 0.0
    %1541 = vmatpush1.msra.mxu0 0.0
    %1542 = vmatprep.subr.mxu0 0.0
    %1543 = vmatpush1.msra.mxu0 0.0
    %1544 = vmatprep.mubr.f32.mxu0 0.0
    %1545 = vmatmul.mubr.f32.gmra.mrb[0].mxu0 %v1457
    %v1546 = vpop.f32.mrb[0].mxu0
    %v1547 = vadd.f32 %v1454, %v1546
    %v1548 = vpop.f32.mrb[0].mxu0
    %1549 = vmatprep.mubr.f32.mxu0 0.0
    %1550 = vmatmul.mubr.f32.gmra.mrb[0].mxu0 %v1460
    %v1551 = vpop.f32.mrb[0].mxu0
    %v1552 = vadd.f32 %v1454, %v1551
    %v1553 = vpop.f32.mrb[0].mxu0
    %1554 = vmatprep.mubr.f32.mxu0 0.0
    %1555 = vmatmul.mubr.f32.gmra.mrb[0].mxu0 %v1463
    %v1556 = vpop.f32.mrb[0].mxu0
    %v1557 = vadd.f32 %v1454, %v1556
    %v1558 = vpop.f32.mrb[0].mxu0
    %1559 = vmatprep.mubr.f32.mxu0 0.0
    %1560 = vmatmul.mubr.f32.gmra.mrb[0].mxu0 %v1466
    %v1561 = vpop.f32.mrb[0].mxu0
    %v1562 = vadd.f32 %v1454, %v1561
    %v1563 = vpop.f32.mrb[0].mxu0
    %1564 = vmatprep.mubr.f32.mxu0 0.0
    %1565 = vmatmul.mubr.f32.gmra.mrb[0].mxu0 %v1469
    %v1566 = vpop.f32.mrb[0].mxu0
    %v1567 = vadd.f32 %v1454, %v1566
    %v1568 = vpop.f32.mrb[0].mxu0
    %1569 = vmatprep.mubr.f32.mxu0 0.0
    %1570 = vmatmul.mubr.f32.gmra.mrb[0].mxu0 %v1472
    %v1571 = vpop.f32.mrb[0].mxu0
    %v1572 = vadd.f32 %v1454, %v1571
    %v1573 = vpop.f32.mrb[0].mxu0
    %1574 = vmatprep.mubr.f32.mxu0 0.0
    %1575 = vmatmul.mubr.f32.gmra.mrb[0].mxu0 %v1475
    %v1576 = vpop.f32.mrb[0].mxu0
    %v1577 = vadd.f32 %v1454, %v1576
    %v1578 = vpop.f32.mrb[0].mxu0
    %1579 = vmatprep.mubr.f32.mxu0 0.0
    %1580 = vmatmul.mubr.f32.gmra.mrb[0].mxu0 %v1478
    %v1581 = vpop.f32.mrb[0].mxu0
    %v1582 = vadd.f32 %v1454, %v1581
    %v1583 = vpop.f32.mrb[0].mxu0
    %1584 = vdwg.mxu0
    %s1585 = scalar_lea.vmem %s10, 32
    %v1586 = vld [vmem:[%s1585] sm:$0xff]
    %v1587 = vld [vmem:[%s1585 + $0x8] sm:$0xff]
    %v1588 = vld [vmem:[%s1585 + $0x10] sm:$0xff]
    %v1589 = vld [vmem:[%s1585 + $0x18] sm:$0xff]
    %s1590 = scalar_lea.vmem %s13, 3
    %v1591 = vld [vmem:[%s1590] sm:$0x1]
    %v1593 = vlaneseq
    %v1594 = vshrl.u32 %v1593, 7
    %v1595 = vsub.s32 0, %v1594
    %v1596 = vrot.slane %v1591, %v1595
    %1598 = vmatprep.subr.mxu0 0.0
    %1599 = vmatpush1.msra.mxu0 %v1586
    %1600 = vmatprep.subr.mxu0 0.0
    %1601 = vmatpush1.msra.mxu0 %v1587
    %1602 = vmatprep.subr.mxu0 0.0
    %1603 = vmatpush1.msra.mxu0 %v1588
    %1604 = vmatprep.subr.mxu0 0.0
    %1605 = vmatpush1.msra.mxu0 %v1589
    %1606 = vmatprep.subr.mxu0 0.0
    %1607 = vmatpush1.msra.mxu0 0.0
    %1608 = vmatprep.subr.mxu0 0.0
    %1609 = vmatpush1.msra.mxu0 0.0
    %1610 = vmatprep.subr.mxu0 0.0
    %1611 = vmatpush1.msra.mxu0 0.0
    %1612 = vmatprep.subr.mxu0 0.0
    %1613 = vmatpush1.msra.mxu0 0.0
    %1614 = vmatprep.subr.mxu0 0.0
    %1615 = vmatpush1.msra.mxu0 0.0
    %1616 = vmatprep.subr.mxu0 0.0
    %1617 = vmatpush1.msra.mxu0 0.0
    %1618 = vmatprep.subr.mxu0 0.0
    %1619 = vmatpush1.msra.mxu0 0.0
    %1620 = vmatprep.subr.mxu0 0.0
    %1621 = vmatpush1.msra.mxu0 0.0
    %1622 = vmatprep.subr.mxu0 0.0
    %1623 = vmatpush1.msra.mxu0 0.0
    %1624 = vmatprep.subr.mxu0 0.0
    %1625 = vmatpush1.msra.mxu0 0.0
    %1626 = vmatprep.subr.mxu0 0.0
    %1627 = vmatpush1.msra.mxu0 0.0
    %1628 = vmatprep.subr.mxu0 0.0
    %1629 = vmatpush1.msra.mxu0 0.0
    %1630 = vmatprep.subr.mxu0 0.0
    %1631 = vmatpush1.msra.mxu0 0.0
    %1632 = vmatprep.subr.mxu0 0.0
    %1633 = vmatpush1.msra.mxu0 0.0
    %1634 = vmatprep.subr.mxu0 0.0
    %1635 = vmatpush1.msra.mxu0 0.0
    %1636 = vmatprep.subr.mxu0 0.0
    %1637 = vmatpush1.msra.mxu0 0.0
    %1638 = vmatprep.subr.mxu0 0.0
    %1639 = vmatpush1.msra.mxu0 0.0
    %1640 = vmatprep.subr.mxu0 0.0
    %1641 = vmatpush1.msra.mxu0 0.0
    %1642 = vmatprep.subr.mxu0 0.0
    %1643 = vmatpush1.msra.mxu0 0.0
    %1644 = vmatprep.subr.mxu0 0.0
    %1645 = vmatpush1.msra.mxu0 0.0
    %1646 = vmatprep.subr.mxu0 0.0
    %1647 = vmatpush1.msra.mxu0 0.0
    %1648 = vmatprep.subr.mxu0 0.0
    %1649 = vmatpush1.msra.mxu0 0.0
    %1650 = vmatprep.subr.mxu0 0.0
    %1651 = vmatpush1.msra.mxu0 0.0
    %1652 = vmatprep.subr.mxu0 0.0
    %1653 = vmatpush1.msra.mxu0 0.0
    %1654 = vmatprep.subr.mxu0 0.0
    %1655 = vmatpush1.msra.mxu0 0.0
    %1656 = vmatprep.subr.mxu0 0.0
    %1657 = vmatpush1.msra.mxu0 0.0
    %1658 = vmatprep.subr.mxu0 0.0
    %1659 = vmatpush1.msra.mxu0 0.0
    %1660 = vmatprep.subr.mxu0 0.0
    %1661 = vmatpush1.msra.mxu0 0.0
    %1662 = vmatprep.mubr.f32.mxu0 0.0
    %1663 = vmatmul.mubr.f32.gmra.mrb[0].mxu0 %v1457
    %v1664 = vpop.f32.mrb[0].mxu0
    %v1665 = vadd.f32 %v1596, %v1664
    %v1666 = vpop.f32.mrb[0].mxu0
    %1667 = vmatprep.mubr.f32.mxu0 0.0
    %1668 = vmatmul.mubr.f32.gmra.mrb[0].mxu0 %v1460
    %v1669 = vpop.f32.mrb[0].mxu0
    %v1670 = vadd.f32 %v1596, %v1669
    %v1671 = vpop.f32.mrb[0].mxu0
    %1672 = vmatprep.mubr.f32.mxu0 0.0
    %1673 = vmatmul.mubr.f32.gmra.mrb[0].mxu0 %v1463
    %v1674 = vpop.f32.mrb[0].mxu0
    %v1675 = vadd.f32 %v1596, %v1674
    %v1676 = vpop.f32.mrb[0].mxu0
    %1677 = vmatprep.mubr.f32.mxu0 0.0
    %1678 = vmatmul.mubr.f32.gmra.mrb[0].mxu0 %v1466
    %v1679 = vpop.f32.mrb[0].mxu0
    %v1680 = vadd.f32 %v1596, %v1679
    %v1681 = vpop.f32.mrb[0].mxu0
    %1682 = vmatprep.mubr.f32.mxu0 0.0
    %1683 = vmatmul.mubr.f32.gmra.mrb[0].mxu0 %v1469
    %v1684 = vpop.f32.mrb[0].mxu0
    %v1685 = vadd.f32 %v1596, %v1684
    %v1686 = vpop.f32.mrb[0].mxu0
    %1687 = vmatprep.mubr.f32.mxu0 0.0
    %1688 = vmatmul.mubr.f32.gmra.mrb[0].mxu0 %v1472
    %v1689 = vpop.f32.mrb[0].mxu0
    %v1690 = vadd.f32 %v1596, %v1689
    %v1691 = vpop.f32.mrb[0].mxu0
    %1692 = vmatprep.mubr.f32.mxu0 0.0
    %1693 = vmatmul.mubr.f32.gmra.mrb[0].mxu0 %v1475
    %v1694 = vpop.f32.mrb[0].mxu0
    %v1695 = vadd.f32 %v1596, %v1694
    %v1696 = vpop.f32.mrb[0].mxu0
    %1697 = vmatprep.mubr.f32.mxu0 0.0
    %1698 = vmatmul.mubr.f32.gmra.mrb[0].mxu0 %v1478
    %v1699 = vpop.f32.mrb[0].mxu0
    %v1700 = vadd.f32 %v1596, %v1699
    %v1701 = vpop.f32.mrb[0].mxu0
    %1702 = vdwg.mxu0
    %s1703 = scalar_lea.vmem %s10, 64
    %v1704 = vld [vmem:[%s1703] sm:$0xff]
    %v1705 = vld [vmem:[%s1703 + $0x8] sm:$0xff]
    %v1706 = vld [vmem:[%s1703 + $0x10] sm:$0xff]
    %v1707 = vld [vmem:[%s1703 + $0x18] sm:$0xff]
    %s1708 = scalar_lea.vmem %s13, 4
    %v1709 = vld [vmem:[%s1708] sm:$0x1]
    %v1711 = vlaneseq
    %v1712 = vshrl.u32 %v1711, 7
    %v1713 = vsub.s32 0, %v1712
    %v1714 = vrot.slane %v1709, %v1713
    %1716 = vmatprep.subr.mxu0 0.0
    %1717 = vmatpush1.msra.mxu0 %v1704
    %1718 = vmatprep.subr.mxu0 0.0
    %1719 = vmatpush1.msra.mxu0 %v1705
    %1720 = vmatprep.subr.mxu0 0.0
    %1721 = vmatpush1.msra.mxu0 %v1706
    %1722 = vmatprep.subr.mxu0 0.0
    %1723 = vmatpush1.msra.mxu0 %v1707
    %1724 = vmatprep.subr.mxu0 0.0
    %1725 = vmatpush1.msra.mxu0 0.0
    %1726 = vmatprep.subr.mxu0 0.0
    %1727 = vmatpush1.msra.mxu0 0.0
    %1728 = vmatprep.subr.mxu0 0.0
    %1729 = vmatpush1.msra.mxu0 0.0
    %1730 = vmatprep.subr.mxu0 0.0
    %1731 = vmatpush1.msra.mxu0 0.0
    %1732 = vmatprep.subr.mxu0 0.0
    %1733 = vmatpush1.msra.mxu0 0.0
    %1734 = vmatprep.subr.mxu0 0.0
    %1735 = vmatpush1.msra.mxu0 0.0
    %1736 = vmatprep.subr.mxu0 0.0
    %1737 = vmatpush1.msra.mxu0 0.0
    %1738 = vmatprep.subr.mxu0 0.0
    %1739 = vmatpush1.msra.mxu0 0.0
    %1740 = vmatprep.subr.mxu0 0.0
    %1741 = vmatpush1.msra.mxu0 0.0
    %1742 = vmatprep.subr.mxu0 0.0
    %1743 = vmatpush1.msra.mxu0 0.0
    %1744 = vmatprep.subr.mxu0 0.0
    %1745 = vmatpush1.msra.mxu0 0.0
    %1746 = vmatprep.subr.mxu0 0.0
    %1747 = vmatpush1.msra.mxu0 0.0
    %1748 = vmatprep.subr.mxu0 0.0
    %1749 = vmatpush1.msra.mxu0 0.0
    %1750 = vmatprep.subr.mxu0 0.0
    %1751 = vmatpush1.msra.mxu0 0.0
    %1752 = vmatprep.subr.mxu0 0.0
    %1753 = vmatpush1.msra.mxu0 0.0
    %1754 = vmatprep.subr.mxu0 0.0
    %1755 = vmatpush1.msra.mxu0 0.0
    %1756 = vmatprep.subr.mxu0 0.0
    %1757 = vmatpush1.msra.mxu0 0.0
    %1758 = vmatprep.subr.mxu0 0.0
    %1759 = vmatpush1.msra.mxu0 0.0
    %1760 = vmatprep.subr.mxu0 0.0
    %1761 = vmatpush1.msra.mxu0 0.0
    %1762 = vmatprep.subr.mxu0 0.0
    %1763 = vmatpush1.msra.mxu0 0.0
    %1764 = vmatprep.subr.mxu0 0.0
    %1765 = vmatpush1.msra.mxu0 0.0
    %1766 = vmatprep.subr.mxu0 0.0
    %1767 = vmatpush1.msra.mxu0 0.0
    %1768 = vmatprep.subr.mxu0 0.0
    %1769 = vmatpush1.msra.mxu0 0.0
    %1770 = vmatprep.subr.mxu0 0.0
    %1771 = vmatpush1.msra.mxu0 0.0
    %1772 = vmatprep.subr.mxu0 0.0
    %1773 = vmatpush1.msra.mxu0 0.0
    %1774 = vmatprep.subr.mxu0 0.0
    %1775 = vmatpush1.msra.mxu0 0.0
    %1776 = vmatprep.subr.mxu0 0.0
    %1777 = vmatpush1.msra.mxu0 0.0
    %1778 = vmatprep.subr.mxu0 0.0
    %1779 = vmatpush1.msra.mxu0 0.0
    %1780 = vmatprep.mubr.f32.mxu0 0.0
    %1781 = vmatmul.mubr.f32.gmra.mrb[0].mxu0 %v1457
    %v1782 = vpop.f32.mrb[0].mxu0
    %v1783 = vadd.f32 %v1714, %v1782
    %v1784 = vpop.f32.mrb[0].mxu0
    %1785 = vmatprep.mubr.f32.mxu0 0.0
    %1786 = vmatmul.mubr.f32.gmra.mrb[0].mxu0 %v1460
    %v1787 = vpop.f32.mrb[0].mxu0
    %v1788 = vadd.f32 %v1714, %v1787
    %v1789 = vpop.f32.mrb[0].mxu0
    %1790 = vmatprep.mubr.f32.mxu0 0.0
    %1791 = vmatmul.mubr.f32.gmra.mrb[0].mxu0 %v1463
    %v1792 = vpop.f32.mrb[0].mxu0
    %v1793 = vadd.f32 %v1714, %v1792
    %v1794 = vpop.f32.mrb[0].mxu0
    %1795 = vmatprep.mubr.f32.mxu0 0.0
    %1796 = vmatmul.mubr.f32.gmra.mrb[0].mxu0 %v1466
    %v1797 = vpop.f32.mrb[0].mxu0
    %v1798 = vadd.f32 %v1714, %v1797
    %v1799 = vpop.f32.mrb[0].mxu0
    %1800 = vmatprep.mubr.f32.mxu0 0.0
    %1801 = vmatmul.mubr.f32.gmra.mrb[0].mxu0 %v1469
    %v1802 = vpop.f32.mrb[0].mxu0
    %v1803 = vadd.f32 %v1714, %v1802
    %v1804 = vpop.f32.mrb[0].mxu0
    %1805 = vmatprep.mubr.f32.mxu0 0.0
    %1806 = vmatmul.mubr.f32.gmra.mrb[0].mxu0 %v1472
    %v1807 = vpop.f32.mrb[0].mxu0
    %v1808 = vadd.f32 %v1714, %v1807
    %v1809 = vpop.f32.mrb[0].mxu0
    %1810 = vmatprep.mubr.f32.mxu0 0.0
    %1811 = vmatmul.mubr.f32.gmra.mrb[0].mxu0 %v1475
    %v1812 = vpop.f32.mrb[0].mxu0
    %v1813 = vadd.f32 %v1714, %v1812
    %v1814 = vpop.f32.mrb[0].mxu0
    %1815 = vmatprep.mubr.f32.mxu0 0.0
    %1816 = vmatmul.mubr.f32.gmra.mrb[0].mxu0 %v1478
    %v1817 = vpop.f32.mrb[0].mxu0
    %v1818 = vadd.f32 %v1714, %v1817
    %v1819 = vpop.f32.mrb[0].mxu0
    %1820 = vdwg.mxu0
    %v1821 = vmul.f32 %v1665, %v1243
    %v1822 = vmul.f32 %v1670, %v1244
    %v1823 = vmul.f32 %v1675, %v1245
    %v1824 = vmul.f32 %v1680, %v1246
    %v1825 = vmul.f32 %v1685, %v1247
    %v1826 = vmul.f32 %v1690, %v1248
    %v1827 = vmul.f32 %v1695, %v1249
    %v1828 = vmul.f32 %v1700, %v1250
    %v1829 = vmul.f32 %v1665, %v1251
    %v1830 = vmul.f32 %v1670, %v1252
    %v1831 = vmul.f32 %v1675, %v1253
    %v1832 = vmul.f32 %v1680, %v1254
    %v1833 = vmul.f32 %v1685, %v1255
    %v1834 = vmul.f32 %v1690, %v1256
    %v1835 = vmul.f32 %v1695, %v1257
    %v1836 = vmul.f32 %v1700, %v1258
    %v1837 = vmul.f32 %v1665, %v1259
    %v1838 = vmul.f32 %v1670, %v1260
    %v1839 = vmul.f32 %v1675, %v1261
    %v1840 = vmul.f32 %v1680, %v1262
    %v1841 = vmul.f32 %v1685, %v1263
    %v1842 = vmul.f32 %v1690, %v1264
    %v1843 = vmul.f32 %v1695, %v1265
    %v1844 = vmul.f32 %v1700, %v1266
    %v1845 = vmul.f32 %v1665, %v1267
    %v1846 = vmul.f32 %v1670, %v1268
    %v1847 = vmul.f32 %v1675, %v1269
    %v1848 = vmul.f32 %v1680, %v1270
    %v1849 = vmul.f32 %v1685, %v1271
    %v1850 = vmul.f32 %v1690, %v1272
    %v1851 = vmul.f32 %v1695, %v1273
    %v1852 = vmul.f32 %v1700, %v1274
    %v1853 = vmul.f32 %v1783, %v1243
    %v1854 = vmul.f32 %v1788, %v1244
    %v1855 = vmul.f32 %v1793, %v1245
    %v1856 = vmul.f32 %v1798, %v1246
    %v1857 = vmul.f32 %v1803, %v1247
    %v1858 = vmul.f32 %v1808, %v1248
    %v1859 = vmul.f32 %v1813, %v1249
    %v1860 = vmul.f32 %v1818, %v1250
    %v1861 = vmul.f32 %v1783, %v1251
    %v1862 = vmul.f32 %v1788, %v1252
    %v1863 = vmul.f32 %v1793, %v1253
    %v1864 = vmul.f32 %v1798, %v1254
    %v1865 = vmul.f32 %v1803, %v1255
    %v1866 = vmul.f32 %v1808, %v1256
    %v1867 = vmul.f32 %v1813, %v1257
    %v1868 = vmul.f32 %v1818, %v1258
    %v1869 = vmul.f32 %v1783, %v1259
    %v1870 = vmul.f32 %v1788, %v1260
    %v1871 = vmul.f32 %v1793, %v1261
    %v1872 = vmul.f32 %v1798, %v1262
    %v1873 = vmul.f32 %v1803, %v1263
    %v1874 = vmul.f32 %v1808, %v1264
    %v1875 = vmul.f32 %v1813, %v1265
    %v1876 = vmul.f32 %v1818, %v1266
    %v1877 = vmul.f32 %v1783, %v1267
    %v1878 = vmul.f32 %v1788, %v1268
    %v1879 = vmul.f32 %v1793, %v1269
    %v1880 = vmul.f32 %v1798, %v1270
    %v1881 = vmul.f32 %v1803, %v1271
    %v1882 = vmul.f32 %v1808, %v1272
    %v1883 = vmul.f32 %v1813, %v1273
    %v1884 = vmul.f32 %v1818, %v1274
    %v1886 = vsel %vm1310, %v1547, 0
    %v1889 = vsel %vm1310, %v1552, 0
    %v1892 = vsel %vm1310, %v1557, 0
    %v1895 = vsel %vm1310, %v1562, 0
    %v1898 = vsel %vm1310, %v1567, 0
    %v1901 = vsel %vm1310, %v1572, 0
    %v1904 = vsel %vm1310, %v1577, 0
    %v1907 = vsel %vm1310, %v1582, 0
    %v1910 = vsel %vm1310, %v1821, 0
    %v1913 = vsel %vm1310, %v1822, 0
    %v1916 = vsel %vm1310, %v1823, 0
    %v1919 = vsel %vm1310, %v1824, 0
    %v1922 = vsel %vm1310, %v1825, 0
    %v1925 = vsel %vm1310, %v1826, 0
    %v1928 = vsel %vm1310, %v1827, 0
    %v1931 = vsel %vm1310, %v1828, 0
    %v1934 = vsel %vm1310, %v1829, 0
    %v1937 = vsel %vm1310, %v1830, 0
    %v1940 = vsel %vm1310, %v1831, 0
    %v1943 = vsel %vm1310, %v1832, 0
    %v1946 = vsel %vm1310, %v1833, 0
    %v1949 = vsel %vm1310, %v1834, 0
    %v1952 = vsel %vm1310, %v1835, 0
    %v1955 = vsel %vm1310, %v1836, 0
    %v1958 = vsel %vm1310, %v1837, 0
    %v1961 = vsel %vm1310, %v1838, 0
    %v1964 = vsel %vm1310, %v1839, 0
    %v1967 = vsel %vm1310, %v1840, 0
    %v1970 = vsel %vm1310, %v1841, 0
    %v1973 = vsel %vm1310, %v1842, 0
    %v1976 = vsel %vm1310, %v1843, 0
    %v1979 = vsel %vm1310, %v1844, 0
    %v1982 = vsel %vm1310, %v1845, 0
    %v1985 = vsel %vm1310, %v1846, 0
    %v1988 = vsel %vm1310, %v1847, 0
    %v1991 = vsel %vm1310, %v1848, 0
    %v1994 = vsel %vm1310, %v1849, 0
    %v1997 = vsel %vm1310, %v1850, 0
    %v2000 = vsel %vm1310, %v1851, 0
    %v2003 = vsel %vm1310, %v1852, 0
    %2005 = vmatprep.subr.mxu0 0.0
    %2006 = vmatpush1.xpose.msra.mxu0 %v1910
    %2007 = vmatprep.subr.mxu0 0.0
    %2008 = vmatpush1.xpose.msra.mxu0 %v1913
    %2009 = vmatprep.subr.mxu0 0.0
    %2010 = vmatpush1.xpose.msra.mxu0 %v1916
    %2011 = vmatprep.subr.mxu0 0.0
    %2012 = vmatpush1.xpose.msra.mxu0 %v1919
    %2013 = vmatprep.subr.mxu0 0.0
    %2014 = vmatpush1.xpose.msra.mxu0 %v1922
    %2015 = vmatprep.subr.mxu0 0.0
    %2016 = vmatpush1.xpose.msra.mxu0 %v1925
    %2017 = vmatprep.subr.mxu0 0.0
    %2018 = vmatpush1.xpose.msra.mxu0 %v1928
    %2019 = vmatprep.subr.mxu0 0.0
    %2020 = vmatpush1.xpose.msra.mxu0 %v1931
    %2021 = vmatprep.subr.mxu0 0.0
    %2022 = vmatpush1.xpose.msra.mxu0 %v1934
    %2023 = vmatprep.subr.mxu0 0.0
    %2024 = vmatpush1.xpose.msra.mxu0 %v1937
    %2025 = vmatprep.subr.mxu0 0.0
    %2026 = vmatpush1.xpose.msra.mxu0 %v1940
    %2027 = vmatprep.subr.mxu0 0.0
    %2028 = vmatpush1.xpose.msra.mxu0 %v1943
    %2029 = vmatprep.subr.mxu0 0.0
    %2030 = vmatpush1.xpose.msra.mxu0 %v1946
    %2031 = vmatprep.subr.mxu0 0.0
    %2032 = vmatpush1.xpose.msra.mxu0 %v1949
    %2033 = vmatprep.subr.mxu0 0.0
    %2034 = vmatpush1.xpose.msra.mxu0 %v1952
    %2035 = vmatprep.subr.mxu0 0.0
    %2036 = vmatpush1.xpose.msra.mxu0 %v1955
    %2037 = vmatprep.subr.mxu0 0.0
    %2038 = vmatpush1.xpose.msra.mxu0 %v1958
    %2039 = vmatprep.subr.mxu0 0.0
    %2040 = vmatpush1.xpose.msra.mxu0 %v1961
    %2041 = vmatprep.subr.mxu0 0.0
    %2042 = vmatpush1.xpose.msra.mxu0 %v1964
    %2043 = vmatprep.subr.mxu0 0.0
    %2044 = vmatpush1.xpose.msra.mxu0 %v1967
    %2045 = vmatprep.subr.mxu0 0.0
    %2046 = vmatpush1.xpose.msra.mxu0 %v1970
    %2047 = vmatprep.subr.mxu0 0.0
    %2048 = vmatpush1.xpose.msra.mxu0 %v1973
    %2049 = vmatprep.subr.mxu0 0.0
    %2050 = vmatpush1.xpose.msra.mxu0 %v1976
    %2051 = vmatprep.subr.mxu0 0.0
    %2052 = vmatpush1.xpose.msra.mxu0 %v1979
    %2053 = vmatprep.subr.mxu0 0.0
    %2054 = vmatpush1.xpose.msra.mxu0 %v1982
    %2055 = vmatprep.subr.mxu0 0.0
    %2056 = vmatpush1.xpose.msra.mxu0 %v1985
    %2057 = vmatprep.subr.mxu0 0.0
    %2058 = vmatpush1.xpose.msra.mxu0 %v1988
    %2059 = vmatprep.subr.mxu0 0.0
    %2060 = vmatpush1.xpose.msra.mxu0 %v1991
    %2061 = vmatprep.subr.mxu0 0.0
    %2062 = vmatpush1.xpose.msra.mxu0 %v1994
    %2063 = vmatprep.subr.mxu0 0.0
    %2064 = vmatpush1.xpose.msra.mxu0 %v1997
    %2065 = vmatprep.subr.mxu0 0.0
    %2066 = vmatpush1.xpose.msra.mxu0 %v2000
    %2067 = vmatprep.subr.mxu0 0.0
    %2068 = vmatpush1.xpose.msra.mxu0 %v2003
    %2069 = vmatprep.mubr.f32.mxu0 0.0
    %2070 = vmatmul.mubr.f32.gmra.mrb[0].mxu0 %v1886
    %v2071 = vpop.f32.mrb[0].mxu0
    %v2072 = vadd.f32 0.0, %v2071
    %v2073 = vpop.f32.mrb[0].mxu0
    %v2074 = vadd.f32 0.0, %v2073
    %2075 = vmatprep.mubr.f32.mxu0 0.0
    %2076 = vmatmul.mubr.f32.gmra.mrb[0].mxu0 %v1889
    %v2077 = vpop.f32.mrb[0].mxu0
    %v2078 = vadd.f32 0.0, %v2077
    %v2079 = vpop.f32.mrb[0].mxu0
    %v2080 = vadd.f32 0.0, %v2079
    %2081 = vmatprep.mubr.f32.mxu0 0.0
    %2082 = vmatmul.mubr.f32.gmra.mrb[0].mxu0 %v1892
    %v2083 = vpop.f32.mrb[0].mxu0
    %v2084 = vadd.f32 0.0, %v2083
    %v2085 = vpop.f32.mrb[0].mxu0
    %v2086 = vadd.f32 0.0, %v2085
    %2087 = vmatprep.mubr.f32.mxu0 0.0
    %2088 = vmatmul.mubr.f32.gmra.mrb[0].mxu0 %v1895
    %v2089 = vpop.f32.mrb[0].mxu0
    %v2090 = vadd.f32 0.0, %v2089
    %v2091 = vpop.f32.mrb[0].mxu0
    %v2092 = vadd.f32 0.0, %v2091
    %2093 = vmatprep.mubr.f32.mxu0 0.0
    %2094 = vmatmul.mubr.f32.gmra.mrb[0].mxu0 %v1898
    %v2095 = vpop.f32.mrb[0].mxu0
    %v2096 = vadd.f32 0.0, %v2095
    %v2097 = vpop.f32.mrb[0].mxu0
    %v2098 = vadd.f32 0.0, %v2097
    %2099 = vmatprep.mubr.f32.mxu0 0.0
    %2100 = vmatmul.mubr.f32.gmra.mrb[0].mxu0 %v1901
    %v2101 = vpop.f32.mrb[0].mxu0
    %v2102 = vadd.f32 0.0, %v2101
    %v2103 = vpop.f32.mrb[0].mxu0
    %v2104 = vadd.f32 0.0, %v2103
    %2105 = vmatprep.mubr.f32.mxu0 0.0
    %2106 = vmatmul.mubr.f32.gmra.mrb[0].mxu0 %v1904
    %v2107 = vpop.f32.mrb[0].mxu0
    %v2108 = vadd.f32 0.0, %v2107
    %v2109 = vpop.f32.mrb[0].mxu0
    %v2110 = vadd.f32 0.0, %v2109
    %2111 = vmatprep.mubr.f32.mxu0 0.0
    %2112 = vmatmul.mubr.f32.gmra.mrb[0].mxu0 %v1907
    %v2113 = vpop.f32.mrb[0].mxu0
    %v2114 = vadd.f32 0.0, %v2113
    %v2115 = vpop.f32.mrb[0].mxu0
    %v2116 = vadd.f32 0.0, %v2115
    %2117 = vdwg.mxu0
    %v2118 = vmul.f32 %v2072, 0.35355338
    %v2119 = vmul.f32 %v2074, 0.35355338
    %v2120 = vmul.f32 %v2078, 0.35355338
    %v2121 = vmul.f32 %v2080, 0.35355338
    %v2122 = vmul.f32 %v2084, 0.35355338
    %v2123 = vmul.f32 %v2086, 0.35355338
    %v2124 = vmul.f32 %v2090, 0.35355338
    %v2125 = vmul.f32 %v2092, 0.35355338
    %v2126 = vmul.f32 %v2096, 0.35355338
    %v2127 = vmul.f32 %v2098, 0.35355338
    %v2128 = vmul.f32 %v2102, 0.35355338
    %v2129 = vmul.f32 %v2104, 0.35355338
    %v2130 = vmul.f32 %v2108, 0.35355338
    %v2131 = vmul.f32 %v2110, 0.35355338
    %v2132 = vmul.f32 %v2114, 0.35355338
    %v2133 = vmul.f32 %v2116, 0.35355338
    %v2134 = vadd.f32 %v2118, %v1227
    %v2135 = vadd.f32 %v2119, %v1228
    %v2136 = vadd.f32 %v2120, %v1229
    %v2137 = vadd.f32 %v2121, %v1230
    %v2138 = vadd.f32 %v2122, %v1231
    %v2139 = vadd.f32 %v2123, %v1232
    %v2140 = vadd.f32 %v2124, %v1233
    %v2141 = vadd.f32 %v2125, %v1234
    %v2142 = vadd.f32 %v2126, %v1235
    %v2143 = vadd.f32 %v2127, %v1236
    %v2144 = vadd.f32 %v2128, %v1237
    %v2145 = vadd.f32 %v2129, %v1238
    %v2146 = vadd.f32 %v2130, %v1239
    %v2147 = vadd.f32 %v2131, %v1240
    %v2148 = vadd.f32 %v2132, %v1241
    %v2149 = vadd.f32 %v2133, %v1242
    %v2150 = vmax.f32 %v2134, %v2135
    %2151 = vmax.xlane.f32.xlu0 %v2150
    %v2152 = vpop.xlane.xlu0 %2151
    %v2153 = vmax.f32 %v2136, %v2137
    %2154 = vmax.xlane.f32.xlu0 %v2153
    %v2155 = vpop.xlane.xlu0 %2154
    %v2156 = vmax.f32 %v2138, %v2139
    %2157 = vmax.xlane.f32.xlu0 %v2156
    %v2158 = vpop.xlane.xlu0 %2157
    %v2159 = vmax.f32 %v2140, %v2141
    %2160 = vmax.xlane.f32.xlu0 %v2159
    %v2161 = vpop.xlane.xlu0 %2160
    %v2162 = vmax.f32 %v2142, %v2143
    %2163 = vmax.xlane.f32.xlu0 %v2162
    %v2164 = vpop.xlane.xlu0 %2163
    %v2165 = vmax.f32 %v2144, %v2145
    %2166 = vmax.xlane.f32.xlu0 %v2165
    %v2167 = vpop.xlane.xlu0 %2166
    %v2168 = vmax.f32 %v2146, %v2147
    %2169 = vmax.xlane.f32.xlu0 %v2168
    %v2170 = vpop.xlane.xlu0 %2169
    %v2171 = vmax.f32 %v2148, %v2149
    %2172 = vmax.xlane.f32.xlu0 %v2171
    %v2173 = vpop.xlane.xlu0 %2172
    %v2174 = vsub.f32 %v2134, %v2152
    %v2175 = vsub.f32 %v2135, %v2152
    %v2176 = vsub.f32 %v2136, %v2155
    %v2177 = vsub.f32 %v2137, %v2155
    %v2178 = vsub.f32 %v2138, %v2158
    %v2179 = vsub.f32 %v2139, %v2158
    %v2180 = vsub.f32 %v2140, %v2161
    %v2181 = vsub.f32 %v2141, %v2161
    %v2182 = vsub.f32 %v2142, %v2164
    %v2183 = vsub.f32 %v2143, %v2164
    %v2184 = vsub.f32 %v2144, %v2167
    %v2185 = vsub.f32 %v2145, %v2167
    %v2186 = vsub.f32 %v2146, %v2170
    %v2187 = vsub.f32 %v2147, %v2170
    %v2188 = vsub.f32 %v2148, %v2173
    %v2189 = vsub.f32 %v2149, %v2173
    %v2190 = vmul.f32 %v2174, 1.442695
    %v2191 = vpow.pop %v2190
    %v2192 = vmul.f32 %v2175, 1.442695
    %v2193 = vpow.pop %v2192
    %v2194 = vmul.f32 %v2176, 1.442695
    %v2195 = vpow.pop %v2194
    %v2196 = vmul.f32 %v2177, 1.442695
    %v2197 = vpow.pop %v2196
    %v2198 = vmul.f32 %v2178, 1.442695
    %v2199 = vpow.pop %v2198
    %v2200 = vmul.f32 %v2179, 1.442695
    %v2201 = vpow.pop %v2200
    %v2202 = vmul.f32 %v2180, 1.442695
    %v2203 = vpow.pop %v2202
    %v2204 = vmul.f32 %v2181, 1.442695
    %v2205 = vpow.pop %v2204
    %v2206 = vmul.f32 %v2182, 1.442695
    %v2207 = vpow.pop %v2206
    %v2208 = vmul.f32 %v2183, 1.442695
    %v2209 = vpow.pop %v2208
    %v2210 = vmul.f32 %v2184, 1.442695
    %v2211 = vpow.pop %v2210
    %v2212 = vmul.f32 %v2185, 1.442695
    %v2213 = vpow.pop %v2212
    %v2214 = vmul.f32 %v2186, 1.442695
    %v2215 = vpow.pop %v2214
    %v2216 = vmul.f32 %v2187, 1.442695
    %v2217 = vpow.pop %v2216
    %v2218 = vmul.f32 %v2188, 1.442695
    %v2219 = vpow.pop %v2218
    %v2220 = vmul.f32 %v2189, 1.442695
    %v2221 = vpow.pop %v2220
    %2222 = vmatprep.subr.mxu0 0.0
    %2223 = vmatpush1.msra.mxu0 %v1275
    %2224 = vmatprep.subr.mxu0 0.0
    %2225 = vmatpush1.msra.mxu0 %v1276
    %2226 = vmatprep.subr.mxu0 0.0
    %2227 = vmatpush1.msra.mxu0 %v1277
    %2228 = vmatprep.subr.mxu0 0.0
    %2229 = vmatpush1.msra.mxu0 %v1278
    %2230 = vmatprep.subr.mxu0 0.0
    %2231 = vmatpush1.msra.mxu0 %v1279
    %2232 = vmatprep.subr.mxu0 0.0
    %2233 = vmatpush1.msra.mxu0 %v1280
    %2234 = vmatprep.subr.mxu0 0.0
    %2235 = vmatpush1.msra.mxu0 %v1281
    %2236 = vmatprep.subr.mxu0 0.0
    %2237 = vmatpush1.msra.mxu0 %v1282
    %2238 = vmatprep.subr.mxu0 0.0
    %2239 = vmatpush1.msra.mxu0 %v1283
    %2240 = vmatprep.subr.mxu0 0.0
    %2241 = vmatpush1.msra.mxu0 %v1284
    %2242 = vmatprep.subr.mxu0 0.0
    %2243 = vmatpush1.msra.mxu0 %v1285
    %2244 = vmatprep.subr.mxu0 0.0
    %2245 = vmatpush1.msra.mxu0 %v1286
    %2246 = vmatprep.subr.mxu0 0.0
    %2247 = vmatpush1.msra.mxu0 %v1287
    %2248 = vmatprep.subr.mxu0 0.0
    %2249 = vmatpush1.msra.mxu0 %v1288
    %2250 = vmatprep.subr.mxu0 0.0
    %2251 = vmatpush1.msra.mxu0 %v1289
    %2252 = vmatprep.subr.mxu0 0.0
    %2253 = vmatpush1.msra.mxu0 %v1290
    %2254 = vmatprep.subr.mxu0 0.0
    %2255 = vmatpush1.msra.mxu0 %v1291
    %2256 = vmatprep.subr.mxu0 0.0
    %2257 = vmatpush1.msra.mxu0 %v1292
    %2258 = vmatprep.subr.mxu0 0.0
    %2259 = vmatpush1.msra.mxu0 %v1293
    %2260 = vmatprep.subr.mxu0 0.0
    %2261 = vmatpush1.msra.mxu0 %v1294
    %2262 = vmatprep.subr.mxu0 0.0
    %2263 = vmatpush1.msra.mxu0 %v1295
    %2264 = vmatprep.subr.mxu0 0.0
    %2265 = vmatpush1.msra.mxu0 %v1296
    %2266 = vmatprep.subr.mxu0 0.0
    %2267 = vmatpush1.msra.mxu0 %v1297
    %2268 = vmatprep.subr.mxu0 0.0
    %2269 = vmatpush1.msra.mxu0 %v1298
    %2270 = vmatprep.subr.mxu0 0.0
    %2271 = vmatpush1.msra.mxu0 %v1299
    %2272 = vmatprep.subr.mxu0 0.0
    %2273 = vmatpush1.msra.mxu0 %v1300
    %2274 = vmatprep.subr.mxu0 0.0
    %2275 = vmatpush1.msra.mxu0 %v1301
    %2276 = vmatprep.subr.mxu0 0.0
    %2277 = vmatpush1.msra.mxu0 %v1302
    %2278 = vmatprep.subr.mxu0 0.0
    %2279 = vmatpush1.msra.mxu0 %v1303
    %2280 = vmatprep.subr.mxu0 0.0
    %2281 = vmatpush1.msra.mxu0 %v1304
    %2282 = vmatprep.subr.mxu0 0.0
    %2283 = vmatpush1.msra.mxu0 %v1305
    %2284 = vmatprep.subr.mxu0 0.0
    %2285 = vmatpush1.msra.mxu0 %v1306
    %2286 = vmatprep.mubr.f32.mxu0 %v2193
    %2287 = vmatmul.mubr.f32.gmra.mrb[0].mxu0 %v2191
    %v2288 = vpop.f32.mrb[0].mxu0
    %v2289 = vadd.f32 0.0, %v2288
    %v2290 = vpop.f32.mrb[0].mxu0
    %2291 = vmatprep.mubr.f32.mxu0 %v2197
    %2292 = vmatmul.mubr.f32.gmra.mrb[0].mxu0 %v2195
    %v2293 = vpop.f32.mrb[0].mxu0
    %v2294 = vadd.f32 0.0, %v2293
    %v2295 = vpop.f32.mrb[0].mxu0
    %2296 = vmatprep.mubr.f32.mxu0 %v2201
    %2297 = vmatmul.mubr.f32.gmra.mrb[0].mxu0 %v2199
    %v2298 = vpop.f32.mrb[0].mxu0
    %v2299 = vadd.f32 0.0, %v2298
    %v2300 = vpop.f32.mrb[0].mxu0
    %2301 = vmatprep.mubr.f32.mxu0 %v2205
    %2302 = vmatmul.mubr.f32.gmra.mrb[0].mxu0 %v2203
    %v2303 = vpop.f32.mrb[0].mxu0
    %v2304 = vadd.f32 0.0, %v2303
    %v2305 = vpop.f32.mrb[0].mxu0
    %2306 = vmatprep.mubr.f32.mxu0 %v2209
    %2307 = vmatmul.mubr.f32.gmra.mrb[0].mxu0 %v2207
    %v2308 = vpop.f32.mrb[0].mxu0
    %v2309 = vadd.f32 0.0, %v2308
    %v2310 = vpop.f32.mrb[0].mxu0
    %2311 = vmatprep.mubr.f32.mxu0 %v2213
    %2312 = vmatmul.mubr.f32.gmra.mrb[0].mxu0 %v2211
    %v2313 = vpop.f32.mrb[0].mxu0
    %v2314 = vadd.f32 0.0, %v2313
    %v2315 = vpop.f32.mrb[0].mxu0
    %2316 = vmatprep.mubr.f32.mxu0 %v2217
    %2317 = vmatmul.mubr.f32.gmra.mrb[0].mxu0 %v2215
    %v2318 = vpop.f32.mrb[0].mxu0
    %v2319 = vadd.f32 0.0, %v2318
    %v2320 = vpop.f32.mrb[0].mxu0
    %2321 = vmatprep.mubr.f32.mxu0 %v2221
    %2322 = vmatmul.mubr.f32.gmra.mrb[0].mxu0 %v2219
    %v2323 = vpop.f32.mrb[0].mxu0
    %v2324 = vadd.f32 0.0, %v2323
    %v2325 = vpop.f32.mrb[0].mxu0
    %2326 = vdwg.mxu0
    %v2328 = vsel %vm976, %v2289, 0
    %v2331 = vsel %vm976, %v2294, 0
    %v2334 = vsel %vm976, %v2299, 0
    %v2337 = vsel %vm976, %v2304, 0
    %v2340 = vsel %vm976, %v2309, 0
    %v2343 = vsel %vm976, %v2314, 0
    %v2346 = vsel %vm976, %v2319, 0
    %v2349 = vsel %vm976, %v2324, 0
    %v2352 = vsel %vm976, %v1275, 0
    %v2355 = vsel %vm976, %v1276, 0
    %v2358 = vsel %vm976, %v1277, 0
    %v2361 = vsel %vm976, %v1278, 0
    %v2364 = vsel %vm976, %v1279, 0
    %v2367 = vsel %vm976, %v1280, 0
    %v2370 = vsel %vm976, %v1281, 0
    %v2373 = vsel %vm976, %v1282, 0
    %v2376 = vsel %vm976, %v1283, 0
    %v2379 = vsel %vm976, %v1284, 0
    %v2382 = vsel %vm976, %v1285, 0
    %v2385 = vsel %vm976, %v1286, 0
    %v2388 = vsel %vm976, %v1287, 0
    %v2391 = vsel %vm976, %v1288, 0
    %v2394 = vsel %vm976, %v1289, 0
    %v2397 = vsel %vm976, %v1290, 0
    %v2400 = vsel %vm976, %v1291, 0
    %v2403 = vsel %vm976, %v1292, 0
    %v2406 = vsel %vm976, %v1293, 0
    %v2409 = vsel %vm976, %v1294, 0
    %v2412 = vsel %vm976, %v1295, 0
    %v2415 = vsel %vm976, %v1296, 0
    %v2418 = vsel %vm976, %v1297, 0
    %v2421 = vsel %vm976, %v1298, 0
    %v2424 = vsel %vm976, %v1299, 0
    %v2427 = vsel %vm976, %v1300, 0
    %v2430 = vsel %vm976, %v1301, 0
    %v2433 = vsel %vm976, %v1302, 0
    %v2436 = vsel %vm976, %v1303, 0
    %v2439 = vsel %vm976, %v1304, 0
    %v2442 = vsel %vm976, %v1305, 0
    %v2445 = vsel %vm976, %v1306, 0
    %2447 = vmatprep.subr.mxu0 0.0
    %2448 = vmatpush1.xpose.msra.mxu0 %v2352
    %2449 = vmatprep.subr.mxu0 0.0
    %2450 = vmatpush1.xpose.msra.mxu0 %v2355
    %2451 = vmatprep.subr.mxu0 0.0
    %2452 = vmatpush1.xpose.msra.mxu0 %v2358
    %2453 = vmatprep.subr.mxu0 0.0
    %2454 = vmatpush1.xpose.msra.mxu0 %v2361
    %2455 = vmatprep.subr.mxu0 0.0
    %2456 = vmatpush1.xpose.msra.mxu0 %v2364
    %2457 = vmatprep.subr.mxu0 0.0
    %2458 = vmatpush1.xpose.msra.mxu0 %v2367
    %2459 = vmatprep.subr.mxu0 0.0
    %2460 = vmatpush1.xpose.msra.mxu0 %v2370
    %2461 = vmatprep.subr.mxu0 0.0
    %2462 = vmatpush1.xpose.msra.mxu0 %v2373
    %2463 = vmatprep.subr.mxu0 0.0
    %2464 = vmatpush1.xpose.msra.mxu0 %v2376
    %2465 = vmatprep.subr.mxu0 0.0
    %2466 = vmatpush1.xpose.msra.mxu0 %v2379
    %2467 = vmatprep.subr.mxu0 0.0
    %2468 = vmatpush1.xpose.msra.mxu0 %v2382
    %2469 = vmatprep.subr.mxu0 0.0
    %2470 = vmatpush1.xpose.msra.mxu0 %v2385
    %2471 = vmatprep.subr.mxu0 0.0
    %2472 = vmatpush1.xpose.msra.mxu0 %v2388
    %2473 = vmatprep.subr.mxu0 0.0
    %2474 = vmatpush1.xpose.msra.mxu0 %v2391
    %2475 = vmatprep.subr.mxu0 0.0
    %2476 = vmatpush1.xpose.msra.mxu0 %v2394
    %2477 = vmatprep.subr.mxu0 0.0
    %2478 = vmatpush1.xpose.msra.mxu0 %v2397
    %2479 = vmatprep.subr.mxu0 0.0
    %2480 = vmatpush1.xpose.msra.mxu0 %v2400
    %2481 = vmatprep.subr.mxu0 0.0
    %2482 = vmatpush1.xpose.msra.mxu0 %v2403
    %2483 = vmatprep.subr.mxu0 0.0
    %2484 = vmatpush1.xpose.msra.mxu0 %v2406
    %2485 = vmatprep.subr.mxu0 0.0
    %2486 = vmatpush1.xpose.msra.mxu0 %v2409
    %2487 = vmatprep.subr.mxu0 0.0
    %2488 = vmatpush1.xpose.msra.mxu0 %v2412
    %2489 = vmatprep.subr.mxu0 0.0
    %2490 = vmatpush1.xpose.msra.mxu0 %v2415
    %2491 = vmatprep.subr.mxu0 0.0
    %2492 = vmatpush1.xpose.msra.mxu0 %v2418
    %2493 = vmatprep.subr.mxu0 0.0
    %2494 = vmatpush1.xpose.msra.mxu0 %v2421
    %2495 = vmatprep.subr.mxu0 0.0
    %2496 = vmatpush1.xpose.msra.mxu0 %v2424
    %2497 = vmatprep.subr.mxu0 0.0
    %2498 = vmatpush1.xpose.msra.mxu0 %v2427
    %2499 = vmatprep.subr.mxu0 0.0
    %2500 = vmatpush1.xpose.msra.mxu0 %v2430
    %2501 = vmatprep.subr.mxu0 0.0
    %2502 = vmatpush1.xpose.msra.mxu0 %v2433
    %2503 = vmatprep.subr.mxu0 0.0
    %2504 = vmatpush1.xpose.msra.mxu0 %v2436
    %2505 = vmatprep.subr.mxu0 0.0
    %2506 = vmatpush1.xpose.msra.mxu0 %v2439
    %2507 = vmatprep.subr.mxu0 0.0
    %2508 = vmatpush1.xpose.msra.mxu0 %v2442
    %2509 = vmatprep.subr.mxu0 0.0
    %2510 = vmatpush1.xpose.msra.mxu0 %v2445
    %2511 = vmatprep.mubr.f32.mxu0 0.0
    %2512 = vmatmul.mubr.f32.gmra.mrb[0].mxu0 %v2328
    %v2513 = vpop.f32.mrb[0].mxu0
    %v2514 = vadd.f32 0.0, %v2513
    %v2515 = vpop.f32.mrb[0].mxu0
    %v2516 = vadd.f32 0.0, %v2515
    %2517 = vmatprep.mubr.f32.mxu0 0.0
    %2518 = vmatmul.mubr.f32.gmra.mrb[0].mxu0 %v2331
    %v2519 = vpop.f32.mrb[0].mxu0
    %v2520 = vadd.f32 0.0, %v2519
    %v2521 = vpop.f32.mrb[0].mxu0
    %v2522 = vadd.f32 0.0, %v2521
    %2523 = vmatprep.mubr.f32.mxu0 0.0
    %2524 = vmatmul.mubr.f32.gmra.mrb[0].mxu0 %v2334
    %v2525 = vpop.f32.mrb[0].mxu0
    %v2526 = vadd.f32 0.0, %v2525
    %v2527 = vpop.f32.mrb[0].mxu0
    %v2528 = vadd.f32 0.0, %v2527
    %2529 = vmatprep.mubr.f32.mxu0 0.0
    %2530 = vmatmul.mubr.f32.gmra.mrb[0].mxu0 %v2337
    %v2531 = vpop.f32.mrb[0].mxu0
    %v2532 = vadd.f32 0.0, %v2531
    %v2533 = vpop.f32.mrb[0].mxu0
    %v2534 = vadd.f32 0.0, %v2533
    %2535 = vmatprep.mubr.f32.mxu0 0.0
    %2536 = vmatmul.mubr.f32.gmra.mrb[0].mxu0 %v2340
    %v2537 = vpop.f32.mrb[0].mxu0
    %v2538 = vadd.f32 0.0, %v2537
    %v2539 = vpop.f32.mrb[0].mxu0
    %v2540 = vadd.f32 0.0, %v2539
    %2541 = vmatprep.mubr.f32.mxu0 0.0
    %2542 = vmatmul.mubr.f32.gmra.mrb[0].mxu0 %v2343
    %v2543 = vpop.f32.mrb[0].mxu0
    %v2544 = vadd.f32 0.0, %v2543
    %v2545 = vpop.f32.mrb[0].mxu0
    %v2546 = vadd.f32 0.0, %v2545
    %2547 = vmatprep.mubr.f32.mxu0 0.0
    %2548 = vmatmul.mubr.f32.gmra.mrb[0].mxu0 %v2346
    %v2549 = vpop.f32.mrb[0].mxu0
    %v2550 = vadd.f32 0.0, %v2549
    %v2551 = vpop.f32.mrb[0].mxu0
    %v2552 = vadd.f32 0.0, %v2551
    %2553 = vmatprep.mubr.f32.mxu0 0.0
    %2554 = vmatmul.mubr.f32.gmra.mrb[0].mxu0 %v2349
    %v2555 = vpop.f32.mrb[0].mxu0
    %v2556 = vadd.f32 0.0, %v2555
    %v2557 = vpop.f32.mrb[0].mxu0
    %v2558 = vadd.f32 0.0, %v2557
    %2559 = vdwg.mxu0
    %v2560 = vmax.f32 %v2514, 1e-20
    %v2561 = vmax.f32 %v2516, 1e-20
    %v2562 = vmax.f32 %v2520, 1e-20
    %v2563 = vmax.f32 %v2522, 1e-20
    %v2564 = vmax.f32 %v2526, 1e-20
    %v2565 = vmax.f32 %v2528, 1e-20
    %v2566 = vmax.f32 %v2532, 1e-20
    %v2567 = vmax.f32 %v2534, 1e-20
    %v2568 = vmax.f32 %v2538, 1e-20
    %v2569 = vmax.f32 %v2540, 1e-20
    %v2570 = vmax.f32 %v2544, 1e-20
    %v2571 = vmax.f32 %v2546, 1e-20
    %v2572 = vmax.f32 %v2550, 1e-20
    %v2573 = vmax.f32 %v2552, 1e-20
    %v2574 = vmax.f32 %v2556, 1e-20
    %v2575 = vmax.f32 %v2558, 1e-20
    %v2576 = vrcp.pop %v2560
    %v2577 = vrcp.pop %v2561
    %v2578 = vrcp.pop %v2562
    %v2579 = vrcp.pop %v2563
    %v2580 = vrcp.pop %v2564
    %v2581 = vrcp.pop %v2565
    %v2582 = vrcp.pop %v2566
    %v2583 = vrcp.pop %v2567
    %v2584 = vrcp.pop %v2568
    %v2585 = vrcp.pop %v2569
    %v2586 = vrcp.pop %v2570
    %v2587 = vrcp.pop %v2571
    %v2588 = vrcp.pop %v2572
    %v2589 = vrcp.pop %v2573
    %v2590 = vrcp.pop %v2574
    %v2591 = vrcp.pop %v2575
    %v2592 = vmul.f32 %v2191, %v2576
    %v2593 = vmul.f32 %v2193, %v2577
    %v2594 = vmul.f32 %v2195, %v2578
    %v2595 = vmul.f32 %v2197, %v2579
    %v2596 = vmul.f32 %v2199, %v2580
    %v2597 = vmul.f32 %v2201, %v2581
    %v2598 = vmul.f32 %v2203, %v2582
    %v2599 = vmul.f32 %v2205, %v2583
    %v2600 = vmul.f32 %v2207, %v2584
    %v2601 = vmul.f32 %v2209, %v2585
    %v2602 = vmul.f32 %v2211, %v2586
    %v2603 = vmul.f32 %v2213, %v2587
    %v2604 = vmul.f32 %v2215, %v2588
    %v2605 = vmul.f32 %v2217, %v2589
    %v2606 = vmul.f32 %v2219, %v2590
    %v2607 = vmul.f32 %v2221, %v2591
    %2608 = vmatprep.subr.mxu0 0.0
    %2609 = vmatpush1.msra.mxu0 %v1853
    %2610 = vmatprep.subr.mxu0 0.0
    %2611 = vmatpush1.msra.mxu0 %v1854
    %2612 = vmatprep.subr.mxu0 0.0
    %2613 = vmatpush1.msra.mxu0 %v1855
    %2614 = vmatprep.subr.mxu0 0.0
    %2615 = vmatpush1.msra.mxu0 %v1856
    %2616 = vmatprep.subr.mxu0 0.0
    %2617 = vmatpush1.msra.mxu0 %v1857
    %2618 = vmatprep.subr.mxu0 0.0
    %2619 = vmatpush1.msra.mxu0 %v1858
    %2620 = vmatprep.subr.mxu0 0.0
    %2621 = vmatpush1.msra.mxu0 %v1859
    %2622 = vmatprep.subr.mxu0 0.0
    %2623 = vmatpush1.msra.mxu0 %v1860
    %2624 = vmatprep.subr.mxu0 0.0
    %2625 = vmatpush1.msra.mxu0 %v1861
    %2626 = vmatprep.subr.mxu0 0.0
    %2627 = vmatpush1.msra.mxu0 %v1862
    %2628 = vmatprep.subr.mxu0 0.0
    %2629 = vmatpush1.msra.mxu0 %v1863
    %2630 = vmatprep.subr.mxu0 0.0
    %2631 = vmatpush1.msra.mxu0 %v1864
    %2632 = vmatprep.subr.mxu0 0.0
    %2633 = vmatpush1.msra.mxu0 %v1865
    %2634 = vmatprep.subr.mxu0 0.0
    %2635 = vmatpush1.msra.mxu0 %v1866
    %2636 = vmatprep.subr.mxu0 0.0
    %2637 = vmatpush1.msra.mxu0 %v1867
    %2638 = vmatprep.subr.mxu0 0.0
    %2639 = vmatpush1.msra.mxu0 %v1868
    %2640 = vmatprep.subr.mxu0 0.0
    %2641 = vmatpush1.msra.mxu0 %v1869
    %2642 = vmatprep.subr.mxu0 0.0
    %2643 = vmatpush1.msra.mxu0 %v1870
    %2644 = vmatprep.subr.mxu0 0.0
    %2645 = vmatpush1.msra.mxu0 %v1871
    %2646 = vmatprep.subr.mxu0 0.0
    %2647 = vmatpush1.msra.mxu0 %v1872
    %2648 = vmatprep.subr.mxu0 0.0
    %2649 = vmatpush1.msra.mxu0 %v1873
    %2650 = vmatprep.subr.mxu0 0.0
    %2651 = vmatpush1.msra.mxu0 %v1874
    %2652 = vmatprep.subr.mxu0 0.0
    %2653 = vmatpush1.msra.mxu0 %v1875
    %2654 = vmatprep.subr.mxu0 0.0
    %2655 = vmatpush1.msra.mxu0 %v1876
    %2656 = vmatprep.subr.mxu0 0.0
    %2657 = vmatpush1.msra.mxu0 %v1877
    %2658 = vmatprep.subr.mxu0 0.0
    %2659 = vmatpush1.msra.mxu0 %v1878
    %2660 = vmatprep.subr.mxu0 0.0
    %2661 = vmatpush1.msra.mxu0 %v1879
    %2662 = vmatprep.subr.mxu0 0.0
    %2663 = vmatpush1.msra.mxu0 %v1880
    %2664 = vmatprep.subr.mxu0 0.0
    %2665 = vmatpush1.msra.mxu0 %v1881
    %2666 = vmatprep.subr.mxu0 0.0
    %2667 = vmatpush1.msra.mxu0 %v1882
    %2668 = vmatprep.subr.mxu0 0.0
    %2669 = vmatpush1.msra.mxu0 %v1883
    %2670 = vmatprep.subr.mxu0 0.0
    %2671 = vmatpush1.msra.mxu0 %v1884
    %2672 = vmatprep.mubr.f32.mxu0 %v2593
    %2673 = vmatmul.mubr.f32.gmra.mrb[0].mxu0 %v2592
    %v2674 = vpop.f32.mrb[0].mxu0
    %v2675 = vadd.f32 0.0, %v2674
    %v2676 = vpop.f32.mrb[0].mxu0
    %2677 = vmatprep.mubr.f32.mxu0 %v2595
    %2678 = vmatmul.mubr.f32.gmra.mrb[0].mxu0 %v2594
    %v2679 = vpop.f32.mrb[0].mxu0
    %v2680 = vadd.f32 0.0, %v2679
    %v2681 = vpop.f32.mrb[0].mxu0
    %2682 = vmatprep.mubr.f32.mxu0 %v2597
    %2683 = vmatmul.mubr.f32.gmra.mrb[0].mxu0 %v2596
    %v2684 = vpop.f32.mrb[0].mxu0
    %v2685 = vadd.f32 0.0, %v2684
    %v2686 = vpop.f32.mrb[0].mxu0
    %2687 = vmatprep.mubr.f32.mxu0 %v2599
    %2688 = vmatmul.mubr.f32.gmra.mrb[0].mxu0 %v2598
    %v2689 = vpop.f32.mrb[0].mxu0
    %v2690 = vadd.f32 0.0, %v2689
    %v2691 = vpop.f32.mrb[0].mxu0
    %2692 = vmatprep.mubr.f32.mxu0 %v2601
    %2693 = vmatmul.mubr.f32.gmra.mrb[0].mxu0 %v2600
    %v2694 = vpop.f32.mrb[0].mxu0
    %v2695 = vadd.f32 0.0, %v2694
    %v2696 = vpop.f32.mrb[0].mxu0
    %2697 = vmatprep.mubr.f32.mxu0 %v2603
    %2698 = vmatmul.mubr.f32.gmra.mrb[0].mxu0 %v2602
    %v2699 = vpop.f32.mrb[0].mxu0
    %v2700 = vadd.f32 0.0, %v2699
    %v2701 = vpop.f32.mrb[0].mxu0
    %2702 = vmatprep.mubr.f32.mxu0 %v2605
    %2703 = vmatmul.mubr.f32.gmra.mrb[0].mxu0 %v2604
    %v2704 = vpop.f32.mrb[0].mxu0
    %v2705 = vadd.f32 0.0, %v2704
    %v2706 = vpop.f32.mrb[0].mxu0
    %2707 = vmatprep.mubr.f32.mxu0 %v2607
    %2708 = vmatmul.mubr.f32.gmra.mrb[0].mxu0 %v2606
    %v2709 = vpop.f32.mrb[0].mxu0
    %v2710 = vadd.f32 0.0, %v2709
    %v2711 = vpop.f32.mrb[0].mxu0
    %2712 = vdwg.mxu0
    %s2713 = scalar_lea.vmem %s10, 96
    %v2714 = vld [vmem:[%s2713] sm:$0xff]
    %v2715 = vld [vmem:[%s2713 + $0x8] sm:$0xff]
    %v2716 = vld [vmem:[%s2713 + $0x10] sm:$0xff]
    %v2717 = vld [vmem:[%s2713 + $0x18] sm:$0xff]
    %v2719 = vsel %vm1310, %v2675, 0
    %v2722 = vsel %vm1310, %v2680, 0
    %v2725 = vsel %vm1310, %v2685, 0
    %v2728 = vsel %vm1310, %v2690, 0
    %v2731 = vsel %vm1310, %v2695, 0
    %v2734 = vsel %vm1310, %v2700, 0
    %v2737 = vsel %vm1310, %v2705, 0
    %v2740 = vsel %vm1310, %v2710, 0
    %2742 = vmatprep.subr.mxu0 0.0
    %2743 = vmatpush1.msra.mxu0 %v2714
    %2744 = vmatprep.subr.mxu0 0.0
    %2745 = vmatpush1.msra.mxu0 %v2715
    %2746 = vmatprep.subr.mxu0 0.0
    %2747 = vmatpush1.msra.mxu0 %v2716
    %2748 = vmatprep.subr.mxu0 0.0
    %2749 = vmatpush1.msra.mxu0 %v2717
    %2750 = vmatprep.subr.mxu0 0.0
    %2751 = vmatpush1.msra.mxu0 0.0
    %2752 = vmatprep.subr.mxu0 0.0
    %2753 = vmatpush1.msra.mxu0 0.0
    %2754 = vmatprep.subr.mxu0 0.0
    %2755 = vmatpush1.msra.mxu0 0.0
    %2756 = vmatprep.subr.mxu0 0.0
    %2757 = vmatpush1.msra.mxu0 0.0
    %2758 = vmatprep.subr.mxu0 0.0
    %2759 = vmatpush1.msra.mxu0 0.0
    %2760 = vmatprep.subr.mxu0 0.0
    %2761 = vmatpush1.msra.mxu0 0.0
    %2762 = vmatprep.subr.mxu0 0.0
    %2763 = vmatpush1.msra.mxu0 0.0
    %2764 = vmatprep.subr.mxu0 0.0
    %2765 = vmatpush1.msra.mxu0 0.0
    %2766 = vmatprep.subr.mxu0 0.0
    %2767 = vmatpush1.msra.mxu0 0.0
    %2768 = vmatprep.subr.mxu0 0.0
    %2769 = vmatpush1.msra.mxu0 0.0
    %2770 = vmatprep.subr.mxu0 0.0
    %2771 = vmatpush1.msra.mxu0 0.0
    %2772 = vmatprep.subr.mxu0 0.0
    %2773 = vmatpush1.msra.mxu0 0.0
    %2774 = vmatprep.subr.mxu0 0.0
    %2775 = vmatpush1.msra.mxu0 0.0
    %2776 = vmatprep.subr.mxu0 0.0
    %2777 = vmatpush1.msra.mxu0 0.0
    %2778 = vmatprep.subr.mxu0 0.0
    %2779 = vmatpush1.msra.mxu0 0.0
    %2780 = vmatprep.subr.mxu0 0.0
    %2781 = vmatpush1.msra.mxu0 0.0
    %2782 = vmatprep.subr.mxu0 0.0
    %2783 = vmatpush1.msra.mxu0 0.0
    %2784 = vmatprep.subr.mxu0 0.0
    %2785 = vmatpush1.msra.mxu0 0.0
    %2786 = vmatprep.subr.mxu0 0.0
    %2787 = vmatpush1.msra.mxu0 0.0
    %2788 = vmatprep.subr.mxu0 0.0
    %2789 = vmatpush1.msra.mxu0 0.0
    %2790 = vmatprep.subr.mxu0 0.0
    %2791 = vmatpush1.msra.mxu0 0.0
    %2792 = vmatprep.subr.mxu0 0.0
    %2793 = vmatpush1.msra.mxu0 0.0
    %2794 = vmatprep.subr.mxu0 0.0
    %2795 = vmatpush1.msra.mxu0 0.0
    %2796 = vmatprep.subr.mxu0 0.0
    %2797 = vmatpush1.msra.mxu0 0.0
    %2798 = vmatprep.subr.mxu0 0.0
    %2799 = vmatpush1.msra.mxu0 0.0
    %2800 = vmatprep.subr.mxu0 0.0
    %2801 = vmatpush1.msra.mxu0 0.0
    %2802 = vmatprep.subr.mxu0 0.0
    %2803 = vmatpush1.msra.mxu0 0.0
    %2804 = vmatprep.subr.mxu0 0.0
    %2805 = vmatpush1.msra.mxu0 0.0
    %2806 = vmatprep.mubr.f32.mxu0 0.0
    %2807 = vmatmul.mubr.f32.gmra.mrb[0].mxu0 %v2719
    %v2808 = vpop.f32.mrb[0].mxu0
    %v2809 = vadd.f32 0.0, %v2808
    %v2810 = vpop.f32.mrb[0].mxu0
    %2811 = vmatprep.mubr.f32.mxu0 0.0
    %2812 = vmatmul.mubr.f32.gmra.mrb[0].mxu0 %v2722
    %v2813 = vpop.f32.mrb[0].mxu0
    %v2814 = vadd.f32 0.0, %v2813
    %v2815 = vpop.f32.mrb[0].mxu0
    %2816 = vmatprep.mubr.f32.mxu0 0.0
    %2817 = vmatmul.mubr.f32.gmra.mrb[0].mxu0 %v2725
    %v2818 = vpop.f32.mrb[0].mxu0
    %v2819 = vadd.f32 0.0, %v2818
    %v2820 = vpop.f32.mrb[0].mxu0
    %2821 = vmatprep.mubr.f32.mxu0 0.0
    %2822 = vmatmul.mubr.f32.gmra.mrb[0].mxu0 %v2728
    %v2823 = vpop.f32.mrb[0].mxu0
    %v2824 = vadd.f32 0.0, %v2823
    %v2825 = vpop.f32.mrb[0].mxu0
    %2826 = vmatprep.mubr.f32.mxu0 0.0
    %2827 = vmatmul.mubr.f32.gmra.mrb[0].mxu0 %v2731
    %v2828 = vpop.f32.mrb[0].mxu0
    %v2829 = vadd.f32 0.0, %v2828
    %v2830 = vpop.f32.mrb[0].mxu0
    %2831 = vmatprep.mubr.f32.mxu0 0.0
    %2832 = vmatmul.mubr.f32.gmra.mrb[0].mxu0 %v2734
    %v2833 = vpop.f32.mrb[0].mxu0
    %v2834 = vadd.f32 0.0, %v2833
    %v2835 = vpop.f32.mrb[0].mxu0
    %2836 = vmatprep.mubr.f32.mxu0 0.0
    %2837 = vmatmul.mubr.f32.gmra.mrb[0].mxu0 %v2737
    %v2838 = vpop.f32.mrb[0].mxu0
    %v2839 = vadd.f32 0.0, %v2838
    %v2840 = vpop.f32.mrb[0].mxu0
    %2841 = vmatprep.mubr.f32.mxu0 0.0
    %2842 = vmatmul.mubr.f32.gmra.mrb[0].mxu0 %v2740
    %v2843 = vpop.f32.mrb[0].mxu0
    %v2844 = vadd.f32 0.0, %v2843
    %v2845 = vpop.f32.mrb[0].mxu0
    %2846 = vdwg.mxu0
    %v2847 = vadd.f32 %v1219, %v2809
    %v2848 = vadd.f32 %v1220, %v2814
    %v2849 = vadd.f32 %v1221, %v2819
    %v2850 = vadd.f32 %v1222, %v2824
    %v2851 = vadd.f32 %v1223, %v2829
    %v2852 = vadd.f32 %v1224, %v2834
    %v2853 = vadd.f32 %v1225, %v2839
    %v2854 = vadd.f32 %v1226, %v2844
    %s2855 = scalar_lea.vmem %s13, 5
    %v2856 = vld [vmem:[%s2855] sm:$0x1]
    %v2858 = vlaneseq
    %v2859 = vshrl.u32 %v2858, 7
    %v2860 = vsub.s32 0, %v2859
    %v2861 = vrot.slane %v2856, %v2860
    %v2863 = vadd.f32 %v2847, %v2861
    %v2864 = vadd.f32 %v2848, %v2861
    %v2865 = vadd.f32 %v2849, %v2861
    %v2866 = vadd.f32 %v2850, %v2861
    %v2867 = vadd.f32 %v2851, %v2861
    %v2868 = vadd.f32 %v2852, %v2861
    %v2869 = vadd.f32 %v2853, %v2861
    %v2870 = vadd.f32 %v2854, %v2861
    %s2871 = scalar_lea.vmem %s13, 6
    %v2872 = vld [vmem:[%s2871] sm:$0x1]
    %s2873 = scalar_lea.vmem %s13, 7
    %v2874 = vld [vmem:[%s2873] sm:$0x1]
    %v2875 = vsel %vm1310, %v2863, 0.0
    %2876 = vadd.xlane.f32.xlu0 %v2875
    %v2877 = vpop.xlane.xlu0 %2876
    %v2878 = vsel %vm1310, %v2864, 0.0
    %2879 = vadd.xlane.f32.xlu0 %v2878
    %v2880 = vpop.xlane.xlu0 %2879
    %v2881 = vsel %vm1310, %v2865, 0.0
    %2882 = vadd.xlane.f32.xlu0 %v2881
    %v2883 = vpop.xlane.xlu0 %2882
    %v2884 = vsel %vm1310, %v2866, 0.0
    %2885 = vadd.xlane.f32.xlu0 %v2884
    %v2886 = vpop.xlane.xlu0 %2885
    %v2887 = vsel %vm1310, %v2867, 0.0
    %2888 = vadd.xlane.f32.xlu0 %v2887
    %v2889 = vpop.xlane.xlu0 %2888
    %v2890 = vsel %vm1310, %v2868, 0.0
    %2891 = vadd.xlane.f32.xlu0 %v2890
    %v2892 = vpop.xlane.xlu0 %2891
    %v2893 = vsel %vm1310, %v2869, 0.0
    %2894 = vadd.xlane.f32.xlu0 %v2893
    %v2895 = vpop.xlane.xlu0 %2894
    %v2896 = vsel %vm1310, %v2870, 0.0
    %2897 = vadd.xlane.f32.xlu0 %v2896
    %v2898 = vpop.xlane.xlu0 %2897
    %v2899 = vmul.f32 %v2877, %v1335
    %v2900 = vmul.f32 %v2880, %v1335
    %v2901 = vmul.f32 %v2883, %v1335
    %v2902 = vmul.f32 %v2886, %v1335
    %v2903 = vmul.f32 %v2889, %v1335
    %v2904 = vmul.f32 %v2892, %v1335
    %v2905 = vmul.f32 %v2895, %v1335
    %v2906 = vmul.f32 %v2898, %v1335
    %v2907 = vsub.f32 %v2863, %v2899
    %v2908 = vsub.f32 %v2864, %v2900
    %v2909 = vsub.f32 %v2865, %v2901
    %v2910 = vsub.f32 %v2866, %v2902
    %v2911 = vsub.f32 %v2867, %v2903
    %v2912 = vsub.f32 %v2868, %v2904
    %v2913 = vsub.f32 %v2869, %v2905
    %v2914 = vsub.f32 %v2870, %v2906
    %v2915 = vmul.f32 %v2907, %v2907
    %v2916 = vmul.f32 %v2908, %v2908
    %v2917 = vmul.f32 %v2909, %v2909
    %v2918 = vmul.f32 %v2910, %v2910
    %v2919 = vmul.f32 %v2911, %v2911
    %v2920 = vmul.f32 %v2912, %v2912
    %v2921 = vmul.f32 %v2913, %v2913
    %v2922 = vmul.f32 %v2914, %v2914
    %v2923 = vsel %vm1310, %v2915, 0.0
    %2924 = vadd.xlane.f32.xlu0 %v2923
    %v2925 = vpop.xlane.xlu0 %2924
    %v2926 = vsel %vm1310, %v2916, 0.0
    %2927 = vadd.xlane.f32.xlu0 %v2926
    %v2928 = vpop.xlane.xlu0 %2927
    %v2929 = vsel %vm1310, %v2917, 0.0
    %2930 = vadd.xlane.f32.xlu0 %v2929
    %v2931 = vpop.xlane.xlu0 %2930
    %v2932 = vsel %vm1310, %v2918, 0.0
    %2933 = vadd.xlane.f32.xlu0 %v2932
    %v2934 = vpop.xlane.xlu0 %2933
    %v2935 = vsel %vm1310, %v2919, 0.0
    %2936 = vadd.xlane.f32.xlu0 %v2935
    %v2937 = vpop.xlane.xlu0 %2936
    %v2938 = vsel %vm1310, %v2920, 0.0
    %2939 = vadd.xlane.f32.xlu0 %v2938
    %v2940 = vpop.xlane.xlu0 %2939
    %v2941 = vsel %vm1310, %v2921, 0.0
    %2942 = vadd.xlane.f32.xlu0 %v2941
    %v2943 = vpop.xlane.xlu0 %2942
    %v2944 = vsel %vm1310, %v2922, 0.0
    %2945 = vadd.xlane.f32.xlu0 %v2944
    %v2946 = vpop.xlane.xlu0 %2945
    %v2947 = vmul.f32 %v2925, %v1335
    %v2948 = vmul.f32 %v2928, %v1335
    %v2949 = vmul.f32 %v2931, %v1335
    %v2950 = vmul.f32 %v2934, %v1335
    %v2951 = vmul.f32 %v2937, %v1335
    %v2952 = vmul.f32 %v2940, %v1335
    %v2953 = vmul.f32 %v2943, %v1335
    %v2954 = vmul.f32 %v2946, %v1335
    %v2955 = vadd.f32 %v2947, 1e-05
    %v2956 = vadd.f32 %v2948, 1e-05
    %v2957 = vadd.f32 %v2949, 1e-05
    %v2958 = vadd.f32 %v2950, 1e-05
    %v2959 = vadd.f32 %v2951, 1e-05
    %v2960 = vadd.f32 %v2952, 1e-05
    %v2961 = vadd.f32 %v2953, 1e-05
    %v2962 = vadd.f32 %v2954, 1e-05
    %v2963 = vrsqrt.pop %v2955
    %v2964 = vrsqrt.pop %v2956
    %v2965 = vrsqrt.pop %v2957
    %v2966 = vrsqrt.pop %v2958
    %v2967 = vrsqrt.pop %v2959
    %v2968 = vrsqrt.pop %v2960
    %v2969 = vrsqrt.pop %v2961
    %v2970 = vrsqrt.pop %v2962
    %v2971 = vmul.f32 %v2907, %v2963
    %v2972 = vmul.f32 %v2908, %v2964
    %v2973 = vmul.f32 %v2909, %v2965
    %v2974 = vmul.f32 %v2910, %v2966
    %v2975 = vmul.f32 %v2911, %v2967
    %v2976 = vmul.f32 %v2912, %v2968
    %v2977 = vmul.f32 %v2913, %v2969
    %v2978 = vmul.f32 %v2914, %v2970
    %v2980 = vlaneseq
    %v2981 = vshrl.u32 %v2980, 7
    %v2982 = vsub.s32 0, %v2981
    %v2983 = vrot.slane %v2872, %v2982
    %v2985 = vmul.f32 %v2971, %v2983
    %v2986 = vmul.f32 %v2972, %v2983
    %v2987 = vmul.f32 %v2973, %v2983
    %v2988 = vmul.f32 %v2974, %v2983
    %v2989 = vmul.f32 %v2975, %v2983
    %v2990 = vmul.f32 %v2976, %v2983
    %v2991 = vmul.f32 %v2977, %v2983
    %v2992 = vmul.f32 %v2978, %v2983
    %v2994 = vlaneseq
    %v2995 = vshrl.u32 %v2994, 7
    %v2996 = vsub.s32 0, %v2995
    %v2997 = vrot.slane %v2874, %v2996
    %v2999 = vadd.f32 %v2985, %v2997
    %v3000 = vadd.f32 %v2986, %v2997
    %v3001 = vadd.f32 %v2987, %v2997
    %v3002 = vadd.f32 %v2988, %v2997
    %v3003 = vadd.f32 %v2989, %v2997
    %v3004 = vadd.f32 %v2990, %v2997
    %v3005 = vadd.f32 %v2991, %v2997
    %v3006 = vadd.f32 %v2992, %v2997
    %v3007 = vld [vmem:[%s11] sm:$0xff]
    %v3008 = vld [vmem:[%s11 + $0x8] sm:$0xff]
    %v3009 = vld [vmem:[%s11 + $0x10] sm:$0xff]
    %v3010 = vld [vmem:[%s11 + $0x18] sm:$0xff]
    %v3011 = vld [vmem:[%s14] sm:$0x1]
    %v3013 = vlaneseq
    %v3014 = vshrl.u32 %v3013, 7
    %v3015 = vsub.s32 0, %v3014
    %v3016 = vrot.slane %v3011, %v3015
    %v3019 = vsel %vm1310, %v2999, 0
    %v3022 = vsel %vm1310, %v3000, 0
    %v3025 = vsel %vm1310, %v3001, 0
    %v3028 = vsel %vm1310, %v3002, 0
    %v3031 = vsel %vm1310, %v3003, 0
    %v3034 = vsel %vm1310, %v3004, 0
    %v3037 = vsel %vm1310, %v3005, 0
    %v3040 = vsel %vm1310, %v3006, 0
    %3042 = vmatprep.subr.mxu0 0.0
    %3043 = vmatpush1.msra.mxu0 %v3007
    %3044 = vmatprep.subr.mxu0 0.0
    %3045 = vmatpush1.msra.mxu0 %v3008
    %3046 = vmatprep.subr.mxu0 0.0
    %3047 = vmatpush1.msra.mxu0 %v3009
    %3048 = vmatprep.subr.mxu0 0.0
    %3049 = vmatpush1.msra.mxu0 %v3010
    %3050 = vmatprep.subr.mxu0 0.0
    %3051 = vmatpush1.msra.mxu0 0.0
    %3052 = vmatprep.subr.mxu0 0.0
    %3053 = vmatpush1.msra.mxu0 0.0
    %3054 = vmatprep.subr.mxu0 0.0
    %3055 = vmatpush1.msra.mxu0 0.0
    %3056 = vmatprep.subr.mxu0 0.0
    %3057 = vmatpush1.msra.mxu0 0.0
    %3058 = vmatprep.subr.mxu0 0.0
    %3059 = vmatpush1.msra.mxu0 0.0
    %3060 = vmatprep.subr.mxu0 0.0
    %3061 = vmatpush1.msra.mxu0 0.0
    %3062 = vmatprep.subr.mxu0 0.0
    %3063 = vmatpush1.msra.mxu0 0.0
    %3064 = vmatprep.subr.mxu0 0.0
    %3065 = vmatpush1.msra.mxu0 0.0
    %3066 = vmatprep.subr.mxu0 0.0
    %3067 = vmatpush1.msra.mxu0 0.0
    %3068 = vmatprep.subr.mxu0 0.0
    %3069 = vmatpush1.msra.mxu0 0.0
    %3070 = vmatprep.subr.mxu0 0.0
    %3071 = vmatpush1.msra.mxu0 0.0
    %3072 = vmatprep.subr.mxu0 0.0
    %3073 = vmatpush1.msra.mxu0 0.0
    %3074 = vmatprep.subr.mxu0 0.0
    %3075 = vmatpush1.msra.mxu0 0.0
    %3076 = vmatprep.subr.mxu0 0.0
    %3077 = vmatpush1.msra.mxu0 0.0
    %3078 = vmatprep.subr.mxu0 0.0
    %3079 = vmatpush1.msra.mxu0 0.0
    %3080 = vmatprep.subr.mxu0 0.0
    %3081 = vmatpush1.msra.mxu0 0.0
    %3082 = vmatprep.subr.mxu0 0.0
    %3083 = vmatpush1.msra.mxu0 0.0
    %3084 = vmatprep.subr.mxu0 0.0
    %3085 = vmatpush1.msra.mxu0 0.0
    %3086 = vmatprep.subr.mxu0 0.0
    %3087 = vmatpush1.msra.mxu0 0.0
    %3088 = vmatprep.subr.mxu0 0.0
    %3089 = vmatpush1.msra.mxu0 0.0
    %3090 = vmatprep.subr.mxu0 0.0
    %3091 = vmatpush1.msra.mxu0 0.0
    %3092 = vmatprep.subr.mxu0 0.0
    %3093 = vmatpush1.msra.mxu0 0.0
    %3094 = vmatprep.subr.mxu0 0.0
    %3095 = vmatpush1.msra.mxu0 0.0
    %3096 = vmatprep.subr.mxu0 0.0
    %3097 = vmatpush1.msra.mxu0 0.0
    %3098 = vmatprep.subr.mxu0 0.0
    %3099 = vmatpush1.msra.mxu0 0.0
    %3100 = vmatprep.subr.mxu0 0.0
    %3101 = vmatpush1.msra.mxu0 0.0
    %3102 = vmatprep.subr.mxu0 0.0
    %3103 = vmatpush1.msra.mxu0 0.0
    %3104 = vmatprep.subr.mxu0 0.0
    %3105 = vmatpush1.msra.mxu0 0.0
    %3106 = vmatprep.mubr.f32.mxu0 0.0
    %3107 = vmatmul.mubr.f32.gmra.mrb[0].mxu0 %v3019
    %v3108 = vpop.f32.mrb[0].mxu0
    %v3109 = vadd.f32 %v3016, %v3108
    %v3110 = vpop.f32.mrb[0].mxu0
    %3111 = vmatprep.mubr.f32.mxu0 0.0
    %3112 = vmatmul.mubr.f32.gmra.mrb[0].mxu0 %v3022
    %v3113 = vpop.f32.mrb[0].mxu0
    %v3114 = vadd.f32 %v3016, %v3113
    %v3115 = vpop.f32.mrb[0].mxu0
    %3116 = vmatprep.mubr.f32.mxu0 0.0
    %3117 = vmatmul.mubr.f32.gmra.mrb[0].mxu0 %v3025
    %v3118 = vpop.f32.mrb[0].mxu0
    %v3119 = vadd.f32 %v3016, %v3118
    %v3120 = vpop.f32.mrb[0].mxu0
    %3121 = vmatprep.mubr.f32.mxu0 0.0
    %3122 = vmatmul.mubr.f32.gmra.mrb[0].mxu0 %v3028
    %v3123 = vpop.f32.mrb[0].mxu0
    %v3124 = vadd.f32 %v3016, %v3123
    %v3125 = vpop.f32.mrb[0].mxu0
    %3126 = vmatprep.mubr.f32.mxu0 0.0
    %3127 = vmatmul.mubr.f32.gmra.mrb[0].mxu0 %v3031
    %v3128 = vpop.f32.mrb[0].mxu0
    %v3129 = vadd.f32 %v3016, %v3128
    %v3130 = vpop.f32.mrb[0].mxu0
    %3131 = vmatprep.mubr.f32.mxu0 0.0
    %3132 = vmatmul.mubr.f32.gmra.mrb[0].mxu0 %v3034
    %v3133 = vpop.f32.mrb[0].mxu0
    %v3134 = vadd.f32 %v3016, %v3133
    %v3135 = vpop.f32.mrb[0].mxu0
    %3136 = vmatprep.mubr.f32.mxu0 0.0
    %3137 = vmatmul.mubr.f32.gmra.mrb[0].mxu0 %v3037
    %v3138 = vpop.f32.mrb[0].mxu0
    %v3139 = vadd.f32 %v3016, %v3138
    %v3140 = vpop.f32.mrb[0].mxu0
    %3141 = vmatprep.mubr.f32.mxu0 0.0
    %3142 = vmatmul.mubr.f32.gmra.mrb[0].mxu0 %v3040
    %v3143 = vpop.f32.mrb[0].mxu0
    %v3144 = vadd.f32 %v3016, %v3143
    %v3145 = vpop.f32.mrb[0].mxu0
    %3146 = vdwg.mxu0
    %v3147 = vmul.f32 %v3109, 0.5
    %v3148 = vmul.f32 %v3114, 0.5
    %v3149 = vmul.f32 %v3119, 0.5
    %v3150 = vmul.f32 %v3124, 0.5
    %v3151 = vmul.f32 %v3129, 0.5
    %v3152 = vmul.f32 %v3134, 0.5
    %v3153 = vmul.f32 %v3139, 0.5
    %v3154 = vmul.f32 %v3144, 0.5
    %v3155 = vmul.f32 %v3109, %v3109
    %v3156 = vmul.f32 %v3114, %v3114
    %v3157 = vmul.f32 %v3119, %v3119
    %v3158 = vmul.f32 %v3124, %v3124
    %v3159 = vmul.f32 %v3129, %v3129
    %v3160 = vmul.f32 %v3134, %v3134
    %v3161 = vmul.f32 %v3139, %v3139
    %v3162 = vmul.f32 %v3144, %v3144
    %v3163 = vmul.f32 %v3109, %v3155
    %v3164 = vmul.f32 %v3114, %v3156
    %v3165 = vmul.f32 %v3119, %v3157
    %v3166 = vmul.f32 %v3124, %v3158
    %v3167 = vmul.f32 %v3129, %v3159
    %v3168 = vmul.f32 %v3134, %v3160
    %v3169 = vmul.f32 %v3139, %v3161
    %v3170 = vmul.f32 %v3144, %v3162
    %v3171 = vmul.f32 %v3163, 0.044715
    %v3172 = vmul.f32 %v3164, 0.044715
    %v3173 = vmul.f32 %v3165, 0.044715
    %v3174 = vmul.f32 %v3166, 0.044715
    %v3175 = vmul.f32 %v3167, 0.044715
    %v3176 = vmul.f32 %v3168, 0.044715
    %v3177 = vmul.f32 %v3169, 0.044715
    %v3178 = vmul.f32 %v3170, 0.044715
    %v3179 = vadd.f32 %v3109, %v3171
    %v3180 = vadd.f32 %v3114, %v3172
    %v3181 = vadd.f32 %v3119, %v3173
    %v3182 = vadd.f32 %v3124, %v3174
    %v3183 = vadd.f32 %v3129, %v3175
    %v3184 = vadd.f32 %v3134, %v3176
    %v3185 = vadd.f32 %v3139, %v3177
    %v3186 = vadd.f32 %v3144, %v3178
    %v3187 = vmul.f32 %v3179, 0.7978846
    %v3188 = vmul.f32 %v3180, 0.7978846
    %v3189 = vmul.f32 %v3181, 0.7978846
    %v3190 = vmul.f32 %v3182, 0.7978846
    %v3191 = vmul.f32 %v3183, 0.7978846
    %v3192 = vmul.f32 %v3184, 0.7978846
    %v3193 = vmul.f32 %v3185, 0.7978846
    %v3194 = vmul.f32 %v3186, 0.7978846
    %v3195 = vtanh.pop %v3187
    %v3196 = vtanh.pop %v3188
    %v3197 = vtanh.pop %v3189
    %v3198 = vtanh.pop %v3190
    %v3199 = vtanh.pop %v3191
    %v3200 = vtanh.pop %v3192
    %v3201 = vtanh.pop %v3193
    %v3202 = vtanh.pop %v3194
    %v3203 = vadd.f32 %v3195, 1.0
    %v3204 = vadd.f32 %v3196, 1.0
    %v3205 = vadd.f32 %v3197, 1.0
    %v3206 = vadd.f32 %v3198, 1.0
    %v3207 = vadd.f32 %v3199, 1.0
    %v3208 = vadd.f32 %v3200, 1.0
    %v3209 = vadd.f32 %v3201, 1.0
    %v3210 = vadd.f32 %v3202, 1.0
    %v3211 = vmul.f32 %v3147, %v3203
    %v3212 = vmul.f32 %v3148, %v3204
    %v3213 = vmul.f32 %v3149, %v3205
    %v3214 = vmul.f32 %v3150, %v3206
    %v3215 = vmul.f32 %v3151, %v3207
    %v3216 = vmul.f32 %v3152, %v3208
    %v3217 = vmul.f32 %v3153, %v3209
    %v3218 = vmul.f32 %v3154, %v3210
    %v3219 = vld [vmem:[%s12] sm:$0xff]
    %v3220 = vld [vmem:[%s12 + $0x8] sm:$0xff]
    %v3221 = vld [vmem:[%s12 + $0x10] sm:$0xff]
    %v3222 = vld [vmem:[%s12 + $0x18] sm:$0xff]
    %v3223 = vld [vmem:[%s12 + $0x20] sm:$0xff]
    %v3224 = vld [vmem:[%s12 + $0x28] sm:$0xff]
    %v3225 = vld [vmem:[%s12 + $0x30] sm:$0xff]
    %v3226 = vld [vmem:[%s12 + $0x38] sm:$0xff]
    %v3227 = vld [vmem:[%s12 + $0x40] sm:$0xff]
    %v3228 = vld [vmem:[%s12 + $0x48] sm:$0xff]
    %v3229 = vld [vmem:[%s12 + $0x50] sm:$0xff]
    %v3230 = vld [vmem:[%s12 + $0x58] sm:$0xff]
    %v3231 = vld [vmem:[%s12 + $0x60] sm:$0xff]
    %v3232 = vld [vmem:[%s12 + $0x68] sm:$0xff]
    %v3233 = vld [vmem:[%s12 + $0x70] sm:$0xff]
    %v3234 = vld [vmem:[%s12 + $0x78] sm:$0xff]
    %3235 = vmatprep.subr.mxu0 0.0
    %3236 = vmatpush1.msra.mxu0 %v3219
    %3237 = vmatprep.subr.mxu0 0.0
    %3238 = vmatpush1.msra.mxu0 %v3220
    %3239 = vmatprep.subr.mxu0 0.0
    %3240 = vmatpush1.msra.mxu0 %v3221
    %3241 = vmatprep.subr.mxu0 0.0
    %3242 = vmatpush1.msra.mxu0 %v3222
    %3243 = vmatprep.subr.mxu0 0.0
    %3244 = vmatpush1.msra.mxu0 %v3223
    %3245 = vmatprep.subr.mxu0 0.0
    %3246 = vmatpush1.msra.mxu0 %v3224
    %3247 = vmatprep.subr.mxu0 0.0
    %3248 = vmatpush1.msra.mxu0 %v3225
    %3249 = vmatprep.subr.mxu0 0.0
    %3250 = vmatpush1.msra.mxu0 %v3226
    %3251 = vmatprep.subr.mxu0 0.0
    %3252 = vmatpush1.msra.mxu0 %v3227
    %3253 = vmatprep.subr.mxu0 0.0
    %3254 = vmatpush1.msra.mxu0 %v3228
    %3255 = vmatprep.subr.mxu0 0.0
    %3256 = vmatpush1.msra.mxu0 %v3229
    %3257 = vmatprep.subr.mxu0 0.0
    %3258 = vmatpush1.msra.mxu0 %v3230
    %3259 = vmatprep.subr.mxu0 0.0
    %3260 = vmatpush1.msra.mxu0 %v3231
    %3261 = vmatprep.subr.mxu0 0.0
    %3262 = vmatpush1.msra.mxu0 %v3232
    %3263 = vmatprep.subr.mxu0 0.0
    %3264 = vmatpush1.msra.mxu0 %v3233
    %3265 = vmatprep.subr.mxu0 0.0
    %3266 = vmatpush1.msra.mxu0 %v3234
    %3267 = vmatprep.subr.mxu0 0.0
    %3268 = vmatpush1.msra.mxu0 0.0
    %3269 = vmatprep.subr.mxu0 0.0
    %3270 = vmatpush1.msra.mxu0 0.0
    %3271 = vmatprep.subr.mxu0 0.0
    %3272 = vmatpush1.msra.mxu0 0.0
    %3273 = vmatprep.subr.mxu0 0.0
    %3274 = vmatpush1.msra.mxu0 0.0
    %3275 = vmatprep.subr.mxu0 0.0
    %3276 = vmatpush1.msra.mxu0 0.0
    %3277 = vmatprep.subr.mxu0 0.0
    %3278 = vmatpush1.msra.mxu0 0.0
    %3279 = vmatprep.subr.mxu0 0.0
    %3280 = vmatpush1.msra.mxu0 0.0
    %3281 = vmatprep.subr.mxu0 0.0
    %3282 = vmatpush1.msra.mxu0 0.0
    %3283 = vmatprep.subr.mxu0 0.0
    %3284 = vmatpush1.msra.mxu0 0.0
    %3285 = vmatprep.subr.mxu0 0.0
    %3286 = vmatpush1.msra.mxu0 0.0
    %3287 = vmatprep.subr.mxu0 0.0
    %3288 = vmatpush1.msra.mxu0 0.0
    %3289 = vmatprep.subr.mxu0 0.0
    %3290 = vmatpush1.msra.mxu0 0.0
    %3291 = vmatprep.subr.mxu0 0.0
    %3292 = vmatpush1.msra.mxu0 0.0
    %3293 = vmatprep.subr.mxu0 0.0
    %3294 = vmatpush1.msra.mxu0 0.0
    %3295 = vmatprep.subr.mxu0 0.0
    %3296 = vmatpush1.msra.mxu0 0.0
    %3297 = vmatprep.subr.mxu0 0.0
    %3298 = vmatpush1.msra.mxu0 0.0
    %3299 = vmatprep.mubr.f32.mxu0 0.0
    %3300 = vmatmul.mubr.f32.gmra.mrb[0].mxu0 %v3211
    %v3301 = vpop.f32.mrb[0].mxu0
    %v3302 = vadd.f32 0.0, %v3301
    %v3303 = vpop.f32.mrb[0].mxu0
    %3304 = vmatprep.mubr.f32.mxu0 0.0
    %3305 = vmatmul.mubr.f32.gmra.mrb[0].mxu0 %v3212
    %v3306 = vpop.f32.mrb[0].mxu0
    %v3307 = vadd.f32 0.0, %v3306
    %v3308 = vpop.f32.mrb[0].mxu0
    %3309 = vmatprep.mubr.f32.mxu0 0.0
    %3310 = vmatmul.mubr.f32.gmra.mrb[0].mxu0 %v3213
    %v3311 = vpop.f32.mrb[0].mxu0
    %v3312 = vadd.f32 0.0, %v3311
    %v3313 = vpop.f32.mrb[0].mxu0
    %3314 = vmatprep.mubr.f32.mxu0 0.0
    %3315 = vmatmul.mubr.f32.gmra.mrb[0].mxu0 %v3214
    %v3316 = vpop.f32.mrb[0].mxu0
    %v3317 = vadd.f32 0.0, %v3316
    %v3318 = vpop.f32.mrb[0].mxu0
    %3319 = vmatprep.mubr.f32.mxu0 0.0
    %3320 = vmatmul.mubr.f32.gmra.mrb[0].mxu0 %v3215
    %v3321 = vpop.f32.mrb[0].mxu0
    %v3322 = vadd.f32 0.0, %v3321
    %v3323 = vpop.f32.mrb[0].mxu0
    %3324 = vmatprep.mubr.f32.mxu0 0.0
    %3325 = vmatmul.mubr.f32.gmra.mrb[0].mxu0 %v3216
    %v3326 = vpop.f32.mrb[0].mxu0
    %v3327 = vadd.f32 0.0, %v3326
    %v3328 = vpop.f32.mrb[0].mxu0
    %3329 = vmatprep.mubr.f32.mxu0 0.0
    %3330 = vmatmul.mubr.f32.gmra.mrb[0].mxu0 %v3217
    %v3331 = vpop.f32.mrb[0].mxu0
    %v3332 = vadd.f32 0.0, %v3331
    %v3333 = vpop.f32.mrb[0].mxu0
    %3334 = vmatprep.mubr.f32.mxu0 0.0
    %3335 = vmatmul.mubr.f32.gmra.mrb[0].mxu0 %v3218
    %v3336 = vpop.f32.mrb[0].mxu0
    %v3337 = vadd.f32 0.0, %v3336
    %v3338 = vpop.f32.mrb[0].mxu0
    %3339 = vdwg.mxu0
    %v3340 = vadd.f32 %v2863, %v3302
    %v3341 = vadd.f32 %v2864, %v3307
    %v3342 = vadd.f32 %v2865, %v3312
    %v3343 = vadd.f32 %v2866, %v3317
    %v3344 = vadd.f32 %v2867, %v3322
    %v3345 = vadd.f32 %v2868, %v3327
    %v3346 = vadd.f32 %v2869, %v3332
    %v3347 = vadd.f32 %v2870, %v3337
    %s3348 = scalar_lea.vmem %s13, 8
    %v3349 = vld [vmem:[%s3348] sm:$0x1]
    %v3351 = vlaneseq
    %v3352 = vshrl.u32 %v3351, 7
    %v3353 = vsub.s32 0, %v3352
    %v3354 = vrot.slane %v3349, %v3353
    %v3356 = vadd.f32 %v3340, %v3354
    %v3357 = vadd.f32 %v3341, %v3354
    %v3358 = vadd.f32 %v3342, %v3354
    %v3359 = vadd.f32 %v3343, %v3354
    %v3360 = vadd.f32 %v3344, %v3354
    %v3361 = vadd.f32 %v3345, %v3354
    %v3362 = vadd.f32 %v3346, %v3354
    %v3363 = vadd.f32 %v3347, %v3354
    %s3364 = scalar_lea.vmem %s13, 9
    %v3365 = vld [vmem:[%s3364] sm:$0x1]
    %s3366 = scalar_lea.vmem %s13, 10
    %v3367 = vld [vmem:[%s3366] sm:$0x1]
    %v3368 = vsel %vm1310, %v3356, 0.0
    %3369 = vadd.xlane.f32.xlu0 %v3368
    %v3370 = vpop.xlane.xlu0 %3369
    %v3371 = vsel %vm1310, %v3357, 0.0
    %3372 = vadd.xlane.f32.xlu0 %v3371
    %v3373 = vpop.xlane.xlu0 %3372
    %v3374 = vsel %vm1310, %v3358, 0.0
    %3375 = vadd.xlane.f32.xlu0 %v3374
    %v3376 = vpop.xlane.xlu0 %3375
    %v3377 = vsel %vm1310, %v3359, 0.0
    %3378 = vadd.xlane.f32.xlu0 %v3377
    %v3379 = vpop.xlane.xlu0 %3378
    %v3380 = vsel %vm1310, %v3360, 0.0
    %3381 = vadd.xlane.f32.xlu0 %v3380
    %v3382 = vpop.xlane.xlu0 %3381
    %v3383 = vsel %vm1310, %v3361, 0.0
    %3384 = vadd.xlane.f32.xlu0 %v3383
    %v3385 = vpop.xlane.xlu0 %3384
    %v3386 = vsel %vm1310, %v3362, 0.0
    %3387 = vadd.xlane.f32.xlu0 %v3386
    %v3388 = vpop.xlane.xlu0 %3387
    %v3389 = vsel %vm1310, %v3363, 0.0
    %3390 = vadd.xlane.f32.xlu0 %v3389
    %v3391 = vpop.xlane.xlu0 %3390
    %v3392 = vmul.f32 %v3370, %v1335
    %v3393 = vmul.f32 %v3373, %v1335
    %v3394 = vmul.f32 %v3376, %v1335
    %v3395 = vmul.f32 %v3379, %v1335
    %v3396 = vmul.f32 %v3382, %v1335
    %v3397 = vmul.f32 %v3385, %v1335
    %v3398 = vmul.f32 %v3388, %v1335
    %v3399 = vmul.f32 %v3391, %v1335
    %v3400 = vsub.f32 %v3356, %v3392
    %v3401 = vsub.f32 %v3357, %v3393
    %v3402 = vsub.f32 %v3358, %v3394
    %v3403 = vsub.f32 %v3359, %v3395
    %v3404 = vsub.f32 %v3360, %v3396
    %v3405 = vsub.f32 %v3361, %v3397
    %v3406 = vsub.f32 %v3362, %v3398
    %v3407 = vsub.f32 %v3363, %v3399
    %v3408 = vmul.f32 %v3400, %v3400
    %v3409 = vmul.f32 %v3401, %v3401
    %v3410 = vmul.f32 %v3402, %v3402
    %v3411 = vmul.f32 %v3403, %v3403
    %v3412 = vmul.f32 %v3404, %v3404
    %v3413 = vmul.f32 %v3405, %v3405
    %v3414 = vmul.f32 %v3406, %v3406
    %v3415 = vmul.f32 %v3407, %v3407
    %v3416 = vsel %vm1310, %v3408, 0.0
    %3417 = vadd.xlane.f32.xlu0 %v3416
    %v3418 = vpop.xlane.xlu0 %3417
    %v3419 = vsel %vm1310, %v3409, 0.0
    %3420 = vadd.xlane.f32.xlu0 %v3419
    %v3421 = vpop.xlane.xlu0 %3420
    %v3422 = vsel %vm1310, %v3410, 0.0
    %3423 = vadd.xlane.f32.xlu0 %v3422
    %v3424 = vpop.xlane.xlu0 %3423
    %v3425 = vsel %vm1310, %v3411, 0.0
    %3426 = vadd.xlane.f32.xlu0 %v3425
    %v3427 = vpop.xlane.xlu0 %3426
    %v3428 = vsel %vm1310, %v3412, 0.0
    %3429 = vadd.xlane.f32.xlu0 %v3428
    %v3430 = vpop.xlane.xlu0 %3429
    %v3431 = vsel %vm1310, %v3413, 0.0
    %3432 = vadd.xlane.f32.xlu0 %v3431
    %v3433 = vpop.xlane.xlu0 %3432
    %v3434 = vsel %vm1310, %v3414, 0.0
    %3435 = vadd.xlane.f32.xlu0 %v3434
    %v3436 = vpop.xlane.xlu0 %3435
    %v3437 = vsel %vm1310, %v3415, 0.0
    %3438 = vadd.xlane.f32.xlu0 %v3437
    %v3439 = vpop.xlane.xlu0 %3438
    %v3440 = vmul.f32 %v3418, %v1335
    %v3441 = vmul.f32 %v3421, %v1335
    %v3442 = vmul.f32 %v3424, %v1335
    %v3443 = vmul.f32 %v3427, %v1335
    %v3444 = vmul.f32 %v3430, %v1335
    %v3445 = vmul.f32 %v3433, %v1335
    %v3446 = vmul.f32 %v3436, %v1335
    %v3447 = vmul.f32 %v3439, %v1335
    %v3448 = vadd.f32 %v3440, 1e-05
    %v3449 = vadd.f32 %v3441, 1e-05
    %v3450 = vadd.f32 %v3442, 1e-05
    %v3451 = vadd.f32 %v3443, 1e-05
    %v3452 = vadd.f32 %v3444, 1e-05
    %v3453 = vadd.f32 %v3445, 1e-05
    %v3454 = vadd.f32 %v3446, 1e-05
    %v3455 = vadd.f32 %v3447, 1e-05
    %v3456 = vrsqrt.pop %v3448
    %v3457 = vrsqrt.pop %v3449
    %v3458 = vrsqrt.pop %v3450
    %v3459 = vrsqrt.pop %v3451
    %v3460 = vrsqrt.pop %v3452
    %v3461 = vrsqrt.pop %v3453
    %v3462 = vrsqrt.pop %v3454
    %v3463 = vrsqrt.pop %v3455
    %v3464 = vmul.f32 %v3400, %v3456
    %v3465 = vmul.f32 %v3401, %v3457
    %v3466 = vmul.f32 %v3402, %v3458
    %v3467 = vmul.f32 %v3403, %v3459
    %v3468 = vmul.f32 %v3404, %v3460
    %v3469 = vmul.f32 %v3405, %v3461
    %v3470 = vmul.f32 %v3406, %v3462
    %v3471 = vmul.f32 %v3407, %v3463
    %v3473 = vlaneseq
    %v3474 = vshrl.u32 %v3473, 7
    %v3475 = vsub.s32 0, %v3474
    %v3476 = vrot.slane %v3365, %v3475
    %v3478 = vmul.f32 %v3464, %v3476
    %v3479 = vmul.f32 %v3465, %v3476
    %v3480 = vmul.f32 %v3466, %v3476
    %v3481 = vmul.f32 %v3467, %v3476
    %v3482 = vmul.f32 %v3468, %v3476
    %v3483 = vmul.f32 %v3469, %v3476
    %v3484 = vmul.f32 %v3470, %v3476
    %v3485 = vmul.f32 %v3471, %v3476
    %v3487 = vlaneseq
    %v3488 = vshrl.u32 %v3487, 7
    %v3489 = vsub.s32 0, %v3488
    %v3490 = vrot.slane %v3367, %v3489
    %v3492 = vadd.f32 %v3478, %v3490
    %v3493 = vadd.f32 %v3479, %v3490
    %v3494 = vadd.f32 %v3480, %v3490
    %v3495 = vadd.f32 %v3481, %v3490
    %v3496 = vadd.f32 %v3482, %v3490
    %v3497 = vadd.f32 %v3483, %v3490
    %v3498 = vadd.f32 %v3484, %v3490
    %v3499 = vadd.f32 %v3485, %v3490
    %s3500 = scalar_lea.vmem %s10, 128
    %v3501 = vld [vmem:[%s3500] sm:$0xff]
    %v3502 = vld [vmem:[%s3500 + $0x8] sm:$0xff]
    %v3503 = vld [vmem:[%s3500 + $0x10] sm:$0xff]
    %v3504 = vld [vmem:[%s3500 + $0x18] sm:$0xff]
    %s3505 = scalar_lea.vmem %s13, 11
    %v3506 = vld [vmem:[%s3505] sm:$0x1]
    %v3508 = vlaneseq
    %v3509 = vshrl.u32 %v3508, 7
    %v3510 = vsub.s32 0, %v3509
    %v3511 = vrot.slane %v3506, %v3510
    %v3514 = vsel %vm1310, %v3492, 0
    %v3517 = vsel %vm1310, %v3493, 0
    %v3520 = vsel %vm1310, %v3494, 0
    %v3523 = vsel %vm1310, %v3495, 0
    %v3526 = vsel %vm1310, %v3496, 0
    %v3529 = vsel %vm1310, %v3497, 0
    %v3532 = vsel %vm1310, %v3498, 0
    %v3535 = vsel %vm1310, %v3499, 0
    %3537 = vmatprep.subr.mxu0 0.0
    %3538 = vmatpush1.msra.mxu0 %v3501
    %3539 = vmatprep.subr.mxu0 0.0
    %3540 = vmatpush1.msra.mxu0 %v3502
    %3541 = vmatprep.subr.mxu0 0.0
    %3542 = vmatpush1.msra.mxu0 %v3503
    %3543 = vmatprep.subr.mxu0 0.0
    %3544 = vmatpush1.msra.mxu0 %v3504
    %3545 = vmatprep.subr.mxu0 0.0
    %3546 = vmatpush1.msra.mxu0 0.0
    %3547 = vmatprep.subr.mxu0 0.0
    %3548 = vmatpush1.msra.mxu0 0.0
    %3549 = vmatprep.subr.mxu0 0.0
    %3550 = vmatpush1.msra.mxu0 0.0
    %3551 = vmatprep.subr.mxu0 0.0
    %3552 = vmatpush1.msra.mxu0 0.0
    %3553 = vmatprep.subr.mxu0 0.0
    %3554 = vmatpush1.msra.mxu0 0.0
    %3555 = vmatprep.subr.mxu0 0.0
    %3556 = vmatpush1.msra.mxu0 0.0
    %3557 = vmatprep.subr.mxu0 0.0
    %3558 = vmatpush1.msra.mxu0 0.0
    %3559 = vmatprep.subr.mxu0 0.0
    %3560 = vmatpush1.msra.mxu0 0.0
    %3561 = vmatprep.subr.mxu0 0.0
    %3562 = vmatpush1.msra.mxu0 0.0
    %3563 = vmatprep.subr.mxu0 0.0
    %3564 = vmatpush1.msra.mxu0 0.0
    %3565 = vmatprep.subr.mxu0 0.0
    %3566 = vmatpush1.msra.mxu0 0.0
    %3567 = vmatprep.subr.mxu0 0.0
    %3568 = vmatpush1.msra.mxu0 0.0
    %3569 = vmatprep.subr.mxu0 0.0
    %3570 = vmatpush1.msra.mxu0 0.0
    %3571 = vmatprep.subr.mxu0 0.0
    %3572 = vmatpush1.msra.mxu0 0.0
    %3573 = vmatprep.subr.mxu0 0.0
    %3574 = vmatpush1.msra.mxu0 0.0
    %3575 = vmatprep.subr.mxu0 0.0
    %3576 = vmatpush1.msra.mxu0 0.0
    %3577 = vmatprep.subr.mxu0 0.0
    %3578 = vmatpush1.msra.mxu0 0.0
    %3579 = vmatprep.subr.mxu0 0.0
    %3580 = vmatpush1.msra.mxu0 0.0
    %3581 = vmatprep.subr.mxu0 0.0
    %3582 = vmatpush1.msra.mxu0 0.0
    %3583 = vmatprep.subr.mxu0 0.0
    %3584 = vmatpush1.msra.mxu0 0.0
    %3585 = vmatprep.subr.mxu0 0.0
    %3586 = vmatpush1.msra.mxu0 0.0
    %3587 = vmatprep.subr.mxu0 0.0
    %3588 = vmatpush1.msra.mxu0 0.0
    %3589 = vmatprep.subr.mxu0 0.0
    %3590 = vmatpush1.msra.mxu0 0.0
    %3591 = vmatprep.subr.mxu0 0.0
    %3592 = vmatpush1.msra.mxu0 0.0
    %3593 = vmatprep.subr.mxu0 0.0
    %3594 = vmatpush1.msra.mxu0 0.0
    %3595 = vmatprep.subr.mxu0 0.0
    %3596 = vmatpush1.msra.mxu0 0.0
    %3597 = vmatprep.subr.mxu0 0.0
    %3598 = vmatpush1.msra.mxu0 0.0
    %3599 = vmatprep.subr.mxu0 0.0
    %3600 = vmatpush1.msra.mxu0 0.0
    %3601 = vmatprep.mubr.f32.mxu0 0.0
    %3602 = vmatmul.mubr.f32.gmra.mrb[0].mxu0 %v3514
    %v3603 = vpop.f32.mrb[0].mxu0
    %v3604 = vadd.f32 %v3511, %v3603
    %v3605 = vpop.f32.mrb[0].mxu0
    %3606 = vmatprep.mubr.f32.mxu0 0.0
    %3607 = vmatmul.mubr.f32.gmra.mrb[0].mxu0 %v3517
    %v3608 = vpop.f32.mrb[0].mxu0
    %v3609 = vadd.f32 %v3511, %v3608
    %v3610 = vpop.f32.mrb[0].mxu0
    %3611 = vmatprep.mubr.f32.mxu0 0.0
    %3612 = vmatmul.mubr.f32.gmra.mrb[0].mxu0 %v3520
    %v3613 = vpop.f32.mrb[0].mxu0
    %v3614 = vadd.f32 %v3511, %v3613
    %v3615 = vpop.f32.mrb[0].mxu0
    %3616 = vmatprep.mubr.f32.mxu0 0.0
    %3617 = vmatmul.mubr.f32.gmra.mrb[0].mxu0 %v3523
    %v3618 = vpop.f32.mrb[0].mxu0
    %v3619 = vadd.f32 %v3511, %v3618
    %v3620 = vpop.f32.mrb[0].mxu0
    %3621 = vmatprep.mubr.f32.mxu0 0.0
    %3622 = vmatmul.mubr.f32.gmra.mrb[0].mxu0 %v3526
    %v3623 = vpop.f32.mrb[0].mxu0
    %v3624 = vadd.f32 %v3511, %v3623
    %v3625 = vpop.f32.mrb[0].mxu0
    %3626 = vmatprep.mubr.f32.mxu0 0.0
    %3627 = vmatmul.mubr.f32.gmra.mrb[0].mxu0 %v3529
    %v3628 = vpop.f32.mrb[0].mxu0
    %v3629 = vadd.f32 %v3511, %v3628
    %v3630 = vpop.f32.mrb[0].mxu0
    %3631 = vmatprep.mubr.f32.mxu0 0.0
    %3632 = vmatmul.mubr.f32.gmra.mrb[0].mxu0 %v3532
    %v3633 = vpop.f32.mrb[0].mxu0
    %v3634 = vadd.f32 %v3511, %v3633
    %v3635 = vpop.f32.mrb[0].mxu0
    %3636 = vmatprep.mubr.f32.mxu0 0.0
    %3637 = vmatmul.mubr.f32.gmra.mrb[0].mxu0 %v3535
    %v3638 = vpop.f32.mrb[0].mxu0
    %v3639 = vadd.f32 %v3511, %v3638
    %v3640 = vpop.f32.mrb[0].mxu0
    %3641 = vdwg.mxu0
    %s3642 = scalar_lea.vmem %s10, 160
    %v3643 = vld [vmem:[%s3642] sm:$0xff]
    %v3644 = vld [vmem:[%s3642 + $0x8] sm:$0xff]
    %v3645 = vld [vmem:[%s3642 + $0x10] sm:$0xff]
    %v3646 = vld [vmem:[%s3642 + $0x18] sm:$0xff]
    %s3647 = scalar_lea.vmem %s13, 12
    %v3648 = vld [vmem:[%s3647] sm:$0x1]
    %v3650 = vlaneseq
    %v3651 = vshrl.u32 %v3650, 7
    %v3652 = vsub.s32 0, %v3651
    %v3653 = vrot.slane %v3648, %v3652
    %3655 = vmatprep.subr.mxu0 0.0
    %3656 = vmatpush1.msra.mxu0 %v3643
    %3657 = vmatprep.subr.mxu0 0.0
    %3658 = vmatpush1.msra.mxu0 %v3644
    %3659 = vmatprep.subr.mxu0 0.0
    %3660 = vmatpush1.msra.mxu0 %v3645
    %3661 = vmatprep.subr.mxu0 0.0
    %3662 = vmatpush1.msra.mxu0 %v3646
    %3663 = vmatprep.subr.mxu0 0.0
    %3664 = vmatpush1.msra.mxu0 0.0
    %3665 = vmatprep.subr.mxu0 0.0
    %3666 = vmatpush1.msra.mxu0 0.0
    %3667 = vmatprep.subr.mxu0 0.0
    %3668 = vmatpush1.msra.mxu0 0.0
    %3669 = vmatprep.subr.mxu0 0.0
    %3670 = vmatpush1.msra.mxu0 0.0
    %3671 = vmatprep.subr.mxu0 0.0
    %3672 = vmatpush1.msra.mxu0 0.0
    %3673 = vmatprep.subr.mxu0 0.0
    %3674 = vmatpush1.msra.mxu0 0.0
    %3675 = vmatprep.subr.mxu0 0.0
    %3676 = vmatpush1.msra.mxu0 0.0
    %3677 = vmatprep.subr.mxu0 0.0
    %3678 = vmatpush1.msra.mxu0 0.0
    %3679 = vmatprep.subr.mxu0 0.0
    %3680 = vmatpush1.msra.mxu0 0.0
    %3681 = vmatprep.subr.mxu0 0.0
    %3682 = vmatpush1.msra.mxu0 0.0
    %3683 = vmatprep.subr.mxu0 0.0
    %3684 = vmatpush1.msra.mxu0 0.0
    %3685 = vmatprep.subr.mxu0 0.0
    %3686 = vmatpush1.msra.mxu0 0.0
    %3687 = vmatprep.subr.mxu0 0.0
    %3688 = vmatpush1.msra.mxu0 0.0
    %3689 = vmatprep.subr.mxu0 0.0
    %3690 = vmatpush1.msra.mxu0 0.0
    %3691 = vmatprep.subr.mxu0 0.0
    %3692 = vmatpush1.msra.mxu0 0.0
    %3693 = vmatprep.subr.mxu0 0.0
    %3694 = vmatpush1.msra.mxu0 0.0
    %3695 = vmatprep.subr.mxu0 0.0
    %3696 = vmatpush1.msra.mxu0 0.0
    %3697 = vmatprep.subr.mxu0 0.0
    %3698 = vmatpush1.msra.mxu0 0.0
    %3699 = vmatprep.subr.mxu0 0.0
    %3700 = vmatpush1.msra.mxu0 0.0
    %3701 = vmatprep.subr.mxu0 0.0
    %3702 = vmatpush1.msra.mxu0 0.0
    %3703 = vmatprep.subr.mxu0 0.0
    %3704 = vmatpush1.msra.mxu0 0.0
    %3705 = vmatprep.subr.mxu0 0.0
    %3706 = vmatpush1.msra.mxu0 0.0
    %3707 = vmatprep.subr.mxu0 0.0
    %3708 = vmatpush1.msra.mxu0 0.0
    %3709 = vmatprep.subr.mxu0 0.0
    %3710 = vmatpush1.msra.mxu0 0.0
    %3711 = vmatprep.subr.mxu0 0.0
    %3712 = vmatpush1.msra.mxu0 0.0
    %3713 = vmatprep.subr.mxu0 0.0
    %3714 = vmatpush1.msra.mxu0 0.0
    %3715 = vmatprep.subr.mxu0 0.0
    %3716 = vmatpush1.msra.mxu0 0.0
    %3717 = vmatprep.subr.mxu0 0.0
    %3718 = vmatpush1.msra.mxu0 0.0
    %3719 = vmatprep.mubr.f32.mxu0 0.0
    %3720 = vmatmul.mubr.f32.gmra.mrb[0].mxu0 %v3514
    %v3721 = vpop.f32.mrb[0].mxu0
    %v3722 = vadd.f32 %v3653, %v3721
    %v3723 = vpop.f32.mrb[0].mxu0
    %3724 = vmatprep.mubr.f32.mxu0 0.0
    %3725 = vmatmul.mubr.f32.gmra.mrb[0].mxu0 %v3517
    %v3726 = vpop.f32.mrb[0].mxu0
    %v3727 = vadd.f32 %v3653, %v3726
    %v3728 = vpop.f32.mrb[0].mxu0
    %3729 = vmatprep.mubr.f32.mxu0 0.0
    %3730 = vmatmul.mubr.f32.gmra.mrb[0].mxu0 %v3520
    %v3731 = vpop.f32.mrb[0].mxu0
    %v3732 = vadd.f32 %v3653, %v3731
    %v3733 = vpop.f32.mrb[0].mxu0
    %3734 = vmatprep.mubr.f32.mxu0 0.0
    %3735 = vmatmul.mubr.f32.gmra.mrb[0].mxu0 %v3523
    %v3736 = vpop.f32.mrb[0].mxu0
    %v3737 = vadd.f32 %v3653, %v3736
    %v3738 = vpop.f32.mrb[0].mxu0
    %3739 = vmatprep.mubr.f32.mxu0 0.0
    %3740 = vmatmul.mubr.f32.gmra.mrb[0].mxu0 %v3526
    %v3741 = vpop.f32.mrb[0].mxu0
    %v3742 = vadd.f32 %v3653, %v3741
    %v3743 = vpop.f32.mrb[0].mxu0
    %3744 = vmatprep.mubr.f32.mxu0 0.0
    %3745 = vmatmul.mubr.f32.gmra.mrb[0].mxu0 %v3529
    %v3746 = vpop.f32.mrb[0].mxu0
    %v3747 = vadd.f32 %v3653, %v3746
    %v3748 = vpop.f32.mrb[0].mxu0
    %3749 = vmatprep.mubr.f32.mxu0 0.0
    %3750 = vmatmul.mubr.f32.gmra.mrb[0].mxu0 %v3532
    %v3751 = vpop.f32.mrb[0].mxu0
    %v3752 = vadd.f32 %v3653, %v3751
    %v3753 = vpop.f32.mrb[0].mxu0
    %3754 = vmatprep.mubr.f32.mxu0 0.0
    %3755 = vmatmul.mubr.f32.gmra.mrb[0].mxu0 %v3535
    %v3756 = vpop.f32.mrb[0].mxu0
    %v3757 = vadd.f32 %v3653, %v3756
    %v3758 = vpop.f32.mrb[0].mxu0
    %3759 = vdwg.mxu0
    %s3760 = scalar_lea.vmem %s10, 192
    %v3761 = vld [vmem:[%s3760] sm:$0xff]
    %v3762 = vld [vmem:[%s3760 + $0x8] sm:$0xff]
    %v3763 = vld [vmem:[%s3760 + $0x10] sm:$0xff]
    %v3764 = vld [vmem:[%s3760 + $0x18] sm:$0xff]
    %s3765 = scalar_lea.vmem %s13, 13
    %v3766 = vld [vmem:[%s3765] sm:$0x1]
    %v3768 = vlaneseq
    %v3769 = vshrl.u32 %v3768, 7
    %v3770 = vsub.s32 0, %v3769
    %v3771 = vrot.slane %v3766, %v3770
    %3773 = vmatprep.subr.mxu0 0.0
    %3774 = vmatpush1.msra.mxu0 %v3761
    %3775 = vmatprep.subr.mxu0 0.0
    %3776 = vmatpush1.msra.mxu0 %v3762
    %3777 = vmatprep.subr.mxu0 0.0
    %3778 = vmatpush1.msra.mxu0 %v3763
    %3779 = vmatprep.subr.mxu0 0.0
    %3780 = vmatpush1.msra.mxu0 %v3764
    %3781 = vmatprep.subr.mxu0 0.0
    %3782 = vmatpush1.msra.mxu0 0.0
    %3783 = vmatprep.subr.mxu0 0.0
    %3784 = vmatpush1.msra.mxu0 0.0
    %3785 = vmatprep.subr.mxu0 0.0
    %3786 = vmatpush1.msra.mxu0 0.0
    %3787 = vmatprep.subr.mxu0 0.0
    %3788 = vmatpush1.msra.mxu0 0.0
    %3789 = vmatprep.subr.mxu0 0.0
    %3790 = vmatpush1.msra.mxu0 0.0
    %3791 = vmatprep.subr.mxu0 0.0
    %3792 = vmatpush1.msra.mxu0 0.0
    %3793 = vmatprep.subr.mxu0 0.0
    %3794 = vmatpush1.msra.mxu0 0.0
    %3795 = vmatprep.subr.mxu0 0.0
    %3796 = vmatpush1.msra.mxu0 0.0
    %3797 = vmatprep.subr.mxu0 0.0
    %3798 = vmatpush1.msra.mxu0 0.0
    %3799 = vmatprep.subr.mxu0 0.0
    %3800 = vmatpush1.msra.mxu0 0.0
    %3801 = vmatprep.subr.mxu0 0.0
    %3802 = vmatpush1.msra.mxu0 0.0
    %3803 = vmatprep.subr.mxu0 0.0
    %3804 = vmatpush1.msra.mxu0 0.0
    %3805 = vmatprep.subr.mxu0 0.0
    %3806 = vmatpush1.msra.mxu0 0.0
    %3807 = vmatprep.subr.mxu0 0.0
    %3808 = vmatpush1.msra.mxu0 0.0
    %3809 = vmatprep.subr.mxu0 0.0
    %3810 = vmatpush1.msra.mxu0 0.0
    %3811 = vmatprep.subr.mxu0 0.0
    %3812 = vmatpush1.msra.mxu0 0.0
    %3813 = vmatprep.subr.mxu0 0.0
    %3814 = vmatpush1.msra.mxu0 0.0
    %3815 = vmatprep.subr.mxu0 0.0
    %3816 = vmatpush1.msra.mxu0 0.0
    %3817 = vmatprep.subr.mxu0 0.0
    %3818 = vmatpush1.msra.mxu0 0.0
    %3819 = vmatprep.subr.mxu0 0.0
    %3820 = vmatpush1.msra.mxu0 0.0
    %3821 = vmatprep.subr.mxu0 0.0
    %3822 = vmatpush1.msra.mxu0 0.0
    %3823 = vmatprep.subr.mxu0 0.0
    %3824 = vmatpush1.msra.mxu0 0.0
    %3825 = vmatprep.subr.mxu0 0.0
    %3826 = vmatpush1.msra.mxu0 0.0
    %3827 = vmatprep.subr.mxu0 0.0
    %3828 = vmatpush1.msra.mxu0 0.0
    %3829 = vmatprep.subr.mxu0 0.0
    %3830 = vmatpush1.msra.mxu0 0.0
    %3831 = vmatprep.subr.mxu0 0.0
    %3832 = vmatpush1.msra.mxu0 0.0
    %3833 = vmatprep.subr.mxu0 0.0
    %3834 = vmatpush1.msra.mxu0 0.0
    %3835 = vmatprep.subr.mxu0 0.0
    %3836 = vmatpush1.msra.mxu0 0.0
    %3837 = vmatprep.mubr.f32.mxu0 0.0
    %3838 = vmatmul.mubr.f32.gmra.mrb[0].mxu0 %v3514
    %v3839 = vpop.f32.mrb[0].mxu0
    %v3840 = vadd.f32 %v3771, %v3839
    %v3841 = vpop.f32.mrb[0].mxu0
    %3842 = vmatprep.mubr.f32.mxu0 0.0
    %3843 = vmatmul.mubr.f32.gmra.mrb[0].mxu0 %v3517
    %v3844 = vpop.f32.mrb[0].mxu0
    %v3845 = vadd.f32 %v3771, %v3844
    %v3846 = vpop.f32.mrb[0].mxu0
    %3847 = vmatprep.mubr.f32.mxu0 0.0
    %3848 = vmatmul.mubr.f32.gmra.mrb[0].mxu0 %v3520
    %v3849 = vpop.f32.mrb[0].mxu0
    %v3850 = vadd.f32 %v3771, %v3849
    %v3851 = vpop.f32.mrb[0].mxu0
    %3852 = vmatprep.mubr.f32.mxu0 0.0
    %3853 = vmatmul.mubr.f32.gmra.mrb[0].mxu0 %v3523
    %v3854 = vpop.f32.mrb[0].mxu0
    %v3855 = vadd.f32 %v3771, %v3854
    %v3856 = vpop.f32.mrb[0].mxu0
    %3857 = vmatprep.mubr.f32.mxu0 0.0
    %3858 = vmatmul.mubr.f32.gmra.mrb[0].mxu0 %v3526
    %v3859 = vpop.f32.mrb[0].mxu0
    %v3860 = vadd.f32 %v3771, %v3859
    %v3861 = vpop.f32.mrb[0].mxu0
    %3862 = vmatprep.mubr.f32.mxu0 0.0
    %3863 = vmatmul.mubr.f32.gmra.mrb[0].mxu0 %v3529
    %v3864 = vpop.f32.mrb[0].mxu0
    %v3865 = vadd.f32 %v3771, %v3864
    %v3866 = vpop.f32.mrb[0].mxu0
    %3867 = vmatprep.mubr.f32.mxu0 0.0
    %3868 = vmatmul.mubr.f32.gmra.mrb[0].mxu0 %v3532
    %v3869 = vpop.f32.mrb[0].mxu0
    %v3870 = vadd.f32 %v3771, %v3869
    %v3871 = vpop.f32.mrb[0].mxu0
    %3872 = vmatprep.mubr.f32.mxu0 0.0
    %3873 = vmatmul.mubr.f32.gmra.mrb[0].mxu0 %v3535
    %v3874 = vpop.f32.mrb[0].mxu0
    %v3875 = vadd.f32 %v3771, %v3874
    %v3876 = vpop.f32.mrb[0].mxu0
    %3877 = vdwg.mxu0
    %v3878 = vmul.f32 %v3722, %v1243
    %v3879 = vmul.f32 %v3727, %v1244
    %v3880 = vmul.f32 %v3732, %v1245
    %v3881 = vmul.f32 %v3737, %v1246
    %v3882 = vmul.f32 %v3742, %v1247
    %v3883 = vmul.f32 %v3747, %v1248
    %v3884 = vmul.f32 %v3752, %v1249
    %v3885 = vmul.f32 %v3757, %v1250
    %v3886 = vmul.f32 %v3722, %v1251
    %v3887 = vmul.f32 %v3727, %v1252
    %v3888 = vmul.f32 %v3732, %v1253
    %v3889 = vmul.f32 %v3737, %v1254
    %v3890 = vmul.f32 %v3742, %v1255
    %v3891 = vmul.f32 %v3747, %v1256
    %v3892 = vmul.f32 %v3752, %v1257
    %v3893 = vmul.f32 %v3757, %v1258
    %v3894 = vmul.f32 %v3722, %v1259
    %v3895 = vmul.f32 %v3727, %v1260
    %v3896 = vmul.f32 %v3732, %v1261
    %v3897 = vmul.f32 %v3737, %v1262
    %v3898 = vmul.f32 %v3742, %v1263
    %v3899 = vmul.f32 %v3747, %v1264
    %v3900 = vmul.f32 %v3752, %v1265
    %v3901 = vmul.f32 %v3757, %v1266
    %v3902 = vmul.f32 %v3722, %v1267
    %v3903 = vmul.f32 %v3727, %v1268
    %v3904 = vmul.f32 %v3732, %v1269
    %v3905 = vmul.f32 %v3737, %v1270
    %v3906 = vmul.f32 %v3742, %v1271
    %v3907 = vmul.f32 %v3747, %v1272
    %v3908 = vmul.f32 %v3752, %v1273
    %v3909 = vmul.f32 %v3757, %v1274
    %v3910 = vmul.f32 %v3840, %v1243
    %v3911 = vmul.f32 %v3845, %v1244
    %v3912 = vmul.f32 %v3850, %v1245
    %v3913 = vmul.f32 %v3855, %v1246
    %v3914 = vmul.f32 %v3860, %v1247
    %v3915 = vmul.f32 %v3865, %v1248
    %v3916 = vmul.f32 %v3870, %v1249
    %v3917 = vmul.f32 %v3875, %v1250
    %v3918 = vmul.f32 %v3840, %v1251
    %v3919 = vmul.f32 %v3845, %v1252
    %v3920 = vmul.f32 %v3850, %v1253
    %v3921 = vmul.f32 %v3855, %v1254
    %v3922 = vmul.f32 %v3860, %v1255
    %v3923 = vmul.f32 %v3865, %v1256
    %v3924 = vmul.f32 %v3870, %v1257
    %v3925 = vmul.f32 %v3875, %v1258
    %v3926 = vmul.f32 %v3840, %v1259
    %v3927 = vmul.f32 %v3845, %v1260
    %v3928 = vmul.f32 %v3850, %v1261
    %v3929 = vmul.f32 %v3855, %v1262
    %v3930 = vmul.f32 %v3860, %v1263
    %v3931 = vmul.f32 %v3865, %v1264
    %v3932 = vmul.f32 %v3870, %v1265
    %v3933 = vmul.f32 %v3875, %v1266
    %v3934 = vmul.f32 %v3840, %v1267
    %v3935 = vmul.f32 %v3845, %v1268
    %v3936 = vmul.f32 %v3850, %v1269
    %v3937 = vmul.f32 %v3855, %v1270
    %v3938 = vmul.f32 %v3860, %v1271
    %v3939 = vmul.f32 %v3865, %v1272
    %v3940 = vmul.f32 %v3870, %v1273
    %v3941 = vmul.f32 %v3875, %v1274
    %v3943 = vsel %vm1310, %v3604, 0
    %v3946 = vsel %vm1310, %v3609, 0
    %v3949 = vsel %vm1310, %v3614, 0
    %v3952 = vsel %vm1310, %v3619, 0
    %v3955 = vsel %vm1310, %v3624, 0
    %v3958 = vsel %vm1310, %v3629, 0
    %v3961 = vsel %vm1310, %v3634, 0
    %v3964 = vsel %vm1310, %v3639, 0
    %v3967 = vsel %vm1310, %v3878, 0
    %v3970 = vsel %vm1310, %v3879, 0
    %v3973 = vsel %vm1310, %v3880, 0
    %v3976 = vsel %vm1310, %v3881, 0
    %v3979 = vsel %vm1310, %v3882, 0
    %v3982 = vsel %vm1310, %v3883, 0
    %v3985 = vsel %vm1310, %v3884, 0
    %v3988 = vsel %vm1310, %v3885, 0
    %v3991 = vsel %vm1310, %v3886, 0
    %v3994 = vsel %vm1310, %v3887, 0
    %v3997 = vsel %vm1310, %v3888, 0
    %v4000 = vsel %vm1310, %v3889, 0
    %v4003 = vsel %vm1310, %v3890, 0
    %v4006 = vsel %vm1310, %v3891, 0
    %v4009 = vsel %vm1310, %v3892, 0
    %v4012 = vsel %vm1310, %v3893, 0
    %v4015 = vsel %vm1310, %v3894, 0
    %v4018 = vsel %vm1310, %v3895, 0
    %v4021 = vsel %vm1310, %v3896, 0
    %v4024 = vsel %vm1310, %v3897, 0
    %v4027 = vsel %vm1310, %v3898, 0
    %v4030 = vsel %vm1310, %v3899, 0
    %v4033 = vsel %vm1310, %v3900, 0
    %v4036 = vsel %vm1310, %v3901, 0
    %v4039 = vsel %vm1310, %v3902, 0
    %v4042 = vsel %vm1310, %v3903, 0
    %v4045 = vsel %vm1310, %v3904, 0
    %v4048 = vsel %vm1310, %v3905, 0
    %v4051 = vsel %vm1310, %v3906, 0
    %v4054 = vsel %vm1310, %v3907, 0
    %v4057 = vsel %vm1310, %v3908, 0
    %v4060 = vsel %vm1310, %v3909, 0
    %4062 = vmatprep.subr.mxu0 0.0
    %4063 = vmatpush1.xpose.msra.mxu0 %v3967
    %4064 = vmatprep.subr.mxu0 0.0
    %4065 = vmatpush1.xpose.msra.mxu0 %v3970
    %4066 = vmatprep.subr.mxu0 0.0
    %4067 = vmatpush1.xpose.msra.mxu0 %v3973
    %4068 = vmatprep.subr.mxu0 0.0
    %4069 = vmatpush1.xpose.msra.mxu0 %v3976
    %4070 = vmatprep.subr.mxu0 0.0
    %4071 = vmatpush1.xpose.msra.mxu0 %v3979
    %4072 = vmatprep.subr.mxu0 0.0
    %4073 = vmatpush1.xpose.msra.mxu0 %v3982
    %4074 = vmatprep.subr.mxu0 0.0
    %4075 = vmatpush1.xpose.msra.mxu0 %v3985
    %4076 = vmatprep.subr.mxu0 0.0
    %4077 = vmatpush1.xpose.msra.mxu0 %v3988
    %4078 = vmatprep.subr.mxu0 0.0
    %4079 = vmatpush1.xpose.msra.mxu0 %v3991
    %4080 = vmatprep.subr.mxu0 0.0
    %4081 = vmatpush1.xpose.msra.mxu0 %v3994
    %4082 = vmatprep.subr.mxu0 0.0
    %4083 = vmatpush1.xpose.msra.mxu0 %v3997
    %4084 = vmatprep.subr.mxu0 0.0
    %4085 = vmatpush1.xpose.msra.mxu0 %v4000
    %4086 = vmatprep.subr.mxu0 0.0
    %4087 = vmatpush1.xpose.msra.mxu0 %v4003
    %4088 = vmatprep.subr.mxu0 0.0
    %4089 = vmatpush1.xpose.msra.mxu0 %v4006
    %4090 = vmatprep.subr.mxu0 0.0
    %4091 = vmatpush1.xpose.msra.mxu0 %v4009
    %4092 = vmatprep.subr.mxu0 0.0
    %4093 = vmatpush1.xpose.msra.mxu0 %v4012
    %4094 = vmatprep.subr.mxu0 0.0
    %4095 = vmatpush1.xpose.msra.mxu0 %v4015
    %4096 = vmatprep.subr.mxu0 0.0
    %4097 = vmatpush1.xpose.msra.mxu0 %v4018
    %4098 = vmatprep.subr.mxu0 0.0
    %4099 = vmatpush1.xpose.msra.mxu0 %v4021
    %4100 = vmatprep.subr.mxu0 0.0
    %4101 = vmatpush1.xpose.msra.mxu0 %v4024
    %4102 = vmatprep.subr.mxu0 0.0
    %4103 = vmatpush1.xpose.msra.mxu0 %v4027
    %4104 = vmatprep.subr.mxu0 0.0
    %4105 = vmatpush1.xpose.msra.mxu0 %v4030
    %4106 = vmatprep.subr.mxu0 0.0
    %4107 = vmatpush1.xpose.msra.mxu0 %v4033
    %4108 = vmatprep.subr.mxu0 0.0
    %4109 = vmatpush1.xpose.msra.mxu0 %v4036
    %4110 = vmatprep.subr.mxu0 0.0
    %4111 = vmatpush1.xpose.msra.mxu0 %v4039
    %4112 = vmatprep.subr.mxu0 0.0
    %4113 = vmatpush1.xpose.msra.mxu0 %v4042
    %4114 = vmatprep.subr.mxu0 0.0
    %4115 = vmatpush1.xpose.msra.mxu0 %v4045
    %4116 = vmatprep.subr.mxu0 0.0
    %4117 = vmatpush1.xpose.msra.mxu0 %v4048
    %4118 = vmatprep.subr.mxu0 0.0
    %4119 = vmatpush1.xpose.msra.mxu0 %v4051
    %4120 = vmatprep.subr.mxu0 0.0
    %4121 = vmatpush1.xpose.msra.mxu0 %v4054
    %4122 = vmatprep.subr.mxu0 0.0
    %4123 = vmatpush1.xpose.msra.mxu0 %v4057
    %4124 = vmatprep.subr.mxu0 0.0
    %4125 = vmatpush1.xpose.msra.mxu0 %v4060
    %4126 = vmatprep.mubr.f32.mxu0 0.0
    %4127 = vmatmul.mubr.f32.gmra.mrb[0].mxu0 %v3943
    %v4128 = vpop.f32.mrb[0].mxu0
    %v4129 = vadd.f32 0.0, %v4128
    %v4130 = vpop.f32.mrb[0].mxu0
    %v4131 = vadd.f32 0.0, %v4130
    %4132 = vmatprep.mubr.f32.mxu0 0.0
    %4133 = vmatmul.mubr.f32.gmra.mrb[0].mxu0 %v3946
    %v4134 = vpop.f32.mrb[0].mxu0
    %v4135 = vadd.f32 0.0, %v4134
    %v4136 = vpop.f32.mrb[0].mxu0
    %v4137 = vadd.f32 0.0, %v4136
    %4138 = vmatprep.mubr.f32.mxu0 0.0
    %4139 = vmatmul.mubr.f32.gmra.mrb[0].mxu0 %v3949
    %v4140 = vpop.f32.mrb[0].mxu0
    %v4141 = vadd.f32 0.0, %v4140
    %v4142 = vpop.f32.mrb[0].mxu0
    %v4143 = vadd.f32 0.0, %v4142
    %4144 = vmatprep.mubr.f32.mxu0 0.0
    %4145 = vmatmul.mubr.f32.gmra.mrb[0].mxu0 %v3952
    %v4146 = vpop.f32.mrb[0].mxu0
    %v4147 = vadd.f32 0.0, %v4146
    %v4148 = vpop.f32.mrb[0].mxu0
    %v4149 = vadd.f32 0.0, %v4148
    %4150 = vmatprep.mubr.f32.mxu0 0.0
    %4151 = vmatmul.mubr.f32.gmra.mrb[0].mxu0 %v3955
    %v4152 = vpop.f32.mrb[0].mxu0
    %v4153 = vadd.f32 0.0, %v4152
    %v4154 = vpop.f32.mrb[0].mxu0
    %v4155 = vadd.f32 0.0, %v4154
    %4156 = vmatprep.mubr.f32.mxu0 0.0
    %4157 = vmatmul.mubr.f32.gmra.mrb[0].mxu0 %v3958
    %v4158 = vpop.f32.mrb[0].mxu0
    %v4159 = vadd.f32 0.0, %v4158
    %v4160 = vpop.f32.mrb[0].mxu0
    %v4161 = vadd.f32 0.0, %v4160
    %4162 = vmatprep.mubr.f32.mxu0 0.0
    %4163 = vmatmul.mubr.f32.gmra.mrb[0].mxu0 %v3961
    %v4164 = vpop.f32.mrb[0].mxu0
    %v4165 = vadd.f32 0.0, %v4164
    %v4166 = vpop.f32.mrb[0].mxu0
    %v4167 = vadd.f32 0.0, %v4166
    %4168 = vmatprep.mubr.f32.mxu0 0.0
    %4169 = vmatmul.mubr.f32.gmra.mrb[0].mxu0 %v3964
    %v4170 = vpop.f32.mrb[0].mxu0
    %v4171 = vadd.f32 0.0, %v4170
    %v4172 = vpop.f32.mrb[0].mxu0
    %v4173 = vadd.f32 0.0, %v4172
    %4174 = vdwg.mxu0
    %v4175 = vmul.f32 %v4129, 0.35355338
    %v4176 = vmul.f32 %v4131, 0.35355338
    %v4177 = vmul.f32 %v4135, 0.35355338
    %v4178 = vmul.f32 %v4137, 0.35355338
    %v4179 = vmul.f32 %v4141, 0.35355338
    %v4180 = vmul.f32 %v4143, 0.35355338
    %v4181 = vmul.f32 %v4147, 0.35355338
    %v4182 = vmul.f32 %v4149, 0.35355338
    %v4183 = vmul.f32 %v4153, 0.35355338
    %v4184 = vmul.f32 %v4155, 0.35355338
    %v4185 = vmul.f32 %v4159, 0.35355338
    %v4186 = vmul.f32 %v4161, 0.35355338
    %v4187 = vmul.f32 %v4165, 0.35355338
    %v4188 = vmul.f32 %v4167, 0.35355338
    %v4189 = vmul.f32 %v4171, 0.35355338
    %v4190 = vmul.f32 %v4173, 0.35355338
    %v4191 = vadd.f32 %v4175, %v1227
    %v4192 = vadd.f32 %v4176, %v1228
    %v4193 = vadd.f32 %v4177, %v1229
    %v4194 = vadd.f32 %v4178, %v1230
    %v4195 = vadd.f32 %v4179, %v1231
    %v4196 = vadd.f32 %v4180, %v1232
    %v4197 = vadd.f32 %v4181, %v1233
    %v4198 = vadd.f32 %v4182, %v1234
    %v4199 = vadd.f32 %v4183, %v1235
    %v4200 = vadd.f32 %v4184, %v1236
    %v4201 = vadd.f32 %v4185, %v1237
    %v4202 = vadd.f32 %v4186, %v1238
    %v4203 = vadd.f32 %v4187, %v1239
    %v4204 = vadd.f32 %v4188, %v1240
    %v4205 = vadd.f32 %v4189, %v1241
    %v4206 = vadd.f32 %v4190, %v1242
    %v4207 = vmax.f32 %v4191, %v4192
    %4208 = vmax.xlane.f32.xlu0 %v4207
    %v4209 = vpop.xlane.xlu0 %4208
    %v4210 = vmax.f32 %v4193, %v4194
    %4211 = vmax.xlane.f32.xlu0 %v4210
    %v4212 = vpop.xlane.xlu0 %4211
    %v4213 = vmax.f32 %v4195, %v4196
    %4214 = vmax.xlane.f32.xlu0 %v4213
    %v4215 = vpop.xlane.xlu0 %4214
    %v4216 = vmax.f32 %v4197, %v4198
    %4217 = vmax.xlane.f32.xlu0 %v4216
    %v4218 = vpop.xlane.xlu0 %4217
    %v4219 = vmax.f32 %v4199, %v4200
    %4220 = vmax.xlane.f32.xlu0 %v4219
    %v4221 = vpop.xlane.xlu0 %4220
    %v4222 = vmax.f32 %v4201, %v4202
    %4223 = vmax.xlane.f32.xlu0 %v4222
    %v4224 = vpop.xlane.xlu0 %4223
    %v4225 = vmax.f32 %v4203, %v4204
    %4226 = vmax.xlane.f32.xlu0 %v4225
    %v4227 = vpop.xlane.xlu0 %4226
    %v4228 = vmax.f32 %v4205, %v4206
    %4229 = vmax.xlane.f32.xlu0 %v4228
    %v4230 = vpop.xlane.xlu0 %4229
    %v4231 = vsub.f32 %v4191, %v4209
    %v4232 = vsub.f32 %v4192, %v4209
    %v4233 = vsub.f32 %v4193, %v4212
    %v4234 = vsub.f32 %v4194, %v4212
    %v4235 = vsub.f32 %v4195, %v4215
    %v4236 = vsub.f32 %v4196, %v4215
    %v4237 = vsub.f32 %v4197, %v4218
    %v4238 = vsub.f32 %v4198, %v4218
    %v4239 = vsub.f32 %v4199, %v4221
    %v4240 = vsub.f32 %v4200, %v4221
    %v4241 = vsub.f32 %v4201, %v4224
    %v4242 = vsub.f32 %v4202, %v4224
    %v4243 = vsub.f32 %v4203, %v4227
    %v4244 = vsub.f32 %v4204, %v4227
    %v4245 = vsub.f32 %v4205, %v4230
    %v4246 = vsub.f32 %v4206, %v4230
    %v4247 = vmul.f32 %v4231, 1.442695
    %v4248 = vpow.pop %v4247
    %v4249 = vmul.f32 %v4232, 1.442695
    %v4250 = vpow.pop %v4249
    %v4251 = vmul.f32 %v4233, 1.442695
    %v4252 = vpow.pop %v4251
    %v4253 = vmul.f32 %v4234, 1.442695
    %v4254 = vpow.pop %v4253
    %v4255 = vmul.f32 %v4235, 1.442695
    %v4256 = vpow.pop %v4255
    %v4257 = vmul.f32 %v4236, 1.442695
    %v4258 = vpow.pop %v4257
    %v4259 = vmul.f32 %v4237, 1.442695
    %v4260 = vpow.pop %v4259
    %v4261 = vmul.f32 %v4238, 1.442695
    %v4262 = vpow.pop %v4261
    %v4263 = vmul.f32 %v4239, 1.442695
    %v4264 = vpow.pop %v4263
    %v4265 = vmul.f32 %v4240, 1.442695
    %v4266 = vpow.pop %v4265
    %v4267 = vmul.f32 %v4241, 1.442695
    %v4268 = vpow.pop %v4267
    %v4269 = vmul.f32 %v4242, 1.442695
    %v4270 = vpow.pop %v4269
    %v4271 = vmul.f32 %v4243, 1.442695
    %v4272 = vpow.pop %v4271
    %v4273 = vmul.f32 %v4244, 1.442695
    %v4274 = vpow.pop %v4273
    %v4275 = vmul.f32 %v4245, 1.442695
    %v4276 = vpow.pop %v4275
    %v4277 = vmul.f32 %v4246, 1.442695
    %v4278 = vpow.pop %v4277
    %4279 = vmatprep.subr.mxu0 0.0
    %4280 = vmatpush1.msra.mxu0 %v1275
    %4281 = vmatprep.subr.mxu0 0.0
    %4282 = vmatpush1.msra.mxu0 %v1276
    %4283 = vmatprep.subr.mxu0 0.0
    %4284 = vmatpush1.msra.mxu0 %v1277
    %4285 = vmatprep.subr.mxu0 0.0
    %4286 = vmatpush1.msra.mxu0 %v1278
    %4287 = vmatprep.subr.mxu0 0.0
    %4288 = vmatpush1.msra.mxu0 %v1279
    %4289 = vmatprep.subr.mxu0 0.0
    %4290 = vmatpush1.msra.mxu0 %v1280
    %4291 = vmatprep.subr.mxu0 0.0
    %4292 = vmatpush1.msra.mxu0 %v1281
    %4293 = vmatprep.subr.mxu0 0.0
    %4294 = vmatpush1.msra.mxu0 %v1282
    %4295 = vmatprep.subr.mxu0 0.0
    %4296 = vmatpush1.msra.mxu0 %v1283
    %4297 = vmatprep.subr.mxu0 0.0
    %4298 = vmatpush1.msra.mxu0 %v1284
    %4299 = vmatprep.subr.mxu0 0.0
    %4300 = vmatpush1.msra.mxu0 %v1285
    %4301 = vmatprep.subr.mxu0 0.0
    %4302 = vmatpush1.msra.mxu0 %v1286
    %4303 = vmatprep.subr.mxu0 0.0
    %4304 = vmatpush1.msra.mxu0 %v1287
    %4305 = vmatprep.subr.mxu0 0.0
    %4306 = vmatpush1.msra.mxu0 %v1288
    %4307 = vmatprep.subr.mxu0 0.0
    %4308 = vmatpush1.msra.mxu0 %v1289
    %4309 = vmatprep.subr.mxu0 0.0
    %4310 = vmatpush1.msra.mxu0 %v1290
    %4311 = vmatprep.subr.mxu0 0.0
    %4312 = vmatpush1.msra.mxu0 %v1291
    %4313 = vmatprep.subr.mxu0 0.0
    %4314 = vmatpush1.msra.mxu0 %v1292
    %4315 = vmatprep.subr.mxu0 0.0
    %4316 = vmatpush1.msra.mxu0 %v1293
    %4317 = vmatprep.subr.mxu0 0.0
    %4318 = vmatpush1.msra.mxu0 %v1294
    %4319 = vmatprep.subr.mxu0 0.0
    %4320 = vmatpush1.msra.mxu0 %v1295
    %4321 = vmatprep.subr.mxu0 0.0
    %4322 = vmatpush1.msra.mxu0 %v1296
    %4323 = vmatprep.subr.mxu0 0.0
    %4324 = vmatpush1.msra.mxu0 %v1297
    %4325 = vmatprep.subr.mxu0 0.0
    %4326 = vmatpush1.msra.mxu0 %v1298
    %4327 = vmatprep.subr.mxu0 0.0
    %4328 = vmatpush1.msra.mxu0 %v1299
    %4329 = vmatprep.subr.mxu0 0.0
    %4330 = vmatpush1.msra.mxu0 %v1300
    %4331 = vmatprep.subr.mxu0 0.0
    %4332 = vmatpush1.msra.mxu0 %v1301
    %4333 = vmatprep.subr.mxu0 0.0
    %4334 = vmatpush1.msra.mxu0 %v1302
    %4335 = vmatprep.subr.mxu0 0.0
    %4336 = vmatpush1.msra.mxu0 %v1303
    %4337 = vmatprep.subr.mxu0 0.0
    %4338 = vmatpush1.msra.mxu0 %v1304
    %4339 = vmatprep.subr.mxu0 0.0
    %4340 = vmatpush1.msra.mxu0 %v1305
    %4341 = vmatprep.subr.mxu0 0.0
    %4342 = vmatpush1.msra.mxu0 %v1306
    %4343 = vmatprep.mubr.f32.mxu0 %v4250
    %4344 = vmatmul.mubr.f32.gmra.mrb[0].mxu0 %v4248
    %v4345 = vpop.f32.mrb[0].mxu0
    %v4346 = vadd.f32 0.0, %v4345
    %v4347 = vpop.f32.mrb[0].mxu0
    %4348 = vmatprep.mubr.f32.mxu0 %v4254
    %4349 = vmatmul.mubr.f32.gmra.mrb[0].mxu0 %v4252
    %v4350 = vpop.f32.mrb[0].mxu0
    %v4351 = vadd.f32 0.0, %v4350
    %v4352 = vpop.f32.mrb[0].mxu0
    %4353 = vmatprep.mubr.f32.mxu0 %v4258
    %4354 = vmatmul.mubr.f32.gmra.mrb[0].mxu0 %v4256
    %v4355 = vpop.f32.mrb[0].mxu0
    %v4356 = vadd.f32 0.0, %v4355
    %v4357 = vpop.f32.mrb[0].mxu0
    %4358 = vmatprep.mubr.f32.mxu0 %v4262
    %4359 = vmatmul.mubr.f32.gmra.mrb[0].mxu0 %v4260
    %v4360 = vpop.f32.mrb[0].mxu0
    %v4361 = vadd.f32 0.0, %v4360
    %v4362 = vpop.f32.mrb[0].mxu0
    %4363 = vmatprep.mubr.f32.mxu0 %v4266
    %4364 = vmatmul.mubr.f32.gmra.mrb[0].mxu0 %v4264
    %v4365 = vpop.f32.mrb[0].mxu0
    %v4366 = vadd.f32 0.0, %v4365
    %v4367 = vpop.f32.mrb[0].mxu0
    %4368 = vmatprep.mubr.f32.mxu0 %v4270
    %4369 = vmatmul.mubr.f32.gmra.mrb[0].mxu0 %v4268
    %v4370 = vpop.f32.mrb[0].mxu0
    %v4371 = vadd.f32 0.0, %v4370
    %v4372 = vpop.f32.mrb[0].mxu0
    %4373 = vmatprep.mubr.f32.mxu0 %v4274
    %4374 = vmatmul.mubr.f32.gmra.mrb[0].mxu0 %v4272
    %v4375 = vpop.f32.mrb[0].mxu0
    %v4376 = vadd.f32 0.0, %v4375
    %v4377 = vpop.f32.mrb[0].mxu0
    %4378 = vmatprep.mubr.f32.mxu0 %v4278
    %4379 = vmatmul.mubr.f32.gmra.mrb[0].mxu0 %v4276
    %v4380 = vpop.f32.mrb[0].mxu0
    %v4381 = vadd.f32 0.0, %v4380
    %v4382 = vpop.f32.mrb[0].mxu0
    %4383 = vdwg.mxu0
    %v4385 = vsel %vm976, %v4346, 0
    %v4388 = vsel %vm976, %v4351, 0
    %v4391 = vsel %vm976, %v4356, 0
    %v4394 = vsel %vm976, %v4361, 0
    %v4397 = vsel %vm976, %v4366, 0
    %v4400 = vsel %vm976, %v4371, 0
    %v4403 = vsel %vm976, %v4376, 0
    %v4406 = vsel %vm976, %v4381, 0
    %4408 = vmatprep.subr.mxu0 0.0
    %4409 = vmatpush1.xpose.msra.mxu0 %v2352
    %4410 = vmatprep.subr.mxu0 0.0
    %4411 = vmatpush1.xpose.msra.mxu0 %v2355
    %4412 = vmatprep.subr.mxu0 0.0
    %4413 = vmatpush1.xpose.msra.mxu0 %v2358
    %4414 = vmatprep.subr.mxu0 0.0
    %4415 = vmatpush1.xpose.msra.mxu0 %v2361
    %4416 = vmatprep.subr.mxu0 0.0
    %4417 = vmatpush1.xpose.msra.mxu0 %v2364
    %4418 = vmatprep.subr.mxu0 0.0
    %4419 = vmatpush1.xpose.msra.mxu0 %v2367
    %4420 = vmatprep.subr.mxu0 0.0
    %4421 = vmatpush1.xpose.msra.mxu0 %v2370
    %4422 = vmatprep.subr.mxu0 0.0
    %4423 = vmatpush1.xpose.msra.mxu0 %v2373
    %4424 = vmatprep.subr.mxu0 0.0
    %4425 = vmatpush1.xpose.msra.mxu0 %v2376
    %4426 = vmatprep.subr.mxu0 0.0
    %4427 = vmatpush1.xpose.msra.mxu0 %v2379
    %4428 = vmatprep.subr.mxu0 0.0
    %4429 = vmatpush1.xpose.msra.mxu0 %v2382
    %4430 = vmatprep.subr.mxu0 0.0
    %4431 = vmatpush1.xpose.msra.mxu0 %v2385
    %4432 = vmatprep.subr.mxu0 0.0
    %4433 = vmatpush1.xpose.msra.mxu0 %v2388
    %4434 = vmatprep.subr.mxu0 0.0
    %4435 = vmatpush1.xpose.msra.mxu0 %v2391
    %4436 = vmatprep.subr.mxu0 0.0
    %4437 = vmatpush1.xpose.msra.mxu0 %v2394
    %4438 = vmatprep.subr.mxu0 0.0
    %4439 = vmatpush1.xpose.msra.mxu0 %v2397
    %4440 = vmatprep.subr.mxu0 0.0
    %4441 = vmatpush1.xpose.msra.mxu0 %v2400
    %4442 = vmatprep.subr.mxu0 0.0
    %4443 = vmatpush1.xpose.msra.mxu0 %v2403
    %4444 = vmatprep.subr.mxu0 0.0
    %4445 = vmatpush1.xpose.msra.mxu0 %v2406
    %4446 = vmatprep.subr.mxu0 0.0
    %4447 = vmatpush1.xpose.msra.mxu0 %v2409
    %4448 = vmatprep.subr.mxu0 0.0
    %4449 = vmatpush1.xpose.msra.mxu0 %v2412
    %4450 = vmatprep.subr.mxu0 0.0
    %4451 = vmatpush1.xpose.msra.mxu0 %v2415
    %4452 = vmatprep.subr.mxu0 0.0
    %4453 = vmatpush1.xpose.msra.mxu0 %v2418
    %4454 = vmatprep.subr.mxu0 0.0
    %4455 = vmatpush1.xpose.msra.mxu0 %v2421
    %4456 = vmatprep.subr.mxu0 0.0
    %4457 = vmatpush1.xpose.msra.mxu0 %v2424
    %4458 = vmatprep.subr.mxu0 0.0
    %4459 = vmatpush1.xpose.msra.mxu0 %v2427
    %4460 = vmatprep.subr.mxu0 0.0
    %4461 = vmatpush1.xpose.msra.mxu0 %v2430
    %4462 = vmatprep.subr.mxu0 0.0
    %4463 = vmatpush1.xpose.msra.mxu0 %v2433
    %4464 = vmatprep.subr.mxu0 0.0
    %4465 = vmatpush1.xpose.msra.mxu0 %v2436
    %4466 = vmatprep.subr.mxu0 0.0
    %4467 = vmatpush1.xpose.msra.mxu0 %v2439
    %4468 = vmatprep.subr.mxu0 0.0
    %4469 = vmatpush1.xpose.msra.mxu0 %v2442
    %4470 = vmatprep.subr.mxu0 0.0
    %4471 = vmatpush1.xpose.msra.mxu0 %v2445
    %4472 = vmatprep.mubr.f32.mxu0 0.0
    %4473 = vmatmul.mubr.f32.gmra.mrb[0].mxu0 %v4385
    %v4474 = vpop.f32.mrb[0].mxu0
    %v4475 = vadd.f32 0.0, %v4474
    %v4476 = vpop.f32.mrb[0].mxu0
    %v4477 = vadd.f32 0.0, %v4476
    %4478 = vmatprep.mubr.f32.mxu0 0.0
    %4479 = vmatmul.mubr.f32.gmra.mrb[0].mxu0 %v4388
    %v4480 = vpop.f32.mrb[0].mxu0
    %v4481 = vadd.f32 0.0, %v4480
    %v4482 = vpop.f32.mrb[0].mxu0
    %v4483 = vadd.f32 0.0, %v4482
    %4484 = vmatprep.mubr.f32.mxu0 0.0
    %4485 = vmatmul.mubr.f32.gmra.mrb[0].mxu0 %v4391
    %v4486 = vpop.f32.mrb[0].mxu0
    %v4487 = vadd.f32 0.0, %v4486
    %v4488 = vpop.f32.mrb[0].mxu0
    %v4489 = vadd.f32 0.0, %v4488
    %4490 = vmatprep.mubr.f32.mxu0 0.0
    %4491 = vmatmul.mubr.f32.gmra.mrb[0].mxu0 %v4394
    %v4492 = vpop.f32.mrb[0].mxu0
    %v4493 = vadd.f32 0.0, %v4492
    %v4494 = vpop.f32.mrb[0].mxu0
    %v4495 = vadd.f32 0.0, %v4494
    %4496 = vmatprep.mubr.f32.mxu0 0.0
    %4497 = vmatmul.mubr.f32.gmra.mrb[0].mxu0 %v4397
    %v4498 = vpop.f32.mrb[0].mxu0
    %v4499 = vadd.f32 0.0, %v4498
    %v4500 = vpop.f32.mrb[0].mxu0
    %v4501 = vadd.f32 0.0, %v4500
    %4502 = vmatprep.mubr.f32.mxu0 0.0
    %4503 = vmatmul.mubr.f32.gmra.mrb[0].mxu0 %v4400
    %v4504 = vpop.f32.mrb[0].mxu0
    %v4505 = vadd.f32 0.0, %v4504
    %v4506 = vpop.f32.mrb[0].mxu0
    %v4507 = vadd.f32 0.0, %v4506
    %4508 = vmatprep.mubr.f32.mxu0 0.0
    %4509 = vmatmul.mubr.f32.gmra.mrb[0].mxu0 %v4403
    %v4510 = vpop.f32.mrb[0].mxu0
    %v4511 = vadd.f32 0.0, %v4510
    %v4512 = vpop.f32.mrb[0].mxu0
    %v4513 = vadd.f32 0.0, %v4512
    %4514 = vmatprep.mubr.f32.mxu0 0.0
    %4515 = vmatmul.mubr.f32.gmra.mrb[0].mxu0 %v4406
    %v4516 = vpop.f32.mrb[0].mxu0
    %v4517 = vadd.f32 0.0, %v4516
    %v4518 = vpop.f32.mrb[0].mxu0
    %v4519 = vadd.f32 0.0, %v4518
    %4520 = vdwg.mxu0
    %v4521 = vmax.f32 %v4475, 1e-20
    %v4522 = vmax.f32 %v4477, 1e-20
    %v4523 = vmax.f32 %v4481, 1e-20
    %v4524 = vmax.f32 %v4483, 1e-20
    %v4525 = vmax.f32 %v4487, 1e-20
    %v4526 = vmax.f32 %v4489, 1e-20
    %v4527 = vmax.f32 %v4493, 1e-20
    %v4528 = vmax.f32 %v4495, 1e-20
    %v4529 = vmax.f32 %v4499, 1e-20
    %v4530 = vmax.f32 %v4501, 1e-20
    %v4531 = vmax.f32 %v4505, 1e-20
    %v4532 = vmax.f32 %v4507, 1e-20
    %v4533 = vmax.f32 %v4511, 1e-20
    %v4534 = vmax.f32 %v4513, 1e-20
    %v4535 = vmax.f32 %v4517, 1e-20
    %v4536 = vmax.f32 %v4519, 1e-20
    %v4537 = vrcp.pop %v4521
    %v4538 = vrcp.pop %v4522
    %v4539 = vrcp.pop %v4523
    %v4540 = vrcp.pop %v4524
    %v4541 = vrcp.pop %v4525
    %v4542 = vrcp.pop %v4526
    %v4543 = vrcp.pop %v4527
    %v4544 = vrcp.pop %v4528
    %v4545 = vrcp.pop %v4529
    %v4546 = vrcp.pop %v4530
    %v4547 = vrcp.pop %v4531
    %v4548 = vrcp.pop %v4532
    %v4549 = vrcp.pop %v4533
    %v4550 = vrcp.pop %v4534
    %v4551 = vrcp.pop %v4535
    %v4552 = vrcp.pop %v4536
    %v4553 = vmul.f32 %v4248, %v4537
    %v4554 = vmul.f32 %v4250, %v4538
    %v4555 = vmul.f32 %v4252, %v4539
    %v4556 = vmul.f32 %v4254, %v4540
    %v4557 = vmul.f32 %v4256, %v4541
    %v4558 = vmul.f32 %v4258, %v4542
    %v4559 = vmul.f32 %v4260, %v4543
    %v4560 = vmul.f32 %v4262, %v4544
    %v4561 = vmul.f32 %v4264, %v4545
    %v4562 = vmul.f32 %v4266, %v4546
    %v4563 = vmul.f32 %v4268, %v4547
    %v4564 = vmul.f32 %v4270, %v4548
    %v4565 = vmul.f32 %v4272, %v4549
    %v4566 = vmul.f32 %v4274, %v4550
    %v4567 = vmul.f32 %v4276, %v4551
    %v4568 = vmul.f32 %v4278, %v4552
    %4569 = vmatprep.subr.mxu0 0.0
    %4570 = vmatpush1.msra.mxu0 %v3910
    %4571 = vmatprep.subr.mxu0 0.0
    %4572 = vmatpush1.msra.mxu0 %v3911
    %4573 = vmatprep.subr.mxu0 0.0
    %4574 = vmatpush1.msra.mxu0 %v3912
    %4575 = vmatprep.subr.mxu0 0.0
    %4576 = vmatpush1.msra.mxu0 %v3913
    %4577 = vmatprep.subr.mxu0 0.0
    %4578 = vmatpush1.msra.mxu0 %v3914
    %4579 = vmatprep.subr.mxu0 0.0
    %4580 = vmatpush1.msra.mxu0 %v3915
    %4581 = vmatprep.subr.mxu0 0.0
    %4582 = vmatpush1.msra.mxu0 %v3916
    %4583 = vmatprep.subr.mxu0 0.0
    %4584 = vmatpush1.msra.mxu0 %v3917
    %4585 = vmatprep.subr.mxu0 0.0
    %4586 = vmatpush1.msra.mxu0 %v3918
    %4587 = vmatprep.subr.mxu0 0.0
    %4588 = vmatpush1.msra.mxu0 %v3919
    %4589 = vmatprep.subr.mxu0 0.0
    %4590 = vmatpush1.msra.mxu0 %v3920
    %4591 = vmatprep.subr.mxu0 0.0
    %4592 = vmatpush1.msra.mxu0 %v3921
    %4593 = vmatprep.subr.mxu0 0.0
    %4594 = vmatpush1.msra.mxu0 %v3922
    %4595 = vmatprep.subr.mxu0 0.0
    %4596 = vmatpush1.msra.mxu0 %v3923
    %4597 = vmatprep.subr.mxu0 0.0
    %4598 = vmatpush1.msra.mxu0 %v3924
    %4599 = vmatprep.subr.mxu0 0.0
    %4600 = vmatpush1.msra.mxu0 %v3925
    %4601 = vmatprep.subr.mxu0 0.0
    %4602 = vmatpush1.msra.mxu0 %v3926
    %4603 = vmatprep.subr.mxu0 0.0
    %4604 = vmatpush1.msra.mxu0 %v3927
    %4605 = vmatprep.subr.mxu0 0.0
    %4606 = vmatpush1.msra.mxu0 %v3928
    %4607 = vmatprep.subr.mxu0 0.0
    %4608 = vmatpush1.msra.mxu0 %v3929
    %4609 = vmatprep.subr.mxu0 0.0
    %4610 = vmatpush1.msra.mxu0 %v3930
    %4611 = vmatprep.subr.mxu0 0.0
    %4612 = vmatpush1.msra.mxu0 %v3931
    %4613 = vmatprep.subr.mxu0 0.0
    %4614 = vmatpush1.msra.mxu0 %v3932
    %4615 = vmatprep.subr.mxu0 0.0
    %4616 = vmatpush1.msra.mxu0 %v3933
    %4617 = vmatprep.subr.mxu0 0.0
    %4618 = vmatpush1.msra.mxu0 %v3934
    %4619 = vmatprep.subr.mxu0 0.0
    %4620 = vmatpush1.msra.mxu0 %v3935
    %4621 = vmatprep.subr.mxu0 0.0
    %4622 = vmatpush1.msra.mxu0 %v3936
    %4623 = vmatprep.subr.mxu0 0.0
    %4624 = vmatpush1.msra.mxu0 %v3937
    %4625 = vmatprep.subr.mxu0 0.0
    %4626 = vmatpush1.msra.mxu0 %v3938
    %4627 = vmatprep.subr.mxu0 0.0
    %4628 = vmatpush1.msra.mxu0 %v3939
    %4629 = vmatprep.subr.mxu0 0.0
    %4630 = vmatpush1.msra.mxu0 %v3940
    %4631 = vmatprep.subr.mxu0 0.0
    %4632 = vmatpush1.msra.mxu0 %v3941
    %4633 = vmatprep.mubr.f32.mxu0 %v4554
    %4634 = vmatmul.mubr.f32.gmra.mrb[0].mxu0 %v4553
    %v4635 = vpop.f32.mrb[0].mxu0
    %v4636 = vadd.f32 0.0, %v4635
    %v4637 = vpop.f32.mrb[0].mxu0
    %4638 = vmatprep.mubr.f32.mxu0 %v4556
    %4639 = vmatmul.mubr.f32.gmra.mrb[0].mxu0 %v4555
    %v4640 = vpop.f32.mrb[0].mxu0
    %v4641 = vadd.f32 0.0, %v4640
    %v4642 = vpop.f32.mrb[0].mxu0
    %4643 = vmatprep.mubr.f32.mxu0 %v4558
    %4644 = vmatmul.mubr.f32.gmra.mrb[0].mxu0 %v4557
    %v4645 = vpop.f32.mrb[0].mxu0
    %v4646 = vadd.f32 0.0, %v4645
    %v4647 = vpop.f32.mrb[0].mxu0
    %4648 = vmatprep.mubr.f32.mxu0 %v4560
    %4649 = vmatmul.mubr.f32.gmra.mrb[0].mxu0 %v4559
    %v4650 = vpop.f32.mrb[0].mxu0
    %v4651 = vadd.f32 0.0, %v4650
    %v4652 = vpop.f32.mrb[0].mxu0
    %4653 = vmatprep.mubr.f32.mxu0 %v4562
    %4654 = vmatmul.mubr.f32.gmra.mrb[0].mxu0 %v4561
    %v4655 = vpop.f32.mrb[0].mxu0
    %v4656 = vadd.f32 0.0, %v4655
    %v4657 = vpop.f32.mrb[0].mxu0
    %4658 = vmatprep.mubr.f32.mxu0 %v4564
    %4659 = vmatmul.mubr.f32.gmra.mrb[0].mxu0 %v4563
    %v4660 = vpop.f32.mrb[0].mxu0
    %v4661 = vadd.f32 0.0, %v4660
    %v4662 = vpop.f32.mrb[0].mxu0
    %4663 = vmatprep.mubr.f32.mxu0 %v4566
    %4664 = vmatmul.mubr.f32.gmra.mrb[0].mxu0 %v4565
    %v4665 = vpop.f32.mrb[0].mxu0
    %v4666 = vadd.f32 0.0, %v4665
    %v4667 = vpop.f32.mrb[0].mxu0
    %4668 = vmatprep.mubr.f32.mxu0 %v4568
    %4669 = vmatmul.mubr.f32.gmra.mrb[0].mxu0 %v4567
    %v4670 = vpop.f32.mrb[0].mxu0
    %v4671 = vadd.f32 0.0, %v4670
    %v4672 = vpop.f32.mrb[0].mxu0
    %4673 = vdwg.mxu0
    %s4674 = scalar_lea.vmem %s10, 224
    %v4675 = vld [vmem:[%s4674] sm:$0xff]
    %v4676 = vld [vmem:[%s4674 + $0x8] sm:$0xff]
    %v4677 = vld [vmem:[%s4674 + $0x10] sm:$0xff]
    %v4678 = vld [vmem:[%s4674 + $0x18] sm:$0xff]
    %v4680 = vsel %vm1310, %v4636, 0
    %v4683 = vsel %vm1310, %v4641, 0
    %v4686 = vsel %vm1310, %v4646, 0
    %v4689 = vsel %vm1310, %v4651, 0
    %v4692 = vsel %vm1310, %v4656, 0
    %v4695 = vsel %vm1310, %v4661, 0
    %v4698 = vsel %vm1310, %v4666, 0
    %v4701 = vsel %vm1310, %v4671, 0
    %4703 = vmatprep.subr.mxu0 0.0
    %4704 = vmatpush1.msra.mxu0 %v4675
    %4705 = vmatprep.subr.mxu0 0.0
    %4706 = vmatpush1.msra.mxu0 %v4676
    %4707 = vmatprep.subr.mxu0 0.0
    %4708 = vmatpush1.msra.mxu0 %v4677
    %4709 = vmatprep.subr.mxu0 0.0
    %4710 = vmatpush1.msra.mxu0 %v4678
    %4711 = vmatprep.subr.mxu0 0.0
    %4712 = vmatpush1.msra.mxu0 0.0
    %4713 = vmatprep.subr.mxu0 0.0
    %4714 = vmatpush1.msra.mxu0 0.0
    %4715 = vmatprep.subr.mxu0 0.0
    %4716 = vmatpush1.msra.mxu0 0.0
    %4717 = vmatprep.subr.mxu0 0.0
    %4718 = vmatpush1.msra.mxu0 0.0
    %4719 = vmatprep.subr.mxu0 0.0
    %4720 = vmatpush1.msra.mxu0 0.0
    %4721 = vmatprep.subr.mxu0 0.0
    %4722 = vmatpush1.msra.mxu0 0.0
    %4723 = vmatprep.subr.mxu0 0.0
    %4724 = vmatpush1.msra.mxu0 0.0
    %4725 = vmatprep.subr.mxu0 0.0
    %4726 = vmatpush1.msra.mxu0 0.0
    %4727 = vmatprep.subr.mxu0 0.0
    %4728 = vmatpush1.msra.mxu0 0.0
    %4729 = vmatprep.subr.mxu0 0.0
    %4730 = vmatpush1.msra.mxu0 0.0
    %4731 = vmatprep.subr.mxu0 0.0
    %4732 = vmatpush1.msra.mxu0 0.0
    %4733 = vmatprep.subr.mxu0 0.0
    %4734 = vmatpush1.msra.mxu0 0.0
    %4735 = vmatprep.subr.mxu0 0.0
    %4736 = vmatpush1.msra.mxu0 0.0
    %4737 = vmatprep.subr.mxu0 0.0
    %4738 = vmatpush1.msra.mxu0 0.0
    %4739 = vmatprep.subr.mxu0 0.0
    %4740 = vmatpush1.msra.mxu0 0.0
    %4741 = vmatprep.subr.mxu0 0.0
    %4742 = vmatpush1.msra.mxu0 0.0
    %4743 = vmatprep.subr.mxu0 0.0
    %4744 = vmatpush1.msra.mxu0 0.0
    %4745 = vmatprep.subr.mxu0 0.0
    %4746 = vmatpush1.msra.mxu0 0.0
    %4747 = vmatprep.subr.mxu0 0.0
    %4748 = vmatpush1.msra.mxu0 0.0
    %4749 = vmatprep.subr.mxu0 0.0
    %4750 = vmatpush1.msra.mxu0 0.0
    %4751 = vmatprep.subr.mxu0 0.0
    %4752 = vmatpush1.msra.mxu0 0.0
    %4753 = vmatprep.subr.mxu0 0.0
    %4754 = vmatpush1.msra.mxu0 0.0
    %4755 = vmatprep.subr.mxu0 0.0
    %4756 = vmatpush1.msra.mxu0 0.0
    %4757 = vmatprep.subr.mxu0 0.0
    %4758 = vmatpush1.msra.mxu0 0.0
    %4759 = vmatprep.subr.mxu0 0.0
    %4760 = vmatpush1.msra.mxu0 0.0
    %4761 = vmatprep.subr.mxu0 0.0
    %4762 = vmatpush1.msra.mxu0 0.0
    %4763 = vmatprep.subr.mxu0 0.0
    %4764 = vmatpush1.msra.mxu0 0.0
    %4765 = vmatprep.subr.mxu0 0.0
    %4766 = vmatpush1.msra.mxu0 0.0
    %4767 = vmatprep.mubr.f32.mxu0 0.0
    %4768 = vmatmul.mubr.f32.gmra.mrb[0].mxu0 %v4680
    %v4769 = vpop.f32.mrb[0].mxu0
    %v4770 = vadd.f32 0.0, %v4769
    %v4771 = vpop.f32.mrb[0].mxu0
    %4772 = vmatprep.mubr.f32.mxu0 0.0
    %4773 = vmatmul.mubr.f32.gmra.mrb[0].mxu0 %v4683
    %v4774 = vpop.f32.mrb[0].mxu0
    %v4775 = vadd.f32 0.0, %v4774
    %v4776 = vpop.f32.mrb[0].mxu0
    %4777 = vmatprep.mubr.f32.mxu0 0.0
    %4778 = vmatmul.mubr.f32.gmra.mrb[0].mxu0 %v4686
    %v4779 = vpop.f32.mrb[0].mxu0
    %v4780 = vadd.f32 0.0, %v4779
    %v4781 = vpop.f32.mrb[0].mxu0
    %4782 = vmatprep.mubr.f32.mxu0 0.0
    %4783 = vmatmul.mubr.f32.gmra.mrb[0].mxu0 %v4689
    %v4784 = vpop.f32.mrb[0].mxu0
    %v4785 = vadd.f32 0.0, %v4784
    %v4786 = vpop.f32.mrb[0].mxu0
    %4787 = vmatprep.mubr.f32.mxu0 0.0
    %4788 = vmatmul.mubr.f32.gmra.mrb[0].mxu0 %v4692
    %v4789 = vpop.f32.mrb[0].mxu0
    %v4790 = vadd.f32 0.0, %v4789
    %v4791 = vpop.f32.mrb[0].mxu0
    %4792 = vmatprep.mubr.f32.mxu0 0.0
    %4793 = vmatmul.mubr.f32.gmra.mrb[0].mxu0 %v4695
    %v4794 = vpop.f32.mrb[0].mxu0
    %v4795 = vadd.f32 0.0, %v4794
    %v4796 = vpop.f32.mrb[0].mxu0
    %4797 = vmatprep.mubr.f32.mxu0 0.0
    %4798 = vmatmul.mubr.f32.gmra.mrb[0].mxu0 %v4698
    %v4799 = vpop.f32.mrb[0].mxu0
    %v4800 = vadd.f32 0.0, %v4799
    %v4801 = vpop.f32.mrb[0].mxu0
    %4802 = vmatprep.mubr.f32.mxu0 0.0
    %4803 = vmatmul.mubr.f32.gmra.mrb[0].mxu0 %v4701
    %v4804 = vpop.f32.mrb[0].mxu0
    %v4805 = vadd.f32 0.0, %v4804
    %v4806 = vpop.f32.mrb[0].mxu0
    %4807 = vdwg.mxu0
    %v4808 = vadd.f32 %v3356, %v4770
    %v4809 = vadd.f32 %v3357, %v4775
    %v4810 = vadd.f32 %v3358, %v4780
    %v4811 = vadd.f32 %v3359, %v4785
    %v4812 = vadd.f32 %v3360, %v4790
    %v4813 = vadd.f32 %v3361, %v4795
    %v4814 = vadd.f32 %v3362, %v4800
    %v4815 = vadd.f32 %v3363, %v4805
    %s4816 = scalar_lea.vmem %s13, 14
    %v4817 = vld [vmem:[%s4816] sm:$0x1]
    %v4819 = vlaneseq
    %v4820 = vshrl.u32 %v4819, 7
    %v4821 = vsub.s32 0, %v4820
    %v4822 = vrot.slane %v4817, %v4821
    %v4824 = vadd.f32 %v4808, %v4822
    %v4825 = vadd.f32 %v4809, %v4822
    %v4826 = vadd.f32 %v4810, %v4822
    %v4827 = vadd.f32 %v4811, %v4822
    %v4828 = vadd.f32 %v4812, %v4822
    %v4829 = vadd.f32 %v4813, %v4822
    %v4830 = vadd.f32 %v4814, %v4822
    %v4831 = vadd.f32 %v4815, %v4822
    %s4832 = scalar_lea.vmem %s13, 15
    %v4833 = vld [vmem:[%s4832] sm:$0x1]
    %s4834 = scalar_lea.vmem %s13, 16
    %v4835 = vld [vmem:[%s4834] sm:$0x1]
    %v4836 = vsel %vm1310, %v4824, 0.0
    %4837 = vadd.xlane.f32.xlu0 %v4836
    %v4838 = vpop.xlane.xlu0 %4837
    %v4839 = vsel %vm1310, %v4825, 0.0
    %4840 = vadd.xlane.f32.xlu0 %v4839
    %v4841 = vpop.xlane.xlu0 %4840
    %v4842 = vsel %vm1310, %v4826, 0.0
    %4843 = vadd.xlane.f32.xlu0 %v4842
    %v4844 = vpop.xlane.xlu0 %4843
    %v4845 = vsel %vm1310, %v4827, 0.0
    %4846 = vadd.xlane.f32.xlu0 %v4845
    %v4847 = vpop.xlane.xlu0 %4846
    %v4848 = vsel %vm1310, %v4828, 0.0
    %4849 = vadd.xlane.f32.xlu0 %v4848
    %v4850 = vpop.xlane.xlu0 %4849
    %v4851 = vsel %vm1310, %v4829, 0.0
    %4852 = vadd.xlane.f32.xlu0 %v4851
    %v4853 = vpop.xlane.xlu0 %4852
    %v4854 = vsel %vm1310, %v4830, 0.0
    %4855 = vadd.xlane.f32.xlu0 %v4854
    %v4856 = vpop.xlane.xlu0 %4855
    %v4857 = vsel %vm1310, %v4831, 0.0
    %4858 = vadd.xlane.f32.xlu0 %v4857
    %v4859 = vpop.xlane.xlu0 %4858
    %v4860 = vmul.f32 %v4838, %v1335
    %v4861 = vmul.f32 %v4841, %v1335
    %v4862 = vmul.f32 %v4844, %v1335
    %v4863 = vmul.f32 %v4847, %v1335
    %v4864 = vmul.f32 %v4850, %v1335
    %v4865 = vmul.f32 %v4853, %v1335
    %v4866 = vmul.f32 %v4856, %v1335
    %v4867 = vmul.f32 %v4859, %v1335
    %v4868 = vsub.f32 %v4824, %v4860
    %v4869 = vsub.f32 %v4825, %v4861
    %v4870 = vsub.f32 %v4826, %v4862
    %v4871 = vsub.f32 %v4827, %v4863
    %v4872 = vsub.f32 %v4828, %v4864
    %v4873 = vsub.f32 %v4829, %v4865
    %v4874 = vsub.f32 %v4830, %v4866
    %v4875 = vsub.f32 %v4831, %v4867
    %v4876 = vmul.f32 %v4868, %v4868
    %v4877 = vmul.f32 %v4869, %v4869
    %v4878 = vmul.f32 %v4870, %v4870
    %v4879 = vmul.f32 %v4871, %v4871
    %v4880 = vmul.f32 %v4872, %v4872
    %v4881 = vmul.f32 %v4873, %v4873
    %v4882 = vmul.f32 %v4874, %v4874
    %v4883 = vmul.f32 %v4875, %v4875
    %v4884 = vsel %vm1310, %v4876, 0.0
    %4885 = vadd.xlane.f32.xlu0 %v4884
    %v4886 = vpop.xlane.xlu0 %4885
    %v4887 = vsel %vm1310, %v4877, 0.0
    %4888 = vadd.xlane.f32.xlu0 %v4887
    %v4889 = vpop.xlane.xlu0 %4888
    %v4890 = vsel %vm1310, %v4878, 0.0
    %4891 = vadd.xlane.f32.xlu0 %v4890
    %v4892 = vpop.xlane.xlu0 %4891
    %v4893 = vsel %vm1310, %v4879, 0.0
    %4894 = vadd.xlane.f32.xlu0 %v4893
    %v4895 = vpop.xlane.xlu0 %4894
    %v4896 = vsel %vm1310, %v4880, 0.0
    %4897 = vadd.xlane.f32.xlu0 %v4896
    %v4898 = vpop.xlane.xlu0 %4897
    %v4899 = vsel %vm1310, %v4881, 0.0
    %4900 = vadd.xlane.f32.xlu0 %v4899
    %v4901 = vpop.xlane.xlu0 %4900
    %v4902 = vsel %vm1310, %v4882, 0.0
    %4903 = vadd.xlane.f32.xlu0 %v4902
    %v4904 = vpop.xlane.xlu0 %4903
    %v4905 = vsel %vm1310, %v4883, 0.0
    %4906 = vadd.xlane.f32.xlu0 %v4905
    %v4907 = vpop.xlane.xlu0 %4906
    %v4908 = vmul.f32 %v4886, %v1335
    %v4909 = vmul.f32 %v4889, %v1335
    %v4910 = vmul.f32 %v4892, %v1335
    %v4911 = vmul.f32 %v4895, %v1335
    %v4912 = vmul.f32 %v4898, %v1335
    %v4913 = vmul.f32 %v4901, %v1335
    %v4914 = vmul.f32 %v4904, %v1335
    %v4915 = vmul.f32 %v4907, %v1335
    %v4916 = vadd.f32 %v4908, 1e-05
    %v4917 = vadd.f32 %v4909, 1e-05
    %v4918 = vadd.f32 %v4910, 1e-05
    %v4919 = vadd.f32 %v4911, 1e-05
    %v4920 = vadd.f32 %v4912, 1e-05
    %v4921 = vadd.f32 %v4913, 1e-05
    %v4922 = vadd.f32 %v4914, 1e-05
    %v4923 = vadd.f32 %v4915, 1e-05
    %v4924 = vrsqrt.pop %v4916
    %v4925 = vrsqrt.pop %v4917
    %v4926 = vrsqrt.pop %v4918
    %v4927 = vrsqrt.pop %v4919
    %v4928 = vrsqrt.pop %v4920
    %v4929 = vrsqrt.pop %v4921
    %v4930 = vrsqrt.pop %v4922
    %v4931 = vrsqrt.pop %v4923
    %v4932 = vmul.f32 %v4868, %v4924
    %v4933 = vmul.f32 %v4869, %v4925
    %v4934 = vmul.f32 %v4870, %v4926
    %v4935 = vmul.f32 %v4871, %v4927
    %v4936 = vmul.f32 %v4872, %v4928
    %v4937 = vmul.f32 %v4873, %v4929
    %v4938 = vmul.f32 %v4874, %v4930
    %v4939 = vmul.f32 %v4875, %v4931
    %v4941 = vlaneseq
    %v4942 = vshrl.u32 %v4941, 7
    %v4943 = vsub.s32 0, %v4942
    %v4944 = vrot.slane %v4833, %v4943
    %v4946 = vmul.f32 %v4932, %v4944
    %v4947 = vmul.f32 %v4933, %v4944
    %v4948 = vmul.f32 %v4934, %v4944
    %v4949 = vmul.f32 %v4935, %v4944
    %v4950 = vmul.f32 %v4936, %v4944
    %v4951 = vmul.f32 %v4937, %v4944
    %v4952 = vmul.f32 %v4938, %v4944
    %v4953 = vmul.f32 %v4939, %v4944
    %v4955 = vlaneseq
    %v4956 = vshrl.u32 %v4955, 7
    %v4957 = vsub.s32 0, %v4956
    %v4958 = vrot.slane %v4835, %v4957
    %v4960 = vadd.f32 %v4946, %v4958
    %v4961 = vadd.f32 %v4947, %v4958
    %v4962 = vadd.f32 %v4948, %v4958
    %v4963 = vadd.f32 %v4949, %v4958
    %v4964 = vadd.f32 %v4950, %v4958
    %v4965 = vadd.f32 %v4951, %v4958
    %v4966 = vadd.f32 %v4952, %v4958
    %v4967 = vadd.f32 %v4953, %v4958
    %s4968 = scalar_lea.vmem %s11, 32
    %v4969 = vld [vmem:[%s4968] sm:$0xff]
    %v4970 = vld [vmem:[%s4968 + $0x8] sm:$0xff]
    %v4971 = vld [vmem:[%s4968 + $0x10] sm:$0xff]
    %v4972 = vld [vmem:[%s4968 + $0x18] sm:$0xff]
    %s4973 = scalar_lea.vmem %s14, 1
    %v4974 = vld [vmem:[%s4973] sm:$0x1]
    %v4976 = vlaneseq
    %v4977 = vshrl.u32 %v4976, 7
    %v4978 = vsub.s32 0, %v4977
    %v4979 = vrot.slane %v4974, %v4978
    %v4982 = vsel %vm1310, %v4960, 0
    %v4985 = vsel %vm1310, %v4961, 0
    %v4988 = vsel %vm1310, %v4962, 0
    %v4991 = vsel %vm1310, %v4963, 0
    %v4994 = vsel %vm1310, %v4964, 0
    %v4997 = vsel %vm1310, %v4965, 0
    %v5000 = vsel %vm1310, %v4966, 0
    %v5003 = vsel %vm1310, %v4967, 0
    %5005 = vmatprep.subr.mxu0 0.0
    %5006 = vmatpush1.msra.mxu0 %v4969
    %5007 = vmatprep.subr.mxu0 0.0
    %5008 = vmatpush1.msra.mxu0 %v4970
    %5009 = vmatprep.subr.mxu0 0.0
    %5010 = vmatpush1.msra.mxu0 %v4971
    %5011 = vmatprep.subr.mxu0 0.0
    %5012 = vmatpush1.msra.mxu0 %v4972
    %5013 = vmatprep.subr.mxu0 0.0
    %5014 = vmatpush1.msra.mxu0 0.0
    %5015 = vmatprep.subr.mxu0 0.0
    %5016 = vmatpush1.msra.mxu0 0.0
    %5017 = vmatprep.subr.mxu0 0.0
    %5018 = vmatpush1.msra.mxu0 0.0
    %5019 = vmatprep.subr.mxu0 0.0
    %5020 = vmatpush1.msra.mxu0 0.0
    %5021 = vmatprep.subr.mxu0 0.0
    %5022 = vmatpush1.msra.mxu0 0.0
    %5023 = vmatprep.subr.mxu0 0.0
    %5024 = vmatpush1.msra.mxu0 0.0
    %5025 = vmatprep.subr.mxu0 0.0
    %5026 = vmatpush1.msra.mxu0 0.0
    %5027 = vmatprep.subr.mxu0 0.0
    %5028 = vmatpush1.msra.mxu0 0.0
    %5029 = vmatprep.subr.mxu0 0.0
    %5030 = vmatpush1.msra.mxu0 0.0
    %5031 = vmatprep.subr.mxu0 0.0
    %5032 = vmatpush1.msra.mxu0 0.0
    %5033 = vmatprep.subr.mxu0 0.0
    %5034 = vmatpush1.msra.mxu0 0.0
    %5035 = vmatprep.subr.mxu0 0.0
    %5036 = vmatpush1.msra.mxu0 0.0
    %5037 = vmatprep.subr.mxu0 0.0
    %5038 = vmatpush1.msra.mxu0 0.0
    %5039 = vmatprep.subr.mxu0 0.0
    %5040 = vmatpush1.msra.mxu0 0.0
    %5041 = vmatprep.subr.mxu0 0.0
    %5042 = vmatpush1.msra.mxu0 0.0
    %5043 = vmatprep.subr.mxu0 0.0
    %5044 = vmatpush1.msra.mxu0 0.0
    %5045 = vmatprep.subr.mxu0 0.0
    %5046 = vmatpush1.msra.mxu0 0.0
    %5047 = vmatprep.subr.mxu0 0.0
    %5048 = vmatpush1.msra.mxu0 0.0
    %5049 = vmatprep.subr.mxu0 0.0
    %5050 = vmatpush1.msra.mxu0 0.0
    %5051 = vmatprep.subr.mxu0 0.0
    %5052 = vmatpush1.msra.mxu0 0.0
    %5053 = vmatprep.subr.mxu0 0.0
    %5054 = vmatpush1.msra.mxu0 0.0
    %5055 = vmatprep.subr.mxu0 0.0
    %5056 = vmatpush1.msra.mxu0 0.0
    %5057 = vmatprep.subr.mxu0 0.0
    %5058 = vmatpush1.msra.mxu0 0.0
    %5059 = vmatprep.subr.mxu0 0.0
    %5060 = vmatpush1.msra.mxu0 0.0
    %5061 = vmatprep.subr.mxu0 0.0
    %5062 = vmatpush1.msra.mxu0 0.0
    %5063 = vmatprep.subr.mxu0 0.0
    %5064 = vmatpush1.msra.mxu0 0.0
    %5065 = vmatprep.subr.mxu0 0.0
    %5066 = vmatpush1.msra.mxu0 0.0
    %5067 = vmatprep.subr.mxu0 0.0
    %5068 = vmatpush1.msra.mxu0 0.0
    %5069 = vmatprep.mubr.f32.mxu0 0.0
    %5070 = vmatmul.mubr.f32.gmra.mrb[0].mxu0 %v4982
    %v5071 = vpop.f32.mrb[0].mxu0
    %v5072 = vadd.f32 %v4979, %v5071
    %v5073 = vpop.f32.mrb[0].mxu0
    %5074 = vmatprep.mubr.f32.mxu0 0.0
    %5075 = vmatmul.mubr.f32.gmra.mrb[0].mxu0 %v4985
    %v5076 = vpop.f32.mrb[0].mxu0
    %v5077 = vadd.f32 %v4979, %v5076
    %v5078 = vpop.f32.mrb[0].mxu0
    %5079 = vmatprep.mubr.f32.mxu0 0.0
    %5080 = vmatmul.mubr.f32.gmra.mrb[0].mxu0 %v4988
    %v5081 = vpop.f32.mrb[0].mxu0
    %v5082 = vadd.f32 %v4979, %v5081
    %v5083 = vpop.f32.mrb[0].mxu0
    %5084 = vmatprep.mubr.f32.mxu0 0.0
    %5085 = vmatmul.mubr.f32.gmra.mrb[0].mxu0 %v4991
    %v5086 = vpop.f32.mrb[0].mxu0
    %v5087 = vadd.f32 %v4979, %v5086
    %v5088 = vpop.f32.mrb[0].mxu0
    %5089 = vmatprep.mubr.f32.mxu0 0.0
    %5090 = vmatmul.mubr.f32.gmra.mrb[0].mxu0 %v4994
    %v5091 = vpop.f32.mrb[0].mxu0
    %v5092 = vadd.f32 %v4979, %v5091
    %v5093 = vpop.f32.mrb[0].mxu0
    %5094 = vmatprep.mubr.f32.mxu0 0.0
    %5095 = vmatmul.mubr.f32.gmra.mrb[0].mxu0 %v4997
    %v5096 = vpop.f32.mrb[0].mxu0
    %v5097 = vadd.f32 %v4979, %v5096
    %v5098 = vpop.f32.mrb[0].mxu0
    %5099 = vmatprep.mubr.f32.mxu0 0.0
    %5100 = vmatmul.mubr.f32.gmra.mrb[0].mxu0 %v5000
    %v5101 = vpop.f32.mrb[0].mxu0
    %v5102 = vadd.f32 %v4979, %v5101
    %v5103 = vpop.f32.mrb[0].mxu0
    %5104 = vmatprep.mubr.f32.mxu0 0.0
    %5105 = vmatmul.mubr.f32.gmra.mrb[0].mxu0 %v5003
    %v5106 = vpop.f32.mrb[0].mxu0
    %v5107 = vadd.f32 %v4979, %v5106
    %v5108 = vpop.f32.mrb[0].mxu0
    %5109 = vdwg.mxu0
    %v5110 = vmul.f32 %v5072, 0.5
    %v5111 = vmul.f32 %v5077, 0.5
    %v5112 = vmul.f32 %v5082, 0.5
    %v5113 = vmul.f32 %v5087, 0.5
    %v5114 = vmul.f32 %v5092, 0.5
    %v5115 = vmul.f32 %v5097, 0.5
    %v5116 = vmul.f32 %v5102, 0.5
    %v5117 = vmul.f32 %v5107, 0.5
    %v5118 = vmul.f32 %v5072, %v5072
    %v5119 = vmul.f32 %v5077, %v5077
    %v5120 = vmul.f32 %v5082, %v5082
    %v5121 = vmul.f32 %v5087, %v5087
    %v5122 = vmul.f32 %v5092, %v5092
    %v5123 = vmul.f32 %v5097, %v5097
    %v5124 = vmul.f32 %v5102, %v5102
    %v5125 = vmul.f32 %v5107, %v5107
    %v5126 = vmul.f32 %v5072, %v5118
    %v5127 = vmul.f32 %v5077, %v5119
    %v5128 = vmul.f32 %v5082, %v5120
    %v5129 = vmul.f32 %v5087, %v5121
    %v5130 = vmul.f32 %v5092, %v5122
    %v5131 = vmul.f32 %v5097, %v5123
    %v5132 = vmul.f32 %v5102, %v5124
    %v5133 = vmul.f32 %v5107, %v5125
    %v5134 = vmul.f32 %v5126, 0.044715
    %v5135 = vmul.f32 %v5127, 0.044715
    %v5136 = vmul.f32 %v5128, 0.044715
    %v5137 = vmul.f32 %v5129, 0.044715
    %v5138 = vmul.f32 %v5130, 0.044715
    %v5139 = vmul.f32 %v5131, 0.044715
    %v5140 = vmul.f32 %v5132, 0.044715
    %v5141 = vmul.f32 %v5133, 0.044715
    %v5142 = vadd.f32 %v5072, %v5134
    %v5143 = vadd.f32 %v5077, %v5135
    %v5144 = vadd.f32 %v5082, %v5136
    %v5145 = vadd.f32 %v5087, %v5137
    %v5146 = vadd.f32 %v5092, %v5138
    %v5147 = vadd.f32 %v5097, %v5139
    %v5148 = vadd.f32 %v5102, %v5140
    %v5149 = vadd.f32 %v5107, %v5141
    %v5150 = vmul.f32 %v5142, 0.7978846
    %v5151 = vmul.f32 %v5143, 0.7978846
    %v5152 = vmul.f32 %v5144, 0.7978846
    %v5153 = vmul.f32 %v5145, 0.7978846
    %v5154 = vmul.f32 %v5146, 0.7978846
    %v5155 = vmul.f32 %v5147, 0.7978846
    %v5156 = vmul.f32 %v5148, 0.7978846
    %v5157 = vmul.f32 %v5149, 0.7978846
    %v5158 = vtanh.pop %v5150
    %v5159 = vtanh.pop %v5151
    %v5160 = vtanh.pop %v5152
    %v5161 = vtanh.pop %v5153
    %v5162 = vtanh.pop %v5154
    %v5163 = vtanh.pop %v5155
    %v5164 = vtanh.pop %v5156
    %v5165 = vtanh.pop %v5157
    %v5166 = vadd.f32 %v5158, 1.0
    %v5167 = vadd.f32 %v5159, 1.0
    %v5168 = vadd.f32 %v5160, 1.0
    %v5169 = vadd.f32 %v5161, 1.0
    %v5170 = vadd.f32 %v5162, 1.0
    %v5171 = vadd.f32 %v5163, 1.0
    %v5172 = vadd.f32 %v5164, 1.0
    %v5173 = vadd.f32 %v5165, 1.0
    %v5174 = vmul.f32 %v5110, %v5166
    %v5175 = vmul.f32 %v5111, %v5167
    %v5176 = vmul.f32 %v5112, %v5168
    %v5177 = vmul.f32 %v5113, %v5169
    %v5178 = vmul.f32 %v5114, %v5170
    %v5179 = vmul.f32 %v5115, %v5171
    %v5180 = vmul.f32 %v5116, %v5172
    %v5181 = vmul.f32 %v5117, %v5173
    %s5182 = scalar_lea.vmem %s12, 128
    %v5183 = vld [vmem:[%s5182] sm:$0xff]
    %v5184 = vld [vmem:[%s5182 + $0x8] sm:$0xff]
    %v5185 = vld [vmem:[%s5182 + $0x10] sm:$0xff]
    %v5186 = vld [vmem:[%s5182 + $0x18] sm:$0xff]
    %v5187 = vld [vmem:[%s5182 + $0x20] sm:$0xff]
    %v5188 = vld [vmem:[%s5182 + $0x28] sm:$0xff]
    %v5189 = vld [vmem:[%s5182 + $0x30] sm:$0xff]
    %v5190 = vld [vmem:[%s5182 + $0x38] sm:$0xff]
    %v5191 = vld [vmem:[%s5182 + $0x40] sm:$0xff]
    %v5192 = vld [vmem:[%s5182 + $0x48] sm:$0xff]
    %v5193 = vld [vmem:[%s5182 + $0x50] sm:$0xff]
    %v5194 = vld [vmem:[%s5182 + $0x58] sm:$0xff]
    %v5195 = vld [vmem:[%s5182 + $0x60] sm:$0xff]
    %v5196 = vld [vmem:[%s5182 + $0x68] sm:$0xff]
    %v5197 = vld [vmem:[%s5182 + $0x70] sm:$0xff]
    %v5198 = vld [vmem:[%s5182 + $0x78] sm:$0xff]
    %5199 = vmatprep.subr.mxu0 0.0
    %5200 = vmatpush1.msra.mxu0 %v5183
    %5201 = vmatprep.subr.mxu0 0.0
    %5202 = vmatpush1.msra.mxu0 %v5184
    %5203 = vmatprep.subr.mxu0 0.0
    %5204 = vmatpush1.msra.mxu0 %v5185
    %5205 = vmatprep.subr.mxu0 0.0
    %5206 = vmatpush1.msra.mxu0 %v5186
    %5207 = vmatprep.subr.mxu0 0.0
    %5208 = vmatpush1.msra.mxu0 %v5187
    %5209 = vmatprep.subr.mxu0 0.0
    %5210 = vmatpush1.msra.mxu0 %v5188
    %5211 = vmatprep.subr.mxu0 0.0
    %5212 = vmatpush1.msra.mxu0 %v5189
    %5213 = vmatprep.subr.mxu0 0.0
    %5214 = vmatpush1.msra.mxu0 %v5190
    %5215 = vmatprep.subr.mxu0 0.0
    %5216 = vmatpush1.msra.mxu0 %v5191
    %5217 = vmatprep.subr.mxu0 0.0
    %5218 = vmatpush1.msra.mxu0 %v5192
    %5219 = vmatprep.subr.mxu0 0.0
    %5220 = vmatpush1.msra.mxu0 %v5193
    %5221 = vmatprep.subr.mxu0 0.0
    %5222 = vmatpush1.msra.mxu0 %v5194
    %5223 = vmatprep.subr.mxu0 0.0
    %5224 = vmatpush1.msra.mxu0 %v5195
    %5225 = vmatprep.subr.mxu0 0.0
    %5226 = vmatpush1.msra.mxu0 %v5196
    %5227 = vmatprep.subr.mxu0 0.0
    %5228 = vmatpush1.msra.mxu0 %v5197
    %5229 = vmatprep.subr.mxu0 0.0
    %5230 = vmatpush1.msra.mxu0 %v5198
    %5231 = vmatprep.subr.mxu0 0.0
    %5232 = vmatpush1.msra.mxu0 0.0
    %5233 = vmatprep.subr.mxu0 0.0
    %5234 = vmatpush1.msra.mxu0 0.0
    %5235 = vmatprep.subr.mxu0 0.0
    %5236 = vmatpush1.msra.mxu0 0.0
    %5237 = vmatprep.subr.mxu0 0.0
    %5238 = vmatpush1.msra.mxu0 0.0
    %5239 = vmatprep.subr.mxu0 0.0
    %5240 = vmatpush1.msra.mxu0 0.0
    %5241 = vmatprep.subr.mxu0 0.0
    %5242 = vmatpush1.msra.mxu0 0.0
    %5243 = vmatprep.subr.mxu0 0.0
    %5244 = vmatpush1.msra.mxu0 0.0
    %5245 = vmatprep.subr.mxu0 0.0
    %5246 = vmatpush1.msra.mxu0 0.0
    %5247 = vmatprep.subr.mxu0 0.0
    %5248 = vmatpush1.msra.mxu0 0.0
    %5249 = vmatprep.subr.mxu0 0.0
    %5250 = vmatpush1.msra.mxu0 0.0
    %5251 = vmatprep.subr.mxu0 0.0
    %5252 = vmatpush1.msra.mxu0 0.0
    %5253 = vmatprep.subr.mxu0 0.0
    %5254 = vmatpush1.msra.mxu0 0.0
    %5255 = vmatprep.subr.mxu0 0.0
    %5256 = vmatpush1.msra.mxu0 0.0
    %5257 = vmatprep.subr.mxu0 0.0
    %5258 = vmatpush1.msra.mxu0 0.0
    %5259 = vmatprep.subr.mxu0 0.0
    %5260 = vmatpush1.msra.mxu0 0.0
    %5261 = vmatprep.subr.mxu0 0.0
    %5262 = vmatpush1.msra.mxu0 0.0
    %5263 = vmatprep.mubr.f32.mxu0 0.0
    %5264 = vmatmul.mubr.f32.gmra.mrb[0].mxu0 %v5174
    %v5265 = vpop.f32.mrb[0].mxu0
    %v5266 = vadd.f32 0.0, %v5265
    %v5267 = vpop.f32.mrb[0].mxu0
    %5268 = vmatprep.mubr.f32.mxu0 0.0
    %5269 = vmatmul.mubr.f32.gmra.mrb[0].mxu0 %v5175
    %v5270 = vpop.f32.mrb[0].mxu0
    %v5271 = vadd.f32 0.0, %v5270
    %v5272 = vpop.f32.mrb[0].mxu0
    %5273 = vmatprep.mubr.f32.mxu0 0.0
    %5274 = vmatmul.mubr.f32.gmra.mrb[0].mxu0 %v5176
    %v5275 = vpop.f32.mrb[0].mxu0
    %v5276 = vadd.f32 0.0, %v5275
    %v5277 = vpop.f32.mrb[0].mxu0
    %5278 = vmatprep.mubr.f32.mxu0 0.0
    %5279 = vmatmul.mubr.f32.gmra.mrb[0].mxu0 %v5177
    %v5280 = vpop.f32.mrb[0].mxu0
    %v5281 = vadd.f32 0.0, %v5280
    %v5282 = vpop.f32.mrb[0].mxu0
    %5283 = vmatprep.mubr.f32.mxu0 0.0
    %5284 = vmatmul.mubr.f32.gmra.mrb[0].mxu0 %v5178
    %v5285 = vpop.f32.mrb[0].mxu0
    %v5286 = vadd.f32 0.0, %v5285
    %v5287 = vpop.f32.mrb[0].mxu0
    %5288 = vmatprep.mubr.f32.mxu0 0.0
    %5289 = vmatmul.mubr.f32.gmra.mrb[0].mxu0 %v5179
    %v5290 = vpop.f32.mrb[0].mxu0
    %v5291 = vadd.f32 0.0, %v5290
    %v5292 = vpop.f32.mrb[0].mxu0
    %5293 = vmatprep.mubr.f32.mxu0 0.0
    %5294 = vmatmul.mubr.f32.gmra.mrb[0].mxu0 %v5180
    %v5295 = vpop.f32.mrb[0].mxu0
    %v5296 = vadd.f32 0.0, %v5295
    %v5297 = vpop.f32.mrb[0].mxu0
    %5298 = vmatprep.mubr.f32.mxu0 0.0
    %5299 = vmatmul.mubr.f32.gmra.mrb[0].mxu0 %v5181
    %v5300 = vpop.f32.mrb[0].mxu0
    %v5301 = vadd.f32 0.0, %v5300
    %v5302 = vpop.f32.mrb[0].mxu0
    %5303 = vdwg.mxu0
    %v5304 = vadd.f32 %v4824, %v5266
    %v5305 = vadd.f32 %v4825, %v5271
    %v5306 = vadd.f32 %v4826, %v5276
    %v5307 = vadd.f32 %v4827, %v5281
    %v5308 = vadd.f32 %v4828, %v5286
    %v5309 = vadd.f32 %v4829, %v5291
    %v5310 = vadd.f32 %v4830, %v5296
    %v5311 = vadd.f32 %v4831, %v5301
    %s5312 = scalar_lea.vmem %s13, 17
    %v5313 = vld [vmem:[%s5312] sm:$0x1]
    %v5315 = vlaneseq
    %v5316 = vshrl.u32 %v5315, 7
    %v5317 = vsub.s32 0, %v5316
    %v5318 = vrot.slane %v5313, %v5317
    %v5320 = vadd.f32 %v5304, %v5318
    %v5321 = vadd.f32 %v5305, %v5318
    %v5322 = vadd.f32 %v5306, %v5318
    %v5323 = vadd.f32 %v5307, %v5318
    %v5324 = vadd.f32 %v5308, %v5318
    %v5325 = vadd.f32 %v5309, %v5318
    %v5326 = vadd.f32 %v5310, %v5318
    %v5327 = vadd.f32 %v5311, %v5318
    %s5328 = scalar_lea.vmem %s13, 18
    %v5329 = vld [vmem:[%s5328] sm:$0x1]
    %s5330 = scalar_lea.vmem %s13, 19
    %v5331 = vld [vmem:[%s5330] sm:$0x1]
    %v5332 = vsel %vm1310, %v5320, 0.0
    %5333 = vadd.xlane.f32.xlu0 %v5332
    %v5334 = vpop.xlane.xlu0 %5333
    %v5335 = vsel %vm1310, %v5321, 0.0
    %5336 = vadd.xlane.f32.xlu0 %v5335
    %v5337 = vpop.xlane.xlu0 %5336
    %v5338 = vsel %vm1310, %v5322, 0.0
    %5339 = vadd.xlane.f32.xlu0 %v5338
    %v5340 = vpop.xlane.xlu0 %5339
    %v5341 = vsel %vm1310, %v5323, 0.0
    %5342 = vadd.xlane.f32.xlu0 %v5341
    %v5343 = vpop.xlane.xlu0 %5342
    %v5344 = vsel %vm1310, %v5324, 0.0
    %5345 = vadd.xlane.f32.xlu0 %v5344
    %v5346 = vpop.xlane.xlu0 %5345
    %v5347 = vsel %vm1310, %v5325, 0.0
    %5348 = vadd.xlane.f32.xlu0 %v5347
    %v5349 = vpop.xlane.xlu0 %5348
    %v5350 = vsel %vm1310, %v5326, 0.0
    %5351 = vadd.xlane.f32.xlu0 %v5350
    %v5352 = vpop.xlane.xlu0 %5351
    %v5353 = vsel %vm1310, %v5327, 0.0
    %5354 = vadd.xlane.f32.xlu0 %v5353
    %v5355 = vpop.xlane.xlu0 %5354
    %v5356 = vmul.f32 %v5334, %v1335
    %v5357 = vmul.f32 %v5337, %v1335
    %v5358 = vmul.f32 %v5340, %v1335
    %v5359 = vmul.f32 %v5343, %v1335
    %v5360 = vmul.f32 %v5346, %v1335
    %v5361 = vmul.f32 %v5349, %v1335
    %v5362 = vmul.f32 %v5352, %v1335
    %v5363 = vmul.f32 %v5355, %v1335
    %v5364 = vsub.f32 %v5320, %v5356
    %v5365 = vsub.f32 %v5321, %v5357
    %v5366 = vsub.f32 %v5322, %v5358
    %v5367 = vsub.f32 %v5323, %v5359
    %v5368 = vsub.f32 %v5324, %v5360
    %v5369 = vsub.f32 %v5325, %v5361
    %v5370 = vsub.f32 %v5326, %v5362
    %v5371 = vsub.f32 %v5327, %v5363
    %v5372 = vmul.f32 %v5364, %v5364
    %v5373 = vmul.f32 %v5365, %v5365
    %v5374 = vmul.f32 %v5366, %v5366
    %v5375 = vmul.f32 %v5367, %v5367
    %v5376 = vmul.f32 %v5368, %v5368
    %v5377 = vmul.f32 %v5369, %v5369
    %v5378 = vmul.f32 %v5370, %v5370
    %v5379 = vmul.f32 %v5371, %v5371
    %v5380 = vsel %vm1310, %v5372, 0.0
    %5381 = vadd.xlane.f32.xlu0 %v5380
    %v5382 = vpop.xlane.xlu0 %5381
    %v5383 = vsel %vm1310, %v5373, 0.0
    %5384 = vadd.xlane.f32.xlu0 %v5383
    %v5385 = vpop.xlane.xlu0 %5384
    %v5386 = vsel %vm1310, %v5374, 0.0
    %5387 = vadd.xlane.f32.xlu0 %v5386
    %v5388 = vpop.xlane.xlu0 %5387
    %v5389 = vsel %vm1310, %v5375, 0.0
    %5390 = vadd.xlane.f32.xlu0 %v5389
    %v5391 = vpop.xlane.xlu0 %5390
    %v5392 = vsel %vm1310, %v5376, 0.0
    %5393 = vadd.xlane.f32.xlu0 %v5392
    %v5394 = vpop.xlane.xlu0 %5393
    %v5395 = vsel %vm1310, %v5377, 0.0
    %5396 = vadd.xlane.f32.xlu0 %v5395
    %v5397 = vpop.xlane.xlu0 %5396
    %v5398 = vsel %vm1310, %v5378, 0.0
    %5399 = vadd.xlane.f32.xlu0 %v5398
    %v5400 = vpop.xlane.xlu0 %5399
    %v5401 = vsel %vm1310, %v5379, 0.0
    %5402 = vadd.xlane.f32.xlu0 %v5401
    %v5403 = vpop.xlane.xlu0 %5402
    %v5404 = vmul.f32 %v5382, %v1335
    %v5405 = vmul.f32 %v5385, %v1335
    %v5406 = vmul.f32 %v5388, %v1335
    %v5407 = vmul.f32 %v5391, %v1335
    %v5408 = vmul.f32 %v5394, %v1335
    %v5409 = vmul.f32 %v5397, %v1335
    %v5410 = vmul.f32 %v5400, %v1335
    %v5411 = vmul.f32 %v5403, %v1335
    %v5412 = vadd.f32 %v5404, 1e-05
    %v5413 = vadd.f32 %v5405, 1e-05
    %v5414 = vadd.f32 %v5406, 1e-05
    %v5415 = vadd.f32 %v5407, 1e-05
    %v5416 = vadd.f32 %v5408, 1e-05
    %v5417 = vadd.f32 %v5409, 1e-05
    %v5418 = vadd.f32 %v5410, 1e-05
    %v5419 = vadd.f32 %v5411, 1e-05
    %v5420 = vrsqrt.pop %v5412
    %v5421 = vrsqrt.pop %v5413
    %v5422 = vrsqrt.pop %v5414
    %v5423 = vrsqrt.pop %v5415
    %v5424 = vrsqrt.pop %v5416
    %v5425 = vrsqrt.pop %v5417
    %v5426 = vrsqrt.pop %v5418
    %v5427 = vrsqrt.pop %v5419
    %v5428 = vmul.f32 %v5364, %v5420
    %v5429 = vmul.f32 %v5365, %v5421
    %v5430 = vmul.f32 %v5366, %v5422
    %v5431 = vmul.f32 %v5367, %v5423
    %v5432 = vmul.f32 %v5368, %v5424
    %v5433 = vmul.f32 %v5369, %v5425
    %v5434 = vmul.f32 %v5370, %v5426
    %v5435 = vmul.f32 %v5371, %v5427
    %v5437 = vlaneseq
    %v5438 = vshrl.u32 %v5437, 7
    %v5439 = vsub.s32 0, %v5438
    %v5440 = vrot.slane %v5329, %v5439
    %v5442 = vmul.f32 %v5428, %v5440
    %v5443 = vmul.f32 %v5429, %v5440
    %v5444 = vmul.f32 %v5430, %v5440
    %v5445 = vmul.f32 %v5431, %v5440
    %v5446 = vmul.f32 %v5432, %v5440
    %v5447 = vmul.f32 %v5433, %v5440
    %v5448 = vmul.f32 %v5434, %v5440
    %v5449 = vmul.f32 %v5435, %v5440
    %v5451 = vlaneseq
    %v5452 = vshrl.u32 %v5451, 7
    %v5453 = vsub.s32 0, %v5452
    %v5454 = vrot.slane %v5331, %v5453
    %v5456 = vadd.f32 %v5442, %v5454
    %v5457 = vadd.f32 %v5443, %v5454
    %v5458 = vadd.f32 %v5444, %v5454
    %v5459 = vadd.f32 %v5445, %v5454
    %v5460 = vadd.f32 %v5446, %v5454
    %v5461 = vadd.f32 %v5447, %v5454
    %v5462 = vadd.f32 %v5448, %v5454
    %v5463 = vadd.f32 %v5449, %v5454
    %v5464 = vld [vmem:[%s9] sm:$0xff]
    %v5465 = vld [vmem:[%s9 + $0x8] sm:$0xff]
    %v5466 = vld [vmem:[%s9 + $0x10] sm:$0xff]
    %v5467 = vld [vmem:[%s9 + $0x18] sm:$0xff]
    %v5469 = vsel %vm1310, %v5456, 0
    %v5472 = vsel %vm1310, %v5457, 0
    %v5475 = vsel %vm1310, %v5458, 0
    %v5478 = vsel %vm1310, %v5459, 0
    %v5481 = vsel %vm1310, %v5460, 0
    %v5484 = vsel %vm1310, %v5461, 0
    %v5487 = vsel %vm1310, %v5462, 0
    %v5490 = vsel %vm1310, %v5463, 0
    %5492 = vmatprep.subr.mxu0 0.0
    %5493 = vmatpush1.msra.mxu0 %v5464
    %5494 = vmatprep.subr.mxu0 0.0
    %5495 = vmatpush1.msra.mxu0 %v5465
    %5496 = vmatprep.subr.mxu0 0.0
    %5497 = vmatpush1.msra.mxu0 %v5466
    %5498 = vmatprep.subr.mxu0 0.0
    %5499 = vmatpush1.msra.mxu0 %v5467
    %5500 = vmatprep.subr.mxu0 0.0
    %5501 = vmatpush1.msra.mxu0 0.0
    %5502 = vmatprep.subr.mxu0 0.0
    %5503 = vmatpush1.msra.mxu0 0.0
    %5504 = vmatprep.subr.mxu0 0.0
    %5505 = vmatpush1.msra.mxu0 0.0
    %5506 = vmatprep.subr.mxu0 0.0
    %5507 = vmatpush1.msra.mxu0 0.0
    %5508 = vmatprep.subr.mxu0 0.0
    %5509 = vmatpush1.msra.mxu0 0.0
    %5510 = vmatprep.subr.mxu0 0.0
    %5511 = vmatpush1.msra.mxu0 0.0
    %5512 = vmatprep.subr.mxu0 0.0
    %5513 = vmatpush1.msra.mxu0 0.0
    %5514 = vmatprep.subr.mxu0 0.0
    %5515 = vmatpush1.msra.mxu0 0.0
    %5516 = vmatprep.subr.mxu0 0.0
    %5517 = vmatpush1.msra.mxu0 0.0
    %5518 = vmatprep.subr.mxu0 0.0
    %5519 = vmatpush1.msra.mxu0 0.0
    %5520 = vmatprep.subr.mxu0 0.0
    %5521 = vmatpush1.msra.mxu0 0.0
    %5522 = vmatprep.subr.mxu0 0.0
    %5523 = vmatpush1.msra.mxu0 0.0
    %5524 = vmatprep.subr.mxu0 0.0
    %5525 = vmatpush1.msra.mxu0 0.0
    %5526 = vmatprep.subr.mxu0 0.0
    %5527 = vmatpush1.msra.mxu0 0.0
    %5528 = vmatprep.subr.mxu0 0.0
    %5529 = vmatpush1.msra.mxu0 0.0
    %5530 = vmatprep.subr.mxu0 0.0
    %5531 = vmatpush1.msra.mxu0 0.0
    %5532 = vmatprep.subr.mxu0 0.0
    %5533 = vmatpush1.msra.mxu0 0.0
    %5534 = vmatprep.subr.mxu0 0.0
    %5535 = vmatpush1.msra.mxu0 0.0
    %5536 = vmatprep.subr.mxu0 0.0
    %5537 = vmatpush1.msra.mxu0 0.0
    %5538 = vmatprep.subr.mxu0 0.0
    %5539 = vmatpush1.msra.mxu0 0.0
    %5540 = vmatprep.subr.mxu0 0.0
    %5541 = vmatpush1.msra.mxu0 0.0
    %5542 = vmatprep.subr.mxu0 0.0
    %5543 = vmatpush1.msra.mxu0 0.0
    %5544 = vmatprep.subr.mxu0 0.0
    %5545 = vmatpush1.msra.mxu0 0.0
    %5546 = vmatprep.subr.mxu0 0.0
    %5547 = vmatpush1.msra.mxu0 0.0
    %5548 = vmatprep.subr.mxu0 0.0
    %5549 = vmatpush1.msra.mxu0 0.0
    %5550 = vmatprep.subr.mxu0 0.0
    %5551 = vmatpush1.msra.mxu0 0.0
    %5552 = vmatprep.subr.mxu0 0.0
    %5553 = vmatpush1.msra.mxu0 0.0
    %5554 = vmatprep.subr.mxu0 0.0
    %5555 = vmatpush1.msra.mxu0 0.0
    %5556 = vmatprep.mubr.f32.mxu0 0.0
    %5557 = vmatmul.mubr.f32.gmra.mrb[0].mxu0 %v5469
    %v5558 = vpop.f32.mrb[0].mxu0
    %v5559 = vadd.f32 0.0, %v5558
    %v5560 = vpop.f32.mrb[0].mxu0
    %5561 = vmatprep.mubr.f32.mxu0 0.0
    %5562 = vmatmul.mubr.f32.gmra.mrb[0].mxu0 %v5472
    %v5563 = vpop.f32.mrb[0].mxu0
    %v5564 = vadd.f32 0.0, %v5563
    %v5565 = vpop.f32.mrb[0].mxu0
    %5566 = vmatprep.mubr.f32.mxu0 0.0
    %5567 = vmatmul.mubr.f32.gmra.mrb[0].mxu0 %v5475
    %v5568 = vpop.f32.mrb[0].mxu0
    %v5569 = vadd.f32 0.0, %v5568
    %v5570 = vpop.f32.mrb[0].mxu0
    %5571 = vmatprep.mubr.f32.mxu0 0.0
    %5572 = vmatmul.mubr.f32.gmra.mrb[0].mxu0 %v5478
    %v5573 = vpop.f32.mrb[0].mxu0
    %v5574 = vadd.f32 0.0, %v5573
    %v5575 = vpop.f32.mrb[0].mxu0
    %5576 = vmatprep.mubr.f32.mxu0 0.0
    %5577 = vmatmul.mubr.f32.gmra.mrb[0].mxu0 %v5481
    %v5578 = vpop.f32.mrb[0].mxu0
    %v5579 = vadd.f32 0.0, %v5578
    %v5580 = vpop.f32.mrb[0].mxu0
    %5581 = vmatprep.mubr.f32.mxu0 0.0
    %5582 = vmatmul.mubr.f32.gmra.mrb[0].mxu0 %v5484
    %v5583 = vpop.f32.mrb[0].mxu0
    %v5584 = vadd.f32 0.0, %v5583
    %v5585 = vpop.f32.mrb[0].mxu0
    %5586 = vmatprep.mubr.f32.mxu0 0.0
    %5587 = vmatmul.mubr.f32.gmra.mrb[0].mxu0 %v5487
    %v5588 = vpop.f32.mrb[0].mxu0
    %v5589 = vadd.f32 0.0, %v5588
    %v5590 = vpop.f32.mrb[0].mxu0
    %5591 = vmatprep.mubr.f32.mxu0 0.0
    %5592 = vmatmul.mubr.f32.gmra.mrb[0].mxu0 %v5490
    %v5593 = vpop.f32.mrb[0].mxu0
    %v5594 = vadd.f32 0.0, %v5593
    %v5595 = vpop.f32.mrb[0].mxu0
    %5596 = vdwg.mxu0
    %5597 = vst [vmem:[%s15] sm:$0xff] %v5559
    %5598 = vst [vmem:[%s15 + $0x8] sm:$0xff] %v5564
    %5599 = vst [vmem:[%s15 + $0x10] sm:$0xff] %v5569
    %5600 = vst [vmem:[%s15 + $0x18] sm:$0xff] %v5574
    %5601 = vst [vmem:[%s15 + $0x20] sm:$0xff] %v5579
    %5602 = vst [vmem:[%s15 + $0x28] sm:$0xff] %v5584
    %5603 = vst [vmem:[%s15 + $0x30] sm:$0xff] %v5589
    %5604 = vst [vmem:[%s15 + $0x38] sm:$0xff] %v5594
    %5605 = vset.pattern.permute.xlu0 0
    %5606 = vperm.xlu0 %5605, %v62
    %v5607 = vpop.permute.xlu0 %5606
    %5608 = vset.pattern.permute.xlu0 0
    %5609 = vperm.xlu0 %5608, %v63
    %v5610 = vpop.permute.xlu0 %5609
    %5611 = vset.pattern.permute.xlu0 0
    %5612 = vperm.xlu0 %5611, %v64
    %v5613 = vpop.permute.xlu0 %5612
    %5614 = vset.pattern.permute.xlu0 0
    %5615 = vperm.xlu0 %5614, %v65
    %v5616 = vpop.permute.xlu0 %5615
    %5617 = vset.pattern.permute.xlu0 0
    %5618 = vperm.xlu0 %5617, %v66
    %v5619 = vpop.permute.xlu0 %5618
    %5620 = vset.pattern.permute.xlu0 0
    %5621 = vperm.xlu0 %5620, %v67
    %v5622 = vpop.permute.xlu0 %5621
    %5623 = vset.pattern.permute.xlu0 0
    %5624 = vperm.xlu0 %5623, %v68
    %v5625 = vpop.permute.xlu0 %5624
    %5626 = vset.pattern.permute.xlu0 0
    %5627 = vperm.xlu0 %5626, %v69
    %v5628 = vpop.permute.xlu0 %5627
    %vm5629 = vcmp.eq.s32.totalorder %v71, %v5607
    %vm5630 = vcmp.eq.s32.totalorder %v71, %v5610
    %vm5631 = vcmp.eq.s32.totalorder %v71, %v5613
    %vm5632 = vcmp.eq.s32.totalorder %v71, %v5616
    %vm5633 = vcmp.eq.s32.totalorder %v71, %v5619
    %vm5634 = vcmp.eq.s32.totalorder %v71, %v5622
    %vm5635 = vcmp.eq.s32.totalorder %v71, %v5625
    %vm5636 = vcmp.eq.s32.totalorder %v71, %v5628
    %v5637 = vsel %vm5629, 1, 0
    %v5638 = vsel %vm5630, 1, 0
    %v5639 = vsel %vm5631, 1, 0
    %v5640 = vsel %vm5632, 1, 0
    %v5641 = vsel %vm5633, 1, 0
    %v5642 = vsel %vm5634, 1, 0
    %v5643 = vsel %vm5635, 1, 0
    %v5644 = vsel %vm5636, 1, 0
    %v5645 = vcvt.s32.f32 %v5637
    %v5646 = vcvt.s32.f32 %v5638
    %v5647 = vcvt.s32.f32 %v5639
    %v5648 = vcvt.s32.f32 %v5640
    %v5649 = vcvt.s32.f32 %v5641
    %v5650 = vcvt.s32.f32 %v5642
    %v5651 = vcvt.s32.f32 %v5643
    %v5652 = vcvt.s32.f32 %v5644
    %5653 = vmax.xlane.f32.xlu0 %v5559
    %v5654 = vpop.xlane.xlu0 %5653
    %5655 = vmax.xlane.f32.xlu0 %v5564
    %v5656 = vpop.xlane.xlu0 %5655
    %5657 = vmax.xlane.f32.xlu0 %v5569
    %v5658 = vpop.xlane.xlu0 %5657
    %5659 = vmax.xlane.f32.xlu0 %v5574
    %v5660 = vpop.xlane.xlu0 %5659
    %5661 = vmax.xlane.f32.xlu0 %v5579
    %v5662 = vpop.xlane.xlu0 %5661
    %5663 = vmax.xlane.f32.xlu0 %v5584
    %v5664 = vpop.xlane.xlu0 %5663
    %5665 = vmax.xlane.f32.xlu0 %v5589
    %v5666 = vpop.xlane.xlu0 %5665
    %5667 = vmax.xlane.f32.xlu0 %v5594
    %v5668 = vpop.xlane.xlu0 %5667
    %v5669 = vsub.f32 %v5559, %v5654
    %v5670 = vsub.f32 %v5564, %v5656
    %v5671 = vsub.f32 %v5569, %v5658
    %v5672 = vsub.f32 %v5574, %v5660
    %v5673 = vsub.f32 %v5579, %v5662
    %v5674 = vsub.f32 %v5584, %v5664
    %v5675 = vsub.f32 %v5589, %v5666
    %v5676 = vsub.f32 %v5594, %v5668
    %v5677 = vmul.f32 %v5669, 1.442695
    %v5678 = vpow.pop %v5677
    %v5679 = vmul.f32 %v5670, 1.442695
    %v5680 = vpow.pop %v5679
    %v5681 = vmul.f32 %v5671, 1.442695
    %v5682 = vpow.pop %v5681
    %v5683 = vmul.f32 %v5672, 1.442695
    %v5684 = vpow.pop %v5683
    %v5685 = vmul.f32 %v5673, 1.442695
    %v5686 = vpow.pop %v5685
    %v5687 = vmul.f32 %v5674, 1.442695
    %v5688 = vpow.pop %v5687
    %v5689 = vmul.f32 %v5675, 1.442695
    %v5690 = vpow.pop %v5689
    %v5691 = vmul.f32 %v5676, 1.442695
    %v5692 = vpow.pop %v5691
    %5693 = vadd.xlane.f32.xlu0 %v5678
    %v5694 = vpop.xlane.xlu0 %5693
    %5695 = vadd.xlane.f32.xlu0 %v5680
    %v5696 = vpop.xlane.xlu0 %5695
    %5697 = vadd.xlane.f32.xlu0 %v5682
    %v5698 = vpop.xlane.xlu0 %5697
    %5699 = vadd.xlane.f32.xlu0 %v5684
    %v5700 = vpop.xlane.xlu0 %5699
    %5701 = vadd.xlane.f32.xlu0 %v5686
    %v5702 = vpop.xlane.xlu0 %5701
    %5703 = vadd.xlane.f32.xlu0 %v5688
    %v5704 = vpop.xlane.xlu0 %5703
    %5705 = vadd.xlane.f32.xlu0 %v5690
    %v5706 = vpop.xlane.xlu0 %5705
    %5707 = vadd.xlane.f32.xlu0 %v5692
    %v5708 = vpop.xlane.xlu0 %5707
    %v5709 = vlog2.pop %v5694
    %v5710 = vmul.f32 %v5709, 0.6931472
    %v5711 = vlog2.pop %v5696
    %v5712 = vmul.f32 %v5711, 0.6931472
    %v5713 = vlog2.pop %v5698
    %v5714 = vmul.f32 %v5713, 0.6931472
    %v5715 = vlog2.pop %v5700
    %v5716 = vmul.f32 %v5715, 0.6931472
    %v5717 = vlog2.pop %v5702
    %v5718 = vmul.f32 %v5717, 0.6931472
    %v5719 = vlog2.pop %v5704
    %v5720 = vmul.f32 %v5719, 0.6931472
    %v5721 = vlog2.pop %v5706
    %v5722 = vmul.f32 %v5721, 0.6931472
    %v5723 = vlog2.pop %v5708
    %v5724 = vmul.f32 %v5723, 0.6931472
    %v5725 = vadd.f32 %v5654, %v5710
    %v5726 = vadd.f32 %v5656, %v5712
    %v5727 = vadd.f32 %v5658, %v5714
    %v5728 = vadd.f32 %v5660, %v5716
    %v5729 = vadd.f32 %v5662, %v5718
    %v5730 = vadd.f32 %v5664, %v5720
    %v5731 = vadd.f32 %v5666, %v5722
    %v5732 = vadd.f32 %v5668, %v5724
    %v5733 = vmul.f32 %v5645, %v5559
    %v5734 = vmul.f32 %v5646, %v5564
    %v5735 = vmul.f32 %v5647, %v5569
    %v5736 = vmul.f32 %v5648, %v5574
    %v5737 = vmul.f32 %v5649, %v5579
    %v5738 = vmul.f32 %v5650, %v5584
    %v5739 = vmul.f32 %v5651, %v5589
    %v5740 = vmul.f32 %v5652, %v5594
    %5741 = vadd.xlane.f32.xlu0 %v5733
    %v5742 = vpop.xlane.xlu0 %5741
    %5743 = vadd.xlane.f32.xlu0 %v5734
    %v5744 = vpop.xlane.xlu0 %5743
    %5745 = vadd.xlane.f32.xlu0 %v5735
    %v5746 = vpop.xlane.xlu0 %5745
    %5747 = vadd.xlane.f32.xlu0 %v5736
    %v5748 = vpop.xlane.xlu0 %5747
    %5749 = vadd.xlane.f32.xlu0 %v5737
    %v5750 = vpop.xlane.xlu0 %5749
    %5751 = vadd.xlane.f32.xlu0 %v5738
    %v5752 = vpop.xlane.xlu0 %5751
    %5753 = vadd.xlane.f32.xlu0 %v5739
    %v5754 = vpop.xlane.xlu0 %5753
    %5755 = vadd.xlane.f32.xlu0 %v5740
    %v5756 = vpop.xlane.xlu0 %5755
    %5757 = vadd.xlane.f32.xlu0 %v5645
    %v5758 = vpop.xlane.xlu0 %5757
    %5759 = vadd.xlane.f32.xlu0 %v5646
    %v5760 = vpop.xlane.xlu0 %5759
    %5761 = vadd.xlane.f32.xlu0 %v5647
    %v5762 = vpop.xlane.xlu0 %5761
    %5763 = vadd.xlane.f32.xlu0 %v5648
    %v5764 = vpop.xlane.xlu0 %5763
    %5765 = vadd.xlane.f32.xlu0 %v5649
    %v5766 = vpop.xlane.xlu0 %5765
    %5767 = vadd.xlane.f32.xlu0 %v5650
    %v5768 = vpop.xlane.xlu0 %5767
    %5769 = vadd.xlane.f32.xlu0 %v5651
    %v5770 = vpop.xlane.xlu0 %5769
    %5771 = vadd.xlane.f32.xlu0 %v5652
    %v5772 = vpop.xlane.xlu0 %5771
    %v5773 = vsub.f32 %v5725, %v5742
    %v5774 = vsub.f32 %v5726, %v5744
    %v5775 = vsub.f32 %v5727, %v5746
    %v5776 = vsub.f32 %v5728, %v5748
    %v5777 = vsub.f32 %v5729, %v5750
    %v5778 = vsub.f32 %v5730, %v5752
    %v5779 = vsub.f32 %v5731, %v5754
    %v5780 = vsub.f32 %v5732, %v5756
    %v5781 = vmul.f32 %v5773, %v5758
    %v5782 = vmul.f32 %v5774, %v5760
    %v5783 = vmul.f32 %v5775, %v5762
    %v5784 = vmul.f32 %v5776, %v5764
    %v5785 = vmul.f32 %v5777, %v5766
    %v5786 = vmul.f32 %v5778, %v5768
    %v5787 = vmul.f32 %v5779, %v5770
    %v5788 = vmul.f32 %v5780, %v5772
    %v5789 = vadd.f32 %v5781, %v5782
    %v5790 = vadd.f32 %v5789, %v5783
    %v5791 = vadd.f32 %v5790, %v5784
    %v5792 = vadd.f32 %v5791, %v5785
    %v5793 = vadd.f32 %v5792, %v5786
    %v5794 = vadd.f32 %v5793, %v5787
    %v5795 = vadd.f32 %v5794, %v5788
    %v5796 = vrot.slane %v5795, 4
    %v5797 = vadd.f32 %v5795, %v5796
    %v5798 = vrot.slane %v5797, 2
    %v5799 = vadd.f32 %v5797, %v5798
    %v5800 = vrot.slane %v5799, 1
    %v5801 = vadd.f32 %v5799, %v5800
    %v5802 = vadd.f32 %v5758, %v5760
    %v5803 = vadd.f32 %v5802, %v5762
    %v5804 = vadd.f32 %v5803, %v5764
    %v5805 = vadd.f32 %v5804, %v5766
    %v5806 = vadd.f32 %v5805, %v5768
    %v5807 = vadd.f32 %v5806, %v5770
    %v5808 = vadd.f32 %v5807, %v5772
    %v5809 = vrot.slane %v5808, 4
    %v5810 = vadd.f32 %v5808, %v5809
    %v5811 = vrot.slane %v5810, 2
    %v5812 = vadd.f32 %v5810, %v5811
    %v5813 = vrot.slane %v5812, 1
    %v5814 = vadd.f32 %v5812, %v5813
    %v5815 = vmax.f32 %v5814, 1.0
    %v5816 = vrcp.pop %v5815
    %v5817 = vmul.f32 %v5801, %v5816
    %vm5818 = vcmask 0
    %5819 = vst.msk [vmem:[#allocation2] sm:$0x1] %vm5818, %v5817
    // Predicated region
    $region62: #{caption_model_forward.1} parent=1 // pred_check
      _
    $region63: #{caption_model_forward.1} parent=1 // pred_check_branch
      %5821 = sbr.rel (0) target = $region65
    $region64: #{caption_model_forward.1} parent=1 // pred_region
      _
    $region65: #{caption_model_forward.1} parent=1 // pred_fallthru
      _
    // Predicated region
    $region66: #{caption_model_forward.1} parent=1 // pred_check
      _
    $region67: #{caption_model_forward.1} parent=1 // pred_check_branch
      %5823 = sbr.rel (0) target = $region69
    $region68: #{caption_model_forward.1} parent=1 // pred_region
      %s5825 = ssub.s32 16, 16
      %5826 = vsyncadd [#allocation3], %s5825
      %s5828 = sshll.u32 [#allocation2], 4
      %s5829 = int_to_ptr.vmem [resolvable:$true] %s5828
      %5831 = dma.vmem_to_hbm [thread:$0]  %s5829, 16, %s16, [#allocation3]
    $region69: #{caption_model_forward.1} parent=1 // pred_fallthru
      _
    // Predicated region
    $region70: #{caption_model_forward.1} parent=1 // pred_check
      _
    $region71: #{caption_model_forward.1} parent=1 // pred_check_branch
      %5833 = sbr.rel (0) target = $region73
    $region72: #{caption_model_forward.1} parent=1 // pred_region
      _
    $region73: #{caption_model_forward.1} parent=1 // pred_fallthru
      _
    // Predicated region
    $region74: #{caption_model_forward.1} parent=1 // pred_check
      _
    $region75: #{caption_model_forward.1} parent=1 // pred_check_branch
      %5835 = sbr.rel (0) target = $region77
    $region76: #{caption_model_forward.1} parent=1 // pred_region
      %5836 = dma.done [#allocation3], 16
    $region77: #{caption_model_forward.1} parent=1 // pred_fallthru
      _
    %5837 = vsyncpa [#allocation3], 1

</llo_original>
